<compile_context>
chip_gen: v7x
topology: tpu7x:2x2x1
jax: 0.10.0
libtpu: 0.0.40
codegen_flags: <defaults>
</compile_context>

<pallas_src>
import jax
import jax.numpy as jnp
from jax import lax
from jax.experimental import pallas as pl
from jax.experimental.pallas import tpu as pltpu


def _round_up(x, m):
    return (x + m - 1) // m * m


# Real / padded (lane-friendly) feature widths at each layer boundary:
#   x -> conv1 -> conv2 -> fc1 -> fc2 -> fc1' -> fc2' -> deconv2 -> deconv1
_REAL_DIMS = [784, 1152, 256, 96, 32, 96, 256, 1152, 784]
_PAD_DIMS = [896, 1152, 256, 128, 128, 128, 256, 1152, 896]   # 896 = 7 * 128


# ---------------------------------------------------------------------------
# Fused forward kernel: 8 x (bf16 matmul + f32 bias + activation), all in VMEM
# ---------------------------------------------------------------------------
def _fused_autoencoder_kernel(x_ref,
                              w1, b1, w2, b2, w3, b3, w4, b4,
                              w5, b5, w6, b6, w7, b7, w8, b8,
                              o_ref):
    def dense(h, w_ref, b_ref):
        # bf16 operands on the MXU, f32 accumulate; bias add stays f32.
        y = jnp.dot(h.astype(jnp.bfloat16), w_ref[...],
                    preferred_element_type=jnp.float32)
        return y + b_ref[...]                      # (1, N) broadcasts over (BT, N)

    h = x_ref[...]                                 # (BT, 896) f32
    h = jnp.maximum(dense(h, w1, b1), 0.0)         # conv1   -> (BT, 1152)
    h = jnp.maximum(dense(h, w2, b2), 0.0)         # conv2   -> (BT, 256)
    h = jnp.maximum(dense(h, w3, b3), 0.0)         # enc fc1 -> (BT, 128)
    h = jnp.maximum(dense(h, w4, b4), 0.0)         # enc fc2 -> (BT, 128)
    h = jnp.maximum(dense(h, w5, b5), 0.0)         # dec fc1 -> (BT, 128)
    h = jnp.maximum(dense(h, w6, b6), 0.0)         # dec fc2 -> (BT, 256)
    h = jnp.maximum(dense(h, w7, b7), 0.0)         # deconv2 -> (BT, 1152)
    y = dense(h, w8, b8)                           # deconv1 -> (BT, 896)
    # Numerically safe sigmoid: clamp so exp(-y) cannot overflow to inf, then
    # exp on the EUP and an approximate reciprocal off the VALU critical path.
    y = jnp.clip(y, -30.0, 30.0)
    o_ref[...] = pl.reciprocal(1.0 + jnp.exp(-y), approx=True)


def _max_batch_tile():
    """512-row tiles where VMEM is plentiful (v5e/v6e: 128 MiB), else 256 (v7x)."""
    try:
        vmem_bytes = pltpu.get_tpu_info().vmem_capacity_bytes
        return 512 if vmem_bytes >= 96 * 1024 * 1024 else 256
    except Exception:
        return 256


def autoencoder_forward(fused_params, x):
    """x: [B, 1, 28, 28] float32 (NCHW)  ->  [B, 1, 28, 28] in [0, 1]."""
    assert x.shape[1:] == (1, 28, 28), x.shape
    B = x.shape[0]
    d_in, d_out = _PAD_DIMS[0], _PAD_DIMS[-1]

    xf = x.reshape(B, 784).astype(jnp.float32)      # free metadata reshape (C=1)
    xf = jnp.pad(xf, ((0, 0), (0, d_in - 784)))     # 784 -> 896 lane-dense

    # Batch tile: >= 2 grid steps whenever possible so the "parallel" batch
    # axis can shard across v7x's two TensorCores; cap by VMEM generation.
    Bp8 = _round_up(B, 8)
    if Bp8 >= 16:
        BT = min(_max_batch_tile(), _round_up((Bp8 + 1) // 2, 8))
    else:
        BT = Bp8
    Bp = _round_up(B, BT)
    if Bp != B:
        xf = jnp.pad(xf, ((0, Bp - B), (0, 0)))

    weights, biases = fused_params["w"], fused_params["b"]

    in_specs = [pl.BlockSpec((BT, d_in), lambda i: (i, 0))]
    operands = [xf]
    for w, b in zip(weights, biases):
        # Constant index maps: each weight/bias block is DMA'd once per core
        # and stays VMEM-resident across all batch tiles.
        in_specs.append(pl.BlockSpec(w.shape, lambda i: (0, 0)))
        in_specs.append(pl.BlockSpec(b.shape, lambda i: (0, 0)))
        operands.extend([w, b])

    vmem_limit = (64 if BT > 256 else 48) * 1024 * 1024   # v7x-safe at BT<=256

    out = pl.pallas_call(
        _fused_autoencoder_kernel,
        out_shape=jax.ShapeDtypeStruct((Bp, d_out), jnp.float32),
        grid=(Bp // BT,),
        in_specs=in_specs,
        out_specs=pl.BlockSpec((BT, d_out), lambda i: (i, 0)),
        compiler_params=pltpu.CompilerParams(
            dimension_semantics=("parallel",),
            vmem_limit_bytes=vmem_limit,
        ),
    )(*operands)

    # Drop batch padding and the 112 padded output lanes (they hold sigmoid(0)).
    return out[:B, :784].reshape(B, 1, 28, 28)


# ---------------------------------------------------------------------------
# One-time parameter preparation (hoisted out of the forward pass)
# ---------------------------------------------------------------------------
def prepare_params(params):
    """Lower every layer to a zero-padded dense (in_features, out_features) matmul.

    Conv / ConvTranspose layers are linear maps over fixed spatial shapes, so
    each is materialised exactly as a dense matrix acting on the NCHW-flattened
    activation (identity-basis trick), with the conv bias repeated per spatial
    position.  Feature dims are padded to _PAD_DIMS; padded rows/cols/biases
    are zero so padded lanes stay exactly zero through the ReLU chain.
    Weights are stored in bf16 (MXU operands); biases stay f32.
    """
    prec = lax.Precision.HIGHEST

    def conv_matrix(w, b, H, W, stride):
        Cout, Cin, K, _ = w.shape
        n_in = Cin * H * W
        basis = jnp.eye(n_in, dtype=jnp.float32).reshape(n_in, Cin, H, W)
        y = lax.conv_general_dilated(
            basis, w, (stride, stride), "VALID",
            dimension_numbers=("NCHW", "OIHW", "NCHW"), precision=prec)
        _, _, Ho, Wo = y.shape
        return y.reshape(n_in, Cout * Ho * Wo), jnp.repeat(b, Ho * Wo)

    def convT_matrix(w, b, H, W, stride, out_pad):
        Cin, Cout, K, _ = w.shape
        n_in = Cin * H * W
        basis = jnp.eye(n_in, dtype=jnp.float32).reshape(n_in, Cin, H, W)
        w_eq = jnp.flip(w, (2, 3)).transpose(1, 0, 2, 3)   # OIHW
        y = lax.conv_general_dilated(
            basis, w_eq, (1, 1),
            ((K - 1, K - 1 + out_pad), (K - 1, K - 1 + out_pad)),
            lhs_dilation=(stride, stride),
            dimension_numbers=("NCHW", "OIHW", "NCHW"), precision=prec)
        _, _, Ho, Wo = y.shape
        return y.reshape(n_in, Cout * Ho * Wo), jnp.repeat(b, Ho * Wo)

    w1, v1 = conv_matrix(*params["enc_conv1"], 28, 28, 2)       # 784  -> 1152
    w2, v2 = conv_matrix(*params["enc_conv2"], 12, 12, 2)       # 1152 -> 256
    w3, v3 = params["enc_fc1"]                                  # 256  -> 96
    w4, v4 = params["enc_fc2"]                                  # 96   -> 32
    w5, v5 = params["dec_fc1"]                                  # 32   -> 96
    w6, v6 = params["dec_fc2"]                                  # 96   -> 256
    w7, v7 = convT_matrix(*params["dec_conv2"], 4, 4, 2, 1)     # 256  -> 1152
    w8, v8 = convT_matrix(*params["dec_conv1"], 12, 12, 2, 1)   # 1152 -> 784

    raw_w = [w1, w2, w3, w4, w5, w6, w7, w8]
    raw_b = [v1, v2, v3, v4, v5, v6, v7, v8]

    ws, bs = [], []
    for i, (w, b) in enumerate(zip(raw_w, raw_b)):
        kp, np_ = _PAD_DIMS[i], _PAD_DIMS[i + 1]
        w = jnp.pad(w.astype(jnp.float32),
                    ((0, kp - w.shape[0]), (0, np_ - w.shape[1])))
        b = jnp.pad(b.astype(jnp.float32), (0, np_ - b.shape[0])).reshape(1, np_)
        ws.append(w.astype(jnp.bfloat16))   # bf16 MXU operands (halves DMA/VMEM)
        bs.append(b)                        # biases stay f32
    return {"w": tuple(ws), "b": tuple(bs)}


# ---------------------------------------------------------------------------
# Parameters (deterministic, PyTorch-default-style uniform init)
# ---------------------------------------------------------------------------
def init_params(key):
    def lin(k, fan_in, fan_out):
        k1, k2 = jax.random.split(k)
        bound = 1.0 / (fan_in ** 0.5)
        w = jax.random.uniform(k1, (fan_in, fan_out), jnp.float32, -bound, bound)
        b = jax.random.uniform(k2, (fan_out,), jnp.float32, -bound, bound)
        return w, b

    def conv(k, cout, cin, K):
        k1, k2 = jax.random.split(k)
        bound = 1.0 / ((cin * K * K) ** 0.5)
        w = jax.random.uniform(k1, (cout, cin, K, K), jnp.float32, -bound, bound)
        b = jax.random.uniform(k2, (cout,), jnp.float32, -bound, bound)
        return w, b

    def convT(k, cin, cout, K):
        k1, k2 = jax.random.split(k)
        bound = 1.0 / ((cout * K * K) ** 0.5)
        w = jax.random.uniform(k1, (cin, cout, K, K), jnp.float32, -bound, bound)
        b = jax.random.uniform(k2, (cout,), jnp.float32, -bound, bound)
        return w, b

    keys = jax.random.split(key, 8)
    return {
        "enc_conv1": conv(keys[0], 8, 1, 5),
        "enc_conv2": conv(keys[1], 16, 8, 5),
        "enc_fc1": lin(keys[2], 256, 96),
        "enc_fc2": lin(keys[3], 96, 32),
        "dec_fc1": lin(keys[4], 32, 96),
        "dec_fc2": lin(keys[5], 96, 256),
        "dec_conv2": convT(keys[6], 16, 8, 5),
        "dec_conv1": convT(keys[7], 8, 1, 5),
    }


# ---------------------------------------------------------------------------
# Pure-JAX reference (mirrors the PyTorch module exactly) for validation
# ---------------------------------------------------------------------------
def reference_forward(params, x):
    prec = lax.Precision.HIGHEST

    def conv(h, w, b, stride):
        y = lax.conv_general_dilated(
            h, w, (stride, stride), "VALID",
            dimension_numbers=("NCHW", "OIHW", "NCHW"), precision=prec)
        return y + b[None, :, None, None]

    def convT(h, w, b, stride, out_pad):
        K = w.shape[2]
        w_eq = jnp.flip(w, (2, 3)).transpose(1, 0, 2, 3)
        y = lax.conv_general_dilated(
            h, w_eq, (1, 1),
            ((K - 1, K - 1 + out_pad), (K - 1, K - 1 + out_pad)),
            lhs_dilation=(stride, stride),
            dimension_numbers=("NCHW", "OIHW", "NCHW"), precision=prec)
        return y + b[None, :, None, None]

    def fc(h, w, b):
        return jnp.dot(h, w, precision=prec) + b

    B = x.shape[0]
    h = jax.nn.relu(conv(x, *params["enc_conv1"], 2))        # [B, 8, 12, 12]
    h = jax.nn.relu(conv(h, *params["enc_conv2"], 2))        # [B, 16, 4, 4]
    h = h.reshape(B, 256)
    h = jax.nn.relu(fc(h, *params["enc_fc1"]))               # [B, 96]
    h = jax.nn.relu(fc(h, *params["enc_fc2"]))               # [B, 32]
    h = jax.nn.relu(fc(h, *params["dec_fc1"]))               # [B, 96]
    h = jax.nn.relu(fc(h, *params["dec_fc2"]))               # [B, 256]
    h = h.reshape(B, 16, 4, 4)
    h = jax.nn.relu(convT(h, *params["dec_conv2"], 2, 1))    # [B, 8, 12, 12]
    h = jax.nn.sigmoid(convT(h, *params["dec_conv1"], 2, 1)) # [B, 1, 28, 28]
    return h


if __name__ == "__main__":
    key = jax.random.PRNGKey(0)
    kp, kx = jax.random.split(key)
    params = init_params(kp)
    fused = prepare_params(params)          # one-time: done OUTSIDE the forward

    # 28x28 input is required by the module (flatten to 256 after two convs).
    x = jax.random.uniform(kx, (2, 1, 28, 28), jnp.float32)

    fwd = jax.jit(autoencoder_forward)
    out = jax.block_until_ready(fwd(fused, x))

    assert out.shape == (2, 1, 28, 28), out.shape
    assert out.dtype == jnp.float32
    assert bool(jnp.all(jnp.isfinite(out)))
    # sigmoid output (approx-reciprocal epilogue => tiny slack around [0, 1])
    assert float(jnp.min(out)) >= -1e-3 and float(jnp.max(out)) <= 1.0 + 1e-3

    ref = reference_forward(params, x)
    err = float(jnp.max(jnp.abs(out - ref)))
    # bf16 MXU operands + approximate-reciprocal sigmoid => slightly looser tol.
    assert err < 2.5e-2, f"mismatch vs reference: {err}"

    print("KERNEL_OK")
</pallas_src>

<mosaic_0001>
module attributes {stable_mosaic.version = 11 : i64} {
  func.func @_fused_autoencoder_kernel(%arg0: i32, %arg1: memref<8x896xf32, #tpu.memory_space<vmem>>, %arg2: memref<896x1152xbf16, #tpu.memory_space<vmem>>, %arg3: memref<1x1152xf32, #tpu.memory_space<vmem>>, %arg4: memref<1152x256xbf16, #tpu.memory_space<vmem>>, %arg5: memref<1x256xf32, #tpu.memory_space<vmem>>, %arg6: memref<256x128xbf16, #tpu.memory_space<vmem>>, %arg7: memref<1x128xf32, #tpu.memory_space<vmem>>, %arg8: memref<128x128xbf16, #tpu.memory_space<vmem>>, %arg9: memref<1x128xf32, #tpu.memory_space<vmem>>, %arg10: memref<128x128xbf16, #tpu.memory_space<vmem>>, %arg11: memref<1x128xf32, #tpu.memory_space<vmem>>, %arg12: memref<128x256xbf16, #tpu.memory_space<vmem>>, %arg13: memref<1x256xf32, #tpu.memory_space<vmem>>, %arg14: memref<256x1152xbf16, #tpu.memory_space<vmem>>, %arg15: memref<1x1152xf32, #tpu.memory_space<vmem>>, %arg16: memref<1152x896xbf16, #tpu.memory_space<vmem>>, %arg17: memref<1x896xf32, #tpu.memory_space<vmem>>, %arg18: memref<8x896xf32, #tpu.memory_space<vmem>>) attributes {dimension_semantics = [#tpu.dimension_semantics<parallel>], iteration_bounds = array<i64: 1>, scalar_prefetch = 0 : i64, scratch_operands = 0 : i64, tpu.core_type = #tpu.core_type<tc>, window_params = [{transform_indices = @transform_0, window_bounds = array<i64: 8, 896>}, {pipeline_mode = #tpu.pipeline_mode<synchronous>, transform_indices = @transform_1, window_bounds = array<i64: 896, 1152>}, {pipeline_mode = #tpu.pipeline_mode<synchronous>, transform_indices = @transform_2, window_bounds = array<i64: 1, 1152>}, {pipeline_mode = #tpu.pipeline_mode<synchronous>, transform_indices = @transform_3, window_bounds = array<i64: 1152, 256>}, {pipeline_mode = #tpu.pipeline_mode<synchronous>, transform_indices = @transform_4, window_bounds = array<i64: 1, 256>}, {pipeline_mode = #tpu.pipeline_mode<synchronous>, transform_indices = @transform_5, window_bounds = array<i64: 256, 128>}, {pipeline_mode = #tpu.pipeline_mode<synchronous>, transform_indices = @transform_6, window_bounds = array<i64: 1, 128>}, {pipeline_mode = #tpu.pipeline_mode<synchronous>, transform_indices = @transform_7, window_bounds = array<i64: 128, 128>}, {pipeline_mode = #tpu.pipeline_mode<synchronous>, transform_indices = @transform_8, window_bounds = array<i64: 1, 128>}, {pipeline_mode = #tpu.pipeline_mode<synchronous>, transform_indices = @transform_9, window_bounds = array<i64: 128, 128>}, {pipeline_mode = #tpu.pipeline_mode<synchronous>, transform_indices = @transform_10, window_bounds = array<i64: 1, 128>}, {pipeline_mode = #tpu.pipeline_mode<synchronous>, transform_indices = @transform_11, window_bounds = array<i64: 128, 256>}, {pipeline_mode = #tpu.pipeline_mode<synchronous>, transform_indices = @transform_12, window_bounds = array<i64: 1, 256>}, {pipeline_mode = #tpu.pipeline_mode<synchronous>, transform_indices = @transform_13, window_bounds = array<i64: 256, 1152>}, {pipeline_mode = #tpu.pipeline_mode<synchronous>, transform_indices = @transform_14, window_bounds = array<i64: 1, 1152>}, {pipeline_mode = #tpu.pipeline_mode<synchronous>, transform_indices = @transform_15, window_bounds = array<i64: 1152, 896>}, {pipeline_mode = #tpu.pipeline_mode<synchronous>, transform_indices = @transform_16, window_bounds = array<i64: 1, 896>}, {transform_indices = @transform_17, window_bounds = array<i64: 8, 896>}]} {
    %c0 = arith.constant 0 : index
    %c0_0 = arith.constant 0 : index
    %0 = vector.load %arg1[%c0, %c0_0] : memref<8x896xf32, #tpu.memory_space<vmem>>, vector<8x896xf32>
    %1 = arith.truncf %0 : vector<8x896xf32> to vector<8x896xbf16>
    %c0_1 = arith.constant 0 : index
    %c0_2 = arith.constant 0 : index
    %2 = vector.load %arg2[%c0_1, %c0_2] : memref<896x1152xbf16, #tpu.memory_space<vmem>>, vector<896x1152xbf16>
    %cst = arith.constant dense<0.000000e+00> : vector<8x1152xf32>
    %3 = tpu.matmul %1, %2, %cst {dimension_numbers = #tpu.dot_dimension_numbers<[1], [0], [0], [1], [0, 0, 1, 1], [], []>} : vector<8x896xbf16>, vector<896x1152xbf16>, vector<8x1152xf32> -> vector<8x1152xf32>
    %c0_3 = arith.constant 0 : index
    %c0_4 = arith.constant 0 : index
    %4 = vector.load %arg3[%c0_3, %c0_4] : memref<1x1152xf32, #tpu.memory_space<vmem>>, vector<1x1152xf32>
    %5 = vector.broadcast %4 : vector<1x1152xf32> to vector<8x1152xf32>
    %6 = arith.addf %3, %5 : vector<8x1152xf32>
    %cst_5 = arith.constant 0.000000e+00 : f32
    %7 = vector.broadcast %cst_5 : f32 to vector<8x1152xf32>
    %8 = arith.maximumf %6, %7 : vector<8x1152xf32>
    %9 = arith.truncf %8 : vector<8x1152xf32> to vector<8x1152xbf16>
    %c0_6 = arith.constant 0 : index
    %c0_7 = arith.constant 0 : index
    %10 = vector.load %arg4[%c0_6, %c0_7] : memref<1152x256xbf16, #tpu.memory_space<vmem>>, vector<1152x256xbf16>
    %cst_8 = arith.constant dense<0.000000e+00> : vector<8x256xf32>
    %11 = tpu.matmul %9, %10, %cst_8 {dimension_numbers = #tpu.dot_dimension_numbers<[1], [0], [0], [1], [0, 0, 1, 1], [], []>} : vector<8x1152xbf16>, vector<1152x256xbf16>, vector<8x256xf32> -> vector<8x256xf32>
    %c0_9 = arith.constant 0 : index
    %c0_10 = arith.constant 0 : index
    %12 = vector.load %arg5[%c0_9, %c0_10] : memref<1x256xf32, #tpu.memory_space<vmem>>, vector<1x256xf32>
    %13 = vector.broadcast %12 : vector<1x256xf32> to vector<8x256xf32>
    %14 = arith.addf %11, %13 : vector<8x256xf32>
    %cst_11 = arith.constant 0.000000e+00 : f32
    %15 = vector.broadcast %cst_11 : f32 to vector<8x256xf32>
    %16 = arith.maximumf %14, %15 : vector<8x256xf32>
    %17 = arith.truncf %16 : vector<8x256xf32> to vector<8x256xbf16>
    %c0_12 = arith.constant 0 : index
    %c0_13 = arith.constant 0 : index
    %18 = vector.load %arg6[%c0_12, %c0_13] : memref<256x128xbf16, #tpu.memory_space<vmem>>, vector<256x128xbf16>
    %cst_14 = arith.constant dense<0.000000e+00> : vector<8x128xf32>
    %19 = tpu.matmul %17, %18, %cst_14 {dimension_numbers = #tpu.dot_dimension_numbers<[1], [0], [0], [1], [0, 0, 1, 1], [], []>} : vector<8x256xbf16>, vector<256x128xbf16>, vector<8x128xf32> -> vector<8x128xf32>
    %c0_15 = arith.constant 0 : index
    %c0_16 = arith.constant 0 : index
    %20 = vector.load %arg7[%c0_15, %c0_16] : memref<1x128xf32, #tpu.memory_space<vmem>>, vector<1x128xf32>
    %21 = vector.broadcast %20 : vector<1x128xf32> to vector<8x128xf32>
    %22 = arith.addf %19, %21 : vector<8x128xf32>
    %cst_17 = arith.constant 0.000000e+00 : f32
    %23 = vector.broadcast %cst_17 : f32 to vector<8x128xf32>
    %24 = arith.maximumf %22, %23 : vector<8x128xf32>
    %25 = arith.truncf %24 : vector<8x128xf32> to vector<8x128xbf16>
    %c0_18 = arith.constant 0 : index
    %c0_19 = arith.constant 0 : index
    %26 = vector.load %arg8[%c0_18, %c0_19] : memref<128x128xbf16, #tpu.memory_space<vmem>>, vector<128x128xbf16>
    %cst_20 = arith.constant dense<0.000000e+00> : vector<8x128xf32>
    %27 = tpu.matmul %25, %26, %cst_20 {dimension_numbers = #tpu.dot_dimension_numbers<[1], [0], [0], [1], [0, 0, 1, 1], [], []>} : vector<8x128xbf16>, vector<128x128xbf16>, vector<8x128xf32> -> vector<8x128xf32>
    %c0_21 = arith.constant 0 : index
    %c0_22 = arith.constant 0 : index
    %28 = vector.load %arg9[%c0_21, %c0_22] : memref<1x128xf32, #tpu.memory_space<vmem>>, vector<1x128xf32>
    %29 = vector.broadcast %28 : vector<1x128xf32> to vector<8x128xf32>
    %30 = arith.addf %27, %29 : vector<8x128xf32>
    %cst_23 = arith.constant 0.000000e+00 : f32
    %31 = vector.broadcast %cst_23 : f32 to vector<8x128xf32>
    %32 = arith.maximumf %30, %31 : vector<8x128xf32>
    %33 = arith.truncf %32 : vector<8x128xf32> to vector<8x128xbf16>
    %c0_24 = arith.constant 0 : index
    %c0_25 = arith.constant 0 : index
    %34 = vector.load %arg10[%c0_24, %c0_25] : memref<128x128xbf16, #tpu.memory_space<vmem>>, vector<128x128xbf16>
    %cst_26 = arith.constant dense<0.000000e+00> : vector<8x128xf32>
    %35 = tpu.matmul %33, %34, %cst_26 {dimension_numbers = #tpu.dot_dimension_numbers<[1], [0], [0], [1], [0, 0, 1, 1], [], []>} : vector<8x128xbf16>, vector<128x128xbf16>, vector<8x128xf32> -> vector<8x128xf32>
    %c0_27 = arith.constant 0 : index
    %c0_28 = arith.constant 0 : index
    %36 = vector.load %arg11[%c0_27, %c0_28] : memref<1x128xf32, #tpu.memory_space<vmem>>, vector<1x128xf32>
    %37 = vector.broadcast %36 : vector<1x128xf32> to vector<8x128xf32>
    %38 = arith.addf %35, %37 : vector<8x128xf32>
    %cst_29 = arith.constant 0.000000e+00 : f32
    %39 = vector.broadcast %cst_29 : f32 to vector<8x128xf32>
    %40 = arith.maximumf %38, %39 : vector<8x128xf32>
    %41 = arith.truncf %40 : vector<8x128xf32> to vector<8x128xbf16>
    %c0_30 = arith.constant 0 : index
    %c0_31 = arith.constant 0 : index
    %42 = vector.load %arg12[%c0_30, %c0_31] : memref<128x256xbf16, #tpu.memory_space<vmem>>, vector<128x256xbf16>
    %cst_32 = arith.constant dense<0.000000e+00> : vector<8x256xf32>
    %43 = tpu.matmul %41, %42, %cst_32 {dimension_numbers = #tpu.dot_dimension_numbers<[1], [0], [0], [1], [0, 0, 1, 1], [], []>} : vector<8x128xbf16>, vector<128x256xbf16>, vector<8x256xf32> -> vector<8x256xf32>
    %c0_33 = arith.constant 0 : index
    %c0_34 = arith.constant 0 : index
    %44 = vector.load %arg13[%c0_33, %c0_34] : memref<1x256xf32, #tpu.memory_space<vmem>>, vector<1x256xf32>
    %45 = vector.broadcast %44 : vector<1x256xf32> to vector<8x256xf32>
    %46 = arith.addf %43, %45 : vector<8x256xf32>
    %cst_35 = arith.constant 0.000000e+00 : f32
    %47 = vector.broadcast %cst_35 : f32 to vector<8x256xf32>
    %48 = arith.maximumf %46, %47 : vector<8x256xf32>
    %49 = arith.truncf %48 : vector<8x256xf32> to vector<8x256xbf16>
    %c0_36 = arith.constant 0 : index
    %c0_37 = arith.constant 0 : index
    %50 = vector.load %arg14[%c0_36, %c0_37] : memref<256x1152xbf16, #tpu.memory_space<vmem>>, vector<256x1152xbf16>
    %cst_38 = arith.constant dense<0.000000e+00> : vector<8x1152xf32>
    %51 = tpu.matmul %49, %50, %cst_38 {dimension_numbers = #tpu.dot_dimension_numbers<[1], [0], [0], [1], [0, 0, 1, 1], [], []>} : vector<8x256xbf16>, vector<256x1152xbf16>, vector<8x1152xf32> -> vector<8x1152xf32>
    %c0_39 = arith.constant 0 : index
    %c0_40 = arith.constant 0 : index
    %52 = vector.load %arg15[%c0_39, %c0_40] : memref<1x1152xf32, #tpu.memory_space<vmem>>, vector<1x1152xf32>
    %53 = vector.broadcast %52 : vector<1x1152xf32> to vector<8x1152xf32>
    %54 = arith.addf %51, %53 : vector<8x1152xf32>
    %cst_41 = arith.constant 0.000000e+00 : f32
    %55 = vector.broadcast %cst_41 : f32 to vector<8x1152xf32>
    %56 = arith.maximumf %54, %55 : vector<8x1152xf32>
    %57 = arith.truncf %56 : vector<8x1152xf32> to vector<8x1152xbf16>
    %c0_42 = arith.constant 0 : index
    %c0_43 = arith.constant 0 : index
    %58 = vector.load %arg16[%c0_42, %c0_43] : memref<1152x896xbf16, #tpu.memory_space<vmem>>, vector<1152x896xbf16>
    %cst_44 = arith.constant dense<0.000000e+00> : vector<8x896xf32>
    %59 = tpu.matmul %57, %58, %cst_44 {dimension_numbers = #tpu.dot_dimension_numbers<[1], [0], [0], [1], [0, 0, 1, 1], [], []>} : vector<8x1152xbf16>, vector<1152x896xbf16>, vector<8x896xf32> -> vector<8x896xf32>
    %c0_45 = arith.constant 0 : index
    %c0_46 = arith.constant 0 : index
    %60 = vector.load %arg17[%c0_45, %c0_46] : memref<1x896xf32, #tpu.memory_space<vmem>>, vector<1x896xf32>
    %61 = vector.broadcast %60 : vector<1x896xf32> to vector<8x896xf32>
    %62 = arith.addf %59, %61 : vector<8x896xf32>
    %cst_47 = arith.constant -3.000000e+01 : f32
    %cst_48 = arith.constant 3.000000e+01 : f32
    %63 = vector.broadcast %cst_47 : f32 to vector<8x896xf32>
    %64 = arith.maximumf %63, %62 : vector<8x896xf32>
    %65 = vector.broadcast %cst_48 : f32 to vector<8x896xf32>
    %66 = arith.minimumf %65, %64 : vector<8x896xf32>
    %cst_49 = arith.constant 0.000000e+00 : f32
    %67 = vector.broadcast %cst_49 : f32 to vector<8x896xf32>
    %68 = arith.subf %67, %66 : vector<8x896xf32>
    %69 = math.exp %68 : vector<8x896xf32>
    %cst_50 = arith.constant 1.000000e+00 : f32
    %70 = vector.broadcast %cst_50 : f32 to vector<8x896xf32>
    %71 = arith.addf %70, %69 : vector<8x896xf32>
    %72 = tpu.reciprocal %71 {approx = true} : vector<8x896xf32> -> vector<8x896xf32>
    %c0_51 = arith.constant 0 : index
    %c0_52 = arith.constant 0 : index
    %73 = vector.load %arg18[%c0_51, %c0_52] : memref<8x896xf32, #tpu.memory_space<vmem>>, vector<8x896xf32>
    tpu.vector_store %arg18[%c0_51, %c0_52], %72 {strides = array<i32>} : memref<8x896xf32, #tpu.memory_space<vmem>>, vector<8x896xf32>,
    return
  }
  func.func @transform_0(%arg0: i32) -> (i32, i32) {
    %c0_i32 = arith.constant 0 : i32
    %c0_i32_0 = arith.constant 0 : i32
    return %arg0, %c0_i32 : i32, i32
  }
  func.func @transform_1(%arg0: i32) -> (i32, i32) {
    %c0_i32 = arith.constant 0 : i32
    %c0_i32_0 = arith.constant 0 : i32
    %c0_i32_1 = arith.constant 0 : i32
    return %c0_i32, %c0_i32_0 : i32, i32
  }
  func.func @transform_2(%arg0: i32) -> (i32, i32) {
    %c0_i32 = arith.constant 0 : i32
    %c0_i32_0 = arith.constant 0 : i32
    %c0_i32_1 = arith.constant 0 : i32
    return %c0_i32, %c0_i32_0 : i32, i32
  }
  func.func @transform_3(%arg0: i32) -> (i32, i32) {
    %c0_i32 = arith.constant 0 : i32
    %c0_i32_0 = arith.constant 0 : i32
    %c0_i32_1 = arith.constant 0 : i32
    return %c0_i32, %c0_i32_0 : i32, i32
  }
  func.func @transform_4(%arg0: i32) -> (i32, i32) {
    %c0_i32 = arith.constant 0 : i32
    %c0_i32_0 = arith.constant 0 : i32
    %c0_i32_1 = arith.constant 0 : i32
    return %c0_i32, %c0_i32_0 : i32, i32
  }
  func.func @transform_5(%arg0: i32) -> (i32, i32) {
    %c0_i32 = arith.constant 0 : i32
    %c0_i32_0 = arith.constant 0 : i32
    %c0_i32_1 = arith.constant 0 : i32
    return %c0_i32, %c0_i32_0 : i32, i32
  }
  func.func @transform_6(%arg0: i32) -> (i32, i32) {
    %c0_i32 = arith.constant 0 : i32
    %c0_i32_0 = arith.constant 0 : i32
    %c0_i32_1 = arith.constant 0 : i32
    return %c0_i32, %c0_i32_0 : i32, i32
  }
  func.func @transform_7(%arg0: i32) -> (i32, i32) {
    %c0_i32 = arith.constant 0 : i32
    %c0_i32_0 = arith.constant 0 : i32
    %c0_i32_1 = arith.constant 0 : i32
    return %c0_i32, %c0_i32_0 : i32, i32
  }
  func.func @transform_8(%arg0: i32) -> (i32, i32) {
    %c0_i32 = arith.constant 0 : i32
    %c0_i32_0 = arith.constant 0 : i32
    %c0_i32_1 = arith.constant 0 : i32
    return %c0_i32, %c0_i32_0 : i32, i32
  }
  func.func @transform_9(%arg0: i32) -> (i32, i32) {
    %c0_i32 = arith.constant 0 : i32
    %c0_i32_0 = arith.constant 0 : i32
    %c0_i32_1 = arith.constant 0 : i32
    return %c0_i32, %c0_i32_0 : i32, i32
  }
  func.func @transform_10(%arg0: i32) -> (i32, i32) {
    %c0_i32 = arith.constant 0 : i32
    %c0_i32_0 = arith.constant 0 : i32
    %c0_i32_1 = arith.constant 0 : i32
    return %c0_i32, %c0_i32_0 : i32, i32
  }
  func.func @transform_11(%arg0: i32) -> (i32, i32) {
    %c0_i32 = arith.constant 0 : i32
    %c0_i32_0 = arith.constant 0 : i32
    %c0_i32_1 = arith.constant 0 : i32
    return %c0_i32, %c0_i32_0 : i32, i32
  }
  func.func @transform_12(%arg0: i32) -> (i32, i32) {
    %c0_i32 = arith.constant 0 : i32
    %c0_i32_0 = arith.constant 0 : i32
    %c0_i32_1 = arith.constant 0 : i32
    return %c0_i32, %c0_i32_0 : i32, i32
  }
  func.func @transform_13(%arg0: i32) -> (i32, i32) {
    %c0_i32 = arith.constant 0 : i32
    %c0_i32_0 = arith.constant 0 : i32
    %c0_i32_1 = arith.constant 0 : i32
    return %c0_i32, %c0_i32_0 : i32, i32
  }
  func.func @transform_14(%arg0: i32) -> (i32, i32) {
    %c0_i32 = arith.constant 0 : i32
    %c0_i32_0 = arith.constant 0 : i32
    %c0_i32_1 = arith.constant 0 : i32
    return %c0_i32, %c0_i32_0 : i32, i32
  }
  func.func @transform_15(%arg0: i32) -> (i32, i32) {
    %c0_i32 = arith.constant 0 : i32
    %c0_i32_0 = arith.constant 0 : i32
    %c0_i32_1 = arith.constant 0 : i32
    return %c0_i32, %c0_i32_0 : i32, i32
  }
  func.func @transform_16(%arg0: i32) -> (i32, i32) {
    %c0_i32 = arith.constant 0 : i32
    %c0_i32_0 = arith.constant 0 : i32
    %c0_i32_1 = arith.constant 0 : i32
    return %c0_i32, %c0_i32_0 : i32, i32
  }
  func.func @transform_17(%arg0: i32) -> (i32, i32) {
    %c0_i32 = arith.constant 0 : i32
    %c0_i32_0 = arith.constant 0 : i32
    return %arg0, %c0_i32 : i32, i32
  }
}

</mosaic_0001>

<llo_original>
// kernel: autoencoder_forward.1
$region0: #{autoencoder_forward.1}
  #allocation0 [shape = 'u32[]', space=smem, size = 0x4, offset = 0x4, fixed_abs, tag = 'smem constant byte address 0x4 - core index']
  #allocation1 [shape = 'u32[144,128]{1,0:T(1,128)}', space=vmem, size = 0x12000, scoped, tag = 'internal scratch']
  %s0 = inlined_call_operand.vmem [shape: f32[8,896], index: 0, kind: input, shape index: {}]
  %s1 = inlined_call_operand.hbm [shape: bf16[896,1152], index: 1, kind: input, shape index: {}]
  %s2 = inlined_call_operand.hbm [shape: f32[1,1152], index: 2, kind: input, shape index: {}]
  %s3 = inlined_call_operand.hbm [shape: bf16[1152,256], index: 3, kind: input, shape index: {}]
  %s4 = inlined_call_operand.hbm [shape: f32[1,256], index: 4, kind: input, shape index: {}]
  %s5 = inlined_call_operand.hbm [shape: bf16[256,128], index: 5, kind: input, shape index: {}]
  %s6 = inlined_call_operand.hbm [shape: f32[1,128], index: 6, kind: input, shape index: {}]
  %s7 = inlined_call_operand.hbm [shape: bf16[128,128], index: 7, kind: input, shape index: {}]
  %s8 = inlined_call_operand.hbm [shape: f32[1,128], index: 8, kind: input, shape index: {}]
  %s9 = inlined_call_operand.hbm [shape: bf16[128,128], index: 9, kind: input, shape index: {}]
  %s10 = inlined_call_operand.hbm [shape: f32[1,128], index: 10, kind: input, shape index: {}]
  %s11 = inlined_call_operand.hbm [shape: bf16[128,256], index: 11, kind: input, shape index: {}]
  %s12 = inlined_call_operand.hbm [shape: f32[1,256], index: 12, kind: input, shape index: {}]
  %s13 = inlined_call_operand.hbm [shape: bf16[256,1152], index: 13, kind: input, shape index: {}]
  %s14 = inlined_call_operand.hbm [shape: f32[1,1152], index: 14, kind: input, shape index: {}]
  %s15 = inlined_call_operand.hbm [shape: bf16[1152,896], index: 15, kind: input, shape index: {}]
  %s16 = inlined_call_operand.hbm [shape: f32[1,896], index: 16, kind: input, shape index: {}]
  %s17 = inlined_call_operand.vmem [shape: f32[8,896], index: 17, kind: output, shape index: {}]
  %s18 = sld [smem:[#allocation0]]
  $region142: #{autoencoder_forward.1} parent=0
    _
  %s20 = ssub.s32 1, %s18
  %s21 = scalar_select 0, %s20, %s18
  $region1: #{autoencoder_forward.1} parent=0
    #allocation2 [shape = 'u8[2064384]{0}', space=vmem, size = 0x1f8000, scoped, tag = 'input window, operand 1, single buffered']
    #allocation3 [shape = 's32[1]{0}', space=sflag, size = 0x4, scoped, tag = 'scoped memory for autoencoder_forward.1']
    #allocation4 [shape = 'u8[4608]{0}', space=vmem, size = 0x1400, scoped, tag = 'input window, operand 2, single buffered']
    #allocation5 [shape = 's32[1]{0}', space=sflag, size = 0x4, scoped, tag = 'scoped memory for autoencoder_forward.1']
    #allocation6 [shape = 'u8[589824]{0}', space=vmem, size = 0x90000, scoped, tag = 'input window, operand 3, single buffered']
    #allocation7 [shape = 'u8[1024]{0}', space=vmem, size = 0x400, scoped, tag = 'input window, operand 4, single buffered']
    #allocation8 [shape = 's32[1]{0}', space=sflag, size = 0x4, scoped, tag = 'scoped memory for autoencoder_forward.1']
    #allocation9 [shape = 'u8[65536]{0}', space=vmem, size = 0x10000, scoped, tag = 'input window, operand 5, single buffered']
    #allocation10 [shape = 'u8[512]{0}', space=vmem, size = 0x400, scoped, tag = 'input window, operand 6, single buffered']
    #allocation11 [shape = 's32[1]{0}', space=sflag, size = 0x4, scoped, tag = 'scoped memory for autoencoder_forward.1']
    #allocation12 [shape = 'u8[32768]{0}', space=vmem, size = 0x8000, scoped, tag = 'input window, operand 7, single buffered']
    #allocation13 [shape = 'u8[512]{0}', space=vmem, size = 0x400, scoped, tag = 'input window, operand 8, single buffered']
    #allocation14 [shape = 's32[1]{0}', space=sflag, size = 0x4, scoped, tag = 'scoped memory for autoencoder_forward.1']
    #allocation15 [shape = 'u8[32768]{0}', space=vmem, size = 0x8000, scoped, tag = 'input window, operand 9, single buffered']
    #allocation16 [shape = 'u8[512]{0}', space=vmem, size = 0x400, scoped, tag = 'input window, operand 10, single buffered']
    #allocation17 [shape = 's32[1]{0}', space=sflag, size = 0x4, scoped, tag = 'scoped memory for autoencoder_forward.1']
    #allocation18 [shape = 'u8[65536]{0}', space=vmem, size = 0x10000, scoped, tag = 'input window, operand 11, single buffered']
    #allocation19 [shape = 'u8[1024]{0}', space=vmem, size = 0x400, scoped, tag = 'input window, operand 12, single buffered']
    #allocation20 [shape = 's32[1]{0}', space=sflag, size = 0x4, scoped, tag = 'scoped memory for autoencoder_forward.1']
    #allocation21 [shape = 'u8[589824]{0}', space=vmem, size = 0x90000, scoped, tag = 'input window, operand 13, single buffered']
    #allocation22 [shape = 'u8[4608]{0}', space=vmem, size = 0x1400, scoped, tag = 'input window, operand 14, single buffered']
    #allocation23 [shape = 's32[1]{0}', space=sflag, size = 0x4, scoped, tag = 'scoped memory for autoencoder_forward.1']
    #allocation24 [shape = 'u8[2064384]{0}', space=vmem, size = 0x1f8000, scoped, tag = 'input window, operand 15, single buffered']
    #allocation25 [shape = 'u8[3584]{0}', space=vmem, size = 0x1000, scoped, tag = 'input window, operand 16, single buffered']
    #allocation26 [shape = 's32[1]{0}', space=sflag, size = 0x4, scoped, tag = 'scoped memory for autoencoder_forward.1']
    %22 = vsyncpa [#allocation3], 0
    %23 = vsyncpa [#allocation5], 0
    %24 = vsyncpa [#allocation8], 0
    %25 = vsyncpa [#allocation11], 0
    %26 = vsyncpa [#allocation14], 0
    %27 = vsyncpa [#allocation17], 0
    %28 = vsyncpa [#allocation20], 0
    %29 = vsyncpa [#allocation23], 0
    %30 = vsyncpa [#allocation26], 0
    // Predicated region
    $region2: #{autoencoder_forward.1} parent=1 // pred_check
      _
    $region3: #{autoencoder_forward.1} parent=1 // pred_check_branch
      %32 = sbr.rel (0) target = $region5
    $region4: #{autoencoder_forward.1} parent=1 // pred_region
      _
    $region5: #{autoencoder_forward.1} parent=1 // pred_fallthru
      _
    // Predicated region
    $region6: #{autoencoder_forward.1} parent=1 // pred_check
      _
    $region7: #{autoencoder_forward.1} parent=1 // pred_check_branch
      %34 = sbr.rel (0) target = $region9
    $region8: #{autoencoder_forward.1} parent=1 // pred_region
      %s36 = ssub.s32 64512, 64512
      %37 = vsyncadd [#allocation3], %s36
      %s38 = sshll.u32 [#allocation2], 4
      %s39 = int_to_ptr.vmem [resolvable:$true] %s38
      %44 = dma.hbm_to_vmem [thread:$0]  %s1, 64512, %s39, [#allocation3], 576, 576, 36
    $region9: #{autoencoder_forward.1} parent=1 // pred_fallthru
      _
    // Predicated region
    $region10: #{autoencoder_forward.1} parent=1 // pred_check
      _
    $region11: #{autoencoder_forward.1} parent=1 // pred_check_branch
      %46 = sbr.rel (0) target = $region13
    $region12: #{autoencoder_forward.1} parent=1 // pred_region
      %s48 = ssub.s32 144, 144
      %49 = vsyncadd [#allocation5], %s48
      %s51 = sshll.u32 [#allocation4], 4
      %s52 = int_to_ptr.vmem [resolvable:$true] %s51
      %54 = dma.hbm_to_vmem [thread:$0]  %s2, 144, %s52, [#allocation5]
    $region13: #{autoencoder_forward.1} parent=1 // pred_fallthru
      _
    // Predicated region
    $region14: #{autoencoder_forward.1} parent=1 // pred_check
      _
    $region15: #{autoencoder_forward.1} parent=1 // pred_check_branch
      %56 = sbr.rel (0) target = $region17
    $region16: #{autoencoder_forward.1} parent=1 // pred_region
      %s58 = ssub.s32 18432, 18432
      %59 = vsyncadd [#allocation5], %s58
      %s60 = sshll.u32 [#allocation6], 4
      %s61 = int_to_ptr.vmem [resolvable:$true] %s60
      %66 = dma.hbm_to_vmem [thread:$0]  %s3, 18432, %s61, [#allocation5], 128, 128, 8
    $region17: #{autoencoder_forward.1} parent=1 // pred_fallthru
      _
    // Predicated region
    $region18: #{autoencoder_forward.1} parent=1 // pred_check
      _
    $region19: #{autoencoder_forward.1} parent=1 // pred_check_branch
      %68 = sbr.rel (0) target = $region21
    $region20: #{autoencoder_forward.1} parent=1 // pred_region
      %s70 = ssub.s32 32, 32
      %71 = vsyncadd [#allocation8], %s70
      %s73 = sshll.u32 [#allocation7], 4
      %s74 = int_to_ptr.vmem [resolvable:$true] %s73
      %76 = dma.hbm_to_vmem [thread:$0]  %s4, 32, %s74, [#allocation8]
    $region21: #{autoencoder_forward.1} parent=1 // pred_fallthru
      _
    // Predicated region
    $region22: #{autoencoder_forward.1} parent=1 // pred_check
      _
    $region23: #{autoencoder_forward.1} parent=1 // pred_check_branch
      %78 = sbr.rel (0) target = $region25
    $region24: #{autoencoder_forward.1} parent=1 // pred_region
      %s80 = ssub.s32 2048, 2048
      %81 = vsyncadd [#allocation8], %s80
      %s82 = sshll.u32 [#allocation9], 4
      %s83 = int_to_ptr.vmem [resolvable:$true] %s82
      %88 = dma.hbm_to_vmem [thread:$0]  %s5, 2048, %s83, [#allocation8], 64, 64, 4
    $region25: #{autoencoder_forward.1} parent=1 // pred_fallthru
      _
    // Predicated region
    $region26: #{autoencoder_forward.1} parent=1 // pred_check
      _
    $region27: #{autoencoder_forward.1} parent=1 // pred_check_branch
      %90 = sbr.rel (0) target = $region29
    $region28: #{autoencoder_forward.1} parent=1 // pred_region
      %s92 = ssub.s32 16, 16
      %93 = vsyncadd [#allocation11], %s92
      %s95 = sshll.u32 [#allocation10], 4
      %s96 = int_to_ptr.vmem [resolvable:$true] %s95
      %98 = dma.hbm_to_vmem [thread:$0]  %s6, 16, %s96, [#allocation11]
    $region29: #{autoencoder_forward.1} parent=1 // pred_fallthru
      _
    // Predicated region
    $region30: #{autoencoder_forward.1} parent=1 // pred_check
      _
    $region31: #{autoencoder_forward.1} parent=1 // pred_check_branch
      %100 = sbr.rel (0) target = $region33
    $region32: #{autoencoder_forward.1} parent=1 // pred_region
      %s102 = ssub.s32 1024, 1024
      %103 = vsyncadd [#allocation11], %s102
      %s104 = sshll.u32 [#allocation12], 4
      %s105 = int_to_ptr.vmem [resolvable:$true] %s104
      %110 = dma.hbm_to_vmem [thread:$0]  %s7, 1024, %s105, [#allocation11], 64, 64, 4
    $region33: #{autoencoder_forward.1} parent=1 // pred_fallthru
      _
    // Predicated region
    $region34: #{autoencoder_forward.1} parent=1 // pred_check
      _
    $region35: #{autoencoder_forward.1} parent=1 // pred_check_branch
      %112 = sbr.rel (0) target = $region37
    $region36: #{autoencoder_forward.1} parent=1 // pred_region
      %s114 = ssub.s32 16, 16
      %115 = vsyncadd [#allocation14], %s114
      %s117 = sshll.u32 [#allocation13], 4
      %s118 = int_to_ptr.vmem [resolvable:$true] %s117
      %120 = dma.hbm_to_vmem [thread:$0]  %s8, 16, %s118, [#allocation14]
    $region37: #{autoencoder_forward.1} parent=1 // pred_fallthru
      _
    // Predicated region
    $region38: #{autoencoder_forward.1} parent=1 // pred_check
      _
    $region39: #{autoencoder_forward.1} parent=1 // pred_check_branch
      %122 = sbr.rel (0) target = $region41
    $region40: #{autoencoder_forward.1} parent=1 // pred_region
      %s124 = ssub.s32 1024, 1024
      %125 = vsyncadd [#allocation14], %s124
      %s126 = sshll.u32 [#allocation15], 4
      %s127 = int_to_ptr.vmem [resolvable:$true] %s126
      %132 = dma.hbm_to_vmem [thread:$0]  %s9, 1024, %s127, [#allocation14], 64, 64, 4
    $region41: #{autoencoder_forward.1} parent=1 // pred_fallthru
      _
    // Predicated region
    $region42: #{autoencoder_forward.1} parent=1 // pred_check
      _
    $region43: #{autoencoder_forward.1} parent=1 // pred_check_branch
      %134 = sbr.rel (0) target = $region45
    $region44: #{autoencoder_forward.1} parent=1 // pred_region
      %s136 = ssub.s32 16, 16
      %137 = vsyncadd [#allocation17], %s136
      %s139 = sshll.u32 [#allocation16], 4
      %s140 = int_to_ptr.vmem [resolvable:$true] %s139
      %142 = dma.hbm_to_vmem [thread:$0]  %s10, 16, %s140, [#allocation17]
    $region45: #{autoencoder_forward.1} parent=1 // pred_fallthru
      _
    // Predicated region
    $region46: #{autoencoder_forward.1} parent=1 // pred_check
      _
    $region47: #{autoencoder_forward.1} parent=1 // pred_check_branch
      %144 = sbr.rel (0) target = $region49
    $region48: #{autoencoder_forward.1} parent=1 // pred_region
      %s146 = ssub.s32 2048, 2048
      %147 = vsyncadd [#allocation17], %s146
      %s148 = sshll.u32 [#allocation18], 4
      %s149 = int_to_ptr.vmem [resolvable:$true] %s148
      %154 = dma.hbm_to_vmem [thread:$0]  %s11, 2048, %s149, [#allocation17], 128, 128, 8
    $region49: #{autoencoder_forward.1} parent=1 // pred_fallthru
      _
    // Predicated region
    $region50: #{autoencoder_forward.1} parent=1 // pred_check
      _
    $region51: #{autoencoder_forward.1} parent=1 // pred_check_branch
      %156 = sbr.rel (0) target = $region53
    $region52: #{autoencoder_forward.1} parent=1 // pred_region
      %s158 = ssub.s32 32, 32
      %159 = vsyncadd [#allocation20], %s158
      %s161 = sshll.u32 [#allocation19], 4
      %s162 = int_to_ptr.vmem [resolvable:$true] %s161
      %164 = dma.hbm_to_vmem [thread:$0]  %s12, 32, %s162, [#allocation20]
    $region53: #{autoencoder_forward.1} parent=1 // pred_fallthru
      _
    // Predicated region
    $region54: #{autoencoder_forward.1} parent=1 // pred_check
      _
    $region55: #{autoencoder_forward.1} parent=1 // pred_check_branch
      %166 = sbr.rel (0) target = $region57
    $region56: #{autoencoder_forward.1} parent=1 // pred_region
      %s168 = ssub.s32 18432, 18432
      %169 = vsyncadd [#allocation20], %s168
      %s170 = sshll.u32 [#allocation21], 4
      %s171 = int_to_ptr.vmem [resolvable:$true] %s170
      %176 = dma.hbm_to_vmem [thread:$0]  %s13, 18432, %s171, [#allocation20], 576, 576, 36
    $region57: #{autoencoder_forward.1} parent=1 // pred_fallthru
      _
    // Predicated region
    $region58: #{autoencoder_forward.1} parent=1 // pred_check
      _
    $region59: #{autoencoder_forward.1} parent=1 // pred_check_branch
      %178 = sbr.rel (0) target = $region61
    $region60: #{autoencoder_forward.1} parent=1 // pred_region
      %s180 = ssub.s32 144, 144
      %181 = vsyncadd [#allocation23], %s180
      %s183 = sshll.u32 [#allocation22], 4
      %s184 = int_to_ptr.vmem [resolvable:$true] %s183
      %186 = dma.hbm_to_vmem [thread:$0]  %s14, 144, %s184, [#allocation23]
    $region61: #{autoencoder_forward.1} parent=1 // pred_fallthru
      _
    // Predicated region
    $region62: #{autoencoder_forward.1} parent=1 // pred_check
      _
    $region63: #{autoencoder_forward.1} parent=1 // pred_check_branch
      %188 = sbr.rel (0) target = $region65
    $region64: #{autoencoder_forward.1} parent=1 // pred_region
      %s190 = ssub.s32 64512, 64512
      %191 = vsyncadd [#allocation23], %s190
      %s192 = sshll.u32 [#allocation24], 4
      %s193 = int_to_ptr.vmem [resolvable:$true] %s192
      %198 = dma.hbm_to_vmem [thread:$0]  %s15, 64512, %s193, [#allocation23], 448, 448, 28
    $region65: #{autoencoder_forward.1} parent=1 // pred_fallthru
      _
    // Predicated region
    $region66: #{autoencoder_forward.1} parent=1 // pred_check
      _
    $region67: #{autoencoder_forward.1} parent=1 // pred_check_branch
      %200 = sbr.rel (0) target = $region69
    $region68: #{autoencoder_forward.1} parent=1 // pred_region
      %s202 = ssub.s32 112, 112
      %203 = vsyncadd [#allocation26], %s202
      %s205 = sshll.u32 [#allocation25], 4
      %s206 = int_to_ptr.vmem [resolvable:$true] %s205
      %208 = dma.hbm_to_vmem [thread:$0]  %s16, 112, %s206, [#allocation26]
    $region69: #{autoencoder_forward.1} parent=1 // pred_fallthru
      _
    // Predicated region
    $region70: #{autoencoder_forward.1} parent=1 // pred_check
      _
    $region71: #{autoencoder_forward.1} parent=1 // pred_check_branch
      %210 = sbr.rel (0) target = $region73
    $region72: #{autoencoder_forward.1} parent=1 // pred_region
      %211 = dma.done [#allocation3], 64512
    $region73: #{autoencoder_forward.1} parent=1 // pred_fallthru
      _
    // Predicated region
    $region74: #{autoencoder_forward.1} parent=1 // pred_check
      _
    $region75: #{autoencoder_forward.1} parent=1 // pred_check_branch
      %213 = sbr.rel (0) target = $region77
    $region76: #{autoencoder_forward.1} parent=1 // pred_region
      %214 = dma.done [#allocation5], 144
    $region77: #{autoencoder_forward.1} parent=1 // pred_fallthru
      _
    // Predicated region
    $region78: #{autoencoder_forward.1} parent=1 // pred_check
      _
    $region79: #{autoencoder_forward.1} parent=1 // pred_check_branch
      %216 = sbr.rel (0) target = $region81
    $region80: #{autoencoder_forward.1} parent=1 // pred_region
      %217 = dma.done [#allocation5], 18432
    $region81: #{autoencoder_forward.1} parent=1 // pred_fallthru
      _
    // Predicated region
    $region82: #{autoencoder_forward.1} parent=1 // pred_check
      _
    $region83: #{autoencoder_forward.1} parent=1 // pred_check_branch
      %219 = sbr.rel (0) target = $region85
    $region84: #{autoencoder_forward.1} parent=1 // pred_region
      %220 = dma.done [#allocation8], 32
    $region85: #{autoencoder_forward.1} parent=1 // pred_fallthru
      _
    // Predicated region
    $region86: #{autoencoder_forward.1} parent=1 // pred_check
      _
    $region87: #{autoencoder_forward.1} parent=1 // pred_check_branch
      %222 = sbr.rel (0) target = $region89
    $region88: #{autoencoder_forward.1} parent=1 // pred_region
      %223 = dma.done [#allocation8], 2048
    $region89: #{autoencoder_forward.1} parent=1 // pred_fallthru
      _
    // Predicated region
    $region90: #{autoencoder_forward.1} parent=1 // pred_check
      _
    $region91: #{autoencoder_forward.1} parent=1 // pred_check_branch
      %225 = sbr.rel (0) target = $region93
    $region92: #{autoencoder_forward.1} parent=1 // pred_region
      %226 = dma.done [#allocation11], 16
    $region93: #{autoencoder_forward.1} parent=1 // pred_fallthru
      _
    // Predicated region
    $region94: #{autoencoder_forward.1} parent=1 // pred_check
      _
    $region95: #{autoencoder_forward.1} parent=1 // pred_check_branch
      %228 = sbr.rel (0) target = $region97
    $region96: #{autoencoder_forward.1} parent=1 // pred_region
      %229 = dma.done [#allocation11], 1024
    $region97: #{autoencoder_forward.1} parent=1 // pred_fallthru
      _
    // Predicated region
    $region98: #{autoencoder_forward.1} parent=1 // pred_check
      _
    $region99: #{autoencoder_forward.1} parent=1 // pred_check_branch
      %231 = sbr.rel (0) target = $region101
    $region100: #{autoencoder_forward.1} parent=1 // pred_region
      %232 = dma.done [#allocation14], 16
    $region101: #{autoencoder_forward.1} parent=1 // pred_fallthru
      _
    // Predicated region
    $region102: #{autoencoder_forward.1} parent=1 // pred_check
      _
    $region103: #{autoencoder_forward.1} parent=1 // pred_check_branch
      %234 = sbr.rel (0) target = $region105
    $region104: #{autoencoder_forward.1} parent=1 // pred_region
      %235 = dma.done [#allocation14], 1024
    $region105: #{autoencoder_forward.1} parent=1 // pred_fallthru
      _
    // Predicated region
    $region106: #{autoencoder_forward.1} parent=1 // pred_check
      _
    $region107: #{autoencoder_forward.1} parent=1 // pred_check_branch
      %237 = sbr.rel (0) target = $region109
    $region108: #{autoencoder_forward.1} parent=1 // pred_region
      %238 = dma.done [#allocation17], 16
    $region109: #{autoencoder_forward.1} parent=1 // pred_fallthru
      _
    // Predicated region
    $region110: #{autoencoder_forward.1} parent=1 // pred_check
      _
    $region111: #{autoencoder_forward.1} parent=1 // pred_check_branch
      %240 = sbr.rel (0) target = $region113
    $region112: #{autoencoder_forward.1} parent=1 // pred_region
      %241 = dma.done [#allocation17], 2048
    $region113: #{autoencoder_forward.1} parent=1 // pred_fallthru
      _
    // Predicated region
    $region114: #{autoencoder_forward.1} parent=1 // pred_check
      _
    $region115: #{autoencoder_forward.1} parent=1 // pred_check_branch
      %243 = sbr.rel (0) target = $region117
    $region116: #{autoencoder_forward.1} parent=1 // pred_region
      %244 = dma.done [#allocation20], 32
    $region117: #{autoencoder_forward.1} parent=1 // pred_fallthru
      _
    // Predicated region
    $region118: #{autoencoder_forward.1} parent=1 // pred_check
      _
    $region119: #{autoencoder_forward.1} parent=1 // pred_check_branch
      %246 = sbr.rel (0) target = $region121
    $region120: #{autoencoder_forward.1} parent=1 // pred_region
      %247 = dma.done [#allocation20], 18432
    $region121: #{autoencoder_forward.1} parent=1 // pred_fallthru
      _
    // Predicated region
    $region122: #{autoencoder_forward.1} parent=1 // pred_check
      _
    $region123: #{autoencoder_forward.1} parent=1 // pred_check_branch
      %249 = sbr.rel (0) target = $region125
    $region124: #{autoencoder_forward.1} parent=1 // pred_region
      %250 = dma.done [#allocation23], 144
    $region125: #{autoencoder_forward.1} parent=1 // pred_fallthru
      _
    // Predicated region
    $region126: #{autoencoder_forward.1} parent=1 // pred_check
      _
    $region127: #{autoencoder_forward.1} parent=1 // pred_check_branch
      %252 = sbr.rel (0) target = $region129
    $region128: #{autoencoder_forward.1} parent=1 // pred_region
      %253 = dma.done [#allocation23], 64512
    $region129: #{autoencoder_forward.1} parent=1 // pred_fallthru
      _
    // Predicated region
    $region130: #{autoencoder_forward.1} parent=1 // pred_check
      _
    $region131: #{autoencoder_forward.1} parent=1 // pred_check_branch
      %255 = sbr.rel (0) target = $region133
    $region132: #{autoencoder_forward.1} parent=1 // pred_region
      %256 = dma.done [#allocation26], 112
    $region133: #{autoencoder_forward.1} parent=1 // pred_fallthru
      _
    %v258 = vld [vmem:[%s0] sm:$0xff]
    %v259 = vld [vmem:[%s0 + $0x8] sm:$0xff]
    %v260 = vld [vmem:[%s0 + $0x10] sm:$0xff]
    %v261 = vld [vmem:[%s0 + $0x18] sm:$0xff]
    %v262 = vld [vmem:[%s0 + $0x20] sm:$0xff]
    %v263 = vld [vmem:[%s0 + $0x28] sm:$0xff]
    %v264 = vld [vmem:[%s0 + $0x30] sm:$0xff]
    %v265 = vpack.c.bf16 %v258, %v258
    %v266 = vpack.c.bf16 %v259, %v259
    %v267 = vpack.c.bf16 %v260, %v260
    %v268 = vpack.c.bf16 %v261, %v261
    %v269 = vpack.c.bf16 %v262, %v262
    %v270 = vpack.c.bf16 %v263, %v263
    %v271 = vpack.c.bf16 %v264, %v264
    %v272 = vld [vmem:[#allocation2] sm:$0xff]
    %v273 = vld [vmem:[#allocation2 + $0x8] sm:$0xff]
    %v274 = vld [vmem:[#allocation2 + $0x10] sm:$0xff]
    %v275 = vld [vmem:[#allocation2 + $0x18] sm:$0xff]
    %v276 = vld [vmem:[#allocation2 + $0x20] sm:$0xf]
    %v277 = vld [vmem:[#allocation2 + $0x24] sm:$0xff]
    %v278 = vld [vmem:[#allocation2 + $0x2c] sm:$0xff]
    %v279 = vld [vmem:[#allocation2 + $0x34] sm:$0xff]
    %v280 = vld [vmem:[#allocation2 + $0x3c] sm:$0xff]
    %v281 = vld [vmem:[#allocation2 + $0x44] sm:$0xf]
    %v282 = vld [vmem:[#allocation2 + $0x48] sm:$0xff]
    %v283 = vld [vmem:[#allocation2 + $0x50] sm:$0xff]
    %v284 = vld [vmem:[#allocation2 + $0x58] sm:$0xff]
    %v285 = vld [vmem:[#allocation2 + $0x60] sm:$0xff]
    %v286 = vld [vmem:[#allocation2 + $0x68] sm:$0xf]
    %v287 = vld [vmem:[#allocation2 + $0x6c] sm:$0xff]
    %v288 = vld [vmem:[#allocation2 + $0x74] sm:$0xff]
    %v289 = vld [vmem:[#allocation2 + $0x7c] sm:$0xff]
    %v290 = vld [vmem:[#allocation2 + $0x84] sm:$0xff]
    %v291 = vld [vmem:[#allocation2 + $0x8c] sm:$0xf]
    %v292 = vld [vmem:[#allocation2 + $0x90] sm:$0xff]
    %v293 = vld [vmem:[#allocation2 + $0x98] sm:$0xff]
    %v294 = vld [vmem:[#allocation2 + $0xa0] sm:$0xff]
    %v295 = vld [vmem:[#allocation2 + $0xa8] sm:$0xff]
    %v296 = vld [vmem:[#allocation2 + $0xb0] sm:$0xf]
    %v297 = vld [vmem:[#allocation2 + $0xb4] sm:$0xff]
    %v298 = vld [vmem:[#allocation2 + $0xbc] sm:$0xff]
    %v299 = vld [vmem:[#allocation2 + $0xc4] sm:$0xff]
    %v300 = vld [vmem:[#allocation2 + $0xcc] sm:$0xff]
    %v301 = vld [vmem:[#allocation2 + $0xd4] sm:$0xf]
    %v302 = vld [vmem:[#allocation2 + $0xd8] sm:$0xff]
    %v303 = vld [vmem:[#allocation2 + $0xe0] sm:$0xff]
    %v304 = vld [vmem:[#allocation2 + $0xe8] sm:$0xff]
    %v305 = vld [vmem:[#allocation2 + $0xf0] sm:$0xff]
    %v306 = vld [vmem:[#allocation2 + $0xf8] sm:$0xf]
    %v307 = vld [vmem:[#allocation2 + $0xfc] sm:$0xff]
    %v308 = vld [vmem:[#allocation2 + $0x104] sm:$0xff]
    %v309 = vld [vmem:[#allocation2 + $0x10c] sm:$0xff]
    %v310 = vld [vmem:[#allocation2 + $0x114] sm:$0xff]
    %v311 = vld [vmem:[#allocation2 + $0x11c] sm:$0xf]
    %v312 = vld [vmem:[#allocation2 + $0x120] sm:$0xff]
    %v313 = vld [vmem:[#allocation2 + $0x128] sm:$0xff]
    %v314 = vld [vmem:[#allocation2 + $0x130] sm:$0xff]
    %v315 = vld [vmem:[#allocation2 + $0x138] sm:$0xff]
    %v316 = vld [vmem:[#allocation2 + $0x140] sm:$0xf]
    %v317 = vld [vmem:[#allocation2 + $0x144] sm:$0xff]
    %v318 = vld [vmem:[#allocation2 + $0x14c] sm:$0xff]
    %v319 = vld [vmem:[#allocation2 + $0x154] sm:$0xff]
    %v320 = vld [vmem:[#allocation2 + $0x15c] sm:$0xff]
    %v321 = vld [vmem:[#allocation2 + $0x164] sm:$0xf]
    %v322 = vld [vmem:[#allocation2 + $0x168] sm:$0xff]
    %v323 = vld [vmem:[#allocation2 + $0x170] sm:$0xff]
    %v324 = vld [vmem:[#allocation2 + $0x178] sm:$0xff]
    %v325 = vld [vmem:[#allocation2 + $0x180] sm:$0xff]
    %v326 = vld [vmem:[#allocation2 + $0x188] sm:$0xf]
    %v327 = vld [vmem:[#allocation2 + $0x18c] sm:$0xff]
    %v328 = vld [vmem:[#allocation2 + $0x194] sm:$0xff]
    %v329 = vld [vmem:[#allocation2 + $0x19c] sm:$0xff]
    %v330 = vld [vmem:[#allocation2 + $0x1a4] sm:$0xff]
    %v331 = vld [vmem:[#allocation2 + $0x1ac] sm:$0xf]
    %v332 = vld [vmem:[#allocation2 + $0x1b0] sm:$0xff]
    %v333 = vld [vmem:[#allocation2 + $0x1b8] sm:$0xff]
    %v334 = vld [vmem:[#allocation2 + $0x1c0] sm:$0xff]
    %v335 = vld [vmem:[#allocation2 + $0x1c8] sm:$0xff]
    %v336 = vld [vmem:[#allocation2 + $0x1d0] sm:$0xf]
    %v337 = vld [vmem:[#allocation2 + $0x1d4] sm:$0xff]
    %v338 = vld [vmem:[#allocation2 + $0x1dc] sm:$0xff]
    %v339 = vld [vmem:[#allocation2 + $0x1e4] sm:$0xff]
    %v340 = vld [vmem:[#allocation2 + $0x1ec] sm:$0xff]
    %v341 = vld [vmem:[#allocation2 + $0x1f4] sm:$0xf]
    %v342 = vld [vmem:[#allocation2 + $0x1f8] sm:$0xff]
    %v343 = vld [vmem:[#allocation2 + $0x200] sm:$0xff]
    %v344 = vld [vmem:[#allocation2 + $0x208] sm:$0xff]
    %v345 = vld [vmem:[#allocation2 + $0x210] sm:$0xff]
    %v346 = vld [vmem:[#allocation2 + $0x218] sm:$0xf]
    %v347 = vld [vmem:[#allocation2 + $0x21c] sm:$0xff]
    %v348 = vld [vmem:[#allocation2 + $0x224] sm:$0xff]
    %v349 = vld [vmem:[#allocation2 + $0x22c] sm:$0xff]
    %v350 = vld [vmem:[#allocation2 + $0x234] sm:$0xff]
    %v351 = vld [vmem:[#allocation2 + $0x23c] sm:$0xf]
    %v352 = vld [vmem:[#allocation2 + $0x240] sm:$0xff]
    %v353 = vld [vmem:[#allocation2 + $0x248] sm:$0xff]
    %v354 = vld [vmem:[#allocation2 + $0x250] sm:$0xff]
    %v355 = vld [vmem:[#allocation2 + $0x258] sm:$0xff]
    %v356 = vld [vmem:[#allocation2 + $0x260] sm:$0xf]
    %v357 = vld [vmem:[#allocation2 + $0x264] sm:$0xff]
    %v358 = vld [vmem:[#allocation2 + $0x26c] sm:$0xff]
    %v359 = vld [vmem:[#allocation2 + $0x274] sm:$0xff]
    %v360 = vld [vmem:[#allocation2 + $0x27c] sm:$0xff]
    %v361 = vld [vmem:[#allocation2 + $0x284] sm:$0xf]
    %v362 = vld [vmem:[#allocation2 + $0x288] sm:$0xff]
    %v363 = vld [vmem:[#allocation2 + $0x290] sm:$0xff]
    %v364 = vld [vmem:[#allocation2 + $0x298] sm:$0xff]
    %v365 = vld [vmem:[#allocation2 + $0x2a0] sm:$0xff]
    %v366 = vld [vmem:[#allocation2 + $0x2a8] sm:$0xf]
    %v367 = vld [vmem:[#allocation2 + $0x2ac] sm:$0xff]
    %v368 = vld [vmem:[#allocation2 + $0x2b4] sm:$0xff]
    %v369 = vld [vmem:[#allocation2 + $0x2bc] sm:$0xff]
    %v370 = vld [vmem:[#allocation2 + $0x2c4] sm:$0xff]
    %v371 = vld [vmem:[#allocation2 + $0x2cc] sm:$0xf]
    %v372 = vld [vmem:[#allocation2 + $0x2d0] sm:$0xff]
    %v373 = vld [vmem:[#allocation2 + $0x2d8] sm:$0xff]
    %v374 = vld [vmem:[#allocation2 + $0x2e0] sm:$0xff]
    %v375 = vld [vmem:[#allocation2 + $0x2e8] sm:$0xff]
    %v376 = vld [vmem:[#allocation2 + $0x2f0] sm:$0xf]
    %v377 = vld [vmem:[#allocation2 + $0x2f4] sm:$0xff]
    %v378 = vld [vmem:[#allocation2 + $0x2fc] sm:$0xff]
    %v379 = vld [vmem:[#allocation2 + $0x304] sm:$0xff]
    %v380 = vld [vmem:[#allocation2 + $0x30c] sm:$0xff]
    %v381 = vld [vmem:[#allocation2 + $0x314] sm:$0xf]
    %v382 = vld [vmem:[#allocation2 + $0x318] sm:$0xff]
    %v383 = vld [vmem:[#allocation2 + $0x320] sm:$0xff]
    %v384 = vld [vmem:[#allocation2 + $0x328] sm:$0xff]
    %v385 = vld [vmem:[#allocation2 + $0x330] sm:$0xff]
    %v386 = vld [vmem:[#allocation2 + $0x338] sm:$0xf]
    %v387 = vld [vmem:[#allocation2 + $0x33c] sm:$0xff]
    %v388 = vld [vmem:[#allocation2 + $0x344] sm:$0xff]
    %v389 = vld [vmem:[#allocation2 + $0x34c] sm:$0xff]
    %v390 = vld [vmem:[#allocation2 + $0x354] sm:$0xff]
    %v391 = vld [vmem:[#allocation2 + $0x35c] sm:$0xf]
    %v392 = vld [vmem:[#allocation2 + $0x360] sm:$0xff]
    %v393 = vld [vmem:[#allocation2 + $0x368] sm:$0xff]
    %v394 = vld [vmem:[#allocation2 + $0x370] sm:$0xff]
    %v395 = vld [vmem:[#allocation2 + $0x378] sm:$0xff]
    %v396 = vld [vmem:[#allocation2 + $0x380] sm:$0xf]
    %v397 = vld [vmem:[#allocation2 + $0x384] sm:$0xff]
    %v398 = vld [vmem:[#allocation2 + $0x38c] sm:$0xff]
    %v399 = vld [vmem:[#allocation2 + $0x394] sm:$0xff]
    %v400 = vld [vmem:[#allocation2 + $0x39c] sm:$0xff]
    %v401 = vld [vmem:[#allocation2 + $0x3a4] sm:$0xf]
    %v402 = vld [vmem:[#allocation2 + $0x3a8] sm:$0xff]
    %v403 = vld [vmem:[#allocation2 + $0x3b0] sm:$0xff]
    %v404 = vld [vmem:[#allocation2 + $0x3b8] sm:$0xff]
    %v405 = vld [vmem:[#allocation2 + $0x3c0] sm:$0xff]
    %v406 = vld [vmem:[#allocation2 + $0x3c8] sm:$0xf]
    %v407 = vld [vmem:[#allocation2 + $0x3cc] sm:$0xff]
    %v408 = vld [vmem:[#allocation2 + $0x3d4] sm:$0xff]
    %v409 = vld [vmem:[#allocation2 + $0x3dc] sm:$0xff]
    %v410 = vld [vmem:[#allocation2 + $0x3e4] sm:$0xff]
    %v411 = vld [vmem:[#allocation2 + $0x3ec] sm:$0xf]
    %v412 = vld [vmem:[#allocation2 + $0x3f0] sm:$0xff]
    %v413 = vld [vmem:[#allocation2 + $0x3f8] sm:$0xff]
    %v414 = vld [vmem:[#allocation2 + $0x400] sm:$0xff]
    %v415 = vld [vmem:[#allocation2 + $0x408] sm:$0xff]
    %v416 = vld [vmem:[#allocation2 + $0x410] sm:$0xf]
    %v417 = vld [vmem:[#allocation2 + $0x414] sm:$0xff]
    %v418 = vld [vmem:[#allocation2 + $0x41c] sm:$0xff]
    %v419 = vld [vmem:[#allocation2 + $0x424] sm:$0xff]
    %v420 = vld [vmem:[#allocation2 + $0x42c] sm:$0xff]
    %v421 = vld [vmem:[#allocation2 + $0x434] sm:$0xf]
    %v422 = vld [vmem:[#allocation2 + $0x438] sm:$0xff]
    %v423 = vld [vmem:[#allocation2 + $0x440] sm:$0xff]
    %v424 = vld [vmem:[#allocation2 + $0x448] sm:$0xff]
    %v425 = vld [vmem:[#allocation2 + $0x450] sm:$0xff]
    %v426 = vld [vmem:[#allocation2 + $0x458] sm:$0xf]
    %v427 = vld [vmem:[#allocation2 + $0x45c] sm:$0xff]
    %v428 = vld [vmem:[#allocation2 + $0x464] sm:$0xff]
    %v429 = vld [vmem:[#allocation2 + $0x46c] sm:$0xff]
    %v430 = vld [vmem:[#allocation2 + $0x474] sm:$0xff]
    %v431 = vld [vmem:[#allocation2 + $0x47c] sm:$0xf]
    %v432 = vld [vmem:[#allocation2 + $0x480] sm:$0xff]
    %v433 = vld [vmem:[#allocation2 + $0x488] sm:$0xff]
    %v434 = vld [vmem:[#allocation2 + $0x490] sm:$0xff]
    %v435 = vld [vmem:[#allocation2 + $0x498] sm:$0xff]
    %v436 = vld [vmem:[#allocation2 + $0x4a0] sm:$0xf]
    %v437 = vld [vmem:[#allocation2 + $0x4a4] sm:$0xff]
    %v438 = vld [vmem:[#allocation2 + $0x4ac] sm:$0xff]
    %v439 = vld [vmem:[#allocation2 + $0x4b4] sm:$0xff]
    %v440 = vld [vmem:[#allocation2 + $0x4bc] sm:$0xff]
    %v441 = vld [vmem:[#allocation2 + $0x4c4] sm:$0xf]
    %v442 = vld [vmem:[#allocation2 + $0x4c8] sm:$0xff]
    %v443 = vld [vmem:[#allocation2 + $0x4d0] sm:$0xff]
    %v444 = vld [vmem:[#allocation2 + $0x4d8] sm:$0xff]
    %v445 = vld [vmem:[#allocation2 + $0x4e0] sm:$0xff]
    %v446 = vld [vmem:[#allocation2 + $0x4e8] sm:$0xf]
    %v447 = vld [vmem:[#allocation2 + $0x4ec] sm:$0xff]
    %v448 = vld [vmem:[#allocation2 + $0x4f4] sm:$0xff]
    %v449 = vld [vmem:[#allocation2 + $0x4fc] sm:$0xff]
    %v450 = vld [vmem:[#allocation2 + $0x504] sm:$0xff]
    %v451 = vld [vmem:[#allocation2 + $0x50c] sm:$0xf]
    %v452 = vld [vmem:[#allocation2 + $0x510] sm:$0xff]
    %v453 = vld [vmem:[#allocation2 + $0x518] sm:$0xff]
    %v454 = vld [vmem:[#allocation2 + $0x520] sm:$0xff]
    %v455 = vld [vmem:[#allocation2 + $0x528] sm:$0xff]
    %v456 = vld [vmem:[#allocation2 + $0x530] sm:$0xf]
    %v457 = vld [vmem:[#allocation2 + $0x534] sm:$0xff]
    %v458 = vld [vmem:[#allocation2 + $0x53c] sm:$0xff]
    %v459 = vld [vmem:[#allocation2 + $0x544] sm:$0xff]
    %v460 = vld [vmem:[#allocation2 + $0x54c] sm:$0xff]
    %v461 = vld [vmem:[#allocation2 + $0x554] sm:$0xf]
    %v462 = vld [vmem:[#allocation2 + $0x558] sm:$0xff]
    %v463 = vld [vmem:[#allocation2 + $0x560] sm:$0xff]
    %v464 = vld [vmem:[#allocation2 + $0x568] sm:$0xff]
    %v465 = vld [vmem:[#allocation2 + $0x570] sm:$0xff]
    %v466 = vld [vmem:[#allocation2 + $0x578] sm:$0xf]
    %v467 = vld [vmem:[#allocation2 + $0x57c] sm:$0xff]
    %v468 = vld [vmem:[#allocation2 + $0x584] sm:$0xff]
    %v469 = vld [vmem:[#allocation2 + $0x58c] sm:$0xff]
    %v470 = vld [vmem:[#allocation2 + $0x594] sm:$0xff]
    %v471 = vld [vmem:[#allocation2 + $0x59c] sm:$0xf]
    %v472 = vld [vmem:[#allocation2 + $0x5a0] sm:$0xff]
    %v473 = vld [vmem:[#allocation2 + $0x5a8] sm:$0xff]
    %v474 = vld [vmem:[#allocation2 + $0x5b0] sm:$0xff]
    %v475 = vld [vmem:[#allocation2 + $0x5b8] sm:$0xff]
    %v476 = vld [vmem:[#allocation2 + $0x5c0] sm:$0xf]
    %v477 = vld [vmem:[#allocation2 + $0x5c4] sm:$0xff]
    %v478 = vld [vmem:[#allocation2 + $0x5cc] sm:$0xff]
    %v479 = vld [vmem:[#allocation2 + $0x5d4] sm:$0xff]
    %v480 = vld [vmem:[#allocation2 + $0x5dc] sm:$0xff]
    %v481 = vld [vmem:[#allocation2 + $0x5e4] sm:$0xf]
    %v482 = vld [vmem:[#allocation2 + $0x5e8] sm:$0xff]
    %v483 = vld [vmem:[#allocation2 + $0x5f0] sm:$0xff]
    %v484 = vld [vmem:[#allocation2 + $0x5f8] sm:$0xff]
    %v485 = vld [vmem:[#allocation2 + $0x600] sm:$0xff]
    %v486 = vld [vmem:[#allocation2 + $0x608] sm:$0xf]
    %v487 = vld [vmem:[#allocation2 + $0x60c] sm:$0xff]
    %v488 = vld [vmem:[#allocation2 + $0x614] sm:$0xff]
    %v489 = vld [vmem:[#allocation2 + $0x61c] sm:$0xff]
    %v490 = vld [vmem:[#allocation2 + $0x624] sm:$0xff]
    %v491 = vld [vmem:[#allocation2 + $0x62c] sm:$0xf]
    %v492 = vld [vmem:[#allocation2 + $0x630] sm:$0xff]
    %v493 = vld [vmem:[#allocation2 + $0x638] sm:$0xff]
    %v494 = vld [vmem:[#allocation2 + $0x640] sm:$0xff]
    %v495 = vld [vmem:[#allocation2 + $0x648] sm:$0xff]
    %v496 = vld [vmem:[#allocation2 + $0x650] sm:$0xf]
    %v497 = vld [vmem:[#allocation2 + $0x654] sm:$0xff]
    %v498 = vld [vmem:[#allocation2 + $0x65c] sm:$0xff]
    %v499 = vld [vmem:[#allocation2 + $0x664] sm:$0xff]
    %v500 = vld [vmem:[#allocation2 + $0x66c] sm:$0xff]
    %v501 = vld [vmem:[#allocation2 + $0x674] sm:$0xf]
    %v502 = vld [vmem:[#allocation2 + $0x678] sm:$0xff]
    %v503 = vld [vmem:[#allocation2 + $0x680] sm:$0xff]
    %v504 = vld [vmem:[#allocation2 + $0x688] sm:$0xff]
    %v505 = vld [vmem:[#allocation2 + $0x690] sm:$0xff]
    %v506 = vld [vmem:[#allocation2 + $0x698] sm:$0xf]
    %v507 = vld [vmem:[#allocation2 + $0x69c] sm:$0xff]
    %v508 = vld [vmem:[#allocation2 + $0x6a4] sm:$0xff]
    %v509 = vld [vmem:[#allocation2 + $0x6ac] sm:$0xff]
    %v510 = vld [vmem:[#allocation2 + $0x6b4] sm:$0xff]
    %v511 = vld [vmem:[#allocation2 + $0x6bc] sm:$0xf]
    %v512 = vld [vmem:[#allocation2 + $0x6c0] sm:$0xff]
    %v513 = vld [vmem:[#allocation2 + $0x6c8] sm:$0xff]
    %v514 = vld [vmem:[#allocation2 + $0x6d0] sm:$0xff]
    %v515 = vld [vmem:[#allocation2 + $0x6d8] sm:$0xff]
    %v516 = vld [vmem:[#allocation2 + $0x6e0] sm:$0xf]
    %v517 = vld [vmem:[#allocation2 + $0x6e4] sm:$0xff]
    %v518 = vld [vmem:[#allocation2 + $0x6ec] sm:$0xff]
    %v519 = vld [vmem:[#allocation2 + $0x6f4] sm:$0xff]
    %v520 = vld [vmem:[#allocation2 + $0x6fc] sm:$0xff]
    %v521 = vld [vmem:[#allocation2 + $0x704] sm:$0xf]
    %v522 = vld [vmem:[#allocation2 + $0x708] sm:$0xff]
    %v523 = vld [vmem:[#allocation2 + $0x710] sm:$0xff]
    %v524 = vld [vmem:[#allocation2 + $0x718] sm:$0xff]
    %v525 = vld [vmem:[#allocation2 + $0x720] sm:$0xff]
    %v526 = vld [vmem:[#allocation2 + $0x728] sm:$0xf]
    %v527 = vld [vmem:[#allocation2 + $0x72c] sm:$0xff]
    %v528 = vld [vmem:[#allocation2 + $0x734] sm:$0xff]
    %v529 = vld [vmem:[#allocation2 + $0x73c] sm:$0xff]
    %v530 = vld [vmem:[#allocation2 + $0x744] sm:$0xff]
    %v531 = vld [vmem:[#allocation2 + $0x74c] sm:$0xf]
    %v532 = vld [vmem:[#allocation2 + $0x750] sm:$0xff]
    %v533 = vld [vmem:[#allocation2 + $0x758] sm:$0xff]
    %v534 = vld [vmem:[#allocation2 + $0x760] sm:$0xff]
    %v535 = vld [vmem:[#allocation2 + $0x768] sm:$0xff]
    %v536 = vld [vmem:[#allocation2 + $0x770] sm:$0xf]
    %v537 = vld [vmem:[#allocation2 + $0x774] sm:$0xff]
    %v538 = vld [vmem:[#allocation2 + $0x77c] sm:$0xff]
    %v539 = vld [vmem:[#allocation2 + $0x784] sm:$0xff]
    %v540 = vld [vmem:[#allocation2 + $0x78c] sm:$0xff]
    %v541 = vld [vmem:[#allocation2 + $0x794] sm:$0xf]
    %v542 = vld [vmem:[#allocation2 + $0x798] sm:$0xff]
    %v543 = vld [vmem:[#allocation2 + $0x7a0] sm:$0xff]
    %v544 = vld [vmem:[#allocation2 + $0x7a8] sm:$0xff]
    %v545 = vld [vmem:[#allocation2 + $0x7b0] sm:$0xff]
    %v546 = vld [vmem:[#allocation2 + $0x7b8] sm:$0xf]
    %v547 = vld [vmem:[#allocation2 + $0x7bc] sm:$0xff]
    %v548 = vld [vmem:[#allocation2 + $0x7c4] sm:$0xff]
    %v549 = vld [vmem:[#allocation2 + $0x7cc] sm:$0xff]
    %v550 = vld [vmem:[#allocation2 + $0x7d4] sm:$0xff]
    %v551 = vld [vmem:[#allocation2 + $0x7dc] sm:$0xf]
    %v552 = vld [vmem:[#allocation2 + $0x7e0] sm:$0xff]
    %v553 = vld [vmem:[#allocation2 + $0x7e8] sm:$0xff]
    %v554 = vld [vmem:[#allocation2 + $0x7f0] sm:$0xff]
    %v555 = vld [vmem:[#allocation2 + $0x7f8] sm:$0xff]
    %v556 = vld [vmem:[#allocation2 + $0x800] sm:$0xf]
    %v557 = vld [vmem:[#allocation2 + $0x804] sm:$0xff]
    %v558 = vld [vmem:[#allocation2 + $0x80c] sm:$0xff]
    %v559 = vld [vmem:[#allocation2 + $0x814] sm:$0xff]
    %v560 = vld [vmem:[#allocation2 + $0x81c] sm:$0xff]
    %v561 = vld [vmem:[#allocation2 + $0x824] sm:$0xf]
    %v562 = vld [vmem:[#allocation2 + $0x828] sm:$0xff]
    %v563 = vld [vmem:[#allocation2 + $0x830] sm:$0xff]
    %v564 = vld [vmem:[#allocation2 + $0x838] sm:$0xff]
    %v565 = vld [vmem:[#allocation2 + $0x840] sm:$0xff]
    %v566 = vld [vmem:[#allocation2 + $0x848] sm:$0xf]
    %v567 = vld [vmem:[#allocation2 + $0x84c] sm:$0xff]
    %v568 = vld [vmem:[#allocation2 + $0x854] sm:$0xff]
    %v569 = vld [vmem:[#allocation2 + $0x85c] sm:$0xff]
    %v570 = vld [vmem:[#allocation2 + $0x864] sm:$0xff]
    %v571 = vld [vmem:[#allocation2 + $0x86c] sm:$0xf]
    %v572 = vld [vmem:[#allocation2 + $0x870] sm:$0xff]
    %v573 = vld [vmem:[#allocation2 + $0x878] sm:$0xff]
    %v574 = vld [vmem:[#allocation2 + $0x880] sm:$0xff]
    %v575 = vld [vmem:[#allocation2 + $0x888] sm:$0xff]
    %v576 = vld [vmem:[#allocation2 + $0x890] sm:$0xf]
    %v577 = vld [vmem:[#allocation2 + $0x894] sm:$0xff]
    %v578 = vld [vmem:[#allocation2 + $0x89c] sm:$0xff]
    %v579 = vld [vmem:[#allocation2 + $0x8a4] sm:$0xff]
    %v580 = vld [vmem:[#allocation2 + $0x8ac] sm:$0xff]
    %v581 = vld [vmem:[#allocation2 + $0x8b4] sm:$0xf]
    %v582 = vld [vmem:[#allocation2 + $0x8b8] sm:$0xff]
    %v583 = vld [vmem:[#allocation2 + $0x8c0] sm:$0xff]
    %v584 = vld [vmem:[#allocation2 + $0x8c8] sm:$0xff]
    %v585 = vld [vmem:[#allocation2 + $0x8d0] sm:$0xff]
    %v586 = vld [vmem:[#allocation2 + $0x8d8] sm:$0xf]
    %v587 = vld [vmem:[#allocation2 + $0x8dc] sm:$0xff]
    %v588 = vld [vmem:[#allocation2 + $0x8e4] sm:$0xff]
    %v589 = vld [vmem:[#allocation2 + $0x8ec] sm:$0xff]
    %v590 = vld [vmem:[#allocation2 + $0x8f4] sm:$0xff]
    %v591 = vld [vmem:[#allocation2 + $0x8fc] sm:$0xf]
    %v592 = vld [vmem:[#allocation2 + $0x900] sm:$0xff]
    %v593 = vld [vmem:[#allocation2 + $0x908] sm:$0xff]
    %v594 = vld [vmem:[#allocation2 + $0x910] sm:$0xff]
    %v595 = vld [vmem:[#allocation2 + $0x918] sm:$0xff]
    %v596 = vld [vmem:[#allocation2 + $0x920] sm:$0xf]
    %v597 = vld [vmem:[#allocation2 + $0x924] sm:$0xff]
    %v598 = vld [vmem:[#allocation2 + $0x92c] sm:$0xff]
    %v599 = vld [vmem:[#allocation2 + $0x934] sm:$0xff]
    %v600 = vld [vmem:[#allocation2 + $0x93c] sm:$0xff]
    %v601 = vld [vmem:[#allocation2 + $0x944] sm:$0xf]
    %v602 = vld [vmem:[#allocation2 + $0x948] sm:$0xff]
    %v603 = vld [vmem:[#allocation2 + $0x950] sm:$0xff]
    %v604 = vld [vmem:[#allocation2 + $0x958] sm:$0xff]
    %v605 = vld [vmem:[#allocation2 + $0x960] sm:$0xff]
    %v606 = vld [vmem:[#allocation2 + $0x968] sm:$0xf]
    %v607 = vld [vmem:[#allocation2 + $0x96c] sm:$0xff]
    %v608 = vld [vmem:[#allocation2 + $0x974] sm:$0xff]
    %v609 = vld [vmem:[#allocation2 + $0x97c] sm:$0xff]
    %v610 = vld [vmem:[#allocation2 + $0x984] sm:$0xff]
    %v611 = vld [vmem:[#allocation2 + $0x98c] sm:$0xf]
    %v612 = vld [vmem:[#allocation2 + $0x990] sm:$0xff]
    %v613 = vld [vmem:[#allocation2 + $0x998] sm:$0xff]
    %v614 = vld [vmem:[#allocation2 + $0x9a0] sm:$0xff]
    %v615 = vld [vmem:[#allocation2 + $0x9a8] sm:$0xff]
    %v616 = vld [vmem:[#allocation2 + $0x9b0] sm:$0xf]
    %v617 = vld [vmem:[#allocation2 + $0x9b4] sm:$0xff]
    %v618 = vld [vmem:[#allocation2 + $0x9bc] sm:$0xff]
    %v619 = vld [vmem:[#allocation2 + $0x9c4] sm:$0xff]
    %v620 = vld [vmem:[#allocation2 + $0x9cc] sm:$0xff]
    %v621 = vld [vmem:[#allocation2 + $0x9d4] sm:$0xf]
    %v622 = vld [vmem:[#allocation2 + $0x9d8] sm:$0xff]
    %v623 = vld [vmem:[#allocation2 + $0x9e0] sm:$0xff]
    %v624 = vld [vmem:[#allocation2 + $0x9e8] sm:$0xff]
    %v625 = vld [vmem:[#allocation2 + $0x9f0] sm:$0xff]
    %v626 = vld [vmem:[#allocation2 + $0x9f8] sm:$0xf]
    %v627 = vld [vmem:[#allocation2 + $0x9fc] sm:$0xff]
    %v628 = vld [vmem:[#allocation2 + $0xa04] sm:$0xff]
    %v629 = vld [vmem:[#allocation2 + $0xa0c] sm:$0xff]
    %v630 = vld [vmem:[#allocation2 + $0xa14] sm:$0xff]
    %v631 = vld [vmem:[#allocation2 + $0xa1c] sm:$0xf]
    %v632 = vld [vmem:[#allocation2 + $0xa20] sm:$0xff]
    %v633 = vld [vmem:[#allocation2 + $0xa28] sm:$0xff]
    %v634 = vld [vmem:[#allocation2 + $0xa30] sm:$0xff]
    %v635 = vld [vmem:[#allocation2 + $0xa38] sm:$0xff]
    %v636 = vld [vmem:[#allocation2 + $0xa40] sm:$0xf]
    %v637 = vld [vmem:[#allocation2 + $0xa44] sm:$0xff]
    %v638 = vld [vmem:[#allocation2 + $0xa4c] sm:$0xff]
    %v639 = vld [vmem:[#allocation2 + $0xa54] sm:$0xff]
    %v640 = vld [vmem:[#allocation2 + $0xa5c] sm:$0xff]
    %v641 = vld [vmem:[#allocation2 + $0xa64] sm:$0xf]
    %v642 = vld [vmem:[#allocation2 + $0xa68] sm:$0xff]
    %v643 = vld [vmem:[#allocation2 + $0xa70] sm:$0xff]
    %v644 = vld [vmem:[#allocation2 + $0xa78] sm:$0xff]
    %v645 = vld [vmem:[#allocation2 + $0xa80] sm:$0xff]
    %v646 = vld [vmem:[#allocation2 + $0xa88] sm:$0xf]
    %v647 = vld [vmem:[#allocation2 + $0xa8c] sm:$0xff]
    %v648 = vld [vmem:[#allocation2 + $0xa94] sm:$0xff]
    %v649 = vld [vmem:[#allocation2 + $0xa9c] sm:$0xff]
    %v650 = vld [vmem:[#allocation2 + $0xaa4] sm:$0xff]
    %v651 = vld [vmem:[#allocation2 + $0xaac] sm:$0xf]
    %v652 = vld [vmem:[#allocation2 + $0xab0] sm:$0xff]
    %v653 = vld [vmem:[#allocation2 + $0xab8] sm:$0xff]
    %v654 = vld [vmem:[#allocation2 + $0xac0] sm:$0xff]
    %v655 = vld [vmem:[#allocation2 + $0xac8] sm:$0xff]
    %v656 = vld [vmem:[#allocation2 + $0xad0] sm:$0xf]
    %v657 = vld [vmem:[#allocation2 + $0xad4] sm:$0xff]
    %v658 = vld [vmem:[#allocation2 + $0xadc] sm:$0xff]
    %v659 = vld [vmem:[#allocation2 + $0xae4] sm:$0xff]
    %v660 = vld [vmem:[#allocation2 + $0xaec] sm:$0xff]
    %v661 = vld [vmem:[#allocation2 + $0xaf4] sm:$0xf]
    %v662 = vld [vmem:[#allocation2 + $0xaf8] sm:$0xff]
    %v663 = vld [vmem:[#allocation2 + $0xb00] sm:$0xff]
    %v664 = vld [vmem:[#allocation2 + $0xb08] sm:$0xff]
    %v665 = vld [vmem:[#allocation2 + $0xb10] sm:$0xff]
    %v666 = vld [vmem:[#allocation2 + $0xb18] sm:$0xf]
    %v667 = vld [vmem:[#allocation2 + $0xb1c] sm:$0xff]
    %v668 = vld [vmem:[#allocation2 + $0xb24] sm:$0xff]
    %v669 = vld [vmem:[#allocation2 + $0xb2c] sm:$0xff]
    %v670 = vld [vmem:[#allocation2 + $0xb34] sm:$0xff]
    %v671 = vld [vmem:[#allocation2 + $0xb3c] sm:$0xf]
    %v672 = vld [vmem:[#allocation2 + $0xb40] sm:$0xff]
    %v673 = vld [vmem:[#allocation2 + $0xb48] sm:$0xff]
    %v674 = vld [vmem:[#allocation2 + $0xb50] sm:$0xff]
    %v675 = vld [vmem:[#allocation2 + $0xb58] sm:$0xff]
    %v676 = vld [vmem:[#allocation2 + $0xb60] sm:$0xf]
    %v677 = vld [vmem:[#allocation2 + $0xb64] sm:$0xff]
    %v678 = vld [vmem:[#allocation2 + $0xb6c] sm:$0xff]
    %v679 = vld [vmem:[#allocation2 + $0xb74] sm:$0xff]
    %v680 = vld [vmem:[#allocation2 + $0xb7c] sm:$0xff]
    %v681 = vld [vmem:[#allocation2 + $0xb84] sm:$0xf]
    %v682 = vld [vmem:[#allocation2 + $0xb88] sm:$0xff]
    %v683 = vld [vmem:[#allocation2 + $0xb90] sm:$0xff]
    %v684 = vld [vmem:[#allocation2 + $0xb98] sm:$0xff]
    %v685 = vld [vmem:[#allocation2 + $0xba0] sm:$0xff]
    %v686 = vld [vmem:[#allocation2 + $0xba8] sm:$0xf]
    %v687 = vld [vmem:[#allocation2 + $0xbac] sm:$0xff]
    %v688 = vld [vmem:[#allocation2 + $0xbb4] sm:$0xff]
    %v689 = vld [vmem:[#allocation2 + $0xbbc] sm:$0xff]
    %v690 = vld [vmem:[#allocation2 + $0xbc4] sm:$0xff]
    %v691 = vld [vmem:[#allocation2 + $0xbcc] sm:$0xf]
    %v692 = vld [vmem:[#allocation2 + $0xbd0] sm:$0xff]
    %v693 = vld [vmem:[#allocation2 + $0xbd8] sm:$0xff]
    %v694 = vld [vmem:[#allocation2 + $0xbe0] sm:$0xff]
    %v695 = vld [vmem:[#allocation2 + $0xbe8] sm:$0xff]
    %v696 = vld [vmem:[#allocation2 + $0xbf0] sm:$0xf]
    %v697 = vld [vmem:[#allocation2 + $0xbf4] sm:$0xff]
    %v698 = vld [vmem:[#allocation2 + $0xbfc] sm:$0xff]
    %v699 = vld [vmem:[#allocation2 + $0xc04] sm:$0xff]
    %v700 = vld [vmem:[#allocation2 + $0xc0c] sm:$0xff]
    %v701 = vld [vmem:[#allocation2 + $0xc14] sm:$0xf]
    %v702 = vld [vmem:[#allocation2 + $0xc18] sm:$0xff]
    %v703 = vld [vmem:[#allocation2 + $0xc20] sm:$0xff]
    %v704 = vld [vmem:[#allocation2 + $0xc28] sm:$0xff]
    %v705 = vld [vmem:[#allocation2 + $0xc30] sm:$0xff]
    %v706 = vld [vmem:[#allocation2 + $0xc38] sm:$0xf]
    %v707 = vld [vmem:[#allocation2 + $0xc3c] sm:$0xff]
    %v708 = vld [vmem:[#allocation2 + $0xc44] sm:$0xff]
    %v709 = vld [vmem:[#allocation2 + $0xc4c] sm:$0xff]
    %v710 = vld [vmem:[#allocation2 + $0xc54] sm:$0xff]
    %v711 = vld [vmem:[#allocation2 + $0xc5c] sm:$0xf]
    %v712 = vld [vmem:[#allocation2 + $0xc60] sm:$0xff]
    %v713 = vld [vmem:[#allocation2 + $0xc68] sm:$0xff]
    %v714 = vld [vmem:[#allocation2 + $0xc70] sm:$0xff]
    %v715 = vld [vmem:[#allocation2 + $0xc78] sm:$0xff]
    %v716 = vld [vmem:[#allocation2 + $0xc80] sm:$0xf]
    %v717 = vld [vmem:[#allocation2 + $0xc84] sm:$0xff]
    %v718 = vld [vmem:[#allocation2 + $0xc8c] sm:$0xff]
    %v719 = vld [vmem:[#allocation2 + $0xc94] sm:$0xff]
    %v720 = vld [vmem:[#allocation2 + $0xc9c] sm:$0xff]
    %v721 = vld [vmem:[#allocation2 + $0xca4] sm:$0xf]
    %v722 = vld [vmem:[#allocation2 + $0xca8] sm:$0xff]
    %v723 = vld [vmem:[#allocation2 + $0xcb0] sm:$0xff]
    %v724 = vld [vmem:[#allocation2 + $0xcb8] sm:$0xff]
    %v725 = vld [vmem:[#allocation2 + $0xcc0] sm:$0xff]
    %v726 = vld [vmem:[#allocation2 + $0xcc8] sm:$0xf]
    %v727 = vld [vmem:[#allocation2 + $0xccc] sm:$0xff]
    %v728 = vld [vmem:[#allocation2 + $0xcd4] sm:$0xff]
    %v729 = vld [vmem:[#allocation2 + $0xcdc] sm:$0xff]
    %v730 = vld [vmem:[#allocation2 + $0xce4] sm:$0xff]
    %v731 = vld [vmem:[#allocation2 + $0xcec] sm:$0xf]
    %v732 = vld [vmem:[#allocation2 + $0xcf0] sm:$0xff]
    %v733 = vld [vmem:[#allocation2 + $0xcf8] sm:$0xff]
    %v734 = vld [vmem:[#allocation2 + $0xd00] sm:$0xff]
    %v735 = vld [vmem:[#allocation2 + $0xd08] sm:$0xff]
    %v736 = vld [vmem:[#allocation2 + $0xd10] sm:$0xf]
    %v737 = vld [vmem:[#allocation2 + $0xd14] sm:$0xff]
    %v738 = vld [vmem:[#allocation2 + $0xd1c] sm:$0xff]
    %v739 = vld [vmem:[#allocation2 + $0xd24] sm:$0xff]
    %v740 = vld [vmem:[#allocation2 + $0xd2c] sm:$0xff]
    %v741 = vld [vmem:[#allocation2 + $0xd34] sm:$0xf]
    %v742 = vld [vmem:[#allocation2 + $0xd38] sm:$0xff]
    %v743 = vld [vmem:[#allocation2 + $0xd40] sm:$0xff]
    %v744 = vld [vmem:[#allocation2 + $0xd48] sm:$0xff]
    %v745 = vld [vmem:[#allocation2 + $0xd50] sm:$0xff]
    %v746 = vld [vmem:[#allocation2 + $0xd58] sm:$0xf]
    %v747 = vld [vmem:[#allocation2 + $0xd5c] sm:$0xff]
    %v748 = vld [vmem:[#allocation2 + $0xd64] sm:$0xff]
    %v749 = vld [vmem:[#allocation2 + $0xd6c] sm:$0xff]
    %v750 = vld [vmem:[#allocation2 + $0xd74] sm:$0xff]
    %v751 = vld [vmem:[#allocation2 + $0xd7c] sm:$0xf]
    %v752 = vld [vmem:[#allocation2 + $0xd80] sm:$0xff]
    %v753 = vld [vmem:[#allocation2 + $0xd88] sm:$0xff]
    %v754 = vld [vmem:[#allocation2 + $0xd90] sm:$0xff]
    %v755 = vld [vmem:[#allocation2 + $0xd98] sm:$0xff]
    %v756 = vld [vmem:[#allocation2 + $0xda0] sm:$0xf]
    %v757 = vld [vmem:[#allocation2 + $0xda4] sm:$0xff]
    %v758 = vld [vmem:[#allocation2 + $0xdac] sm:$0xff]
    %v759 = vld [vmem:[#allocation2 + $0xdb4] sm:$0xff]
    %v760 = vld [vmem:[#allocation2 + $0xdbc] sm:$0xff]
    %v761 = vld [vmem:[#allocation2 + $0xdc4] sm:$0xf]
    %v762 = vld [vmem:[#allocation2 + $0xdc8] sm:$0xff]
    %v763 = vld [vmem:[#allocation2 + $0xdd0] sm:$0xff]
    %v764 = vld [vmem:[#allocation2 + $0xdd8] sm:$0xff]
    %v765 = vld [vmem:[#allocation2 + $0xde0] sm:$0xff]
    %v766 = vld [vmem:[#allocation2 + $0xde8] sm:$0xf]
    %v767 = vld [vmem:[#allocation2 + $0xdec] sm:$0xff]
    %v768 = vld [vmem:[#allocation2 + $0xdf4] sm:$0xff]
    %v769 = vld [vmem:[#allocation2 + $0xdfc] sm:$0xff]
    %v770 = vld [vmem:[#allocation2 + $0xe04] sm:$0xff]
    %v771 = vld [vmem:[#allocation2 + $0xe0c] sm:$0xf]
    %v772 = vld [vmem:[#allocation2 + $0xe10] sm:$0xff]
    %v773 = vld [vmem:[#allocation2 + $0xe18] sm:$0xff]
    %v774 = vld [vmem:[#allocation2 + $0xe20] sm:$0xff]
    %v775 = vld [vmem:[#allocation2 + $0xe28] sm:$0xff]
    %v776 = vld [vmem:[#allocation2 + $0xe30] sm:$0xf]
    %v777 = vld [vmem:[#allocation2 + $0xe34] sm:$0xff]
    %v778 = vld [vmem:[#allocation2 + $0xe3c] sm:$0xff]
    %v779 = vld [vmem:[#allocation2 + $0xe44] sm:$0xff]
    %v780 = vld [vmem:[#allocation2 + $0xe4c] sm:$0xff]
    %v781 = vld [vmem:[#allocation2 + $0xe54] sm:$0xf]
    %v782 = vld [vmem:[#allocation2 + $0xe58] sm:$0xff]
    %v783 = vld [vmem:[#allocation2 + $0xe60] sm:$0xff]
    %v784 = vld [vmem:[#allocation2 + $0xe68] sm:$0xff]
    %v785 = vld [vmem:[#allocation2 + $0xe70] sm:$0xff]
    %v786 = vld [vmem:[#allocation2 + $0xe78] sm:$0xf]
    %v787 = vld [vmem:[#allocation2 + $0xe7c] sm:$0xff]
    %v788 = vld [vmem:[#allocation2 + $0xe84] sm:$0xff]
    %v789 = vld [vmem:[#allocation2 + $0xe8c] sm:$0xff]
    %v790 = vld [vmem:[#allocation2 + $0xe94] sm:$0xff]
    %v791 = vld [vmem:[#allocation2 + $0xe9c] sm:$0xf]
    %v792 = vld [vmem:[#allocation2 + $0xea0] sm:$0xff]
    %v793 = vld [vmem:[#allocation2 + $0xea8] sm:$0xff]
    %v794 = vld [vmem:[#allocation2 + $0xeb0] sm:$0xff]
    %v795 = vld [vmem:[#allocation2 + $0xeb8] sm:$0xff]
    %v796 = vld [vmem:[#allocation2 + $0xec0] sm:$0xf]
    %v797 = vld [vmem:[#allocation2 + $0xec4] sm:$0xff]
    %v798 = vld [vmem:[#allocation2 + $0xecc] sm:$0xff]
    %v799 = vld [vmem:[#allocation2 + $0xed4] sm:$0xff]
    %v800 = vld [vmem:[#allocation2 + $0xedc] sm:$0xff]
    %v801 = vld [vmem:[#allocation2 + $0xee4] sm:$0xf]
    %v802 = vld [vmem:[#allocation2 + $0xee8] sm:$0xff]
    %v803 = vld [vmem:[#allocation2 + $0xef0] sm:$0xff]
    %v804 = vld [vmem:[#allocation2 + $0xef8] sm:$0xff]
    %v805 = vld [vmem:[#allocation2 + $0xf00] sm:$0xff]
    %v806 = vld [vmem:[#allocation2 + $0xf08] sm:$0xf]
    %v807 = vld [vmem:[#allocation2 + $0xf0c] sm:$0xff]
    %v808 = vld [vmem:[#allocation2 + $0xf14] sm:$0xff]
    %v809 = vld [vmem:[#allocation2 + $0xf1c] sm:$0xff]
    %v810 = vld [vmem:[#allocation2 + $0xf24] sm:$0xff]
    %v811 = vld [vmem:[#allocation2 + $0xf2c] sm:$0xf]
    %v812 = vld [vmem:[#allocation2 + $0xf30] sm:$0xff]
    %v813 = vld [vmem:[#allocation2 + $0xf38] sm:$0xff]
    %v814 = vld [vmem:[#allocation2 + $0xf40] sm:$0xff]
    %v815 = vld [vmem:[#allocation2 + $0xf48] sm:$0xff]
    %v816 = vld [vmem:[#allocation2 + $0xf50] sm:$0xf]
    %v817 = vld [vmem:[#allocation2 + $0xf54] sm:$0xff]
    %v818 = vld [vmem:[#allocation2 + $0xf5c] sm:$0xff]
    %v819 = vld [vmem:[#allocation2 + $0xf64] sm:$0xff]
    %v820 = vld [vmem:[#allocation2 + $0xf6c] sm:$0xff]
    %v821 = vld [vmem:[#allocation2 + $0xf74] sm:$0xf]
    %v822 = vld [vmem:[#allocation2 + $0xf78] sm:$0xff]
    %v823 = vld [vmem:[#allocation2 + $0xf80] sm:$0xff]
    %v824 = vld [vmem:[#allocation2 + $0xf88] sm:$0xff]
    %v825 = vld [vmem:[#allocation2 + $0xf90] sm:$0xff]
    %v826 = vld [vmem:[#allocation2 + $0xf98] sm:$0xf]
    %v827 = vld [vmem:[#allocation2 + $0xf9c] sm:$0xff]
    %v828 = vld [vmem:[#allocation2 + $0xfa4] sm:$0xff]
    %v829 = vld [vmem:[#allocation2 + $0xfac] sm:$0xff]
    %v830 = vld [vmem:[#allocation2 + $0xfb4] sm:$0xff]
    %v831 = vld [vmem:[#allocation2 + $0xfbc] sm:$0xf]
    %v832 = vld [vmem:[#allocation4] sm:$0xff]
    %v833 = vld [vmem:[#allocation4 + $0x8] sm:$0x1]
    %v836 = vlaneseq
    %v837 = vshrl.u32 %v836, 7
    %v838 = vsub.s32 0, %v837
    %v839 = vrot.slane %v832, %v838
    %v840 = vlaneseq
    %v841 = vshrl.u32 %v840, 7
    %v842 = vsub.s32 1, %v841
    %v843 = vrot.slane %v832, %v842
    %v844 = vlaneseq
    %v845 = vshrl.u32 %v844, 7
    %v846 = vsub.s32 2, %v845
    %v847 = vrot.slane %v832, %v846
    %v848 = vlaneseq
    %v849 = vshrl.u32 %v848, 7
    %v850 = vsub.s32 3, %v849
    %v851 = vrot.slane %v832, %v850
    %v852 = vlaneseq
    %v853 = vshrl.u32 %v852, 7
    %v854 = vsub.s32 4, %v853
    %v855 = vrot.slane %v832, %v854
    %v856 = vlaneseq
    %v857 = vshrl.u32 %v856, 7
    %v858 = vsub.s32 5, %v857
    %v859 = vrot.slane %v832, %v858
    %v860 = vlaneseq
    %v861 = vshrl.u32 %v860, 7
    %v862 = vsub.s32 6, %v861
    %v863 = vrot.slane %v832, %v862
    %v864 = vlaneseq
    %v865 = vshrl.u32 %v864, 7
    %v866 = vsub.s32 7, %v865
    %v867 = vrot.slane %v832, %v866
    %v868 = vlaneseq
    %v869 = vshrl.u32 %v868, 7
    %v870 = vsub.s32 0, %v869
    %v871 = vrot.slane %v833, %v870
    %v1441 = vunpack.c.l.b16 %v272
    %v1442 = vunpack.c.h.b16 %v272
    %v1443 = vunpack.c.l.b16 %v273
    %v1444 = vunpack.c.h.b16 %v273
    %v1445 = vunpack.c.l.b16 %v274
    %v1446 = vunpack.c.h.b16 %v274
    %v1447 = vunpack.c.l.b16 %v275
    %v1448 = vunpack.c.h.b16 %v275
    %v1449 = vunpack.c.l.b16 %v276
    %v1450 = vunpack.c.l.b16 %v277
    %v1451 = vunpack.c.h.b16 %v277
    %v1452 = vunpack.c.l.b16 %v278
    %v1453 = vunpack.c.h.b16 %v278
    %v1454 = vunpack.c.l.b16 %v279
    %v1455 = vunpack.c.h.b16 %v279
    %v1456 = vunpack.c.l.b16 %v280
    %v1457 = vunpack.c.h.b16 %v280
    %v1458 = vunpack.c.l.b16 %v281
    %v1459 = vunpack.c.l.b16 %v282
    %v1460 = vunpack.c.h.b16 %v282
    %v1461 = vunpack.c.l.b16 %v283
    %v1462 = vunpack.c.h.b16 %v283
    %v1463 = vunpack.c.l.b16 %v284
    %v1464 = vunpack.c.h.b16 %v284
    %v1465 = vunpack.c.l.b16 %v285
    %v1466 = vunpack.c.h.b16 %v285
    %v1467 = vunpack.c.l.b16 %v286
    %v1468 = vunpack.c.l.b16 %v287
    %v1469 = vunpack.c.h.b16 %v287
    %v1470 = vunpack.c.l.b16 %v288
    %v1471 = vunpack.c.h.b16 %v288
    %v1472 = vunpack.c.l.b16 %v289
    %v1473 = vunpack.c.h.b16 %v289
    %v1474 = vunpack.c.l.b16 %v290
    %v1475 = vunpack.c.h.b16 %v290
    %v1476 = vunpack.c.l.b16 %v291
    %v1477 = vunpack.c.l.b16 %v292
    %v1478 = vunpack.c.h.b16 %v292
    %v1479 = vunpack.c.l.b16 %v293
    %v1480 = vunpack.c.h.b16 %v293
    %v1481 = vunpack.c.l.b16 %v294
    %v1482 = vunpack.c.h.b16 %v294
    %v1483 = vunpack.c.l.b16 %v295
    %v1484 = vunpack.c.h.b16 %v295
    %v1485 = vunpack.c.l.b16 %v296
    %v1486 = vunpack.c.l.b16 %v297
    %v1487 = vunpack.c.h.b16 %v297
    %v1488 = vunpack.c.l.b16 %v298
    %v1489 = vunpack.c.h.b16 %v298
    %v1490 = vunpack.c.l.b16 %v299
    %v1491 = vunpack.c.h.b16 %v299
    %v1492 = vunpack.c.l.b16 %v300
    %v1493 = vunpack.c.h.b16 %v300
    %v1494 = vunpack.c.l.b16 %v301
    %v1495 = vunpack.c.l.b16 %v302
    %v1496 = vunpack.c.h.b16 %v302
    %v1497 = vunpack.c.l.b16 %v303
    %v1498 = vunpack.c.h.b16 %v303
    %v1499 = vunpack.c.l.b16 %v304
    %v1500 = vunpack.c.h.b16 %v304
    %v1501 = vunpack.c.l.b16 %v305
    %v1502 = vunpack.c.h.b16 %v305
    %v1503 = vunpack.c.l.b16 %v306
    %v1504 = vunpack.c.l.b16 %v307
    %v1505 = vunpack.c.h.b16 %v307
    %v1506 = vunpack.c.l.b16 %v308
    %v1507 = vunpack.c.h.b16 %v308
    %v1508 = vunpack.c.l.b16 %v309
    %v1509 = vunpack.c.h.b16 %v309
    %v1510 = vunpack.c.l.b16 %v310
    %v1511 = vunpack.c.h.b16 %v310
    %v1512 = vunpack.c.l.b16 %v311
    %v1513 = vunpack.c.l.b16 %v312
    %v1514 = vunpack.c.h.b16 %v312
    %v1515 = vunpack.c.l.b16 %v313
    %v1516 = vunpack.c.h.b16 %v313
    %v1517 = vunpack.c.l.b16 %v314
    %v1518 = vunpack.c.h.b16 %v314
    %v1519 = vunpack.c.l.b16 %v315
    %v1520 = vunpack.c.h.b16 %v315
    %v1521 = vunpack.c.l.b16 %v316
    %v1522 = vunpack.c.l.b16 %v317
    %v1523 = vunpack.c.h.b16 %v317
    %v1524 = vunpack.c.l.b16 %v318
    %v1525 = vunpack.c.h.b16 %v318
    %v1526 = vunpack.c.l.b16 %v319
    %v1527 = vunpack.c.h.b16 %v319
    %v1528 = vunpack.c.l.b16 %v320
    %v1529 = vunpack.c.h.b16 %v320
    %v1530 = vunpack.c.l.b16 %v321
    %v1531 = vunpack.c.l.b16 %v322
    %v1532 = vunpack.c.h.b16 %v322
    %v1533 = vunpack.c.l.b16 %v323
    %v1534 = vunpack.c.h.b16 %v323
    %v1535 = vunpack.c.l.b16 %v324
    %v1536 = vunpack.c.h.b16 %v324
    %v1537 = vunpack.c.l.b16 %v325
    %v1538 = vunpack.c.h.b16 %v325
    %v1539 = vunpack.c.l.b16 %v326
    %v1540 = vunpack.c.l.b16 %v327
    %v1541 = vunpack.c.h.b16 %v327
    %v1542 = vunpack.c.l.b16 %v328
    %v1543 = vunpack.c.h.b16 %v328
    %v1544 = vunpack.c.l.b16 %v329
    %v1545 = vunpack.c.h.b16 %v329
    %v1546 = vunpack.c.l.b16 %v330
    %v1547 = vunpack.c.h.b16 %v330
    %v1548 = vunpack.c.l.b16 %v331
    %v1549 = vunpack.c.l.b16 %v332
    %v1550 = vunpack.c.h.b16 %v332
    %v1551 = vunpack.c.l.b16 %v333
    %v1552 = vunpack.c.h.b16 %v333
    %v1553 = vunpack.c.l.b16 %v334
    %v1554 = vunpack.c.h.b16 %v334
    %v1555 = vunpack.c.l.b16 %v335
    %v1556 = vunpack.c.h.b16 %v335
    %v1557 = vunpack.c.l.b16 %v336
    %v1558 = vunpack.c.l.b16 %v337
    %v1559 = vunpack.c.h.b16 %v337
    %v1560 = vunpack.c.l.b16 %v338
    %v1561 = vunpack.c.h.b16 %v338
    %v1562 = vunpack.c.l.b16 %v339
    %v1563 = vunpack.c.h.b16 %v339
    %v1564 = vunpack.c.l.b16 %v340
    %v1565 = vunpack.c.h.b16 %v340
    %v1566 = vunpack.c.l.b16 %v341
    %v1567 = vunpack.c.l.b16 %v342
    %v1568 = vunpack.c.h.b16 %v342
    %v1569 = vunpack.c.l.b16 %v343
    %v1570 = vunpack.c.h.b16 %v343
    %v1571 = vunpack.c.l.b16 %v344
    %v1572 = vunpack.c.h.b16 %v344
    %v1573 = vunpack.c.l.b16 %v345
    %v1574 = vunpack.c.h.b16 %v345
    %v1575 = vunpack.c.l.b16 %v346
    %v1576 = vunpack.c.l.b16 %v347
    %v1577 = vunpack.c.h.b16 %v347
    %v1578 = vunpack.c.l.b16 %v348
    %v1579 = vunpack.c.h.b16 %v348
    %v1580 = vunpack.c.l.b16 %v349
    %v1581 = vunpack.c.h.b16 %v349
    %v1582 = vunpack.c.l.b16 %v350
    %v1583 = vunpack.c.h.b16 %v350
    %v1584 = vunpack.c.l.b16 %v351
    %v1585 = vunpack.c.l.b16 %v352
    %v1586 = vunpack.c.h.b16 %v352
    %v1587 = vunpack.c.l.b16 %v353
    %v1588 = vunpack.c.h.b16 %v353
    %v1589 = vunpack.c.l.b16 %v354
    %v1590 = vunpack.c.h.b16 %v354
    %v1591 = vunpack.c.l.b16 %v355
    %v1592 = vunpack.c.h.b16 %v355
    %v1593 = vunpack.c.l.b16 %v356
    %v1594 = vunpack.c.l.b16 %v357
    %v1595 = vunpack.c.h.b16 %v357
    %v1596 = vunpack.c.l.b16 %v358
    %v1597 = vunpack.c.h.b16 %v358
    %v1598 = vunpack.c.l.b16 %v359
    %v1599 = vunpack.c.h.b16 %v359
    %v1600 = vunpack.c.l.b16 %v360
    %v1601 = vunpack.c.h.b16 %v360
    %v1602 = vunpack.c.l.b16 %v361
    %v1603 = vunpack.c.l.b16 %v362
    %v1604 = vunpack.c.h.b16 %v362
    %v1605 = vunpack.c.l.b16 %v363
    %v1606 = vunpack.c.h.b16 %v363
    %v1607 = vunpack.c.l.b16 %v364
    %v1608 = vunpack.c.h.b16 %v364
    %v1609 = vunpack.c.l.b16 %v365
    %v1610 = vunpack.c.h.b16 %v365
    %v1611 = vunpack.c.l.b16 %v366
    %v1612 = vunpack.c.l.b16 %v367
    %v1613 = vunpack.c.h.b16 %v367
    %v1614 = vunpack.c.l.b16 %v368
    %v1615 = vunpack.c.h.b16 %v368
    %v1616 = vunpack.c.l.b16 %v369
    %v1617 = vunpack.c.h.b16 %v369
    %v1618 = vunpack.c.l.b16 %v370
    %v1619 = vunpack.c.h.b16 %v370
    %v1620 = vunpack.c.l.b16 %v371
    %v1621 = vunpack.c.l.b16 %v372
    %v1622 = vunpack.c.h.b16 %v372
    %v1623 = vunpack.c.l.b16 %v373
    %v1624 = vunpack.c.h.b16 %v373
    %v1625 = vunpack.c.l.b16 %v374
    %v1626 = vunpack.c.h.b16 %v374
    %v1627 = vunpack.c.l.b16 %v375
    %v1628 = vunpack.c.h.b16 %v375
    %v1629 = vunpack.c.l.b16 %v376
    %v1630 = vunpack.c.l.b16 %v377
    %v1631 = vunpack.c.h.b16 %v377
    %v1632 = vunpack.c.l.b16 %v378
    %v1633 = vunpack.c.h.b16 %v378
    %v1634 = vunpack.c.l.b16 %v379
    %v1635 = vunpack.c.h.b16 %v379
    %v1636 = vunpack.c.l.b16 %v380
    %v1637 = vunpack.c.h.b16 %v380
    %v1638 = vunpack.c.l.b16 %v381
    %v1639 = vunpack.c.l.b16 %v382
    %v1640 = vunpack.c.h.b16 %v382
    %v1641 = vunpack.c.l.b16 %v383
    %v1642 = vunpack.c.h.b16 %v383
    %v1643 = vunpack.c.l.b16 %v384
    %v1644 = vunpack.c.h.b16 %v384
    %v1645 = vunpack.c.l.b16 %v385
    %v1646 = vunpack.c.h.b16 %v385
    %v1647 = vunpack.c.l.b16 %v386
    %v1648 = vunpack.c.l.b16 %v387
    %v1649 = vunpack.c.h.b16 %v387
    %v1650 = vunpack.c.l.b16 %v388
    %v1651 = vunpack.c.h.b16 %v388
    %v1652 = vunpack.c.l.b16 %v389
    %v1653 = vunpack.c.h.b16 %v389
    %v1654 = vunpack.c.l.b16 %v390
    %v1655 = vunpack.c.h.b16 %v390
    %v1656 = vunpack.c.l.b16 %v391
    %v1657 = vunpack.c.l.b16 %v392
    %v1658 = vunpack.c.h.b16 %v392
    %v1659 = vunpack.c.l.b16 %v393
    %v1660 = vunpack.c.h.b16 %v393
    %v1661 = vunpack.c.l.b16 %v394
    %v1662 = vunpack.c.h.b16 %v394
    %v1663 = vunpack.c.l.b16 %v395
    %v1664 = vunpack.c.h.b16 %v395
    %v1665 = vunpack.c.l.b16 %v396
    %v1666 = vunpack.c.l.b16 %v397
    %v1667 = vunpack.c.h.b16 %v397
    %v1668 = vunpack.c.l.b16 %v398
    %v1669 = vunpack.c.h.b16 %v398
    %v1670 = vunpack.c.l.b16 %v399
    %v1671 = vunpack.c.h.b16 %v399
    %v1672 = vunpack.c.l.b16 %v400
    %v1673 = vunpack.c.h.b16 %v400
    %v1674 = vunpack.c.l.b16 %v401
    %v1675 = vunpack.c.l.b16 %v402
    %v1676 = vunpack.c.h.b16 %v402
    %v1677 = vunpack.c.l.b16 %v403
    %v1678 = vunpack.c.h.b16 %v403
    %v1679 = vunpack.c.l.b16 %v404
    %v1680 = vunpack.c.h.b16 %v404
    %v1681 = vunpack.c.l.b16 %v405
    %v1682 = vunpack.c.h.b16 %v405
    %v1683 = vunpack.c.l.b16 %v406
    %v1684 = vunpack.c.l.b16 %v407
    %v1685 = vunpack.c.h.b16 %v407
    %v1686 = vunpack.c.l.b16 %v408
    %v1687 = vunpack.c.h.b16 %v408
    %v1688 = vunpack.c.l.b16 %v409
    %v1689 = vunpack.c.h.b16 %v409
    %v1690 = vunpack.c.l.b16 %v410
    %v1691 = vunpack.c.h.b16 %v410
    %v1692 = vunpack.c.l.b16 %v411
    %v1693 = vunpack.c.l.b16 %v412
    %v1694 = vunpack.c.h.b16 %v412
    %v1695 = vunpack.c.l.b16 %v413
    %v1696 = vunpack.c.h.b16 %v413
    %v1697 = vunpack.c.l.b16 %v414
    %v1698 = vunpack.c.h.b16 %v414
    %v1699 = vunpack.c.l.b16 %v415
    %v1700 = vunpack.c.h.b16 %v415
    %v1701 = vunpack.c.l.b16 %v416
    %v1702 = vunpack.c.l.b16 %v417
    %v1703 = vunpack.c.h.b16 %v417
    %v1704 = vunpack.c.l.b16 %v418
    %v1705 = vunpack.c.h.b16 %v418
    %v1706 = vunpack.c.l.b16 %v419
    %v1707 = vunpack.c.h.b16 %v419
    %v1708 = vunpack.c.l.b16 %v420
    %v1709 = vunpack.c.h.b16 %v420
    %v1710 = vunpack.c.l.b16 %v421
    %v1711 = vunpack.c.l.b16 %v422
    %v1712 = vunpack.c.h.b16 %v422
    %v1713 = vunpack.c.l.b16 %v423
    %v1714 = vunpack.c.h.b16 %v423
    %v1715 = vunpack.c.l.b16 %v424
    %v1716 = vunpack.c.h.b16 %v424
    %v1717 = vunpack.c.l.b16 %v425
    %v1718 = vunpack.c.h.b16 %v425
    %v1719 = vunpack.c.l.b16 %v426
    %v1720 = vunpack.c.l.b16 %v427
    %v1721 = vunpack.c.h.b16 %v427
    %v1722 = vunpack.c.l.b16 %v428
    %v1723 = vunpack.c.h.b16 %v428
    %v1724 = vunpack.c.l.b16 %v429
    %v1725 = vunpack.c.h.b16 %v429
    %v1726 = vunpack.c.l.b16 %v430
    %v1727 = vunpack.c.h.b16 %v430
    %v1728 = vunpack.c.l.b16 %v431
    %v1729 = vunpack.c.l.b16 %v432
    %v1730 = vunpack.c.h.b16 %v432
    %v1731 = vunpack.c.l.b16 %v433
    %v1732 = vunpack.c.h.b16 %v433
    %v1733 = vunpack.c.l.b16 %v434
    %v1734 = vunpack.c.h.b16 %v434
    %v1735 = vunpack.c.l.b16 %v435
    %v1736 = vunpack.c.h.b16 %v435
    %v1737 = vunpack.c.l.b16 %v436
    %v1738 = vunpack.c.l.b16 %v437
    %v1739 = vunpack.c.h.b16 %v437
    %v1740 = vunpack.c.l.b16 %v438
    %v1741 = vunpack.c.h.b16 %v438
    %v1742 = vunpack.c.l.b16 %v439
    %v1743 = vunpack.c.h.b16 %v439
    %v1744 = vunpack.c.l.b16 %v440
    %v1745 = vunpack.c.h.b16 %v440
    %v1746 = vunpack.c.l.b16 %v441
    %v1747 = vunpack.c.l.b16 %v442
    %v1748 = vunpack.c.h.b16 %v442
    %v1749 = vunpack.c.l.b16 %v443
    %v1750 = vunpack.c.h.b16 %v443
    %v1751 = vunpack.c.l.b16 %v444
    %v1752 = vunpack.c.h.b16 %v444
    %v1753 = vunpack.c.l.b16 %v445
    %v1754 = vunpack.c.h.b16 %v445
    %v1755 = vunpack.c.l.b16 %v446
    %v1756 = vunpack.c.l.b16 %v447
    %v1757 = vunpack.c.h.b16 %v447
    %v1758 = vunpack.c.l.b16 %v448
    %v1759 = vunpack.c.h.b16 %v448
    %v1760 = vunpack.c.l.b16 %v449
    %v1761 = vunpack.c.h.b16 %v449
    %v1762 = vunpack.c.l.b16 %v450
    %v1763 = vunpack.c.h.b16 %v450
    %v1764 = vunpack.c.l.b16 %v451
    %v1765 = vunpack.c.l.b16 %v452
    %v1766 = vunpack.c.h.b16 %v452
    %v1767 = vunpack.c.l.b16 %v453
    %v1768 = vunpack.c.h.b16 %v453
    %v1769 = vunpack.c.l.b16 %v454
    %v1770 = vunpack.c.h.b16 %v454
    %v1771 = vunpack.c.l.b16 %v455
    %v1772 = vunpack.c.h.b16 %v455
    %v1773 = vunpack.c.l.b16 %v456
    %v1774 = vunpack.c.l.b16 %v457
    %v1775 = vunpack.c.h.b16 %v457
    %v1776 = vunpack.c.l.b16 %v458
    %v1777 = vunpack.c.h.b16 %v458
    %v1778 = vunpack.c.l.b16 %v459
    %v1779 = vunpack.c.h.b16 %v459
    %v1780 = vunpack.c.l.b16 %v460
    %v1781 = vunpack.c.h.b16 %v460
    %v1782 = vunpack.c.l.b16 %v461
    %v1783 = vunpack.c.l.b16 %v462
    %v1784 = vunpack.c.h.b16 %v462
    %v1785 = vunpack.c.l.b16 %v463
    %v1786 = vunpack.c.h.b16 %v463
    %v1787 = vunpack.c.l.b16 %v464
    %v1788 = vunpack.c.h.b16 %v464
    %v1789 = vunpack.c.l.b16 %v465
    %v1790 = vunpack.c.h.b16 %v465
    %v1791 = vunpack.c.l.b16 %v466
    %v1792 = vunpack.c.l.b16 %v467
    %v1793 = vunpack.c.h.b16 %v467
    %v1794 = vunpack.c.l.b16 %v468
    %v1795 = vunpack.c.h.b16 %v468
    %v1796 = vunpack.c.l.b16 %v469
    %v1797 = vunpack.c.h.b16 %v469
    %v1798 = vunpack.c.l.b16 %v470
    %v1799 = vunpack.c.h.b16 %v470
    %v1800 = vunpack.c.l.b16 %v471
    %v1801 = vunpack.c.l.b16 %v472
    %v1802 = vunpack.c.h.b16 %v472
    %v1803 = vunpack.c.l.b16 %v473
    %v1804 = vunpack.c.h.b16 %v473
    %v1805 = vunpack.c.l.b16 %v474
    %v1806 = vunpack.c.h.b16 %v474
    %v1807 = vunpack.c.l.b16 %v475
    %v1808 = vunpack.c.h.b16 %v475
    %v1809 = vunpack.c.l.b16 %v476
    %v1810 = vunpack.c.l.b16 %v477
    %v1811 = vunpack.c.h.b16 %v477
    %v1812 = vunpack.c.l.b16 %v478
    %v1813 = vunpack.c.h.b16 %v478
    %v1814 = vunpack.c.l.b16 %v479
    %v1815 = vunpack.c.h.b16 %v479
    %v1816 = vunpack.c.l.b16 %v480
    %v1817 = vunpack.c.h.b16 %v480
    %v1818 = vunpack.c.l.b16 %v481
    %v1819 = vunpack.c.l.b16 %v482
    %v1820 = vunpack.c.h.b16 %v482
    %v1821 = vunpack.c.l.b16 %v483
    %v1822 = vunpack.c.h.b16 %v483
    %v1823 = vunpack.c.l.b16 %v484
    %v1824 = vunpack.c.h.b16 %v484
    %v1825 = vunpack.c.l.b16 %v485
    %v1826 = vunpack.c.h.b16 %v485
    %v1827 = vunpack.c.l.b16 %v486
    %v1828 = vunpack.c.l.b16 %v487
    %v1829 = vunpack.c.h.b16 %v487
    %v1830 = vunpack.c.l.b16 %v488
    %v1831 = vunpack.c.h.b16 %v488
    %v1832 = vunpack.c.l.b16 %v489
    %v1833 = vunpack.c.h.b16 %v489
    %v1834 = vunpack.c.l.b16 %v490
    %v1835 = vunpack.c.h.b16 %v490
    %v1836 = vunpack.c.l.b16 %v491
    %v1837 = vunpack.c.l.b16 %v492
    %v1838 = vunpack.c.h.b16 %v492
    %v1839 = vunpack.c.l.b16 %v493
    %v1840 = vunpack.c.h.b16 %v493
    %v1841 = vunpack.c.l.b16 %v494
    %v1842 = vunpack.c.h.b16 %v494
    %v1843 = vunpack.c.l.b16 %v495
    %v1844 = vunpack.c.h.b16 %v495
    %v1845 = vunpack.c.l.b16 %v496
    %v1846 = vunpack.c.l.b16 %v497
    %v1847 = vunpack.c.h.b16 %v497
    %v1848 = vunpack.c.l.b16 %v498
    %v1849 = vunpack.c.h.b16 %v498
    %v1850 = vunpack.c.l.b16 %v499
    %v1851 = vunpack.c.h.b16 %v499
    %v1852 = vunpack.c.l.b16 %v500
    %v1853 = vunpack.c.h.b16 %v500
    %v1854 = vunpack.c.l.b16 %v501
    %v1855 = vunpack.c.l.b16 %v502
    %v1856 = vunpack.c.h.b16 %v502
    %v1857 = vunpack.c.l.b16 %v503
    %v1858 = vunpack.c.h.b16 %v503
    %v1859 = vunpack.c.l.b16 %v504
    %v1860 = vunpack.c.h.b16 %v504
    %v1861 = vunpack.c.l.b16 %v505
    %v1862 = vunpack.c.h.b16 %v505
    %v1863 = vunpack.c.l.b16 %v506
    %v1864 = vunpack.c.l.b16 %v507
    %v1865 = vunpack.c.h.b16 %v507
    %v1866 = vunpack.c.l.b16 %v508
    %v1867 = vunpack.c.h.b16 %v508
    %v1868 = vunpack.c.l.b16 %v509
    %v1869 = vunpack.c.h.b16 %v509
    %v1870 = vunpack.c.l.b16 %v510
    %v1871 = vunpack.c.h.b16 %v510
    %v1872 = vunpack.c.l.b16 %v511
    %v1873 = vunpack.c.l.b16 %v512
    %v1874 = vunpack.c.h.b16 %v512
    %v1875 = vunpack.c.l.b16 %v513
    %v1876 = vunpack.c.h.b16 %v513
    %v1877 = vunpack.c.l.b16 %v514
    %v1878 = vunpack.c.h.b16 %v514
    %v1879 = vunpack.c.l.b16 %v515
    %v1880 = vunpack.c.h.b16 %v515
    %v1881 = vunpack.c.l.b16 %v516
    %v1882 = vunpack.c.l.b16 %v517
    %v1883 = vunpack.c.h.b16 %v517
    %v1884 = vunpack.c.l.b16 %v518
    %v1885 = vunpack.c.h.b16 %v518
    %v1886 = vunpack.c.l.b16 %v519
    %v1887 = vunpack.c.h.b16 %v519
    %v1888 = vunpack.c.l.b16 %v520
    %v1889 = vunpack.c.h.b16 %v520
    %v1890 = vunpack.c.l.b16 %v521
    %v1891 = vunpack.c.l.b16 %v522
    %v1892 = vunpack.c.h.b16 %v522
    %v1893 = vunpack.c.l.b16 %v523
    %v1894 = vunpack.c.h.b16 %v523
    %v1895 = vunpack.c.l.b16 %v524
    %v1896 = vunpack.c.h.b16 %v524
    %v1897 = vunpack.c.l.b16 %v525
    %v1898 = vunpack.c.h.b16 %v525
    %v1899 = vunpack.c.l.b16 %v526
    %v1900 = vunpack.c.l.b16 %v527
    %v1901 = vunpack.c.h.b16 %v527
    %v1902 = vunpack.c.l.b16 %v528
    %v1903 = vunpack.c.h.b16 %v528
    %v1904 = vunpack.c.l.b16 %v529
    %v1905 = vunpack.c.h.b16 %v529
    %v1906 = vunpack.c.l.b16 %v530
    %v1907 = vunpack.c.h.b16 %v530
    %v1908 = vunpack.c.l.b16 %v531
    %v1909 = vunpack.c.l.b16 %v532
    %v1910 = vunpack.c.h.b16 %v532
    %v1911 = vunpack.c.l.b16 %v533
    %v1912 = vunpack.c.h.b16 %v533
    %v1913 = vunpack.c.l.b16 %v534
    %v1914 = vunpack.c.h.b16 %v534
    %v1915 = vunpack.c.l.b16 %v535
    %v1916 = vunpack.c.h.b16 %v535
    %v1917 = vunpack.c.l.b16 %v536
    %v1918 = vunpack.c.l.b16 %v537
    %v1919 = vunpack.c.h.b16 %v537
    %v1920 = vunpack.c.l.b16 %v538
    %v1921 = vunpack.c.h.b16 %v538
    %v1922 = vunpack.c.l.b16 %v539
    %v1923 = vunpack.c.h.b16 %v539
    %v1924 = vunpack.c.l.b16 %v540
    %v1925 = vunpack.c.h.b16 %v540
    %v1926 = vunpack.c.l.b16 %v541
    %v1927 = vunpack.c.l.b16 %v542
    %v1928 = vunpack.c.h.b16 %v542
    %v1929 = vunpack.c.l.b16 %v543
    %v1930 = vunpack.c.h.b16 %v543
    %v1931 = vunpack.c.l.b16 %v544
    %v1932 = vunpack.c.h.b16 %v544
    %v1933 = vunpack.c.l.b16 %v545
    %v1934 = vunpack.c.h.b16 %v545
    %v1935 = vunpack.c.l.b16 %v546
    %v1936 = vunpack.c.l.b16 %v547
    %v1937 = vunpack.c.h.b16 %v547
    %v1938 = vunpack.c.l.b16 %v548
    %v1939 = vunpack.c.h.b16 %v548
    %v1940 = vunpack.c.l.b16 %v549
    %v1941 = vunpack.c.h.b16 %v549
    %v1942 = vunpack.c.l.b16 %v550
    %v1943 = vunpack.c.h.b16 %v550
    %v1944 = vunpack.c.l.b16 %v551
    %v1945 = vunpack.c.l.b16 %v552
    %v1946 = vunpack.c.h.b16 %v552
    %v1947 = vunpack.c.l.b16 %v553
    %v1948 = vunpack.c.h.b16 %v553
    %v1949 = vunpack.c.l.b16 %v554
    %v1950 = vunpack.c.h.b16 %v554
    %v1951 = vunpack.c.l.b16 %v555
    %v1952 = vunpack.c.h.b16 %v555
    %v1953 = vunpack.c.l.b16 %v556
    %v1954 = vunpack.c.l.b16 %v557
    %v1955 = vunpack.c.h.b16 %v557
    %v1956 = vunpack.c.l.b16 %v558
    %v1957 = vunpack.c.h.b16 %v558
    %v1958 = vunpack.c.l.b16 %v559
    %v1959 = vunpack.c.h.b16 %v559
    %v1960 = vunpack.c.l.b16 %v560
    %v1961 = vunpack.c.h.b16 %v560
    %v1962 = vunpack.c.l.b16 %v561
    %v1963 = vunpack.c.l.b16 %v562
    %v1964 = vunpack.c.h.b16 %v562
    %v1965 = vunpack.c.l.b16 %v563
    %v1966 = vunpack.c.h.b16 %v563
    %v1967 = vunpack.c.l.b16 %v564
    %v1968 = vunpack.c.h.b16 %v564
    %v1969 = vunpack.c.l.b16 %v565
    %v1970 = vunpack.c.h.b16 %v565
    %v1971 = vunpack.c.l.b16 %v566
    %v1972 = vunpack.c.l.b16 %v567
    %v1973 = vunpack.c.h.b16 %v567
    %v1974 = vunpack.c.l.b16 %v568
    %v1975 = vunpack.c.h.b16 %v568
    %v1976 = vunpack.c.l.b16 %v569
    %v1977 = vunpack.c.h.b16 %v569
    %v1978 = vunpack.c.l.b16 %v570
    %v1979 = vunpack.c.h.b16 %v570
    %v1980 = vunpack.c.l.b16 %v571
    %v1981 = vunpack.c.l.b16 %v572
    %v1982 = vunpack.c.h.b16 %v572
    %v1983 = vunpack.c.l.b16 %v573
    %v1984 = vunpack.c.h.b16 %v573
    %v1985 = vunpack.c.l.b16 %v574
    %v1986 = vunpack.c.h.b16 %v574
    %v1987 = vunpack.c.l.b16 %v575
    %v1988 = vunpack.c.h.b16 %v575
    %v1989 = vunpack.c.l.b16 %v576
    %v1990 = vunpack.c.l.b16 %v577
    %v1991 = vunpack.c.h.b16 %v577
    %v1992 = vunpack.c.l.b16 %v578
    %v1993 = vunpack.c.h.b16 %v578
    %v1994 = vunpack.c.l.b16 %v579
    %v1995 = vunpack.c.h.b16 %v579
    %v1996 = vunpack.c.l.b16 %v580
    %v1997 = vunpack.c.h.b16 %v580
    %v1998 = vunpack.c.l.b16 %v581
    %v1999 = vunpack.c.l.b16 %v582
    %v2000 = vunpack.c.h.b16 %v582
    %v2001 = vunpack.c.l.b16 %v583
    %v2002 = vunpack.c.h.b16 %v583
    %v2003 = vunpack.c.l.b16 %v584
    %v2004 = vunpack.c.h.b16 %v584
    %v2005 = vunpack.c.l.b16 %v585
    %v2006 = vunpack.c.h.b16 %v585
    %v2007 = vunpack.c.l.b16 %v586
    %v2008 = vunpack.c.l.b16 %v587
    %v2009 = vunpack.c.h.b16 %v587
    %v2010 = vunpack.c.l.b16 %v588
    %v2011 = vunpack.c.h.b16 %v588
    %v2012 = vunpack.c.l.b16 %v589
    %v2013 = vunpack.c.h.b16 %v589
    %v2014 = vunpack.c.l.b16 %v590
    %v2015 = vunpack.c.h.b16 %v590
    %v2016 = vunpack.c.l.b16 %v591
    %v2017 = vunpack.c.l.b16 %v592
    %v2018 = vunpack.c.h.b16 %v592
    %v2019 = vunpack.c.l.b16 %v593
    %v2020 = vunpack.c.h.b16 %v593
    %v2021 = vunpack.c.l.b16 %v594
    %v2022 = vunpack.c.h.b16 %v594
    %v2023 = vunpack.c.l.b16 %v595
    %v2024 = vunpack.c.h.b16 %v595
    %v2025 = vunpack.c.l.b16 %v596
    %v2026 = vunpack.c.l.b16 %v597
    %v2027 = vunpack.c.h.b16 %v597
    %v2028 = vunpack.c.l.b16 %v598
    %v2029 = vunpack.c.h.b16 %v598
    %v2030 = vunpack.c.l.b16 %v599
    %v2031 = vunpack.c.h.b16 %v599
    %v2032 = vunpack.c.l.b16 %v600
    %v2033 = vunpack.c.h.b16 %v600
    %v2034 = vunpack.c.l.b16 %v601
    %v2035 = vunpack.c.l.b16 %v602
    %v2036 = vunpack.c.h.b16 %v602
    %v2037 = vunpack.c.l.b16 %v603
    %v2038 = vunpack.c.h.b16 %v603
    %v2039 = vunpack.c.l.b16 %v604
    %v2040 = vunpack.c.h.b16 %v604
    %v2041 = vunpack.c.l.b16 %v605
    %v2042 = vunpack.c.h.b16 %v605
    %v2043 = vunpack.c.l.b16 %v606
    %v2044 = vunpack.c.l.b16 %v607
    %v2045 = vunpack.c.h.b16 %v607
    %v2046 = vunpack.c.l.b16 %v608
    %v2047 = vunpack.c.h.b16 %v608
    %v2048 = vunpack.c.l.b16 %v609
    %v2049 = vunpack.c.h.b16 %v609
    %v2050 = vunpack.c.l.b16 %v610
    %v2051 = vunpack.c.h.b16 %v610
    %v2052 = vunpack.c.l.b16 %v611
    %v2053 = vunpack.c.l.b16 %v612
    %v2054 = vunpack.c.h.b16 %v612
    %v2055 = vunpack.c.l.b16 %v613
    %v2056 = vunpack.c.h.b16 %v613
    %v2057 = vunpack.c.l.b16 %v614
    %v2058 = vunpack.c.h.b16 %v614
    %v2059 = vunpack.c.l.b16 %v615
    %v2060 = vunpack.c.h.b16 %v615
    %v2061 = vunpack.c.l.b16 %v616
    %v2062 = vunpack.c.l.b16 %v617
    %v2063 = vunpack.c.h.b16 %v617
    %v2064 = vunpack.c.l.b16 %v618
    %v2065 = vunpack.c.h.b16 %v618
    %v2066 = vunpack.c.l.b16 %v619
    %v2067 = vunpack.c.h.b16 %v619
    %v2068 = vunpack.c.l.b16 %v620
    %v2069 = vunpack.c.h.b16 %v620
    %v2070 = vunpack.c.l.b16 %v621
    %v2071 = vunpack.c.l.b16 %v622
    %v2072 = vunpack.c.h.b16 %v622
    %v2073 = vunpack.c.l.b16 %v623
    %v2074 = vunpack.c.h.b16 %v623
    %v2075 = vunpack.c.l.b16 %v624
    %v2076 = vunpack.c.h.b16 %v624
    %v2077 = vunpack.c.l.b16 %v625
    %v2078 = vunpack.c.h.b16 %v625
    %v2079 = vunpack.c.l.b16 %v626
    %v2080 = vunpack.c.l.b16 %v627
    %v2081 = vunpack.c.h.b16 %v627
    %v2082 = vunpack.c.l.b16 %v628
    %v2083 = vunpack.c.h.b16 %v628
    %v2084 = vunpack.c.l.b16 %v629
    %v2085 = vunpack.c.h.b16 %v629
    %v2086 = vunpack.c.l.b16 %v630
    %v2087 = vunpack.c.h.b16 %v630
    %v2088 = vunpack.c.l.b16 %v631
    %v2089 = vunpack.c.l.b16 %v632
    %v2090 = vunpack.c.h.b16 %v632
    %v2091 = vunpack.c.l.b16 %v633
    %v2092 = vunpack.c.h.b16 %v633
    %v2093 = vunpack.c.l.b16 %v634
    %v2094 = vunpack.c.h.b16 %v634
    %v2095 = vunpack.c.l.b16 %v635
    %v2096 = vunpack.c.h.b16 %v635
    %v2097 = vunpack.c.l.b16 %v636
    %v2098 = vunpack.c.l.b16 %v637
    %v2099 = vunpack.c.h.b16 %v637
    %v2100 = vunpack.c.l.b16 %v638
    %v2101 = vunpack.c.h.b16 %v638
    %v2102 = vunpack.c.l.b16 %v639
    %v2103 = vunpack.c.h.b16 %v639
    %v2104 = vunpack.c.l.b16 %v640
    %v2105 = vunpack.c.h.b16 %v640
    %v2106 = vunpack.c.l.b16 %v641
    %v2107 = vunpack.c.l.b16 %v642
    %v2108 = vunpack.c.h.b16 %v642
    %v2109 = vunpack.c.l.b16 %v643
    %v2110 = vunpack.c.h.b16 %v643
    %v2111 = vunpack.c.l.b16 %v644
    %v2112 = vunpack.c.h.b16 %v644
    %v2113 = vunpack.c.l.b16 %v645
    %v2114 = vunpack.c.h.b16 %v645
    %v2115 = vunpack.c.l.b16 %v646
    %v2116 = vunpack.c.l.b16 %v647
    %v2117 = vunpack.c.h.b16 %v647
    %v2118 = vunpack.c.l.b16 %v648
    %v2119 = vunpack.c.h.b16 %v648
    %v2120 = vunpack.c.l.b16 %v649
    %v2121 = vunpack.c.h.b16 %v649
    %v2122 = vunpack.c.l.b16 %v650
    %v2123 = vunpack.c.h.b16 %v650
    %v2124 = vunpack.c.l.b16 %v651
    %v2125 = vunpack.c.l.b16 %v652
    %v2126 = vunpack.c.h.b16 %v652
    %v2127 = vunpack.c.l.b16 %v653
    %v2128 = vunpack.c.h.b16 %v653
    %v2129 = vunpack.c.l.b16 %v654
    %v2130 = vunpack.c.h.b16 %v654
    %v2131 = vunpack.c.l.b16 %v655
    %v2132 = vunpack.c.h.b16 %v655
    %v2133 = vunpack.c.l.b16 %v656
    %v2134 = vunpack.c.l.b16 %v657
    %v2135 = vunpack.c.h.b16 %v657
    %v2136 = vunpack.c.l.b16 %v658
    %v2137 = vunpack.c.h.b16 %v658
    %v2138 = vunpack.c.l.b16 %v659
    %v2139 = vunpack.c.h.b16 %v659
    %v2140 = vunpack.c.l.b16 %v660
    %v2141 = vunpack.c.h.b16 %v660
    %v2142 = vunpack.c.l.b16 %v661
    %v2143 = vunpack.c.l.b16 %v662
    %v2144 = vunpack.c.h.b16 %v662
    %v2145 = vunpack.c.l.b16 %v663
    %v2146 = vunpack.c.h.b16 %v663
    %v2147 = vunpack.c.l.b16 %v664
    %v2148 = vunpack.c.h.b16 %v664
    %v2149 = vunpack.c.l.b16 %v665
    %v2150 = vunpack.c.h.b16 %v665
    %v2151 = vunpack.c.l.b16 %v666
    %v2152 = vunpack.c.l.b16 %v667
    %v2153 = vunpack.c.h.b16 %v667
    %v2154 = vunpack.c.l.b16 %v668
    %v2155 = vunpack.c.h.b16 %v668
    %v2156 = vunpack.c.l.b16 %v669
    %v2157 = vunpack.c.h.b16 %v669
    %v2158 = vunpack.c.l.b16 %v670
    %v2159 = vunpack.c.h.b16 %v670
    %v2160 = vunpack.c.l.b16 %v671
    %v2161 = vunpack.c.l.b16 %v672
    %v2162 = vunpack.c.h.b16 %v672
    %v2163 = vunpack.c.l.b16 %v673
    %v2164 = vunpack.c.h.b16 %v673
    %v2165 = vunpack.c.l.b16 %v674
    %v2166 = vunpack.c.h.b16 %v674
    %v2167 = vunpack.c.l.b16 %v675
    %v2168 = vunpack.c.h.b16 %v675
    %v2169 = vunpack.c.l.b16 %v676
    %v2170 = vunpack.c.l.b16 %v677
    %v2171 = vunpack.c.h.b16 %v677
    %v2172 = vunpack.c.l.b16 %v678
    %v2173 = vunpack.c.h.b16 %v678
    %v2174 = vunpack.c.l.b16 %v679
    %v2175 = vunpack.c.h.b16 %v679
    %v2176 = vunpack.c.l.b16 %v680
    %v2177 = vunpack.c.h.b16 %v680
    %v2178 = vunpack.c.l.b16 %v681
    %v2179 = vunpack.c.l.b16 %v682
    %v2180 = vunpack.c.h.b16 %v682
    %v2181 = vunpack.c.l.b16 %v683
    %v2182 = vunpack.c.h.b16 %v683
    %v2183 = vunpack.c.l.b16 %v684
    %v2184 = vunpack.c.h.b16 %v684
    %v2185 = vunpack.c.l.b16 %v685
    %v2186 = vunpack.c.h.b16 %v685
    %v2187 = vunpack.c.l.b16 %v686
    %v2188 = vunpack.c.l.b16 %v687
    %v2189 = vunpack.c.h.b16 %v687
    %v2190 = vunpack.c.l.b16 %v688
    %v2191 = vunpack.c.h.b16 %v688
    %v2192 = vunpack.c.l.b16 %v689
    %v2193 = vunpack.c.h.b16 %v689
    %v2194 = vunpack.c.l.b16 %v690
    %v2195 = vunpack.c.h.b16 %v690
    %v2196 = vunpack.c.l.b16 %v691
    %v2197 = vunpack.c.l.b16 %v692
    %v2198 = vunpack.c.h.b16 %v692
    %v2199 = vunpack.c.l.b16 %v693
    %v2200 = vunpack.c.h.b16 %v693
    %v2201 = vunpack.c.l.b16 %v694
    %v2202 = vunpack.c.h.b16 %v694
    %v2203 = vunpack.c.l.b16 %v695
    %v2204 = vunpack.c.h.b16 %v695
    %v2205 = vunpack.c.l.b16 %v696
    %v2206 = vunpack.c.l.b16 %v697
    %v2207 = vunpack.c.h.b16 %v697
    %v2208 = vunpack.c.l.b16 %v698
    %v2209 = vunpack.c.h.b16 %v698
    %v2210 = vunpack.c.l.b16 %v699
    %v2211 = vunpack.c.h.b16 %v699
    %v2212 = vunpack.c.l.b16 %v700
    %v2213 = vunpack.c.h.b16 %v700
    %v2214 = vunpack.c.l.b16 %v701
    %v2215 = vunpack.c.l.b16 %v702
    %v2216 = vunpack.c.h.b16 %v702
    %v2217 = vunpack.c.l.b16 %v703
    %v2218 = vunpack.c.h.b16 %v703
    %v2219 = vunpack.c.l.b16 %v704
    %v2220 = vunpack.c.h.b16 %v704
    %v2221 = vunpack.c.l.b16 %v705
    %v2222 = vunpack.c.h.b16 %v705
    %v2223 = vunpack.c.l.b16 %v706
    %v2224 = vunpack.c.l.b16 %v707
    %v2225 = vunpack.c.h.b16 %v707
    %v2226 = vunpack.c.l.b16 %v708
    %v2227 = vunpack.c.h.b16 %v708
    %v2228 = vunpack.c.l.b16 %v709
    %v2229 = vunpack.c.h.b16 %v709
    %v2230 = vunpack.c.l.b16 %v710
    %v2231 = vunpack.c.h.b16 %v710
    %v2232 = vunpack.c.l.b16 %v711
    %v2233 = vunpack.c.l.b16 %v712
    %v2234 = vunpack.c.h.b16 %v712
    %v2235 = vunpack.c.l.b16 %v713
    %v2236 = vunpack.c.h.b16 %v713
    %v2237 = vunpack.c.l.b16 %v714
    %v2238 = vunpack.c.h.b16 %v714
    %v2239 = vunpack.c.l.b16 %v715
    %v2240 = vunpack.c.h.b16 %v715
    %v2241 = vunpack.c.l.b16 %v716
    %v2242 = vunpack.c.l.b16 %v717
    %v2243 = vunpack.c.h.b16 %v717
    %v2244 = vunpack.c.l.b16 %v718
    %v2245 = vunpack.c.h.b16 %v718
    %v2246 = vunpack.c.l.b16 %v719
    %v2247 = vunpack.c.h.b16 %v719
    %v2248 = vunpack.c.l.b16 %v720
    %v2249 = vunpack.c.h.b16 %v720
    %v2250 = vunpack.c.l.b16 %v721
    %v2251 = vunpack.c.l.b16 %v722
    %v2252 = vunpack.c.h.b16 %v722
    %v2253 = vunpack.c.l.b16 %v723
    %v2254 = vunpack.c.h.b16 %v723
    %v2255 = vunpack.c.l.b16 %v724
    %v2256 = vunpack.c.h.b16 %v724
    %v2257 = vunpack.c.l.b16 %v725
    %v2258 = vunpack.c.h.b16 %v725
    %v2259 = vunpack.c.l.b16 %v726
    %v2260 = vunpack.c.l.b16 %v727
    %v2261 = vunpack.c.h.b16 %v727
    %v2262 = vunpack.c.l.b16 %v728
    %v2263 = vunpack.c.h.b16 %v728
    %v2264 = vunpack.c.l.b16 %v729
    %v2265 = vunpack.c.h.b16 %v729
    %v2266 = vunpack.c.l.b16 %v730
    %v2267 = vunpack.c.h.b16 %v730
    %v2268 = vunpack.c.l.b16 %v731
    %v2269 = vunpack.c.l.b16 %v732
    %v2270 = vunpack.c.h.b16 %v732
    %v2271 = vunpack.c.l.b16 %v733
    %v2272 = vunpack.c.h.b16 %v733
    %v2273 = vunpack.c.l.b16 %v734
    %v2274 = vunpack.c.h.b16 %v734
    %v2275 = vunpack.c.l.b16 %v735
    %v2276 = vunpack.c.h.b16 %v735
    %v2277 = vunpack.c.l.b16 %v736
    %v2278 = vunpack.c.l.b16 %v737
    %v2279 = vunpack.c.h.b16 %v737
    %v2280 = vunpack.c.l.b16 %v738
    %v2281 = vunpack.c.h.b16 %v738
    %v2282 = vunpack.c.l.b16 %v739
    %v2283 = vunpack.c.h.b16 %v739
    %v2284 = vunpack.c.l.b16 %v740
    %v2285 = vunpack.c.h.b16 %v740
    %v2286 = vunpack.c.l.b16 %v741
    %v2287 = vunpack.c.l.b16 %v742
    %v2288 = vunpack.c.h.b16 %v742
    %v2289 = vunpack.c.l.b16 %v743
    %v2290 = vunpack.c.h.b16 %v743
    %v2291 = vunpack.c.l.b16 %v744
    %v2292 = vunpack.c.h.b16 %v744
    %v2293 = vunpack.c.l.b16 %v745
    %v2294 = vunpack.c.h.b16 %v745
    %v2295 = vunpack.c.l.b16 %v746
    %v2296 = vunpack.c.l.b16 %v747
    %v2297 = vunpack.c.h.b16 %v747
    %v2298 = vunpack.c.l.b16 %v748
    %v2299 = vunpack.c.h.b16 %v748
    %v2300 = vunpack.c.l.b16 %v749
    %v2301 = vunpack.c.h.b16 %v749
    %v2302 = vunpack.c.l.b16 %v750
    %v2303 = vunpack.c.h.b16 %v750
    %v2304 = vunpack.c.l.b16 %v751
    %v2305 = vunpack.c.l.b16 %v752
    %v2306 = vunpack.c.h.b16 %v752
    %v2307 = vunpack.c.l.b16 %v753
    %v2308 = vunpack.c.h.b16 %v753
    %v2309 = vunpack.c.l.b16 %v754
    %v2310 = vunpack.c.h.b16 %v754
    %v2311 = vunpack.c.l.b16 %v755
    %v2312 = vunpack.c.h.b16 %v755
    %v2313 = vunpack.c.l.b16 %v756
    %v2314 = vunpack.c.l.b16 %v757
    %v2315 = vunpack.c.h.b16 %v757
    %v2316 = vunpack.c.l.b16 %v758
    %v2317 = vunpack.c.h.b16 %v758
    %v2318 = vunpack.c.l.b16 %v759
    %v2319 = vunpack.c.h.b16 %v759
    %v2320 = vunpack.c.l.b16 %v760
    %v2321 = vunpack.c.h.b16 %v760
    %v2322 = vunpack.c.l.b16 %v761
    %v2323 = vunpack.c.l.b16 %v762
    %v2324 = vunpack.c.h.b16 %v762
    %v2325 = vunpack.c.l.b16 %v763
    %v2326 = vunpack.c.h.b16 %v763
    %v2327 = vunpack.c.l.b16 %v764
    %v2328 = vunpack.c.h.b16 %v764
    %v2329 = vunpack.c.l.b16 %v765
    %v2330 = vunpack.c.h.b16 %v765
    %v2331 = vunpack.c.l.b16 %v766
    %v2332 = vunpack.c.l.b16 %v767
    %v2333 = vunpack.c.h.b16 %v767
    %v2334 = vunpack.c.l.b16 %v768
    %v2335 = vunpack.c.h.b16 %v768
    %v2336 = vunpack.c.l.b16 %v769
    %v2337 = vunpack.c.h.b16 %v769
    %v2338 = vunpack.c.l.b16 %v770
    %v2339 = vunpack.c.h.b16 %v770
    %v2340 = vunpack.c.l.b16 %v771
    %v2341 = vunpack.c.l.b16 %v772
    %v2342 = vunpack.c.h.b16 %v772
    %v2343 = vunpack.c.l.b16 %v773
    %v2344 = vunpack.c.h.b16 %v773
    %v2345 = vunpack.c.l.b16 %v774
    %v2346 = vunpack.c.h.b16 %v774
    %v2347 = vunpack.c.l.b16 %v775
    %v2348 = vunpack.c.h.b16 %v775
    %v2349 = vunpack.c.l.b16 %v776
    %v2350 = vunpack.c.l.b16 %v777
    %v2351 = vunpack.c.h.b16 %v777
    %v2352 = vunpack.c.l.b16 %v778
    %v2353 = vunpack.c.h.b16 %v778
    %v2354 = vunpack.c.l.b16 %v779
    %v2355 = vunpack.c.h.b16 %v779
    %v2356 = vunpack.c.l.b16 %v780
    %v2357 = vunpack.c.h.b16 %v780
    %v2358 = vunpack.c.l.b16 %v781
    %v2359 = vunpack.c.l.b16 %v782
    %v2360 = vunpack.c.h.b16 %v782
    %v2361 = vunpack.c.l.b16 %v783
    %v2362 = vunpack.c.h.b16 %v783
    %v2363 = vunpack.c.l.b16 %v784
    %v2364 = vunpack.c.h.b16 %v784
    %v2365 = vunpack.c.l.b16 %v785
    %v2366 = vunpack.c.h.b16 %v785
    %v2367 = vunpack.c.l.b16 %v786
    %v2368 = vunpack.c.l.b16 %v787
    %v2369 = vunpack.c.h.b16 %v787
    %v2370 = vunpack.c.l.b16 %v788
    %v2371 = vunpack.c.h.b16 %v788
    %v2372 = vunpack.c.l.b16 %v789
    %v2373 = vunpack.c.h.b16 %v789
    %v2374 = vunpack.c.l.b16 %v790
    %v2375 = vunpack.c.h.b16 %v790
    %v2376 = vunpack.c.l.b16 %v791
    %v2377 = vunpack.c.l.b16 %v792
    %v2378 = vunpack.c.h.b16 %v792
    %v2379 = vunpack.c.l.b16 %v793
    %v2380 = vunpack.c.h.b16 %v793
    %v2381 = vunpack.c.l.b16 %v794
    %v2382 = vunpack.c.h.b16 %v794
    %v2383 = vunpack.c.l.b16 %v795
    %v2384 = vunpack.c.h.b16 %v795
    %v2385 = vunpack.c.l.b16 %v796
    %v2386 = vunpack.c.l.b16 %v797
    %v2387 = vunpack.c.h.b16 %v797
    %v2388 = vunpack.c.l.b16 %v798
    %v2389 = vunpack.c.h.b16 %v798
    %v2390 = vunpack.c.l.b16 %v799
    %v2391 = vunpack.c.h.b16 %v799
    %v2392 = vunpack.c.l.b16 %v800
    %v2393 = vunpack.c.h.b16 %v800
    %v2394 = vunpack.c.l.b16 %v801
    %v2395 = vunpack.c.l.b16 %v802
    %v2396 = vunpack.c.h.b16 %v802
    %v2397 = vunpack.c.l.b16 %v803
    %v2398 = vunpack.c.h.b16 %v803
    %v2399 = vunpack.c.l.b16 %v804
    %v2400 = vunpack.c.h.b16 %v804
    %v2401 = vunpack.c.l.b16 %v805
    %v2402 = vunpack.c.h.b16 %v805
    %v2403 = vunpack.c.l.b16 %v806
    %v2404 = vunpack.c.l.b16 %v807
    %v2405 = vunpack.c.h.b16 %v807
    %v2406 = vunpack.c.l.b16 %v808
    %v2407 = vunpack.c.h.b16 %v808
    %v2408 = vunpack.c.l.b16 %v809
    %v2409 = vunpack.c.h.b16 %v809
    %v2410 = vunpack.c.l.b16 %v810
    %v2411 = vunpack.c.h.b16 %v810
    %v2412 = vunpack.c.l.b16 %v811
    %v2413 = vunpack.c.l.b16 %v812
    %v2414 = vunpack.c.h.b16 %v812
    %v2415 = vunpack.c.l.b16 %v813
    %v2416 = vunpack.c.h.b16 %v813
    %v2417 = vunpack.c.l.b16 %v814
    %v2418 = vunpack.c.h.b16 %v814
    %v2419 = vunpack.c.l.b16 %v815
    %v2420 = vunpack.c.h.b16 %v815
    %v2421 = vunpack.c.l.b16 %v816
    %v2422 = vunpack.c.l.b16 %v817
    %v2423 = vunpack.c.h.b16 %v817
    %v2424 = vunpack.c.l.b16 %v818
    %v2425 = vunpack.c.h.b16 %v818
    %v2426 = vunpack.c.l.b16 %v819
    %v2427 = vunpack.c.h.b16 %v819
    %v2428 = vunpack.c.l.b16 %v820
    %v2429 = vunpack.c.h.b16 %v820
    %v2430 = vunpack.c.l.b16 %v821
    %v2431 = vunpack.c.l.b16 %v822
    %v2432 = vunpack.c.h.b16 %v822
    %v2433 = vunpack.c.l.b16 %v823
    %v2434 = vunpack.c.h.b16 %v823
    %v2435 = vunpack.c.l.b16 %v824
    %v2436 = vunpack.c.h.b16 %v824
    %v2437 = vunpack.c.l.b16 %v825
    %v2438 = vunpack.c.h.b16 %v825
    %v2439 = vunpack.c.l.b16 %v826
    %v2440 = vunpack.c.l.b16 %v827
    %v2441 = vunpack.c.h.b16 %v827
    %v2442 = vunpack.c.l.b16 %v828
    %v2443 = vunpack.c.h.b16 %v828
    %v2444 = vunpack.c.l.b16 %v829
    %v2445 = vunpack.c.h.b16 %v829
    %v2446 = vunpack.c.l.b16 %v830
    %v2447 = vunpack.c.h.b16 %v830
    %v2448 = vunpack.c.l.b16 %v831
    %v2449 = vpack.c.b16 %v1450, %v1441
    %v2450 = vpack.c.b16 %v1451, %v1442
    %v2451 = vpack.c.b16 %v1452, %v1443
    %v2452 = vpack.c.b16 %v1453, %v1444
    %v2453 = vpack.c.b16 %v1454, %v1445
    %v2454 = vpack.c.b16 %v1455, %v1446
    %v2455 = vpack.c.b16 %v1456, %v1447
    %v2456 = vpack.c.b16 %v1457, %v1448
    %v2457 = vpack.c.b16 %v1458, %v1449
    %v2458 = vpack.c.b16 %v1468, %v1459
    %v2459 = vpack.c.b16 %v1469, %v1460
    %v2460 = vpack.c.b16 %v1470, %v1461
    %v2461 = vpack.c.b16 %v1471, %v1462
    %v2462 = vpack.c.b16 %v1472, %v1463
    %v2463 = vpack.c.b16 %v1473, %v1464
    %v2464 = vpack.c.b16 %v1474, %v1465
    %v2465 = vpack.c.b16 %v1475, %v1466
    %v2466 = vpack.c.b16 %v1476, %v1467
    %v2467 = vpack.c.b16 %v1486, %v1477
    %v2468 = vpack.c.b16 %v1487, %v1478
    %v2469 = vpack.c.b16 %v1488, %v1479
    %v2470 = vpack.c.b16 %v1489, %v1480
    %v2471 = vpack.c.b16 %v1490, %v1481
    %v2472 = vpack.c.b16 %v1491, %v1482
    %v2473 = vpack.c.b16 %v1492, %v1483
    %v2474 = vpack.c.b16 %v1493, %v1484
    %v2475 = vpack.c.b16 %v1494, %v1485
    %v2476 = vpack.c.b16 %v1504, %v1495
    %v2477 = vpack.c.b16 %v1505, %v1496
    %v2478 = vpack.c.b16 %v1506, %v1497
    %v2479 = vpack.c.b16 %v1507, %v1498
    %v2480 = vpack.c.b16 %v1508, %v1499
    %v2481 = vpack.c.b16 %v1509, %v1500
    %v2482 = vpack.c.b16 %v1510, %v1501
    %v2483 = vpack.c.b16 %v1511, %v1502
    %v2484 = vpack.c.b16 %v1512, %v1503
    %v2485 = vpack.c.b16 %v1522, %v1513
    %v2486 = vpack.c.b16 %v1523, %v1514
    %v2487 = vpack.c.b16 %v1524, %v1515
    %v2488 = vpack.c.b16 %v1525, %v1516
    %v2489 = vpack.c.b16 %v1526, %v1517
    %v2490 = vpack.c.b16 %v1527, %v1518
    %v2491 = vpack.c.b16 %v1528, %v1519
    %v2492 = vpack.c.b16 %v1529, %v1520
    %v2493 = vpack.c.b16 %v1530, %v1521
    %v2494 = vpack.c.b16 %v1540, %v1531
    %v2495 = vpack.c.b16 %v1541, %v1532
    %v2496 = vpack.c.b16 %v1542, %v1533
    %v2497 = vpack.c.b16 %v1543, %v1534
    %v2498 = vpack.c.b16 %v1544, %v1535
    %v2499 = vpack.c.b16 %v1545, %v1536
    %v2500 = vpack.c.b16 %v1546, %v1537
    %v2501 = vpack.c.b16 %v1547, %v1538
    %v2502 = vpack.c.b16 %v1548, %v1539
    %v2503 = vpack.c.b16 %v1558, %v1549
    %v2504 = vpack.c.b16 %v1559, %v1550
    %v2505 = vpack.c.b16 %v1560, %v1551
    %v2506 = vpack.c.b16 %v1561, %v1552
    %v2507 = vpack.c.b16 %v1562, %v1553
    %v2508 = vpack.c.b16 %v1563, %v1554
    %v2509 = vpack.c.b16 %v1564, %v1555
    %v2510 = vpack.c.b16 %v1565, %v1556
    %v2511 = vpack.c.b16 %v1566, %v1557
    %v2512 = vpack.c.b16 %v1576, %v1567
    %v2513 = vpack.c.b16 %v1577, %v1568
    %v2514 = vpack.c.b16 %v1578, %v1569
    %v2515 = vpack.c.b16 %v1579, %v1570
    %v2516 = vpack.c.b16 %v1580, %v1571
    %v2517 = vpack.c.b16 %v1581, %v1572
    %v2518 = vpack.c.b16 %v1582, %v1573
    %v2519 = vpack.c.b16 %v1583, %v1574
    %v2520 = vpack.c.b16 %v1584, %v1575
    %v2521 = vpack.c.b16 %v1594, %v1585
    %v2522 = vpack.c.b16 %v1595, %v1586
    %v2523 = vpack.c.b16 %v1596, %v1587
    %v2524 = vpack.c.b16 %v1597, %v1588
    %v2525 = vpack.c.b16 %v1598, %v1589
    %v2526 = vpack.c.b16 %v1599, %v1590
    %v2527 = vpack.c.b16 %v1600, %v1591
    %v2528 = vpack.c.b16 %v1601, %v1592
    %v2529 = vpack.c.b16 %v1602, %v1593
    %v2530 = vpack.c.b16 %v1612, %v1603
    %v2531 = vpack.c.b16 %v1613, %v1604
    %v2532 = vpack.c.b16 %v1614, %v1605
    %v2533 = vpack.c.b16 %v1615, %v1606
    %v2534 = vpack.c.b16 %v1616, %v1607
    %v2535 = vpack.c.b16 %v1617, %v1608
    %v2536 = vpack.c.b16 %v1618, %v1609
    %v2537 = vpack.c.b16 %v1619, %v1610
    %v2538 = vpack.c.b16 %v1620, %v1611
    %v2539 = vpack.c.b16 %v1630, %v1621
    %v2540 = vpack.c.b16 %v1631, %v1622
    %v2541 = vpack.c.b16 %v1632, %v1623
    %v2542 = vpack.c.b16 %v1633, %v1624
    %v2543 = vpack.c.b16 %v1634, %v1625
    %v2544 = vpack.c.b16 %v1635, %v1626
    %v2545 = vpack.c.b16 %v1636, %v1627
    %v2546 = vpack.c.b16 %v1637, %v1628
    %v2547 = vpack.c.b16 %v1638, %v1629
    %v2548 = vpack.c.b16 %v1648, %v1639
    %v2549 = vpack.c.b16 %v1649, %v1640
    %v2550 = vpack.c.b16 %v1650, %v1641
    %v2551 = vpack.c.b16 %v1651, %v1642
    %v2552 = vpack.c.b16 %v1652, %v1643
    %v2553 = vpack.c.b16 %v1653, %v1644
    %v2554 = vpack.c.b16 %v1654, %v1645
    %v2555 = vpack.c.b16 %v1655, %v1646
    %v2556 = vpack.c.b16 %v1656, %v1647
    %v2557 = vpack.c.b16 %v1666, %v1657
    %v2558 = vpack.c.b16 %v1667, %v1658
    %v2559 = vpack.c.b16 %v1668, %v1659
    %v2560 = vpack.c.b16 %v1669, %v1660
    %v2561 = vpack.c.b16 %v1670, %v1661
    %v2562 = vpack.c.b16 %v1671, %v1662
    %v2563 = vpack.c.b16 %v1672, %v1663
    %v2564 = vpack.c.b16 %v1673, %v1664
    %v2565 = vpack.c.b16 %v1674, %v1665
    %v2566 = vpack.c.b16 %v1684, %v1675
    %v2567 = vpack.c.b16 %v1685, %v1676
    %v2568 = vpack.c.b16 %v1686, %v1677
    %v2569 = vpack.c.b16 %v1687, %v1678
    %v2570 = vpack.c.b16 %v1688, %v1679
    %v2571 = vpack.c.b16 %v1689, %v1680
    %v2572 = vpack.c.b16 %v1690, %v1681
    %v2573 = vpack.c.b16 %v1691, %v1682
    %v2574 = vpack.c.b16 %v1692, %v1683
    %v2575 = vpack.c.b16 %v1702, %v1693
    %v2576 = vpack.c.b16 %v1703, %v1694
    %v2577 = vpack.c.b16 %v1704, %v1695
    %v2578 = vpack.c.b16 %v1705, %v1696
    %v2579 = vpack.c.b16 %v1706, %v1697
    %v2580 = vpack.c.b16 %v1707, %v1698
    %v2581 = vpack.c.b16 %v1708, %v1699
    %v2582 = vpack.c.b16 %v1709, %v1700
    %v2583 = vpack.c.b16 %v1710, %v1701
    %v2584 = vpack.c.b16 %v1720, %v1711
    %v2585 = vpack.c.b16 %v1721, %v1712
    %v2586 = vpack.c.b16 %v1722, %v1713
    %v2587 = vpack.c.b16 %v1723, %v1714
    %v2588 = vpack.c.b16 %v1724, %v1715
    %v2589 = vpack.c.b16 %v1725, %v1716
    %v2590 = vpack.c.b16 %v1726, %v1717
    %v2591 = vpack.c.b16 %v1727, %v1718
    %v2592 = vpack.c.b16 %v1728, %v1719
    %v2593 = vpack.c.b16 %v1738, %v1729
    %v2594 = vpack.c.b16 %v1739, %v1730
    %v2595 = vpack.c.b16 %v1740, %v1731
    %v2596 = vpack.c.b16 %v1741, %v1732
    %v2597 = vpack.c.b16 %v1742, %v1733
    %v2598 = vpack.c.b16 %v1743, %v1734
    %v2599 = vpack.c.b16 %v1744, %v1735
    %v2600 = vpack.c.b16 %v1745, %v1736
    %v2601 = vpack.c.b16 %v1746, %v1737
    %v2602 = vpack.c.b16 %v1756, %v1747
    %v2603 = vpack.c.b16 %v1757, %v1748
    %v2604 = vpack.c.b16 %v1758, %v1749
    %v2605 = vpack.c.b16 %v1759, %v1750
    %v2606 = vpack.c.b16 %v1760, %v1751
    %v2607 = vpack.c.b16 %v1761, %v1752
    %v2608 = vpack.c.b16 %v1762, %v1753
    %v2609 = vpack.c.b16 %v1763, %v1754
    %v2610 = vpack.c.b16 %v1764, %v1755
    %v2611 = vpack.c.b16 %v1774, %v1765
    %v2612 = vpack.c.b16 %v1775, %v1766
    %v2613 = vpack.c.b16 %v1776, %v1767
    %v2614 = vpack.c.b16 %v1777, %v1768
    %v2615 = vpack.c.b16 %v1778, %v1769
    %v2616 = vpack.c.b16 %v1779, %v1770
    %v2617 = vpack.c.b16 %v1780, %v1771
    %v2618 = vpack.c.b16 %v1781, %v1772
    %v2619 = vpack.c.b16 %v1782, %v1773
    %v2620 = vpack.c.b16 %v1792, %v1783
    %v2621 = vpack.c.b16 %v1793, %v1784
    %v2622 = vpack.c.b16 %v1794, %v1785
    %v2623 = vpack.c.b16 %v1795, %v1786
    %v2624 = vpack.c.b16 %v1796, %v1787
    %v2625 = vpack.c.b16 %v1797, %v1788
    %v2626 = vpack.c.b16 %v1798, %v1789
    %v2627 = vpack.c.b16 %v1799, %v1790
    %v2628 = vpack.c.b16 %v1800, %v1791
    %v2629 = vpack.c.b16 %v1810, %v1801
    %v2630 = vpack.c.b16 %v1811, %v1802
    %v2631 = vpack.c.b16 %v1812, %v1803
    %v2632 = vpack.c.b16 %v1813, %v1804
    %v2633 = vpack.c.b16 %v1814, %v1805
    %v2634 = vpack.c.b16 %v1815, %v1806
    %v2635 = vpack.c.b16 %v1816, %v1807
    %v2636 = vpack.c.b16 %v1817, %v1808
    %v2637 = vpack.c.b16 %v1818, %v1809
    %v2638 = vpack.c.b16 %v1828, %v1819
    %v2639 = vpack.c.b16 %v1829, %v1820
    %v2640 = vpack.c.b16 %v1830, %v1821
    %v2641 = vpack.c.b16 %v1831, %v1822
    %v2642 = vpack.c.b16 %v1832, %v1823
    %v2643 = vpack.c.b16 %v1833, %v1824
    %v2644 = vpack.c.b16 %v1834, %v1825
    %v2645 = vpack.c.b16 %v1835, %v1826
    %v2646 = vpack.c.b16 %v1836, %v1827
    %v2647 = vpack.c.b16 %v1846, %v1837
    %v2648 = vpack.c.b16 %v1847, %v1838
    %v2649 = vpack.c.b16 %v1848, %v1839
    %v2650 = vpack.c.b16 %v1849, %v1840
    %v2651 = vpack.c.b16 %v1850, %v1841
    %v2652 = vpack.c.b16 %v1851, %v1842
    %v2653 = vpack.c.b16 %v1852, %v1843
    %v2654 = vpack.c.b16 %v1853, %v1844
    %v2655 = vpack.c.b16 %v1854, %v1845
    %v2656 = vpack.c.b16 %v1864, %v1855
    %v2657 = vpack.c.b16 %v1865, %v1856
    %v2658 = vpack.c.b16 %v1866, %v1857
    %v2659 = vpack.c.b16 %v1867, %v1858
    %v2660 = vpack.c.b16 %v1868, %v1859
    %v2661 = vpack.c.b16 %v1869, %v1860
    %v2662 = vpack.c.b16 %v1870, %v1861
    %v2663 = vpack.c.b16 %v1871, %v1862
    %v2664 = vpack.c.b16 %v1872, %v1863
    %v2665 = vpack.c.b16 %v1882, %v1873
    %v2666 = vpack.c.b16 %v1883, %v1874
    %v2667 = vpack.c.b16 %v1884, %v1875
    %v2668 = vpack.c.b16 %v1885, %v1876
    %v2669 = vpack.c.b16 %v1886, %v1877
    %v2670 = vpack.c.b16 %v1887, %v1878
    %v2671 = vpack.c.b16 %v1888, %v1879
    %v2672 = vpack.c.b16 %v1889, %v1880
    %v2673 = vpack.c.b16 %v1890, %v1881
    %v2674 = vpack.c.b16 %v1900, %v1891
    %v2675 = vpack.c.b16 %v1901, %v1892
    %v2676 = vpack.c.b16 %v1902, %v1893
    %v2677 = vpack.c.b16 %v1903, %v1894
    %v2678 = vpack.c.b16 %v1904, %v1895
    %v2679 = vpack.c.b16 %v1905, %v1896
    %v2680 = vpack.c.b16 %v1906, %v1897
    %v2681 = vpack.c.b16 %v1907, %v1898
    %v2682 = vpack.c.b16 %v1908, %v1899
    %v2683 = vpack.c.b16 %v1918, %v1909
    %v2684 = vpack.c.b16 %v1919, %v1910
    %v2685 = vpack.c.b16 %v1920, %v1911
    %v2686 = vpack.c.b16 %v1921, %v1912
    %v2687 = vpack.c.b16 %v1922, %v1913
    %v2688 = vpack.c.b16 %v1923, %v1914
    %v2689 = vpack.c.b16 %v1924, %v1915
    %v2690 = vpack.c.b16 %v1925, %v1916
    %v2691 = vpack.c.b16 %v1926, %v1917
    %v2692 = vpack.c.b16 %v1936, %v1927
    %v2693 = vpack.c.b16 %v1937, %v1928
    %v2694 = vpack.c.b16 %v1938, %v1929
    %v2695 = vpack.c.b16 %v1939, %v1930
    %v2696 = vpack.c.b16 %v1940, %v1931
    %v2697 = vpack.c.b16 %v1941, %v1932
    %v2698 = vpack.c.b16 %v1942, %v1933
    %v2699 = vpack.c.b16 %v1943, %v1934
    %v2700 = vpack.c.b16 %v1944, %v1935
    %v2701 = vpack.c.b16 %v1954, %v1945
    %v2702 = vpack.c.b16 %v1955, %v1946
    %v2703 = vpack.c.b16 %v1956, %v1947
    %v2704 = vpack.c.b16 %v1957, %v1948
    %v2705 = vpack.c.b16 %v1958, %v1949
    %v2706 = vpack.c.b16 %v1959, %v1950
    %v2707 = vpack.c.b16 %v1960, %v1951
    %v2708 = vpack.c.b16 %v1961, %v1952
    %v2709 = vpack.c.b16 %v1962, %v1953
    %v2710 = vpack.c.b16 %v1972, %v1963
    %v2711 = vpack.c.b16 %v1973, %v1964
    %v2712 = vpack.c.b16 %v1974, %v1965
    %v2713 = vpack.c.b16 %v1975, %v1966
    %v2714 = vpack.c.b16 %v1976, %v1967
    %v2715 = vpack.c.b16 %v1977, %v1968
    %v2716 = vpack.c.b16 %v1978, %v1969
    %v2717 = vpack.c.b16 %v1979, %v1970
    %v2718 = vpack.c.b16 %v1980, %v1971
    %v2719 = vpack.c.b16 %v1990, %v1981
    %v2720 = vpack.c.b16 %v1991, %v1982
    %v2721 = vpack.c.b16 %v1992, %v1983
    %v2722 = vpack.c.b16 %v1993, %v1984
    %v2723 = vpack.c.b16 %v1994, %v1985
    %v2724 = vpack.c.b16 %v1995, %v1986
    %v2725 = vpack.c.b16 %v1996, %v1987
    %v2726 = vpack.c.b16 %v1997, %v1988
    %v2727 = vpack.c.b16 %v1998, %v1989
    %v2728 = vpack.c.b16 %v2008, %v1999
    %v2729 = vpack.c.b16 %v2009, %v2000
    %v2730 = vpack.c.b16 %v2010, %v2001
    %v2731 = vpack.c.b16 %v2011, %v2002
    %v2732 = vpack.c.b16 %v2012, %v2003
    %v2733 = vpack.c.b16 %v2013, %v2004
    %v2734 = vpack.c.b16 %v2014, %v2005
    %v2735 = vpack.c.b16 %v2015, %v2006
    %v2736 = vpack.c.b16 %v2016, %v2007
    %v2737 = vpack.c.b16 %v2026, %v2017
    %v2738 = vpack.c.b16 %v2027, %v2018
    %v2739 = vpack.c.b16 %v2028, %v2019
    %v2740 = vpack.c.b16 %v2029, %v2020
    %v2741 = vpack.c.b16 %v2030, %v2021
    %v2742 = vpack.c.b16 %v2031, %v2022
    %v2743 = vpack.c.b16 %v2032, %v2023
    %v2744 = vpack.c.b16 %v2033, %v2024
    %v2745 = vpack.c.b16 %v2034, %v2025
    %v2746 = vpack.c.b16 %v2044, %v2035
    %v2747 = vpack.c.b16 %v2045, %v2036
    %v2748 = vpack.c.b16 %v2046, %v2037
    %v2749 = vpack.c.b16 %v2047, %v2038
    %v2750 = vpack.c.b16 %v2048, %v2039
    %v2751 = vpack.c.b16 %v2049, %v2040
    %v2752 = vpack.c.b16 %v2050, %v2041
    %v2753 = vpack.c.b16 %v2051, %v2042
    %v2754 = vpack.c.b16 %v2052, %v2043
    %v2755 = vpack.c.b16 %v2062, %v2053
    %v2756 = vpack.c.b16 %v2063, %v2054
    %v2757 = vpack.c.b16 %v2064, %v2055
    %v2758 = vpack.c.b16 %v2065, %v2056
    %v2759 = vpack.c.b16 %v2066, %v2057
    %v2760 = vpack.c.b16 %v2067, %v2058
    %v2761 = vpack.c.b16 %v2068, %v2059
    %v2762 = vpack.c.b16 %v2069, %v2060
    %v2763 = vpack.c.b16 %v2070, %v2061
    %v2764 = vpack.c.b16 %v2080, %v2071
    %v2765 = vpack.c.b16 %v2081, %v2072
    %v2766 = vpack.c.b16 %v2082, %v2073
    %v2767 = vpack.c.b16 %v2083, %v2074
    %v2768 = vpack.c.b16 %v2084, %v2075
    %v2769 = vpack.c.b16 %v2085, %v2076
    %v2770 = vpack.c.b16 %v2086, %v2077
    %v2771 = vpack.c.b16 %v2087, %v2078
    %v2772 = vpack.c.b16 %v2088, %v2079
    %v2773 = vpack.c.b16 %v2098, %v2089
    %v2774 = vpack.c.b16 %v2099, %v2090
    %v2775 = vpack.c.b16 %v2100, %v2091
    %v2776 = vpack.c.b16 %v2101, %v2092
    %v2777 = vpack.c.b16 %v2102, %v2093
    %v2778 = vpack.c.b16 %v2103, %v2094
    %v2779 = vpack.c.b16 %v2104, %v2095
    %v2780 = vpack.c.b16 %v2105, %v2096
    %v2781 = vpack.c.b16 %v2106, %v2097
    %v2782 = vpack.c.b16 %v2116, %v2107
    %v2783 = vpack.c.b16 %v2117, %v2108
    %v2784 = vpack.c.b16 %v2118, %v2109
    %v2785 = vpack.c.b16 %v2119, %v2110
    %v2786 = vpack.c.b16 %v2120, %v2111
    %v2787 = vpack.c.b16 %v2121, %v2112
    %v2788 = vpack.c.b16 %v2122, %v2113
    %v2789 = vpack.c.b16 %v2123, %v2114
    %v2790 = vpack.c.b16 %v2124, %v2115
    %v2791 = vpack.c.b16 %v2134, %v2125
    %v2792 = vpack.c.b16 %v2135, %v2126
    %v2793 = vpack.c.b16 %v2136, %v2127
    %v2794 = vpack.c.b16 %v2137, %v2128
    %v2795 = vpack.c.b16 %v2138, %v2129
    %v2796 = vpack.c.b16 %v2139, %v2130
    %v2797 = vpack.c.b16 %v2140, %v2131
    %v2798 = vpack.c.b16 %v2141, %v2132
    %v2799 = vpack.c.b16 %v2142, %v2133
    %v2800 = vpack.c.b16 %v2152, %v2143
    %v2801 = vpack.c.b16 %v2153, %v2144
    %v2802 = vpack.c.b16 %v2154, %v2145
    %v2803 = vpack.c.b16 %v2155, %v2146
    %v2804 = vpack.c.b16 %v2156, %v2147
    %v2805 = vpack.c.b16 %v2157, %v2148
    %v2806 = vpack.c.b16 %v2158, %v2149
    %v2807 = vpack.c.b16 %v2159, %v2150
    %v2808 = vpack.c.b16 %v2160, %v2151
    %v2809 = vpack.c.b16 %v2170, %v2161
    %v2810 = vpack.c.b16 %v2171, %v2162
    %v2811 = vpack.c.b16 %v2172, %v2163
    %v2812 = vpack.c.b16 %v2173, %v2164
    %v2813 = vpack.c.b16 %v2174, %v2165
    %v2814 = vpack.c.b16 %v2175, %v2166
    %v2815 = vpack.c.b16 %v2176, %v2167
    %v2816 = vpack.c.b16 %v2177, %v2168
    %v2817 = vpack.c.b16 %v2178, %v2169
    %v2818 = vpack.c.b16 %v2188, %v2179
    %v2819 = vpack.c.b16 %v2189, %v2180
    %v2820 = vpack.c.b16 %v2190, %v2181
    %v2821 = vpack.c.b16 %v2191, %v2182
    %v2822 = vpack.c.b16 %v2192, %v2183
    %v2823 = vpack.c.b16 %v2193, %v2184
    %v2824 = vpack.c.b16 %v2194, %v2185
    %v2825 = vpack.c.b16 %v2195, %v2186
    %v2826 = vpack.c.b16 %v2196, %v2187
    %v2827 = vpack.c.b16 %v2206, %v2197
    %v2828 = vpack.c.b16 %v2207, %v2198
    %v2829 = vpack.c.b16 %v2208, %v2199
    %v2830 = vpack.c.b16 %v2209, %v2200
    %v2831 = vpack.c.b16 %v2210, %v2201
    %v2832 = vpack.c.b16 %v2211, %v2202
    %v2833 = vpack.c.b16 %v2212, %v2203
    %v2834 = vpack.c.b16 %v2213, %v2204
    %v2835 = vpack.c.b16 %v2214, %v2205
    %v2836 = vpack.c.b16 %v2224, %v2215
    %v2837 = vpack.c.b16 %v2225, %v2216
    %v2838 = vpack.c.b16 %v2226, %v2217
    %v2839 = vpack.c.b16 %v2227, %v2218
    %v2840 = vpack.c.b16 %v2228, %v2219
    %v2841 = vpack.c.b16 %v2229, %v2220
    %v2842 = vpack.c.b16 %v2230, %v2221
    %v2843 = vpack.c.b16 %v2231, %v2222
    %v2844 = vpack.c.b16 %v2232, %v2223
    %v2845 = vpack.c.b16 %v2242, %v2233
    %v2846 = vpack.c.b16 %v2243, %v2234
    %v2847 = vpack.c.b16 %v2244, %v2235
    %v2848 = vpack.c.b16 %v2245, %v2236
    %v2849 = vpack.c.b16 %v2246, %v2237
    %v2850 = vpack.c.b16 %v2247, %v2238
    %v2851 = vpack.c.b16 %v2248, %v2239
    %v2852 = vpack.c.b16 %v2249, %v2240
    %v2853 = vpack.c.b16 %v2250, %v2241
    %v2854 = vpack.c.b16 %v2260, %v2251
    %v2855 = vpack.c.b16 %v2261, %v2252
    %v2856 = vpack.c.b16 %v2262, %v2253
    %v2857 = vpack.c.b16 %v2263, %v2254
    %v2858 = vpack.c.b16 %v2264, %v2255
    %v2859 = vpack.c.b16 %v2265, %v2256
    %v2860 = vpack.c.b16 %v2266, %v2257
    %v2861 = vpack.c.b16 %v2267, %v2258
    %v2862 = vpack.c.b16 %v2268, %v2259
    %v2863 = vpack.c.b16 %v2278, %v2269
    %v2864 = vpack.c.b16 %v2279, %v2270
    %v2865 = vpack.c.b16 %v2280, %v2271
    %v2866 = vpack.c.b16 %v2281, %v2272
    %v2867 = vpack.c.b16 %v2282, %v2273
    %v2868 = vpack.c.b16 %v2283, %v2274
    %v2869 = vpack.c.b16 %v2284, %v2275
    %v2870 = vpack.c.b16 %v2285, %v2276
    %v2871 = vpack.c.b16 %v2286, %v2277
    %v2872 = vpack.c.b16 %v2296, %v2287
    %v2873 = vpack.c.b16 %v2297, %v2288
    %v2874 = vpack.c.b16 %v2298, %v2289
    %v2875 = vpack.c.b16 %v2299, %v2290
    %v2876 = vpack.c.b16 %v2300, %v2291
    %v2877 = vpack.c.b16 %v2301, %v2292
    %v2878 = vpack.c.b16 %v2302, %v2293
    %v2879 = vpack.c.b16 %v2303, %v2294
    %v2880 = vpack.c.b16 %v2304, %v2295
    %v2881 = vpack.c.b16 %v2314, %v2305
    %v2882 = vpack.c.b16 %v2315, %v2306
    %v2883 = vpack.c.b16 %v2316, %v2307
    %v2884 = vpack.c.b16 %v2317, %v2308
    %v2885 = vpack.c.b16 %v2318, %v2309
    %v2886 = vpack.c.b16 %v2319, %v2310
    %v2887 = vpack.c.b16 %v2320, %v2311
    %v2888 = vpack.c.b16 %v2321, %v2312
    %v2889 = vpack.c.b16 %v2322, %v2313
    %v2890 = vpack.c.b16 %v2332, %v2323
    %v2891 = vpack.c.b16 %v2333, %v2324
    %v2892 = vpack.c.b16 %v2334, %v2325
    %v2893 = vpack.c.b16 %v2335, %v2326
    %v2894 = vpack.c.b16 %v2336, %v2327
    %v2895 = vpack.c.b16 %v2337, %v2328
    %v2896 = vpack.c.b16 %v2338, %v2329
    %v2897 = vpack.c.b16 %v2339, %v2330
    %v2898 = vpack.c.b16 %v2340, %v2331
    %v2899 = vpack.c.b16 %v2350, %v2341
    %v2900 = vpack.c.b16 %v2351, %v2342
    %v2901 = vpack.c.b16 %v2352, %v2343
    %v2902 = vpack.c.b16 %v2353, %v2344
    %v2903 = vpack.c.b16 %v2354, %v2345
    %v2904 = vpack.c.b16 %v2355, %v2346
    %v2905 = vpack.c.b16 %v2356, %v2347
    %v2906 = vpack.c.b16 %v2357, %v2348
    %v2907 = vpack.c.b16 %v2358, %v2349
    %v2908 = vpack.c.b16 %v2368, %v2359
    %v2909 = vpack.c.b16 %v2369, %v2360
    %v2910 = vpack.c.b16 %v2370, %v2361
    %v2911 = vpack.c.b16 %v2371, %v2362
    %v2912 = vpack.c.b16 %v2372, %v2363
    %v2913 = vpack.c.b16 %v2373, %v2364
    %v2914 = vpack.c.b16 %v2374, %v2365
    %v2915 = vpack.c.b16 %v2375, %v2366
    %v2916 = vpack.c.b16 %v2376, %v2367
    %v2917 = vpack.c.b16 %v2386, %v2377
    %v2918 = vpack.c.b16 %v2387, %v2378
    %v2919 = vpack.c.b16 %v2388, %v2379
    %v2920 = vpack.c.b16 %v2389, %v2380
    %v2921 = vpack.c.b16 %v2390, %v2381
    %v2922 = vpack.c.b16 %v2391, %v2382
    %v2923 = vpack.c.b16 %v2392, %v2383
    %v2924 = vpack.c.b16 %v2393, %v2384
    %v2925 = vpack.c.b16 %v2394, %v2385
    %v2926 = vpack.c.b16 %v2404, %v2395
    %v2927 = vpack.c.b16 %v2405, %v2396
    %v2928 = vpack.c.b16 %v2406, %v2397
    %v2929 = vpack.c.b16 %v2407, %v2398
    %v2930 = vpack.c.b16 %v2408, %v2399
    %v2931 = vpack.c.b16 %v2409, %v2400
    %v2932 = vpack.c.b16 %v2410, %v2401
    %v2933 = vpack.c.b16 %v2411, %v2402
    %v2934 = vpack.c.b16 %v2412, %v2403
    %v2935 = vpack.c.b16 %v2422, %v2413
    %v2936 = vpack.c.b16 %v2423, %v2414
    %v2937 = vpack.c.b16 %v2424, %v2415
    %v2938 = vpack.c.b16 %v2425, %v2416
    %v2939 = vpack.c.b16 %v2426, %v2417
    %v2940 = vpack.c.b16 %v2427, %v2418
    %v2941 = vpack.c.b16 %v2428, %v2419
    %v2942 = vpack.c.b16 %v2429, %v2420
    %v2943 = vpack.c.b16 %v2430, %v2421
    %v2944 = vpack.c.b16 %v2440, %v2431
    %v2945 = vpack.c.b16 %v2441, %v2432
    %v2946 = vpack.c.b16 %v2442, %v2433
    %v2947 = vpack.c.b16 %v2443, %v2434
    %v2948 = vpack.c.b16 %v2444, %v2435
    %v2949 = vpack.c.b16 %v2445, %v2436
    %v2950 = vpack.c.b16 %v2446, %v2437
    %v2951 = vpack.c.b16 %v2447, %v2438
    %v2952 = vpack.c.b16 %v2448, %v2439
    %3457 = vmatprep.subr.bf16.mxu0 %v2450
    %3458 = vmatpush1.bf16.msra.mxu0 %v2449
    %3459 = vmatprep.subr.bf16.mxu0 %v2459
    %3460 = vmatpush1.bf16.msra.mxu0 %v2458
    %3461 = vmatprep.subr.bf16.mxu0 %v2468
    %3462 = vmatpush1.bf16.msra.mxu0 %v2467
    %3463 = vmatprep.subr.bf16.mxu0 %v2477
    %3464 = vmatpush1.bf16.msra.mxu0 %v2476
    %3465 = vmatprep.subr.bf16.mxu0 %v2486
    %3466 = vmatpush1.bf16.msra.mxu0 %v2485
    %3467 = vmatprep.subr.bf16.mxu0 %v2495
    %3468 = vmatpush1.bf16.msra.mxu0 %v2494
    %3469 = vmatprep.subr.bf16.mxu0 %v2504
    %3470 = vmatpush1.bf16.msra.mxu0 %v2503
    %3471 = vmatprep.subr.bf16.mxu0 %v2513
    %3472 = vmatpush1.bf16.msra.mxu0 %v2512
    %3473 = vmatprep.subr.bf16.mxu0 %v2522
    %3474 = vmatpush1.bf16.msra.mxu0 %v2521
    %3475 = vmatprep.subr.bf16.mxu0 %v2531
    %3476 = vmatpush1.bf16.msra.mxu0 %v2530
    %3477 = vmatprep.subr.bf16.mxu0 %v2540
    %3478 = vmatpush1.bf16.msra.mxu0 %v2539
    %3479 = vmatprep.subr.bf16.mxu0 %v2549
    %3480 = vmatpush1.bf16.msra.mxu0 %v2548
    %3481 = vmatprep.subr.bf16.mxu0 %v2558
    %3482 = vmatpush1.bf16.msra.mxu0 %v2557
    %3483 = vmatprep.subr.bf16.mxu0 %v2567
    %3484 = vmatpush1.bf16.msra.mxu0 %v2566
    %3485 = vmatprep.subr.bf16.mxu0 %v2576
    %3486 = vmatpush1.bf16.msra.mxu0 %v2575
    %3487 = vmatprep.subr.bf16.mxu0 %v2585
    %3488 = vmatpush1.bf16.msra.mxu0 %v2584
    %3489 = vmatprep.mubr.bf16.mxu0 %v266
    %3490 = vmatmul.mubr.bf16.gmra.mrb[0].mxu0 %v265
    %v3491 = vpop.f32.mrb[0].mxu0
    %v3492 = vadd.f32 %v839, %v3491
    %v3493 = vpop.f32.mrb[0].mxu0
    %v3494 = vadd.f32 %v843, %v3493
    %v3495 = vpop.f32.mrb[0].mxu0
    %v3496 = vpop.f32.mrb[0].mxu0
    %3497 = vdwg.mxu0
    %3498 = vmatprep.subr.bf16.mxu0 %v2594
    %3499 = vmatpush1.bf16.msra.mxu0 %v2593
    %3500 = vmatprep.subr.bf16.mxu0 %v2603
    %3501 = vmatpush1.bf16.msra.mxu0 %v2602
    %3502 = vmatprep.subr.bf16.mxu0 %v2612
    %3503 = vmatpush1.bf16.msra.mxu0 %v2611
    %3504 = vmatprep.subr.bf16.mxu0 %v2621
    %3505 = vmatpush1.bf16.msra.mxu0 %v2620
    %3506 = vmatprep.subr.bf16.mxu0 %v2630
    %3507 = vmatpush1.bf16.msra.mxu0 %v2629
    %3508 = vmatprep.subr.bf16.mxu0 %v2639
    %3509 = vmatpush1.bf16.msra.mxu0 %v2638
    %3510 = vmatprep.subr.bf16.mxu0 %v2648
    %3511 = vmatpush1.bf16.msra.mxu0 %v2647
    %3512 = vmatprep.subr.bf16.mxu0 %v2657
    %3513 = vmatpush1.bf16.msra.mxu0 %v2656
    %3514 = vmatprep.subr.bf16.mxu0 %v2666
    %3515 = vmatpush1.bf16.msra.mxu0 %v2665
    %3516 = vmatprep.subr.bf16.mxu0 %v2675
    %3517 = vmatpush1.bf16.msra.mxu0 %v2674
    %3518 = vmatprep.subr.bf16.mxu0 %v2684
    %3519 = vmatpush1.bf16.msra.mxu0 %v2683
    %3520 = vmatprep.subr.bf16.mxu0 %v2693
    %3521 = vmatpush1.bf16.msra.mxu0 %v2692
    %3522 = vmatprep.subr.bf16.mxu0 %v2702
    %3523 = vmatpush1.bf16.msra.mxu0 %v2701
    %3524 = vmatprep.subr.bf16.mxu0 %v2711
    %3525 = vmatpush1.bf16.msra.mxu0 %v2710
    %3526 = vmatprep.subr.bf16.mxu0 %v2720
    %3527 = vmatpush1.bf16.msra.mxu0 %v2719
    %3528 = vmatprep.subr.bf16.mxu0 %v2729
    %3529 = vmatpush1.bf16.msra.mxu0 %v2728
    %3530 = vmatprep.mubr.bf16.mxu0 %v268
    %3531 = vmatmul.mubr.bf16.gmra.mrb[0].mxu0 %v267
    %v3532 = vpop.f32.mrb[0].mxu0
    %v3533 = vadd.f32 %v3492, %v3532
    %v3534 = vpop.f32.mrb[0].mxu0
    %v3535 = vadd.f32 %v3494, %v3534
    %v3536 = vpop.f32.mrb[0].mxu0
    %v3537 = vpop.f32.mrb[0].mxu0
    %3538 = vdwg.mxu0
    %3539 = vmatprep.subr.bf16.mxu0 %v2738
    %3540 = vmatpush1.bf16.msra.mxu0 %v2737
    %3541 = vmatprep.subr.bf16.mxu0 %v2747
    %3542 = vmatpush1.bf16.msra.mxu0 %v2746
    %3543 = vmatprep.subr.bf16.mxu0 %v2756
    %3544 = vmatpush1.bf16.msra.mxu0 %v2755
    %3545 = vmatprep.subr.bf16.mxu0 %v2765
    %3546 = vmatpush1.bf16.msra.mxu0 %v2764
    %3547 = vmatprep.subr.bf16.mxu0 %v2774
    %3548 = vmatpush1.bf16.msra.mxu0 %v2773
    %3549 = vmatprep.subr.bf16.mxu0 %v2783
    %3550 = vmatpush1.bf16.msra.mxu0 %v2782
    %3551 = vmatprep.subr.bf16.mxu0 %v2792
    %3552 = vmatpush1.bf16.msra.mxu0 %v2791
    %3553 = vmatprep.subr.bf16.mxu0 %v2801
    %3554 = vmatpush1.bf16.msra.mxu0 %v2800
    %3555 = vmatprep.subr.bf16.mxu0 %v2810
    %3556 = vmatpush1.bf16.msra.mxu0 %v2809
    %3557 = vmatprep.subr.bf16.mxu0 %v2819
    %3558 = vmatpush1.bf16.msra.mxu0 %v2818
    %3559 = vmatprep.subr.bf16.mxu0 %v2828
    %3560 = vmatpush1.bf16.msra.mxu0 %v2827
    %3561 = vmatprep.subr.bf16.mxu0 %v2837
    %3562 = vmatpush1.bf16.msra.mxu0 %v2836
    %3563 = vmatprep.subr.bf16.mxu0 %v2846
    %3564 = vmatpush1.bf16.msra.mxu0 %v2845
    %3565 = vmatprep.subr.bf16.mxu0 %v2855
    %3566 = vmatpush1.bf16.msra.mxu0 %v2854
    %3567 = vmatprep.subr.bf16.mxu0 %v2864
    %3568 = vmatpush1.bf16.msra.mxu0 %v2863
    %3569 = vmatprep.subr.bf16.mxu0 %v2873
    %3570 = vmatpush1.bf16.msra.mxu0 %v2872
    %3571 = vmatprep.mubr.bf16.mxu0 %v270
    %3572 = vmatmul.mubr.bf16.gmra.mrb[0].mxu0 %v269
    %v3573 = vpop.f32.mrb[0].mxu0
    %v3574 = vadd.f32 %v3533, %v3573
    %v3575 = vpop.f32.mrb[0].mxu0
    %v3576 = vadd.f32 %v3535, %v3575
    %v3577 = vpop.f32.mrb[0].mxu0
    %v3578 = vpop.f32.mrb[0].mxu0
    %3579 = vdwg.mxu0
    %3580 = vmatprep.subr.bf16.mxu0 %v2882
    %3581 = vmatpush1.bf16.msra.mxu0 %v2881
    %3582 = vmatprep.subr.bf16.mxu0 %v2891
    %3583 = vmatpush1.bf16.msra.mxu0 %v2890
    %3584 = vmatprep.subr.bf16.mxu0 %v2900
    %3585 = vmatpush1.bf16.msra.mxu0 %v2899
    %3586 = vmatprep.subr.bf16.mxu0 %v2909
    %3587 = vmatpush1.bf16.msra.mxu0 %v2908
    %3588 = vmatprep.subr.bf16.mxu0 %v2918
    %3589 = vmatpush1.bf16.msra.mxu0 %v2917
    %3590 = vmatprep.subr.bf16.mxu0 %v2927
    %3591 = vmatpush1.bf16.msra.mxu0 %v2926
    %3592 = vmatprep.subr.bf16.mxu0 %v2936
    %3593 = vmatpush1.bf16.msra.mxu0 %v2935
    %3594 = vmatprep.subr.bf16.mxu0 %v2945
    %3595 = vmatpush1.bf16.msra.mxu0 %v2944
    %3596 = vmatprep.subr.bf16.mxu0 0
    %3597 = vmatpush1.bf16.msra.mxu0 0
    %3598 = vmatprep.subr.bf16.mxu0 0
    %3599 = vmatpush1.bf16.msra.mxu0 0
    %3600 = vmatprep.subr.bf16.mxu0 0
    %3601 = vmatpush1.bf16.msra.mxu0 0
    %3602 = vmatprep.subr.bf16.mxu0 0
    %3603 = vmatpush1.bf16.msra.mxu0 0
    %3604 = vmatprep.subr.bf16.mxu0 0
    %3605 = vmatpush1.bf16.msra.mxu0 0
    %3606 = vmatprep.subr.bf16.mxu0 0
    %3607 = vmatpush1.bf16.msra.mxu0 0
    %3608 = vmatprep.subr.bf16.mxu0 0
    %3609 = vmatpush1.bf16.msra.mxu0 0
    %3610 = vmatprep.subr.bf16.mxu0 0
    %3611 = vmatpush1.bf16.msra.mxu0 0
    %3612 = vmatprep.mubr.bf16.mxu0 0
    %3613 = vmatmul.mubr.bf16.gmra.mrb[0].mxu0 %v271
    %v3614 = vpop.f32.mrb[0].mxu0
    %v3615 = vadd.f32 %v3574, %v3614
    %v3616 = vpop.f32.mrb[0].mxu0
    %v3617 = vadd.f32 %v3576, %v3616
    %v3618 = vpop.f32.mrb[0].mxu0
    %v3619 = vpop.f32.mrb[0].mxu0
    %3620 = vdwg.mxu0
    %3621 = vmatprep.subr.bf16.mxu0 %v2452
    %3622 = vmatpush1.bf16.msra.mxu0 %v2451
    %3623 = vmatprep.subr.bf16.mxu0 %v2461
    %3624 = vmatpush1.bf16.msra.mxu0 %v2460
    %3625 = vmatprep.subr.bf16.mxu0 %v2470
    %3626 = vmatpush1.bf16.msra.mxu0 %v2469
    %3627 = vmatprep.subr.bf16.mxu0 %v2479
    %3628 = vmatpush1.bf16.msra.mxu0 %v2478
    %3629 = vmatprep.subr.bf16.mxu0 %v2488
    %3630 = vmatpush1.bf16.msra.mxu0 %v2487
    %3631 = vmatprep.subr.bf16.mxu0 %v2497
    %3632 = vmatpush1.bf16.msra.mxu0 %v2496
    %3633 = vmatprep.subr.bf16.mxu0 %v2506
    %3634 = vmatpush1.bf16.msra.mxu0 %v2505
    %3635 = vmatprep.subr.bf16.mxu0 %v2515
    %3636 = vmatpush1.bf16.msra.mxu0 %v2514
    %3637 = vmatprep.subr.bf16.mxu0 %v2524
    %3638 = vmatpush1.bf16.msra.mxu0 %v2523
    %3639 = vmatprep.subr.bf16.mxu0 %v2533
    %3640 = vmatpush1.bf16.msra.mxu0 %v2532
    %3641 = vmatprep.subr.bf16.mxu0 %v2542
    %3642 = vmatpush1.bf16.msra.mxu0 %v2541
    %3643 = vmatprep.subr.bf16.mxu0 %v2551
    %3644 = vmatpush1.bf16.msra.mxu0 %v2550
    %3645 = vmatprep.subr.bf16.mxu0 %v2560
    %3646 = vmatpush1.bf16.msra.mxu0 %v2559
    %3647 = vmatprep.subr.bf16.mxu0 %v2569
    %3648 = vmatpush1.bf16.msra.mxu0 %v2568
    %3649 = vmatprep.subr.bf16.mxu0 %v2578
    %3650 = vmatpush1.bf16.msra.mxu0 %v2577
    %3651 = vmatprep.subr.bf16.mxu0 %v2587
    %3652 = vmatpush1.bf16.msra.mxu0 %v2586
    %3653 = vmatprep.mubr.bf16.mxu0 %v266
    %3654 = vmatmul.mubr.bf16.gmra.mrb[0].mxu0 %v265
    %v3655 = vpop.f32.mrb[0].mxu0
    %v3656 = vadd.f32 %v847, %v3655
    %v3657 = vpop.f32.mrb[0].mxu0
    %v3658 = vadd.f32 %v851, %v3657
    %v3659 = vpop.f32.mrb[0].mxu0
    %v3660 = vpop.f32.mrb[0].mxu0
    %3661 = vdwg.mxu0
    %3662 = vmatprep.subr.bf16.mxu0 %v2596
    %3663 = vmatpush1.bf16.msra.mxu0 %v2595
    %3664 = vmatprep.subr.bf16.mxu0 %v2605
    %3665 = vmatpush1.bf16.msra.mxu0 %v2604
    %3666 = vmatprep.subr.bf16.mxu0 %v2614
    %3667 = vmatpush1.bf16.msra.mxu0 %v2613
    %3668 = vmatprep.subr.bf16.mxu0 %v2623
    %3669 = vmatpush1.bf16.msra.mxu0 %v2622
    %3670 = vmatprep.subr.bf16.mxu0 %v2632
    %3671 = vmatpush1.bf16.msra.mxu0 %v2631
    %3672 = vmatprep.subr.bf16.mxu0 %v2641
    %3673 = vmatpush1.bf16.msra.mxu0 %v2640
    %3674 = vmatprep.subr.bf16.mxu0 %v2650
    %3675 = vmatpush1.bf16.msra.mxu0 %v2649
    %3676 = vmatprep.subr.bf16.mxu0 %v2659
    %3677 = vmatpush1.bf16.msra.mxu0 %v2658
    %3678 = vmatprep.subr.bf16.mxu0 %v2668
    %3679 = vmatpush1.bf16.msra.mxu0 %v2667
    %3680 = vmatprep.subr.bf16.mxu0 %v2677
    %3681 = vmatpush1.bf16.msra.mxu0 %v2676
    %3682 = vmatprep.subr.bf16.mxu0 %v2686
    %3683 = vmatpush1.bf16.msra.mxu0 %v2685
    %3684 = vmatprep.subr.bf16.mxu0 %v2695
    %3685 = vmatpush1.bf16.msra.mxu0 %v2694
    %3686 = vmatprep.subr.bf16.mxu0 %v2704
    %3687 = vmatpush1.bf16.msra.mxu0 %v2703
    %3688 = vmatprep.subr.bf16.mxu0 %v2713
    %3689 = vmatpush1.bf16.msra.mxu0 %v2712
    %3690 = vmatprep.subr.bf16.mxu0 %v2722
    %3691 = vmatpush1.bf16.msra.mxu0 %v2721
    %3692 = vmatprep.subr.bf16.mxu0 %v2731
    %3693 = vmatpush1.bf16.msra.mxu0 %v2730
    %3694 = vmatprep.mubr.bf16.mxu0 %v268
    %3695 = vmatmul.mubr.bf16.gmra.mrb[0].mxu0 %v267
    %v3696 = vpop.f32.mrb[0].mxu0
    %v3697 = vadd.f32 %v3656, %v3696
    %v3698 = vpop.f32.mrb[0].mxu0
    %v3699 = vadd.f32 %v3658, %v3698
    %v3700 = vpop.f32.mrb[0].mxu0
    %v3701 = vpop.f32.mrb[0].mxu0
    %3702 = vdwg.mxu0
    %3703 = vmatprep.subr.bf16.mxu0 %v2740
    %3704 = vmatpush1.bf16.msra.mxu0 %v2739
    %3705 = vmatprep.subr.bf16.mxu0 %v2749
    %3706 = vmatpush1.bf16.msra.mxu0 %v2748
    %3707 = vmatprep.subr.bf16.mxu0 %v2758
    %3708 = vmatpush1.bf16.msra.mxu0 %v2757
    %3709 = vmatprep.subr.bf16.mxu0 %v2767
    %3710 = vmatpush1.bf16.msra.mxu0 %v2766
    %3711 = vmatprep.subr.bf16.mxu0 %v2776
    %3712 = vmatpush1.bf16.msra.mxu0 %v2775
    %3713 = vmatprep.subr.bf16.mxu0 %v2785
    %3714 = vmatpush1.bf16.msra.mxu0 %v2784
    %3715 = vmatprep.subr.bf16.mxu0 %v2794
    %3716 = vmatpush1.bf16.msra.mxu0 %v2793
    %3717 = vmatprep.subr.bf16.mxu0 %v2803
    %3718 = vmatpush1.bf16.msra.mxu0 %v2802
    %3719 = vmatprep.subr.bf16.mxu0 %v2812
    %3720 = vmatpush1.bf16.msra.mxu0 %v2811
    %3721 = vmatprep.subr.bf16.mxu0 %v2821
    %3722 = vmatpush1.bf16.msra.mxu0 %v2820
    %3723 = vmatprep.subr.bf16.mxu0 %v2830
    %3724 = vmatpush1.bf16.msra.mxu0 %v2829
    %3725 = vmatprep.subr.bf16.mxu0 %v2839
    %3726 = vmatpush1.bf16.msra.mxu0 %v2838
    %3727 = vmatprep.subr.bf16.mxu0 %v2848
    %3728 = vmatpush1.bf16.msra.mxu0 %v2847
    %3729 = vmatprep.subr.bf16.mxu0 %v2857
    %3730 = vmatpush1.bf16.msra.mxu0 %v2856
    %3731 = vmatprep.subr.bf16.mxu0 %v2866
    %3732 = vmatpush1.bf16.msra.mxu0 %v2865
    %3733 = vmatprep.subr.bf16.mxu0 %v2875
    %3734 = vmatpush1.bf16.msra.mxu0 %v2874
    %3735 = vmatprep.mubr.bf16.mxu0 %v270
    %3736 = vmatmul.mubr.bf16.gmra.mrb[0].mxu0 %v269
    %v3737 = vpop.f32.mrb[0].mxu0
    %v3738 = vadd.f32 %v3697, %v3737
    %v3739 = vpop.f32.mrb[0].mxu0
    %v3740 = vadd.f32 %v3699, %v3739
    %v3741 = vpop.f32.mrb[0].mxu0
    %v3742 = vpop.f32.mrb[0].mxu0
    %3743 = vdwg.mxu0
    %3744 = vmatprep.subr.bf16.mxu0 %v2884
    %3745 = vmatpush1.bf16.msra.mxu0 %v2883
    %3746 = vmatprep.subr.bf16.mxu0 %v2893
    %3747 = vmatpush1.bf16.msra.mxu0 %v2892
    %3748 = vmatprep.subr.bf16.mxu0 %v2902
    %3749 = vmatpush1.bf16.msra.mxu0 %v2901
    %3750 = vmatprep.subr.bf16.mxu0 %v2911
    %3751 = vmatpush1.bf16.msra.mxu0 %v2910
    %3752 = vmatprep.subr.bf16.mxu0 %v2920
    %3753 = vmatpush1.bf16.msra.mxu0 %v2919
    %3754 = vmatprep.subr.bf16.mxu0 %v2929
    %3755 = vmatpush1.bf16.msra.mxu0 %v2928
    %3756 = vmatprep.subr.bf16.mxu0 %v2938
    %3757 = vmatpush1.bf16.msra.mxu0 %v2937
    %3758 = vmatprep.subr.bf16.mxu0 %v2947
    %3759 = vmatpush1.bf16.msra.mxu0 %v2946
    %3760 = vmatprep.subr.bf16.mxu0 0
    %3761 = vmatpush1.bf16.msra.mxu0 0
    %3762 = vmatprep.subr.bf16.mxu0 0
    %3763 = vmatpush1.bf16.msra.mxu0 0
    %3764 = vmatprep.subr.bf16.mxu0 0
    %3765 = vmatpush1.bf16.msra.mxu0 0
    %3766 = vmatprep.subr.bf16.mxu0 0
    %3767 = vmatpush1.bf16.msra.mxu0 0
    %3768 = vmatprep.subr.bf16.mxu0 0
    %3769 = vmatpush1.bf16.msra.mxu0 0
    %3770 = vmatprep.subr.bf16.mxu0 0
    %3771 = vmatpush1.bf16.msra.mxu0 0
    %3772 = vmatprep.subr.bf16.mxu0 0
    %3773 = vmatpush1.bf16.msra.mxu0 0
    %3774 = vmatprep.subr.bf16.mxu0 0
    %3775 = vmatpush1.bf16.msra.mxu0 0
    %3776 = vmatprep.mubr.bf16.mxu0 0
    %3777 = vmatmul.mubr.bf16.gmra.mrb[0].mxu0 %v271
    %v3778 = vpop.f32.mrb[0].mxu0
    %v3779 = vadd.f32 %v3738, %v3778
    %v3780 = vpop.f32.mrb[0].mxu0
    %v3781 = vadd.f32 %v3740, %v3780
    %v3782 = vpop.f32.mrb[0].mxu0
    %v3783 = vpop.f32.mrb[0].mxu0
    %3784 = vdwg.mxu0
    %3785 = vmatprep.subr.bf16.mxu0 %v2454
    %3786 = vmatpush1.bf16.msra.mxu0 %v2453
    %3787 = vmatprep.subr.bf16.mxu0 %v2463
    %3788 = vmatpush1.bf16.msra.mxu0 %v2462
    %3789 = vmatprep.subr.bf16.mxu0 %v2472
    %3790 = vmatpush1.bf16.msra.mxu0 %v2471
    %3791 = vmatprep.subr.bf16.mxu0 %v2481
    %3792 = vmatpush1.bf16.msra.mxu0 %v2480
    %3793 = vmatprep.subr.bf16.mxu0 %v2490
    %3794 = vmatpush1.bf16.msra.mxu0 %v2489
    %3795 = vmatprep.subr.bf16.mxu0 %v2499
    %3796 = vmatpush1.bf16.msra.mxu0 %v2498
    %3797 = vmatprep.subr.bf16.mxu0 %v2508
    %3798 = vmatpush1.bf16.msra.mxu0 %v2507
    %3799 = vmatprep.subr.bf16.mxu0 %v2517
    %3800 = vmatpush1.bf16.msra.mxu0 %v2516
    %3801 = vmatprep.subr.bf16.mxu0 %v2526
    %3802 = vmatpush1.bf16.msra.mxu0 %v2525
    %3803 = vmatprep.subr.bf16.mxu0 %v2535
    %3804 = vmatpush1.bf16.msra.mxu0 %v2534
    %3805 = vmatprep.subr.bf16.mxu0 %v2544
    %3806 = vmatpush1.bf16.msra.mxu0 %v2543
    %3807 = vmatprep.subr.bf16.mxu0 %v2553
    %3808 = vmatpush1.bf16.msra.mxu0 %v2552
    %3809 = vmatprep.subr.bf16.mxu0 %v2562
    %3810 = vmatpush1.bf16.msra.mxu0 %v2561
    %3811 = vmatprep.subr.bf16.mxu0 %v2571
    %3812 = vmatpush1.bf16.msra.mxu0 %v2570
    %3813 = vmatprep.subr.bf16.mxu0 %v2580
    %3814 = vmatpush1.bf16.msra.mxu0 %v2579
    %3815 = vmatprep.subr.bf16.mxu0 %v2589
    %3816 = vmatpush1.bf16.msra.mxu0 %v2588
    %3817 = vmatprep.mubr.bf16.mxu0 %v266
    %3818 = vmatmul.mubr.bf16.gmra.mrb[0].mxu0 %v265
    %v3819 = vpop.f32.mrb[0].mxu0
    %v3820 = vadd.f32 %v855, %v3819
    %v3821 = vpop.f32.mrb[0].mxu0
    %v3822 = vadd.f32 %v859, %v3821
    %v3823 = vpop.f32.mrb[0].mxu0
    %v3824 = vpop.f32.mrb[0].mxu0
    %3825 = vdwg.mxu0
    %3826 = vmatprep.subr.bf16.mxu0 %v2598
    %3827 = vmatpush1.bf16.msra.mxu0 %v2597
    %3828 = vmatprep.subr.bf16.mxu0 %v2607
    %3829 = vmatpush1.bf16.msra.mxu0 %v2606
    %3830 = vmatprep.subr.bf16.mxu0 %v2616
    %3831 = vmatpush1.bf16.msra.mxu0 %v2615
    %3832 = vmatprep.subr.bf16.mxu0 %v2625
    %3833 = vmatpush1.bf16.msra.mxu0 %v2624
    %3834 = vmatprep.subr.bf16.mxu0 %v2634
    %3835 = vmatpush1.bf16.msra.mxu0 %v2633
    %3836 = vmatprep.subr.bf16.mxu0 %v2643
    %3837 = vmatpush1.bf16.msra.mxu0 %v2642
    %3838 = vmatprep.subr.bf16.mxu0 %v2652
    %3839 = vmatpush1.bf16.msra.mxu0 %v2651
    %3840 = vmatprep.subr.bf16.mxu0 %v2661
    %3841 = vmatpush1.bf16.msra.mxu0 %v2660
    %3842 = vmatprep.subr.bf16.mxu0 %v2670
    %3843 = vmatpush1.bf16.msra.mxu0 %v2669
    %3844 = vmatprep.subr.bf16.mxu0 %v2679
    %3845 = vmatpush1.bf16.msra.mxu0 %v2678
    %3846 = vmatprep.subr.bf16.mxu0 %v2688
    %3847 = vmatpush1.bf16.msra.mxu0 %v2687
    %3848 = vmatprep.subr.bf16.mxu0 %v2697
    %3849 = vmatpush1.bf16.msra.mxu0 %v2696
    %3850 = vmatprep.subr.bf16.mxu0 %v2706
    %3851 = vmatpush1.bf16.msra.mxu0 %v2705
    %3852 = vmatprep.subr.bf16.mxu0 %v2715
    %3853 = vmatpush1.bf16.msra.mxu0 %v2714
    %3854 = vmatprep.subr.bf16.mxu0 %v2724
    %3855 = vmatpush1.bf16.msra.mxu0 %v2723
    %3856 = vmatprep.subr.bf16.mxu0 %v2733
    %3857 = vmatpush1.bf16.msra.mxu0 %v2732
    %3858 = vmatprep.mubr.bf16.mxu0 %v268
    %3859 = vmatmul.mubr.bf16.gmra.mrb[0].mxu0 %v267
    %v3860 = vpop.f32.mrb[0].mxu0
    %v3861 = vadd.f32 %v3820, %v3860
    %v3862 = vpop.f32.mrb[0].mxu0
    %v3863 = vadd.f32 %v3822, %v3862
    %v3864 = vpop.f32.mrb[0].mxu0
    %v3865 = vpop.f32.mrb[0].mxu0
    %3866 = vdwg.mxu0
    %3867 = vmatprep.subr.bf16.mxu0 %v2742
    %3868 = vmatpush1.bf16.msra.mxu0 %v2741
    %3869 = vmatprep.subr.bf16.mxu0 %v2751
    %3870 = vmatpush1.bf16.msra.mxu0 %v2750
    %3871 = vmatprep.subr.bf16.mxu0 %v2760
    %3872 = vmatpush1.bf16.msra.mxu0 %v2759
    %3873 = vmatprep.subr.bf16.mxu0 %v2769
    %3874 = vmatpush1.bf16.msra.mxu0 %v2768
    %3875 = vmatprep.subr.bf16.mxu0 %v2778
    %3876 = vmatpush1.bf16.msra.mxu0 %v2777
    %3877 = vmatprep.subr.bf16.mxu0 %v2787
    %3878 = vmatpush1.bf16.msra.mxu0 %v2786
    %3879 = vmatprep.subr.bf16.mxu0 %v2796
    %3880 = vmatpush1.bf16.msra.mxu0 %v2795
    %3881 = vmatprep.subr.bf16.mxu0 %v2805
    %3882 = vmatpush1.bf16.msra.mxu0 %v2804
    %3883 = vmatprep.subr.bf16.mxu0 %v2814
    %3884 = vmatpush1.bf16.msra.mxu0 %v2813
    %3885 = vmatprep.subr.bf16.mxu0 %v2823
    %3886 = vmatpush1.bf16.msra.mxu0 %v2822
    %3887 = vmatprep.subr.bf16.mxu0 %v2832
    %3888 = vmatpush1.bf16.msra.mxu0 %v2831
    %3889 = vmatprep.subr.bf16.mxu0 %v2841
    %3890 = vmatpush1.bf16.msra.mxu0 %v2840
    %3891 = vmatprep.subr.bf16.mxu0 %v2850
    %3892 = vmatpush1.bf16.msra.mxu0 %v2849
    %3893 = vmatprep.subr.bf16.mxu0 %v2859
    %3894 = vmatpush1.bf16.msra.mxu0 %v2858
    %3895 = vmatprep.subr.bf16.mxu0 %v2868
    %3896 = vmatpush1.bf16.msra.mxu0 %v2867
    %3897 = vmatprep.subr.bf16.mxu0 %v2877
    %3898 = vmatpush1.bf16.msra.mxu0 %v2876
    %3899 = vmatprep.mubr.bf16.mxu0 %v270
    %3900 = vmatmul.mubr.bf16.gmra.mrb[0].mxu0 %v269
    %v3901 = vpop.f32.mrb[0].mxu0
    %v3902 = vadd.f32 %v3861, %v3901
    %v3903 = vpop.f32.mrb[0].mxu0
    %v3904 = vadd.f32 %v3863, %v3903
    %v3905 = vpop.f32.mrb[0].mxu0
    %v3906 = vpop.f32.mrb[0].mxu0
    %3907 = vdwg.mxu0
    %3908 = vmatprep.subr.bf16.mxu0 %v2886
    %3909 = vmatpush1.bf16.msra.mxu0 %v2885
    %3910 = vmatprep.subr.bf16.mxu0 %v2895
    %3911 = vmatpush1.bf16.msra.mxu0 %v2894
    %3912 = vmatprep.subr.bf16.mxu0 %v2904
    %3913 = vmatpush1.bf16.msra.mxu0 %v2903
    %3914 = vmatprep.subr.bf16.mxu0 %v2913
    %3915 = vmatpush1.bf16.msra.mxu0 %v2912
    %3916 = vmatprep.subr.bf16.mxu0 %v2922
    %3917 = vmatpush1.bf16.msra.mxu0 %v2921
    %3918 = vmatprep.subr.bf16.mxu0 %v2931
    %3919 = vmatpush1.bf16.msra.mxu0 %v2930
    %3920 = vmatprep.subr.bf16.mxu0 %v2940
    %3921 = vmatpush1.bf16.msra.mxu0 %v2939
    %3922 = vmatprep.subr.bf16.mxu0 %v2949
    %3923 = vmatpush1.bf16.msra.mxu0 %v2948
    %3924 = vmatprep.subr.bf16.mxu0 0
    %3925 = vmatpush1.bf16.msra.mxu0 0
    %3926 = vmatprep.subr.bf16.mxu0 0
    %3927 = vmatpush1.bf16.msra.mxu0 0
    %3928 = vmatprep.subr.bf16.mxu0 0
    %3929 = vmatpush1.bf16.msra.mxu0 0
    %3930 = vmatprep.subr.bf16.mxu0 0
    %3931 = vmatpush1.bf16.msra.mxu0 0
    %3932 = vmatprep.subr.bf16.mxu0 0
    %3933 = vmatpush1.bf16.msra.mxu0 0
    %3934 = vmatprep.subr.bf16.mxu0 0
    %3935 = vmatpush1.bf16.msra.mxu0 0
    %3936 = vmatprep.subr.bf16.mxu0 0
    %3937 = vmatpush1.bf16.msra.mxu0 0
    %3938 = vmatprep.subr.bf16.mxu0 0
    %3939 = vmatpush1.bf16.msra.mxu0 0
    %3940 = vmatprep.mubr.bf16.mxu0 0
    %3941 = vmatmul.mubr.bf16.gmra.mrb[0].mxu0 %v271
    %v3942 = vpop.f32.mrb[0].mxu0
    %v3943 = vadd.f32 %v3902, %v3942
    %v3944 = vpop.f32.mrb[0].mxu0
    %v3945 = vadd.f32 %v3904, %v3944
    %v3946 = vpop.f32.mrb[0].mxu0
    %v3947 = vpop.f32.mrb[0].mxu0
    %3948 = vdwg.mxu0
    %3949 = vmatprep.subr.bf16.mxu0 %v2456
    %3950 = vmatpush1.bf16.msra.mxu0 %v2455
    %3951 = vmatprep.subr.bf16.mxu0 %v2465
    %3952 = vmatpush1.bf16.msra.mxu0 %v2464
    %3953 = vmatprep.subr.bf16.mxu0 %v2474
    %3954 = vmatpush1.bf16.msra.mxu0 %v2473
    %3955 = vmatprep.subr.bf16.mxu0 %v2483
    %3956 = vmatpush1.bf16.msra.mxu0 %v2482
    %3957 = vmatprep.subr.bf16.mxu0 %v2492
    %3958 = vmatpush1.bf16.msra.mxu0 %v2491
    %3959 = vmatprep.subr.bf16.mxu0 %v2501
    %3960 = vmatpush1.bf16.msra.mxu0 %v2500
    %3961 = vmatprep.subr.bf16.mxu0 %v2510
    %3962 = vmatpush1.bf16.msra.mxu0 %v2509
    %3963 = vmatprep.subr.bf16.mxu0 %v2519
    %3964 = vmatpush1.bf16.msra.mxu0 %v2518
    %3965 = vmatprep.subr.bf16.mxu0 %v2528
    %3966 = vmatpush1.bf16.msra.mxu0 %v2527
    %3967 = vmatprep.subr.bf16.mxu0 %v2537
    %3968 = vmatpush1.bf16.msra.mxu0 %v2536
    %3969 = vmatprep.subr.bf16.mxu0 %v2546
    %3970 = vmatpush1.bf16.msra.mxu0 %v2545
    %3971 = vmatprep.subr.bf16.mxu0 %v2555
    %3972 = vmatpush1.bf16.msra.mxu0 %v2554
    %3973 = vmatprep.subr.bf16.mxu0 %v2564
    %3974 = vmatpush1.bf16.msra.mxu0 %v2563
    %3975 = vmatprep.subr.bf16.mxu0 %v2573
    %3976 = vmatpush1.bf16.msra.mxu0 %v2572
    %3977 = vmatprep.subr.bf16.mxu0 %v2582
    %3978 = vmatpush1.bf16.msra.mxu0 %v2581
    %3979 = vmatprep.subr.bf16.mxu0 %v2591
    %3980 = vmatpush1.bf16.msra.mxu0 %v2590
    %3981 = vmatprep.mubr.bf16.mxu0 %v266
    %3982 = vmatmul.mubr.bf16.gmra.mrb[0].mxu0 %v265
    %v3983 = vpop.f32.mrb[0].mxu0
    %v3984 = vadd.f32 %v863, %v3983
    %v3985 = vpop.f32.mrb[0].mxu0
    %v3986 = vadd.f32 %v867, %v3985
    %v3987 = vpop.f32.mrb[0].mxu0
    %v3988 = vpop.f32.mrb[0].mxu0
    %3989 = vdwg.mxu0
    %3990 = vmatprep.subr.bf16.mxu0 %v2600
    %3991 = vmatpush1.bf16.msra.mxu0 %v2599
    %3992 = vmatprep.subr.bf16.mxu0 %v2609
    %3993 = vmatpush1.bf16.msra.mxu0 %v2608
    %3994 = vmatprep.subr.bf16.mxu0 %v2618
    %3995 = vmatpush1.bf16.msra.mxu0 %v2617
    %3996 = vmatprep.subr.bf16.mxu0 %v2627
    %3997 = vmatpush1.bf16.msra.mxu0 %v2626
    %3998 = vmatprep.subr.bf16.mxu0 %v2636
    %3999 = vmatpush1.bf16.msra.mxu0 %v2635
    %4000 = vmatprep.subr.bf16.mxu0 %v2645
    %4001 = vmatpush1.bf16.msra.mxu0 %v2644
    %4002 = vmatprep.subr.bf16.mxu0 %v2654
    %4003 = vmatpush1.bf16.msra.mxu0 %v2653
    %4004 = vmatprep.subr.bf16.mxu0 %v2663
    %4005 = vmatpush1.bf16.msra.mxu0 %v2662
    %4006 = vmatprep.subr.bf16.mxu0 %v2672
    %4007 = vmatpush1.bf16.msra.mxu0 %v2671
    %4008 = vmatprep.subr.bf16.mxu0 %v2681
    %4009 = vmatpush1.bf16.msra.mxu0 %v2680
    %4010 = vmatprep.subr.bf16.mxu0 %v2690
    %4011 = vmatpush1.bf16.msra.mxu0 %v2689
    %4012 = vmatprep.subr.bf16.mxu0 %v2699
    %4013 = vmatpush1.bf16.msra.mxu0 %v2698
    %4014 = vmatprep.subr.bf16.mxu0 %v2708
    %4015 = vmatpush1.bf16.msra.mxu0 %v2707
    %4016 = vmatprep.subr.bf16.mxu0 %v2717
    %4017 = vmatpush1.bf16.msra.mxu0 %v2716
    %4018 = vmatprep.subr.bf16.mxu0 %v2726
    %4019 = vmatpush1.bf16.msra.mxu0 %v2725
    %4020 = vmatprep.subr.bf16.mxu0 %v2735
    %4021 = vmatpush1.bf16.msra.mxu0 %v2734
    %4022 = vmatprep.mubr.bf16.mxu0 %v268
    %4023 = vmatmul.mubr.bf16.gmra.mrb[0].mxu0 %v267
    %v4024 = vpop.f32.mrb[0].mxu0
    %v4025 = vadd.f32 %v3984, %v4024
    %v4026 = vpop.f32.mrb[0].mxu0
    %v4027 = vadd.f32 %v3986, %v4026
    %v4028 = vpop.f32.mrb[0].mxu0
    %v4029 = vpop.f32.mrb[0].mxu0
    %4030 = vdwg.mxu0
    %4031 = vmatprep.subr.bf16.mxu0 %v2744
    %4032 = vmatpush1.bf16.msra.mxu0 %v2743
    %4033 = vmatprep.subr.bf16.mxu0 %v2753
    %4034 = vmatpush1.bf16.msra.mxu0 %v2752
    %4035 = vmatprep.subr.bf16.mxu0 %v2762
    %4036 = vmatpush1.bf16.msra.mxu0 %v2761
    %4037 = vmatprep.subr.bf16.mxu0 %v2771
    %4038 = vmatpush1.bf16.msra.mxu0 %v2770
    %4039 = vmatprep.subr.bf16.mxu0 %v2780
    %4040 = vmatpush1.bf16.msra.mxu0 %v2779
    %4041 = vmatprep.subr.bf16.mxu0 %v2789
    %4042 = vmatpush1.bf16.msra.mxu0 %v2788
    %4043 = vmatprep.subr.bf16.mxu0 %v2798
    %4044 = vmatpush1.bf16.msra.mxu0 %v2797
    %4045 = vmatprep.subr.bf16.mxu0 %v2807
    %4046 = vmatpush1.bf16.msra.mxu0 %v2806
    %4047 = vmatprep.subr.bf16.mxu0 %v2816
    %4048 = vmatpush1.bf16.msra.mxu0 %v2815
    %4049 = vmatprep.subr.bf16.mxu0 %v2825
    %4050 = vmatpush1.bf16.msra.mxu0 %v2824
    %4051 = vmatprep.subr.bf16.mxu0 %v2834
    %4052 = vmatpush1.bf16.msra.mxu0 %v2833
    %4053 = vmatprep.subr.bf16.mxu0 %v2843
    %4054 = vmatpush1.bf16.msra.mxu0 %v2842
    %4055 = vmatprep.subr.bf16.mxu0 %v2852
    %4056 = vmatpush1.bf16.msra.mxu0 %v2851
    %4057 = vmatprep.subr.bf16.mxu0 %v2861
    %4058 = vmatpush1.bf16.msra.mxu0 %v2860
    %4059 = vmatprep.subr.bf16.mxu0 %v2870
    %4060 = vmatpush1.bf16.msra.mxu0 %v2869
    %4061 = vmatprep.subr.bf16.mxu0 %v2879
    %4062 = vmatpush1.bf16.msra.mxu0 %v2878
    %4063 = vmatprep.mubr.bf16.mxu0 %v270
    %4064 = vmatmul.mubr.bf16.gmra.mrb[0].mxu0 %v269
    %v4065 = vpop.f32.mrb[0].mxu0
    %v4066 = vadd.f32 %v4025, %v4065
    %v4067 = vpop.f32.mrb[0].mxu0
    %v4068 = vadd.f32 %v4027, %v4067
    %v4069 = vpop.f32.mrb[0].mxu0
    %v4070 = vpop.f32.mrb[0].mxu0
    %4071 = vdwg.mxu0
    %4072 = vmatprep.subr.bf16.mxu0 %v2888
    %4073 = vmatpush1.bf16.msra.mxu0 %v2887
    %4074 = vmatprep.subr.bf16.mxu0 %v2897
    %4075 = vmatpush1.bf16.msra.mxu0 %v2896
    %4076 = vmatprep.subr.bf16.mxu0 %v2906
    %4077 = vmatpush1.bf16.msra.mxu0 %v2905
    %4078 = vmatprep.subr.bf16.mxu0 %v2915
    %4079 = vmatpush1.bf16.msra.mxu0 %v2914
    %4080 = vmatprep.subr.bf16.mxu0 %v2924
    %4081 = vmatpush1.bf16.msra.mxu0 %v2923
    %4082 = vmatprep.subr.bf16.mxu0 %v2933
    %4083 = vmatpush1.bf16.msra.mxu0 %v2932
    %4084 = vmatprep.subr.bf16.mxu0 %v2942
    %4085 = vmatpush1.bf16.msra.mxu0 %v2941
    %4086 = vmatprep.subr.bf16.mxu0 %v2951
    %4087 = vmatpush1.bf16.msra.mxu0 %v2950
    %4088 = vmatprep.subr.bf16.mxu0 0
    %4089 = vmatpush1.bf16.msra.mxu0 0
    %4090 = vmatprep.subr.bf16.mxu0 0
    %4091 = vmatpush1.bf16.msra.mxu0 0
    %4092 = vmatprep.subr.bf16.mxu0 0
    %4093 = vmatpush1.bf16.msra.mxu0 0
    %4094 = vmatprep.subr.bf16.mxu0 0
    %4095 = vmatpush1.bf16.msra.mxu0 0
    %4096 = vmatprep.subr.bf16.mxu0 0
    %4097 = vmatpush1.bf16.msra.mxu0 0
    %4098 = vmatprep.subr.bf16.mxu0 0
    %4099 = vmatpush1.bf16.msra.mxu0 0
    %4100 = vmatprep.subr.bf16.mxu0 0
    %4101 = vmatpush1.bf16.msra.mxu0 0
    %4102 = vmatprep.subr.bf16.mxu0 0
    %4103 = vmatpush1.bf16.msra.mxu0 0
    %4104 = vmatprep.mubr.bf16.mxu0 0
    %4105 = vmatmul.mubr.bf16.gmra.mrb[0].mxu0 %v271
    %v4106 = vpop.f32.mrb[0].mxu0
    %v4107 = vadd.f32 %v4066, %v4106
    %v4108 = vpop.f32.mrb[0].mxu0
    %v4109 = vadd.f32 %v4068, %v4108
    %v4110 = vpop.f32.mrb[0].mxu0
    %v4111 = vpop.f32.mrb[0].mxu0
    %4112 = vdwg.mxu0
    %4113 = vmatprep.subr.bf16.mxu0 0
    %4114 = vmatpush1.bf16.msra.mxu0 %v2457
    %4115 = vmatprep.subr.bf16.mxu0 0
    %4116 = vmatpush1.bf16.msra.mxu0 %v2466
    %4117 = vmatprep.subr.bf16.mxu0 0
    %4118 = vmatpush1.bf16.msra.mxu0 %v2475
    %4119 = vmatprep.subr.bf16.mxu0 0
    %4120 = vmatpush1.bf16.msra.mxu0 %v2484
    %4121 = vmatprep.subr.bf16.mxu0 0
    %4122 = vmatpush1.bf16.msra.mxu0 %v2493
    %4123 = vmatprep.subr.bf16.mxu0 0
    %4124 = vmatpush1.bf16.msra.mxu0 %v2502
    %4125 = vmatprep.subr.bf16.mxu0 0
    %4126 = vmatpush1.bf16.msra.mxu0 %v2511
    %4127 = vmatprep.subr.bf16.mxu0 0
    %4128 = vmatpush1.bf16.msra.mxu0 %v2520
    %4129 = vmatprep.subr.bf16.mxu0 0
    %4130 = vmatpush1.bf16.msra.mxu0 %v2529
    %4131 = vmatprep.subr.bf16.mxu0 0
    %4132 = vmatpush1.bf16.msra.mxu0 %v2538
    %4133 = vmatprep.subr.bf16.mxu0 0
    %4134 = vmatpush1.bf16.msra.mxu0 %v2547
    %4135 = vmatprep.subr.bf16.mxu0 0
    %4136 = vmatpush1.bf16.msra.mxu0 %v2556
    %4137 = vmatprep.subr.bf16.mxu0 0
    %4138 = vmatpush1.bf16.msra.mxu0 %v2565
    %4139 = vmatprep.subr.bf16.mxu0 0
    %4140 = vmatpush1.bf16.msra.mxu0 %v2574
    %4141 = vmatprep.subr.bf16.mxu0 0
    %4142 = vmatpush1.bf16.msra.mxu0 %v2583
    %4143 = vmatprep.subr.bf16.mxu0 0
    %4144 = vmatpush1.bf16.msra.mxu0 %v2592
    %4145 = vmatprep.mubr.bf16.mxu0 %v266
    %4146 = vmatmul.mubr.bf16.gmra.mrb[0].mxu0 %v265
    %v4147 = vpop.f32.mrb[0].mxu0
    %v4148 = vadd.f32 %v871, %v4147
    %v4149 = vpop.f32.mrb[0].mxu0
    %v4150 = vpop.f32.mrb[0].mxu0
    %v4151 = vpop.f32.mrb[0].mxu0
    %4152 = vdwg.mxu0
    %4153 = vmatprep.subr.bf16.mxu0 0
    %4154 = vmatpush1.bf16.msra.mxu0 %v2601
    %4155 = vmatprep.subr.bf16.mxu0 0
    %4156 = vmatpush1.bf16.msra.mxu0 %v2610
    %4157 = vmatprep.subr.bf16.mxu0 0
    %4158 = vmatpush1.bf16.msra.mxu0 %v2619
    %4159 = vmatprep.subr.bf16.mxu0 0
    %4160 = vmatpush1.bf16.msra.mxu0 %v2628
    %4161 = vmatprep.subr.bf16.mxu0 0
    %4162 = vmatpush1.bf16.msra.mxu0 %v2637
    %4163 = vmatprep.subr.bf16.mxu0 0
    %4164 = vmatpush1.bf16.msra.mxu0 %v2646
    %4165 = vmatprep.subr.bf16.mxu0 0
    %4166 = vmatpush1.bf16.msra.mxu0 %v2655
    %4167 = vmatprep.subr.bf16.mxu0 0
    %4168 = vmatpush1.bf16.msra.mxu0 %v2664
    %4169 = vmatprep.subr.bf16.mxu0 0
    %4170 = vmatpush1.bf16.msra.mxu0 %v2673
    %4171 = vmatprep.subr.bf16.mxu0 0
    %4172 = vmatpush1.bf16.msra.mxu0 %v2682
    %4173 = vmatprep.subr.bf16.mxu0 0
    %4174 = vmatpush1.bf16.msra.mxu0 %v2691
    %4175 = vmatprep.subr.bf16.mxu0 0
    %4176 = vmatpush1.bf16.msra.mxu0 %v2700
    %4177 = vmatprep.subr.bf16.mxu0 0
    %4178 = vmatpush1.bf16.msra.mxu0 %v2709
    %4179 = vmatprep.subr.bf16.mxu0 0
    %4180 = vmatpush1.bf16.msra.mxu0 %v2718
    %4181 = vmatprep.subr.bf16.mxu0 0
    %4182 = vmatpush1.bf16.msra.mxu0 %v2727
    %4183 = vmatprep.subr.bf16.mxu0 0
    %4184 = vmatpush1.bf16.msra.mxu0 %v2736
    %4185 = vmatprep.mubr.bf16.mxu0 %v268
    %4186 = vmatmul.mubr.bf16.gmra.mrb[0].mxu0 %v267
    %v4187 = vpop.f32.mrb[0].mxu0
    %v4188 = vadd.f32 %v4148, %v4187
    %v4189 = vpop.f32.mrb[0].mxu0
    %v4190 = vpop.f32.mrb[0].mxu0
    %v4191 = vpop.f32.mrb[0].mxu0
    %4192 = vdwg.mxu0
    %4193 = vmatprep.subr.bf16.mxu0 0
    %4194 = vmatpush1.bf16.msra.mxu0 %v2745
    %4195 = vmatprep.subr.bf16.mxu0 0
    %4196 = vmatpush1.bf16.msra.mxu0 %v2754
    %4197 = vmatprep.subr.bf16.mxu0 0
    %4198 = vmatpush1.bf16.msra.mxu0 %v2763
    %4199 = vmatprep.subr.bf16.mxu0 0
    %4200 = vmatpush1.bf16.msra.mxu0 %v2772
    %4201 = vmatprep.subr.bf16.mxu0 0
    %4202 = vmatpush1.bf16.msra.mxu0 %v2781
    %4203 = vmatprep.subr.bf16.mxu0 0
    %4204 = vmatpush1.bf16.msra.mxu0 %v2790
    %4205 = vmatprep.subr.bf16.mxu0 0
    %4206 = vmatpush1.bf16.msra.mxu0 %v2799
    %4207 = vmatprep.subr.bf16.mxu0 0
    %4208 = vmatpush1.bf16.msra.mxu0 %v2808
    %4209 = vmatprep.subr.bf16.mxu0 0
    %4210 = vmatpush1.bf16.msra.mxu0 %v2817
    %4211 = vmatprep.subr.bf16.mxu0 0
    %4212 = vmatpush1.bf16.msra.mxu0 %v2826
    %4213 = vmatprep.subr.bf16.mxu0 0
    %4214 = vmatpush1.bf16.msra.mxu0 %v2835
    %4215 = vmatprep.subr.bf16.mxu0 0
    %4216 = vmatpush1.bf16.msra.mxu0 %v2844
    %4217 = vmatprep.subr.bf16.mxu0 0
    %4218 = vmatpush1.bf16.msra.mxu0 %v2853
    %4219 = vmatprep.subr.bf16.mxu0 0
    %4220 = vmatpush1.bf16.msra.mxu0 %v2862
    %4221 = vmatprep.subr.bf16.mxu0 0
    %4222 = vmatpush1.bf16.msra.mxu0 %v2871
    %4223 = vmatprep.subr.bf16.mxu0 0
    %4224 = vmatpush1.bf16.msra.mxu0 %v2880
    %4225 = vmatprep.mubr.bf16.mxu0 %v270
    %4226 = vmatmul.mubr.bf16.gmra.mrb[0].mxu0 %v269
    %v4227 = vpop.f32.mrb[0].mxu0
    %v4228 = vadd.f32 %v4188, %v4227
    %v4229 = vpop.f32.mrb[0].mxu0
    %v4230 = vpop.f32.mrb[0].mxu0
    %v4231 = vpop.f32.mrb[0].mxu0
    %4232 = vdwg.mxu0
    %4233 = vmatprep.subr.bf16.mxu0 0
    %4234 = vmatpush1.bf16.msra.mxu0 %v2889
    %4235 = vmatprep.subr.bf16.mxu0 0
    %4236 = vmatpush1.bf16.msra.mxu0 %v2898
    %4237 = vmatprep.subr.bf16.mxu0 0
    %4238 = vmatpush1.bf16.msra.mxu0 %v2907
    %4239 = vmatprep.subr.bf16.mxu0 0
    %4240 = vmatpush1.bf16.msra.mxu0 %v2916
    %4241 = vmatprep.subr.bf16.mxu0 0
    %4242 = vmatpush1.bf16.msra.mxu0 %v2925
    %4243 = vmatprep.subr.bf16.mxu0 0
    %4244 = vmatpush1.bf16.msra.mxu0 %v2934
    %4245 = vmatprep.subr.bf16.mxu0 0
    %4246 = vmatpush1.bf16.msra.mxu0 %v2943
    %4247 = vmatprep.subr.bf16.mxu0 0
    %4248 = vmatpush1.bf16.msra.mxu0 %v2952
    %4249 = vmatprep.subr.bf16.mxu0 0
    %4250 = vmatpush1.bf16.msra.mxu0 0
    %4251 = vmatprep.subr.bf16.mxu0 0
    %4252 = vmatpush1.bf16.msra.mxu0 0
    %4253 = vmatprep.subr.bf16.mxu0 0
    %4254 = vmatpush1.bf16.msra.mxu0 0
    %4255 = vmatprep.subr.bf16.mxu0 0
    %4256 = vmatpush1.bf16.msra.mxu0 0
    %4257 = vmatprep.subr.bf16.mxu0 0
    %4258 = vmatpush1.bf16.msra.mxu0 0
    %4259 = vmatprep.subr.bf16.mxu0 0
    %4260 = vmatpush1.bf16.msra.mxu0 0
    %4261 = vmatprep.subr.bf16.mxu0 0
    %4262 = vmatpush1.bf16.msra.mxu0 0
    %4263 = vmatprep.subr.bf16.mxu0 0
    %4264 = vmatpush1.bf16.msra.mxu0 0
    %4265 = vmatprep.mubr.bf16.mxu0 0
    %4266 = vmatmul.mubr.bf16.gmra.mrb[0].mxu0 %v271
    %v4267 = vpop.f32.mrb[0].mxu0
    %v4268 = vadd.f32 %v4228, %v4267
    %v4269 = vpop.f32.mrb[0].mxu0
    %v4270 = vpop.f32.mrb[0].mxu0
    %v4271 = vpop.f32.mrb[0].mxu0
    %4272 = vdwg.mxu0
    %v4273 = vmax.f32 %v3615, 0.0
    %v4274 = vmax.f32 %v3617, 0.0
    %v4275 = vmax.f32 %v3779, 0.0
    %v4276 = vmax.f32 %v3781, 0.0
    %v4277 = vmax.f32 %v3943, 0.0
    %v4278 = vmax.f32 %v3945, 0.0
    %v4279 = vmax.f32 %v4107, 0.0
    %v4280 = vmax.f32 %v4109, 0.0
    %v4281 = vmax.f32 %v4268, 0.0
    %v4282 = vpack.c.bf16 %v4273, %v4273
    %v4283 = vpack.c.bf16 %v4274, %v4274
    %v4284 = vpack.c.bf16 %v4275, %v4275
    %v4285 = vpack.c.bf16 %v4276, %v4276
    %v4286 = vpack.c.bf16 %v4277, %v4277
    %v4287 = vpack.c.bf16 %v4278, %v4278
    %v4288 = vpack.c.bf16 %v4279, %v4279
    %v4289 = vpack.c.bf16 %v4280, %v4280
    %v4290 = vpack.c.bf16 %v4281, %v4281
    %v4291 = vld [vmem:[#allocation6] sm:$0xff]
    %v4292 = vld [vmem:[#allocation6 + $0x8] sm:$0xff]
    %v4293 = vld [vmem:[#allocation6 + $0x10] sm:$0xff]
    %v4294 = vld [vmem:[#allocation6 + $0x18] sm:$0xff]
    %v4295 = vld [vmem:[#allocation6 + $0x20] sm:$0xff]
    %v4296 = vld [vmem:[#allocation6 + $0x28] sm:$0xff]
    %v4297 = vld [vmem:[#allocation6 + $0x30] sm:$0xff]
    %v4298 = vld [vmem:[#allocation6 + $0x38] sm:$0xff]
    %v4299 = vld [vmem:[#allocation6 + $0x40] sm:$0xff]
    %v4300 = vld [vmem:[#allocation6 + $0x48] sm:$0xff]
    %v4301 = vld [vmem:[#allocation6 + $0x50] sm:$0xff]
    %v4302 = vld [vmem:[#allocation6 + $0x58] sm:$0xff]
    %v4303 = vld [vmem:[#allocation6 + $0x60] sm:$0xff]
    %v4304 = vld [vmem:[#allocation6 + $0x68] sm:$0xff]
    %v4305 = vld [vmem:[#allocation6 + $0x70] sm:$0xff]
    %v4306 = vld [vmem:[#allocation6 + $0x78] sm:$0xff]
    %v4307 = vld [vmem:[#allocation6 + $0x80] sm:$0xff]
    %v4308 = vld [vmem:[#allocation6 + $0x88] sm:$0xff]
    %v4309 = vld [vmem:[#allocation6 + $0x90] sm:$0xff]
    %v4310 = vld [vmem:[#allocation6 + $0x98] sm:$0xff]
    %v4311 = vld [vmem:[#allocation6 + $0xa0] sm:$0xff]
    %v4312 = vld [vmem:[#allocation6 + $0xa8] sm:$0xff]
    %v4313 = vld [vmem:[#allocation6 + $0xb0] sm:$0xff]
    %v4314 = vld [vmem:[#allocation6 + $0xb8] sm:$0xff]
    %v4315 = vld [vmem:[#allocation6 + $0xc0] sm:$0xff]
    %v4316 = vld [vmem:[#allocation6 + $0xc8] sm:$0xff]
    %v4317 = vld [vmem:[#allocation6 + $0xd0] sm:$0xff]
    %v4318 = vld [vmem:[#allocation6 + $0xd8] sm:$0xff]
    %v4319 = vld [vmem:[#allocation6 + $0xe0] sm:$0xff]
    %v4320 = vld [vmem:[#allocation6 + $0xe8] sm:$0xff]
    %v4321 = vld [vmem:[#allocation6 + $0xf0] sm:$0xff]
    %v4322 = vld [vmem:[#allocation6 + $0xf8] sm:$0xff]
    %v4323 = vld [vmem:[#allocation6 + $0x100] sm:$0xff]
    %v4324 = vld [vmem:[#allocation6 + $0x108] sm:$0xff]
    %v4325 = vld [vmem:[#allocation6 + $0x110] sm:$0xff]
    %v4326 = vld [vmem:[#allocation6 + $0x118] sm:$0xff]
    %v4327 = vld [vmem:[#allocation6 + $0x120] sm:$0xff]
    %v4328 = vld [vmem:[#allocation6 + $0x128] sm:$0xff]
    %v4329 = vld [vmem:[#allocation6 + $0x130] sm:$0xff]
    %v4330 = vld [vmem:[#allocation6 + $0x138] sm:$0xff]
    %v4331 = vld [vmem:[#allocation6 + $0x140] sm:$0xff]
    %v4332 = vld [vmem:[#allocation6 + $0x148] sm:$0xff]
    %v4333 = vld [vmem:[#allocation6 + $0x150] sm:$0xff]
    %v4334 = vld [vmem:[#allocation6 + $0x158] sm:$0xff]
    %v4335 = vld [vmem:[#allocation6 + $0x160] sm:$0xff]
    %v4336 = vld [vmem:[#allocation6 + $0x168] sm:$0xff]
    %v4337 = vld [vmem:[#allocation6 + $0x170] sm:$0xff]
    %v4338 = vld [vmem:[#allocation6 + $0x178] sm:$0xff]
    %v4339 = vld [vmem:[#allocation6 + $0x180] sm:$0xff]
    %v4340 = vld [vmem:[#allocation6 + $0x188] sm:$0xff]
    %v4341 = vld [vmem:[#allocation6 + $0x190] sm:$0xff]
    %v4342 = vld [vmem:[#allocation6 + $0x198] sm:$0xff]
    %v4343 = vld [vmem:[#allocation6 + $0x1a0] sm:$0xff]
    %v4344 = vld [vmem:[#allocation6 + $0x1a8] sm:$0xff]
    %v4345 = vld [vmem:[#allocation6 + $0x1b0] sm:$0xff]
    %v4346 = vld [vmem:[#allocation6 + $0x1b8] sm:$0xff]
    %v4347 = vld [vmem:[#allocation6 + $0x1c0] sm:$0xff]
    %v4348 = vld [vmem:[#allocation6 + $0x1c8] sm:$0xff]
    %v4349 = vld [vmem:[#allocation6 + $0x1d0] sm:$0xff]
    %v4350 = vld [vmem:[#allocation6 + $0x1d8] sm:$0xff]
    %v4351 = vld [vmem:[#allocation6 + $0x1e0] sm:$0xff]
    %v4352 = vld [vmem:[#allocation6 + $0x1e8] sm:$0xff]
    %v4353 = vld [vmem:[#allocation6 + $0x1f0] sm:$0xff]
    %v4354 = vld [vmem:[#allocation6 + $0x1f8] sm:$0xff]
    %v4355 = vld [vmem:[#allocation6 + $0x200] sm:$0xff]
    %v4356 = vld [vmem:[#allocation6 + $0x208] sm:$0xff]
    %v4357 = vld [vmem:[#allocation6 + $0x210] sm:$0xff]
    %v4358 = vld [vmem:[#allocation6 + $0x218] sm:$0xff]
    %v4359 = vld [vmem:[#allocation6 + $0x220] sm:$0xff]
    %v4360 = vld [vmem:[#allocation6 + $0x228] sm:$0xff]
    %v4361 = vld [vmem:[#allocation6 + $0x230] sm:$0xff]
    %v4362 = vld [vmem:[#allocation6 + $0x238] sm:$0xff]
    %v4363 = vld [vmem:[#allocation6 + $0x240] sm:$0xff]
    %v4364 = vld [vmem:[#allocation6 + $0x248] sm:$0xff]
    %v4365 = vld [vmem:[#allocation6 + $0x250] sm:$0xff]
    %v4366 = vld [vmem:[#allocation6 + $0x258] sm:$0xff]
    %v4367 = vld [vmem:[#allocation6 + $0x260] sm:$0xff]
    %v4368 = vld [vmem:[#allocation6 + $0x268] sm:$0xff]
    %v4369 = vld [vmem:[#allocation6 + $0x270] sm:$0xff]
    %v4370 = vld [vmem:[#allocation6 + $0x278] sm:$0xff]
    %v4371 = vld [vmem:[#allocation6 + $0x280] sm:$0xff]
    %v4372 = vld [vmem:[#allocation6 + $0x288] sm:$0xff]
    %v4373 = vld [vmem:[#allocation6 + $0x290] sm:$0xff]
    %v4374 = vld [vmem:[#allocation6 + $0x298] sm:$0xff]
    %v4375 = vld [vmem:[#allocation6 + $0x2a0] sm:$0xff]
    %v4376 = vld [vmem:[#allocation6 + $0x2a8] sm:$0xff]
    %v4377 = vld [vmem:[#allocation6 + $0x2b0] sm:$0xff]
    %v4378 = vld [vmem:[#allocation6 + $0x2b8] sm:$0xff]
    %v4379 = vld [vmem:[#allocation6 + $0x2c0] sm:$0xff]
    %v4380 = vld [vmem:[#allocation6 + $0x2c8] sm:$0xff]
    %v4381 = vld [vmem:[#allocation6 + $0x2d0] sm:$0xff]
    %v4382 = vld [vmem:[#allocation6 + $0x2d8] sm:$0xff]
    %v4383 = vld [vmem:[#allocation6 + $0x2e0] sm:$0xff]
    %v4384 = vld [vmem:[#allocation6 + $0x2e8] sm:$0xff]
    %v4385 = vld [vmem:[#allocation6 + $0x2f0] sm:$0xff]
    %v4386 = vld [vmem:[#allocation6 + $0x2f8] sm:$0xff]
    %v4387 = vld [vmem:[#allocation6 + $0x300] sm:$0xff]
    %v4388 = vld [vmem:[#allocation6 + $0x308] sm:$0xff]
    %v4389 = vld [vmem:[#allocation6 + $0x310] sm:$0xff]
    %v4390 = vld [vmem:[#allocation6 + $0x318] sm:$0xff]
    %v4391 = vld [vmem:[#allocation6 + $0x320] sm:$0xff]
    %v4392 = vld [vmem:[#allocation6 + $0x328] sm:$0xff]
    %v4393 = vld [vmem:[#allocation6 + $0x330] sm:$0xff]
    %v4394 = vld [vmem:[#allocation6 + $0x338] sm:$0xff]
    %v4395 = vld [vmem:[#allocation6 + $0x340] sm:$0xff]
    %v4396 = vld [vmem:[#allocation6 + $0x348] sm:$0xff]
    %v4397 = vld [vmem:[#allocation6 + $0x350] sm:$0xff]
    %v4398 = vld [vmem:[#allocation6 + $0x358] sm:$0xff]
    %v4399 = vld [vmem:[#allocation6 + $0x360] sm:$0xff]
    %v4400 = vld [vmem:[#allocation6 + $0x368] sm:$0xff]
    %v4401 = vld [vmem:[#allocation6 + $0x370] sm:$0xff]
    %v4402 = vld [vmem:[#allocation6 + $0x378] sm:$0xff]
    %v4403 = vld [vmem:[#allocation6 + $0x380] sm:$0xff]
    %v4404 = vld [vmem:[#allocation6 + $0x388] sm:$0xff]
    %v4405 = vld [vmem:[#allocation6 + $0x390] sm:$0xff]
    %v4406 = vld [vmem:[#allocation6 + $0x398] sm:$0xff]
    %v4407 = vld [vmem:[#allocation6 + $0x3a0] sm:$0xff]
    %v4408 = vld [vmem:[#allocation6 + $0x3a8] sm:$0xff]
    %v4409 = vld [vmem:[#allocation6 + $0x3b0] sm:$0xff]
    %v4410 = vld [vmem:[#allocation6 + $0x3b8] sm:$0xff]
    %v4411 = vld [vmem:[#allocation6 + $0x3c0] sm:$0xff]
    %v4412 = vld [vmem:[#allocation6 + $0x3c8] sm:$0xff]
    %v4413 = vld [vmem:[#allocation6 + $0x3d0] sm:$0xff]
    %v4414 = vld [vmem:[#allocation6 + $0x3d8] sm:$0xff]
    %v4415 = vld [vmem:[#allocation6 + $0x3e0] sm:$0xff]
    %v4416 = vld [vmem:[#allocation6 + $0x3e8] sm:$0xff]
    %v4417 = vld [vmem:[#allocation6 + $0x3f0] sm:$0xff]
    %v4418 = vld [vmem:[#allocation6 + $0x3f8] sm:$0xff]
    %v4419 = vld [vmem:[#allocation6 + $0x400] sm:$0xff]
    %v4420 = vld [vmem:[#allocation6 + $0x408] sm:$0xff]
    %v4421 = vld [vmem:[#allocation6 + $0x410] sm:$0xff]
    %v4422 = vld [vmem:[#allocation6 + $0x418] sm:$0xff]
    %v4423 = vld [vmem:[#allocation6 + $0x420] sm:$0xff]
    %v4424 = vld [vmem:[#allocation6 + $0x428] sm:$0xff]
    %v4425 = vld [vmem:[#allocation6 + $0x430] sm:$0xff]
    %v4426 = vld [vmem:[#allocation6 + $0x438] sm:$0xff]
    %v4427 = vld [vmem:[#allocation6 + $0x440] sm:$0xff]
    %v4428 = vld [vmem:[#allocation6 + $0x448] sm:$0xff]
    %v4429 = vld [vmem:[#allocation6 + $0x450] sm:$0xff]
    %v4430 = vld [vmem:[#allocation6 + $0x458] sm:$0xff]
    %v4431 = vld [vmem:[#allocation6 + $0x460] sm:$0xff]
    %v4432 = vld [vmem:[#allocation6 + $0x468] sm:$0xff]
    %v4433 = vld [vmem:[#allocation6 + $0x470] sm:$0xff]
    %v4434 = vld [vmem:[#allocation6 + $0x478] sm:$0xff]
    %v4435 = vld [vmem:[#allocation7] sm:$0x3]
    %v4437 = vlaneseq
    %v4438 = vshrl.u32 %v4437, 7
    %v4439 = vsub.s32 0, %v4438
    %v4440 = vrot.slane %v4435, %v4439
    %v4441 = vlaneseq
    %v4442 = vshrl.u32 %v4441, 7
    %v4443 = vsub.s32 1, %v4442
    %v4444 = vrot.slane %v4435, %v4443
    %v4591 = vunpack.c.l.b16 %v4291
    %v4592 = vunpack.c.h.b16 %v4291
    %v4593 = vunpack.c.l.b16 %v4292
    %v4594 = vunpack.c.h.b16 %v4292
    %v4595 = vunpack.c.l.b16 %v4293
    %v4596 = vunpack.c.h.b16 %v4293
    %v4597 = vunpack.c.l.b16 %v4294
    %v4598 = vunpack.c.h.b16 %v4294
    %v4599 = vunpack.c.l.b16 %v4295
    %v4600 = vunpack.c.h.b16 %v4295
    %v4601 = vunpack.c.l.b16 %v4296
    %v4602 = vunpack.c.h.b16 %v4296
    %v4603 = vunpack.c.l.b16 %v4297
    %v4604 = vunpack.c.h.b16 %v4297
    %v4605 = vunpack.c.l.b16 %v4298
    %v4606 = vunpack.c.h.b16 %v4298
    %v4607 = vunpack.c.l.b16 %v4299
    %v4608 = vunpack.c.h.b16 %v4299
    %v4609 = vunpack.c.l.b16 %v4300
    %v4610 = vunpack.c.h.b16 %v4300
    %v4611 = vunpack.c.l.b16 %v4301
    %v4612 = vunpack.c.h.b16 %v4301
    %v4613 = vunpack.c.l.b16 %v4302
    %v4614 = vunpack.c.h.b16 %v4302
    %v4615 = vunpack.c.l.b16 %v4303
    %v4616 = vunpack.c.h.b16 %v4303
    %v4617 = vunpack.c.l.b16 %v4304
    %v4618 = vunpack.c.h.b16 %v4304
    %v4619 = vunpack.c.l.b16 %v4305
    %v4620 = vunpack.c.h.b16 %v4305
    %v4621 = vunpack.c.l.b16 %v4306
    %v4622 = vunpack.c.h.b16 %v4306
    %v4623 = vunpack.c.l.b16 %v4307
    %v4624 = vunpack.c.h.b16 %v4307
    %v4625 = vunpack.c.l.b16 %v4308
    %v4626 = vunpack.c.h.b16 %v4308
    %v4627 = vunpack.c.l.b16 %v4309
    %v4628 = vunpack.c.h.b16 %v4309
    %v4629 = vunpack.c.l.b16 %v4310
    %v4630 = vunpack.c.h.b16 %v4310
    %v4631 = vunpack.c.l.b16 %v4311
    %v4632 = vunpack.c.h.b16 %v4311
    %v4633 = vunpack.c.l.b16 %v4312
    %v4634 = vunpack.c.h.b16 %v4312
    %v4635 = vunpack.c.l.b16 %v4313
    %v4636 = vunpack.c.h.b16 %v4313
    %v4637 = vunpack.c.l.b16 %v4314
    %v4638 = vunpack.c.h.b16 %v4314
    %v4639 = vunpack.c.l.b16 %v4315
    %v4640 = vunpack.c.h.b16 %v4315
    %v4641 = vunpack.c.l.b16 %v4316
    %v4642 = vunpack.c.h.b16 %v4316
    %v4643 = vunpack.c.l.b16 %v4317
    %v4644 = vunpack.c.h.b16 %v4317
    %v4645 = vunpack.c.l.b16 %v4318
    %v4646 = vunpack.c.h.b16 %v4318
    %v4647 = vunpack.c.l.b16 %v4319
    %v4648 = vunpack.c.h.b16 %v4319
    %v4649 = vunpack.c.l.b16 %v4320
    %v4650 = vunpack.c.h.b16 %v4320
    %v4651 = vunpack.c.l.b16 %v4321
    %v4652 = vunpack.c.h.b16 %v4321
    %v4653 = vunpack.c.l.b16 %v4322
    %v4654 = vunpack.c.h.b16 %v4322
    %v4655 = vunpack.c.l.b16 %v4323
    %v4656 = vunpack.c.h.b16 %v4323
    %v4657 = vunpack.c.l.b16 %v4324
    %v4658 = vunpack.c.h.b16 %v4324
    %v4659 = vunpack.c.l.b16 %v4325
    %v4660 = vunpack.c.h.b16 %v4325
    %v4661 = vunpack.c.l.b16 %v4326
    %v4662 = vunpack.c.h.b16 %v4326
    %v4663 = vunpack.c.l.b16 %v4327
    %v4664 = vunpack.c.h.b16 %v4327
    %v4665 = vunpack.c.l.b16 %v4328
    %v4666 = vunpack.c.h.b16 %v4328
    %v4667 = vunpack.c.l.b16 %v4329
    %v4668 = vunpack.c.h.b16 %v4329
    %v4669 = vunpack.c.l.b16 %v4330
    %v4670 = vunpack.c.h.b16 %v4330
    %v4671 = vunpack.c.l.b16 %v4331
    %v4672 = vunpack.c.h.b16 %v4331
    %v4673 = vunpack.c.l.b16 %v4332
    %v4674 = vunpack.c.h.b16 %v4332
    %v4675 = vunpack.c.l.b16 %v4333
    %v4676 = vunpack.c.h.b16 %v4333
    %v4677 = vunpack.c.l.b16 %v4334
    %v4678 = vunpack.c.h.b16 %v4334
    %v4679 = vunpack.c.l.b16 %v4335
    %v4680 = vunpack.c.h.b16 %v4335
    %v4681 = vunpack.c.l.b16 %v4336
    %v4682 = vunpack.c.h.b16 %v4336
    %v4683 = vunpack.c.l.b16 %v4337
    %v4684 = vunpack.c.h.b16 %v4337
    %v4685 = vunpack.c.l.b16 %v4338
    %v4686 = vunpack.c.h.b16 %v4338
    %v4687 = vunpack.c.l.b16 %v4339
    %v4688 = vunpack.c.h.b16 %v4339
    %v4689 = vunpack.c.l.b16 %v4340
    %v4690 = vunpack.c.h.b16 %v4340
    %v4691 = vunpack.c.l.b16 %v4341
    %v4692 = vunpack.c.h.b16 %v4341
    %v4693 = vunpack.c.l.b16 %v4342
    %v4694 = vunpack.c.h.b16 %v4342
    %v4695 = vunpack.c.l.b16 %v4343
    %v4696 = vunpack.c.h.b16 %v4343
    %v4697 = vunpack.c.l.b16 %v4344
    %v4698 = vunpack.c.h.b16 %v4344
    %v4699 = vunpack.c.l.b16 %v4345
    %v4700 = vunpack.c.h.b16 %v4345
    %v4701 = vunpack.c.l.b16 %v4346
    %v4702 = vunpack.c.h.b16 %v4346
    %v4703 = vunpack.c.l.b16 %v4347
    %v4704 = vunpack.c.h.b16 %v4347
    %v4705 = vunpack.c.l.b16 %v4348
    %v4706 = vunpack.c.h.b16 %v4348
    %v4707 = vunpack.c.l.b16 %v4349
    %v4708 = vunpack.c.h.b16 %v4349
    %v4709 = vunpack.c.l.b16 %v4350
    %v4710 = vunpack.c.h.b16 %v4350
    %v4711 = vunpack.c.l.b16 %v4351
    %v4712 = vunpack.c.h.b16 %v4351
    %v4713 = vunpack.c.l.b16 %v4352
    %v4714 = vunpack.c.h.b16 %v4352
    %v4715 = vunpack.c.l.b16 %v4353
    %v4716 = vunpack.c.h.b16 %v4353
    %v4717 = vunpack.c.l.b16 %v4354
    %v4718 = vunpack.c.h.b16 %v4354
    %v4719 = vunpack.c.l.b16 %v4355
    %v4720 = vunpack.c.h.b16 %v4355
    %v4721 = vunpack.c.l.b16 %v4356
    %v4722 = vunpack.c.h.b16 %v4356
    %v4723 = vunpack.c.l.b16 %v4357
    %v4724 = vunpack.c.h.b16 %v4357
    %v4725 = vunpack.c.l.b16 %v4358
    %v4726 = vunpack.c.h.b16 %v4358
    %v4727 = vunpack.c.l.b16 %v4359
    %v4728 = vunpack.c.h.b16 %v4359
    %v4729 = vunpack.c.l.b16 %v4360
    %v4730 = vunpack.c.h.b16 %v4360
    %v4731 = vunpack.c.l.b16 %v4361
    %v4732 = vunpack.c.h.b16 %v4361
    %v4733 = vunpack.c.l.b16 %v4362
    %v4734 = vunpack.c.h.b16 %v4362
    %v4735 = vunpack.c.l.b16 %v4363
    %v4736 = vunpack.c.h.b16 %v4363
    %v4737 = vunpack.c.l.b16 %v4364
    %v4738 = vunpack.c.h.b16 %v4364
    %v4739 = vunpack.c.l.b16 %v4365
    %v4740 = vunpack.c.h.b16 %v4365
    %v4741 = vunpack.c.l.b16 %v4366
    %v4742 = vunpack.c.h.b16 %v4366
    %v4743 = vunpack.c.l.b16 %v4367
    %v4744 = vunpack.c.h.b16 %v4367
    %v4745 = vunpack.c.l.b16 %v4368
    %v4746 = vunpack.c.h.b16 %v4368
    %v4747 = vunpack.c.l.b16 %v4369
    %v4748 = vunpack.c.h.b16 %v4369
    %v4749 = vunpack.c.l.b16 %v4370
    %v4750 = vunpack.c.h.b16 %v4370
    %v4751 = vunpack.c.l.b16 %v4371
    %v4752 = vunpack.c.h.b16 %v4371
    %v4753 = vunpack.c.l.b16 %v4372
    %v4754 = vunpack.c.h.b16 %v4372
    %v4755 = vunpack.c.l.b16 %v4373
    %v4756 = vunpack.c.h.b16 %v4373
    %v4757 = vunpack.c.l.b16 %v4374
    %v4758 = vunpack.c.h.b16 %v4374
    %v4759 = vunpack.c.l.b16 %v4375
    %v4760 = vunpack.c.h.b16 %v4375
    %v4761 = vunpack.c.l.b16 %v4376
    %v4762 = vunpack.c.h.b16 %v4376
    %v4763 = vunpack.c.l.b16 %v4377
    %v4764 = vunpack.c.h.b16 %v4377
    %v4765 = vunpack.c.l.b16 %v4378
    %v4766 = vunpack.c.h.b16 %v4378
    %v4767 = vunpack.c.l.b16 %v4379
    %v4768 = vunpack.c.h.b16 %v4379
    %v4769 = vunpack.c.l.b16 %v4380
    %v4770 = vunpack.c.h.b16 %v4380
    %v4771 = vunpack.c.l.b16 %v4381
    %v4772 = vunpack.c.h.b16 %v4381
    %v4773 = vunpack.c.l.b16 %v4382
    %v4774 = vunpack.c.h.b16 %v4382
    %v4775 = vunpack.c.l.b16 %v4383
    %v4776 = vunpack.c.h.b16 %v4383
    %v4777 = vunpack.c.l.b16 %v4384
    %v4778 = vunpack.c.h.b16 %v4384
    %v4779 = vunpack.c.l.b16 %v4385
    %v4780 = vunpack.c.h.b16 %v4385
    %v4781 = vunpack.c.l.b16 %v4386
    %v4782 = vunpack.c.h.b16 %v4386
    %v4783 = vunpack.c.l.b16 %v4387
    %v4784 = vunpack.c.h.b16 %v4387
    %v4785 = vunpack.c.l.b16 %v4388
    %v4786 = vunpack.c.h.b16 %v4388
    %v4787 = vunpack.c.l.b16 %v4389
    %v4788 = vunpack.c.h.b16 %v4389
    %v4789 = vunpack.c.l.b16 %v4390
    %v4790 = vunpack.c.h.b16 %v4390
    %v4791 = vunpack.c.l.b16 %v4391
    %v4792 = vunpack.c.h.b16 %v4391
    %v4793 = vunpack.c.l.b16 %v4392
    %v4794 = vunpack.c.h.b16 %v4392
    %v4795 = vunpack.c.l.b16 %v4393
    %v4796 = vunpack.c.h.b16 %v4393
    %v4797 = vunpack.c.l.b16 %v4394
    %v4798 = vunpack.c.h.b16 %v4394
    %v4799 = vunpack.c.l.b16 %v4395
    %v4800 = vunpack.c.h.b16 %v4395
    %v4801 = vunpack.c.l.b16 %v4396
    %v4802 = vunpack.c.h.b16 %v4396
    %v4803 = vunpack.c.l.b16 %v4397
    %v4804 = vunpack.c.h.b16 %v4397
    %v4805 = vunpack.c.l.b16 %v4398
    %v4806 = vunpack.c.h.b16 %v4398
    %v4807 = vunpack.c.l.b16 %v4399
    %v4808 = vunpack.c.h.b16 %v4399
    %v4809 = vunpack.c.l.b16 %v4400
    %v4810 = vunpack.c.h.b16 %v4400
    %v4811 = vunpack.c.l.b16 %v4401
    %v4812 = vunpack.c.h.b16 %v4401
    %v4813 = vunpack.c.l.b16 %v4402
    %v4814 = vunpack.c.h.b16 %v4402
    %v4815 = vunpack.c.l.b16 %v4403
    %v4816 = vunpack.c.h.b16 %v4403
    %v4817 = vunpack.c.l.b16 %v4404
    %v4818 = vunpack.c.h.b16 %v4404
    %v4819 = vunpack.c.l.b16 %v4405
    %v4820 = vunpack.c.h.b16 %v4405
    %v4821 = vunpack.c.l.b16 %v4406
    %v4822 = vunpack.c.h.b16 %v4406
    %v4823 = vunpack.c.l.b16 %v4407
    %v4824 = vunpack.c.h.b16 %v4407
    %v4825 = vunpack.c.l.b16 %v4408
    %v4826 = vunpack.c.h.b16 %v4408
    %v4827 = vunpack.c.l.b16 %v4409
    %v4828 = vunpack.c.h.b16 %v4409
    %v4829 = vunpack.c.l.b16 %v4410
    %v4830 = vunpack.c.h.b16 %v4410
    %v4831 = vunpack.c.l.b16 %v4411
    %v4832 = vunpack.c.h.b16 %v4411
    %v4833 = vunpack.c.l.b16 %v4412
    %v4834 = vunpack.c.h.b16 %v4412
    %v4835 = vunpack.c.l.b16 %v4413
    %v4836 = vunpack.c.h.b16 %v4413
    %v4837 = vunpack.c.l.b16 %v4414
    %v4838 = vunpack.c.h.b16 %v4414
    %v4839 = vunpack.c.l.b16 %v4415
    %v4840 = vunpack.c.h.b16 %v4415
    %v4841 = vunpack.c.l.b16 %v4416
    %v4842 = vunpack.c.h.b16 %v4416
    %v4843 = vunpack.c.l.b16 %v4417
    %v4844 = vunpack.c.h.b16 %v4417
    %v4845 = vunpack.c.l.b16 %v4418
    %v4846 = vunpack.c.h.b16 %v4418
    %v4847 = vunpack.c.l.b16 %v4419
    %v4848 = vunpack.c.h.b16 %v4419
    %v4849 = vunpack.c.l.b16 %v4420
    %v4850 = vunpack.c.h.b16 %v4420
    %v4851 = vunpack.c.l.b16 %v4421
    %v4852 = vunpack.c.h.b16 %v4421
    %v4853 = vunpack.c.l.b16 %v4422
    %v4854 = vunpack.c.h.b16 %v4422
    %v4855 = vunpack.c.l.b16 %v4423
    %v4856 = vunpack.c.h.b16 %v4423
    %v4857 = vunpack.c.l.b16 %v4424
    %v4858 = vunpack.c.h.b16 %v4424
    %v4859 = vunpack.c.l.b16 %v4425
    %v4860 = vunpack.c.h.b16 %v4425
    %v4861 = vunpack.c.l.b16 %v4426
    %v4862 = vunpack.c.h.b16 %v4426
    %v4863 = vunpack.c.l.b16 %v4427
    %v4864 = vunpack.c.h.b16 %v4427
    %v4865 = vunpack.c.l.b16 %v4428
    %v4866 = vunpack.c.h.b16 %v4428
    %v4867 = vunpack.c.l.b16 %v4429
    %v4868 = vunpack.c.h.b16 %v4429
    %v4869 = vunpack.c.l.b16 %v4430
    %v4870 = vunpack.c.h.b16 %v4430
    %v4871 = vunpack.c.l.b16 %v4431
    %v4872 = vunpack.c.h.b16 %v4431
    %v4873 = vunpack.c.l.b16 %v4432
    %v4874 = vunpack.c.h.b16 %v4432
    %v4875 = vunpack.c.l.b16 %v4433
    %v4876 = vunpack.c.h.b16 %v4433
    %v4877 = vunpack.c.l.b16 %v4434
    %v4878 = vunpack.c.h.b16 %v4434
    %v4879 = vpack.c.b16 %v4593, %v4591
    %v4880 = vpack.c.b16 %v4594, %v4592
    %v4881 = vpack.c.b16 %v4597, %v4595
    %v4882 = vpack.c.b16 %v4598, %v4596
    %v4883 = vpack.c.b16 %v4601, %v4599
    %v4884 = vpack.c.b16 %v4602, %v4600
    %v4885 = vpack.c.b16 %v4605, %v4603
    %v4886 = vpack.c.b16 %v4606, %v4604
    %v4887 = vpack.c.b16 %v4609, %v4607
    %v4888 = vpack.c.b16 %v4610, %v4608
    %v4889 = vpack.c.b16 %v4613, %v4611
    %v4890 = vpack.c.b16 %v4614, %v4612
    %v4891 = vpack.c.b16 %v4617, %v4615
    %v4892 = vpack.c.b16 %v4618, %v4616
    %v4893 = vpack.c.b16 %v4621, %v4619
    %v4894 = vpack.c.b16 %v4622, %v4620
    %v4895 = vpack.c.b16 %v4625, %v4623
    %v4896 = vpack.c.b16 %v4626, %v4624
    %v4897 = vpack.c.b16 %v4629, %v4627
    %v4898 = vpack.c.b16 %v4630, %v4628
    %v4899 = vpack.c.b16 %v4633, %v4631
    %v4900 = vpack.c.b16 %v4634, %v4632
    %v4901 = vpack.c.b16 %v4637, %v4635
    %v4902 = vpack.c.b16 %v4638, %v4636
    %v4903 = vpack.c.b16 %v4641, %v4639
    %v4904 = vpack.c.b16 %v4642, %v4640
    %v4905 = vpack.c.b16 %v4645, %v4643
    %v4906 = vpack.c.b16 %v4646, %v4644
    %v4907 = vpack.c.b16 %v4649, %v4647
    %v4908 = vpack.c.b16 %v4650, %v4648
    %v4909 = vpack.c.b16 %v4653, %v4651
    %v4910 = vpack.c.b16 %v4654, %v4652
    %v4911 = vpack.c.b16 %v4657, %v4655
    %v4912 = vpack.c.b16 %v4658, %v4656
    %v4913 = vpack.c.b16 %v4661, %v4659
    %v4914 = vpack.c.b16 %v4662, %v4660
    %v4915 = vpack.c.b16 %v4665, %v4663
    %v4916 = vpack.c.b16 %v4666, %v4664
    %v4917 = vpack.c.b16 %v4669, %v4667
    %v4918 = vpack.c.b16 %v4670, %v4668
    %v4919 = vpack.c.b16 %v4673, %v4671
    %v4920 = vpack.c.b16 %v4674, %v4672
    %v4921 = vpack.c.b16 %v4677, %v4675
    %v4922 = vpack.c.b16 %v4678, %v4676
    %v4923 = vpack.c.b16 %v4681, %v4679
    %v4924 = vpack.c.b16 %v4682, %v4680
    %v4925 = vpack.c.b16 %v4685, %v4683
    %v4926 = vpack.c.b16 %v4686, %v4684
    %v4927 = vpack.c.b16 %v4689, %v4687
    %v4928 = vpack.c.b16 %v4690, %v4688
    %v4929 = vpack.c.b16 %v4693, %v4691
    %v4930 = vpack.c.b16 %v4694, %v4692
    %v4931 = vpack.c.b16 %v4697, %v4695
    %v4932 = vpack.c.b16 %v4698, %v4696
    %v4933 = vpack.c.b16 %v4701, %v4699
    %v4934 = vpack.c.b16 %v4702, %v4700
    %v4935 = vpack.c.b16 %v4705, %v4703
    %v4936 = vpack.c.b16 %v4706, %v4704
    %v4937 = vpack.c.b16 %v4709, %v4707
    %v4938 = vpack.c.b16 %v4710, %v4708
    %v4939 = vpack.c.b16 %v4713, %v4711
    %v4940 = vpack.c.b16 %v4714, %v4712
    %v4941 = vpack.c.b16 %v4717, %v4715
    %v4942 = vpack.c.b16 %v4718, %v4716
    %v4943 = vpack.c.b16 %v4721, %v4719
    %v4944 = vpack.c.b16 %v4722, %v4720
    %v4945 = vpack.c.b16 %v4725, %v4723
    %v4946 = vpack.c.b16 %v4726, %v4724
    %v4947 = vpack.c.b16 %v4729, %v4727
    %v4948 = vpack.c.b16 %v4730, %v4728
    %v4949 = vpack.c.b16 %v4733, %v4731
    %v4950 = vpack.c.b16 %v4734, %v4732
    %v4951 = vpack.c.b16 %v4737, %v4735
    %v4952 = vpack.c.b16 %v4738, %v4736
    %v4953 = vpack.c.b16 %v4741, %v4739
    %v4954 = vpack.c.b16 %v4742, %v4740
    %v4955 = vpack.c.b16 %v4745, %v4743
    %v4956 = vpack.c.b16 %v4746, %v4744
    %v4957 = vpack.c.b16 %v4749, %v4747
    %v4958 = vpack.c.b16 %v4750, %v4748
    %v4959 = vpack.c.b16 %v4753, %v4751
    %v4960 = vpack.c.b16 %v4754, %v4752
    %v4961 = vpack.c.b16 %v4757, %v4755
    %v4962 = vpack.c.b16 %v4758, %v4756
    %v4963 = vpack.c.b16 %v4761, %v4759
    %v4964 = vpack.c.b16 %v4762, %v4760
    %v4965 = vpack.c.b16 %v4765, %v4763
    %v4966 = vpack.c.b16 %v4766, %v4764
    %v4967 = vpack.c.b16 %v4769, %v4767
    %v4968 = vpack.c.b16 %v4770, %v4768
    %v4969 = vpack.c.b16 %v4773, %v4771
    %v4970 = vpack.c.b16 %v4774, %v4772
    %v4971 = vpack.c.b16 %v4777, %v4775
    %v4972 = vpack.c.b16 %v4778, %v4776
    %v4973 = vpack.c.b16 %v4781, %v4779
    %v4974 = vpack.c.b16 %v4782, %v4780
    %v4975 = vpack.c.b16 %v4785, %v4783
    %v4976 = vpack.c.b16 %v4786, %v4784
    %v4977 = vpack.c.b16 %v4789, %v4787
    %v4978 = vpack.c.b16 %v4790, %v4788
    %v4979 = vpack.c.b16 %v4793, %v4791
    %v4980 = vpack.c.b16 %v4794, %v4792
    %v4981 = vpack.c.b16 %v4797, %v4795
    %v4982 = vpack.c.b16 %v4798, %v4796
    %v4983 = vpack.c.b16 %v4801, %v4799
    %v4984 = vpack.c.b16 %v4802, %v4800
    %v4985 = vpack.c.b16 %v4805, %v4803
    %v4986 = vpack.c.b16 %v4806, %v4804
    %v4987 = vpack.c.b16 %v4809, %v4807
    %v4988 = vpack.c.b16 %v4810, %v4808
    %v4989 = vpack.c.b16 %v4813, %v4811
    %v4990 = vpack.c.b16 %v4814, %v4812
    %v4991 = vpack.c.b16 %v4817, %v4815
    %v4992 = vpack.c.b16 %v4818, %v4816
    %v4993 = vpack.c.b16 %v4821, %v4819
    %v4994 = vpack.c.b16 %v4822, %v4820
    %v4995 = vpack.c.b16 %v4825, %v4823
    %v4996 = vpack.c.b16 %v4826, %v4824
    %v4997 = vpack.c.b16 %v4829, %v4827
    %v4998 = vpack.c.b16 %v4830, %v4828
    %v4999 = vpack.c.b16 %v4833, %v4831
    %v5000 = vpack.c.b16 %v4834, %v4832
    %v5001 = vpack.c.b16 %v4837, %v4835
    %v5002 = vpack.c.b16 %v4838, %v4836
    %v5003 = vpack.c.b16 %v4841, %v4839
    %v5004 = vpack.c.b16 %v4842, %v4840
    %v5005 = vpack.c.b16 %v4845, %v4843
    %v5006 = vpack.c.b16 %v4846, %v4844
    %v5007 = vpack.c.b16 %v4849, %v4847
    %v5008 = vpack.c.b16 %v4850, %v4848
    %v5009 = vpack.c.b16 %v4853, %v4851
    %v5010 = vpack.c.b16 %v4854, %v4852
    %v5011 = vpack.c.b16 %v4857, %v4855
    %v5012 = vpack.c.b16 %v4858, %v4856
    %v5013 = vpack.c.b16 %v4861, %v4859
    %v5014 = vpack.c.b16 %v4862, %v4860
    %v5015 = vpack.c.b16 %v4865, %v4863
    %v5016 = vpack.c.b16 %v4866, %v4864
    %v5017 = vpack.c.b16 %v4869, %v4867
    %v5018 = vpack.c.b16 %v4870, %v4868
    %v5019 = vpack.c.b16 %v4873, %v4871
    %v5020 = vpack.c.b16 %v4874, %v4872
    %v5021 = vpack.c.b16 %v4877, %v4875
    %v5022 = vpack.c.b16 %v4878, %v4876
    %5167 = vmatprep.subr.bf16.mxu0 %v4880
    %5168 = vmatpush1.bf16.msra.mxu0 %v4879
    %5169 = vmatprep.subr.bf16.mxu0 %v4882
    %5170 = vmatpush1.bf16.msra.mxu0 %v4881
    %5171 = vmatprep.subr.bf16.mxu0 %v4884
    %5172 = vmatpush1.bf16.msra.mxu0 %v4883
    %5173 = vmatprep.subr.bf16.mxu0 %v4886
    %5174 = vmatpush1.bf16.msra.mxu0 %v4885
    %5175 = vmatprep.subr.bf16.mxu0 %v4888
    %5176 = vmatpush1.bf16.msra.mxu0 %v4887
    %5177 = vmatprep.subr.bf16.mxu0 %v4890
    %5178 = vmatpush1.bf16.msra.mxu0 %v4889
    %5179 = vmatprep.subr.bf16.mxu0 %v4892
    %5180 = vmatpush1.bf16.msra.mxu0 %v4891
    %5181 = vmatprep.subr.bf16.mxu0 %v4894
    %5182 = vmatpush1.bf16.msra.mxu0 %v4893
    %5183 = vmatprep.subr.bf16.mxu0 %v4896
    %5184 = vmatpush1.bf16.msra.mxu0 %v4895
    %5185 = vmatprep.subr.bf16.mxu0 %v4898
    %5186 = vmatpush1.bf16.msra.mxu0 %v4897
    %5187 = vmatprep.subr.bf16.mxu0 %v4900
    %5188 = vmatpush1.bf16.msra.mxu0 %v4899
    %5189 = vmatprep.subr.bf16.mxu0 %v4902
    %5190 = vmatpush1.bf16.msra.mxu0 %v4901
    %5191 = vmatprep.subr.bf16.mxu0 %v4904
    %5192 = vmatpush1.bf16.msra.mxu0 %v4903
    %5193 = vmatprep.subr.bf16.mxu0 %v4906
    %5194 = vmatpush1.bf16.msra.mxu0 %v4905
    %5195 = vmatprep.subr.bf16.mxu0 %v4908
    %5196 = vmatpush1.bf16.msra.mxu0 %v4907
    %5197 = vmatprep.subr.bf16.mxu0 %v4910
    %5198 = vmatpush1.bf16.msra.mxu0 %v4909
    %5199 = vmatprep.mubr.bf16.mxu0 %v4283
    %5200 = vmatmul.mubr.bf16.gmra.mrb[0].mxu0 %v4282
    %v5201 = vpop.f32.mrb[0].mxu0
    %v5202 = vadd.f32 %v4440, %v5201
    %v5203 = vpop.f32.mrb[0].mxu0
    %v5204 = vadd.f32 %v4444, %v5203
    %v5205 = vpop.f32.mrb[0].mxu0
    %v5206 = vpop.f32.mrb[0].mxu0
    %5207 = vdwg.mxu0
    %5208 = vmatprep.subr.bf16.mxu0 %v4912
    %5209 = vmatpush1.bf16.msra.mxu0 %v4911
    %5210 = vmatprep.subr.bf16.mxu0 %v4914
    %5211 = vmatpush1.bf16.msra.mxu0 %v4913
    %5212 = vmatprep.subr.bf16.mxu0 %v4916
    %5213 = vmatpush1.bf16.msra.mxu0 %v4915
    %5214 = vmatprep.subr.bf16.mxu0 %v4918
    %5215 = vmatpush1.bf16.msra.mxu0 %v4917
    %5216 = vmatprep.subr.bf16.mxu0 %v4920
    %5217 = vmatpush1.bf16.msra.mxu0 %v4919
    %5218 = vmatprep.subr.bf16.mxu0 %v4922
    %5219 = vmatpush1.bf16.msra.mxu0 %v4921
    %5220 = vmatprep.subr.bf16.mxu0 %v4924
    %5221 = vmatpush1.bf16.msra.mxu0 %v4923
    %5222 = vmatprep.subr.bf16.mxu0 %v4926
    %5223 = vmatpush1.bf16.msra.mxu0 %v4925
    %5224 = vmatprep.subr.bf16.mxu0 %v4928
    %5225 = vmatpush1.bf16.msra.mxu0 %v4927
    %5226 = vmatprep.subr.bf16.mxu0 %v4930
    %5227 = vmatpush1.bf16.msra.mxu0 %v4929
    %5228 = vmatprep.subr.bf16.mxu0 %v4932
    %5229 = vmatpush1.bf16.msra.mxu0 %v4931
    %5230 = vmatprep.subr.bf16.mxu0 %v4934
    %5231 = vmatpush1.bf16.msra.mxu0 %v4933
    %5232 = vmatprep.subr.bf16.mxu0 %v4936
    %5233 = vmatpush1.bf16.msra.mxu0 %v4935
    %5234 = vmatprep.subr.bf16.mxu0 %v4938
    %5235 = vmatpush1.bf16.msra.mxu0 %v4937
    %5236 = vmatprep.subr.bf16.mxu0 %v4940
    %5237 = vmatpush1.bf16.msra.mxu0 %v4939
    %5238 = vmatprep.subr.bf16.mxu0 %v4942
    %5239 = vmatpush1.bf16.msra.mxu0 %v4941
    %5240 = vmatprep.mubr.bf16.mxu0 %v4285
    %5241 = vmatmul.mubr.bf16.gmra.mrb[0].mxu0 %v4284
    %v5242 = vpop.f32.mrb[0].mxu0
    %v5243 = vadd.f32 %v5202, %v5242
    %v5244 = vpop.f32.mrb[0].mxu0
    %v5245 = vadd.f32 %v5204, %v5244
    %v5246 = vpop.f32.mrb[0].mxu0
    %v5247 = vpop.f32.mrb[0].mxu0
    %5248 = vdwg.mxu0
    %5249 = vmatprep.subr.bf16.mxu0 %v4944
    %5250 = vmatpush1.bf16.msra.mxu0 %v4943
    %5251 = vmatprep.subr.bf16.mxu0 %v4946
    %5252 = vmatpush1.bf16.msra.mxu0 %v4945
    %5253 = vmatprep.subr.bf16.mxu0 %v4948
    %5254 = vmatpush1.bf16.msra.mxu0 %v4947
    %5255 = vmatprep.subr.bf16.mxu0 %v4950
    %5256 = vmatpush1.bf16.msra.mxu0 %v4949
    %5257 = vmatprep.subr.bf16.mxu0 %v4952
    %5258 = vmatpush1.bf16.msra.mxu0 %v4951
    %5259 = vmatprep.subr.bf16.mxu0 %v4954
    %5260 = vmatpush1.bf16.msra.mxu0 %v4953
    %5261 = vmatprep.subr.bf16.mxu0 %v4956
    %5262 = vmatpush1.bf16.msra.mxu0 %v4955
    %5263 = vmatprep.subr.bf16.mxu0 %v4958
    %5264 = vmatpush1.bf16.msra.mxu0 %v4957
    %5265 = vmatprep.subr.bf16.mxu0 %v4960
    %5266 = vmatpush1.bf16.msra.mxu0 %v4959
    %5267 = vmatprep.subr.bf16.mxu0 %v4962
    %5268 = vmatpush1.bf16.msra.mxu0 %v4961
    %5269 = vmatprep.subr.bf16.mxu0 %v4964
    %5270 = vmatpush1.bf16.msra.mxu0 %v4963
    %5271 = vmatprep.subr.bf16.mxu0 %v4966
    %5272 = vmatpush1.bf16.msra.mxu0 %v4965
    %5273 = vmatprep.subr.bf16.mxu0 %v4968
    %5274 = vmatpush1.bf16.msra.mxu0 %v4967
    %5275 = vmatprep.subr.bf16.mxu0 %v4970
    %5276 = vmatpush1.bf16.msra.mxu0 %v4969
    %5277 = vmatprep.subr.bf16.mxu0 %v4972
    %5278 = vmatpush1.bf16.msra.mxu0 %v4971
    %5279 = vmatprep.subr.bf16.mxu0 %v4974
    %5280 = vmatpush1.bf16.msra.mxu0 %v4973
    %5281 = vmatprep.mubr.bf16.mxu0 %v4287
    %5282 = vmatmul.mubr.bf16.gmra.mrb[0].mxu0 %v4286
    %v5283 = vpop.f32.mrb[0].mxu0
    %v5284 = vadd.f32 %v5243, %v5283
    %v5285 = vpop.f32.mrb[0].mxu0
    %v5286 = vadd.f32 %v5245, %v5285
    %v5287 = vpop.f32.mrb[0].mxu0
    %v5288 = vpop.f32.mrb[0].mxu0
    %5289 = vdwg.mxu0
    %5290 = vmatprep.subr.bf16.mxu0 %v4976
    %5291 = vmatpush1.bf16.msra.mxu0 %v4975
    %5292 = vmatprep.subr.bf16.mxu0 %v4978
    %5293 = vmatpush1.bf16.msra.mxu0 %v4977
    %5294 = vmatprep.subr.bf16.mxu0 %v4980
    %5295 = vmatpush1.bf16.msra.mxu0 %v4979
    %5296 = vmatprep.subr.bf16.mxu0 %v4982
    %5297 = vmatpush1.bf16.msra.mxu0 %v4981
    %5298 = vmatprep.subr.bf16.mxu0 %v4984
    %5299 = vmatpush1.bf16.msra.mxu0 %v4983
    %5300 = vmatprep.subr.bf16.mxu0 %v4986
    %5301 = vmatpush1.bf16.msra.mxu0 %v4985
    %5302 = vmatprep.subr.bf16.mxu0 %v4988
    %5303 = vmatpush1.bf16.msra.mxu0 %v4987
    %5304 = vmatprep.subr.bf16.mxu0 %v4990
    %5305 = vmatpush1.bf16.msra.mxu0 %v4989
    %5306 = vmatprep.subr.bf16.mxu0 %v4992
    %5307 = vmatpush1.bf16.msra.mxu0 %v4991
    %5308 = vmatprep.subr.bf16.mxu0 %v4994
    %5309 = vmatpush1.bf16.msra.mxu0 %v4993
    %5310 = vmatprep.subr.bf16.mxu0 %v4996
    %5311 = vmatpush1.bf16.msra.mxu0 %v4995
    %5312 = vmatprep.subr.bf16.mxu0 %v4998
    %5313 = vmatpush1.bf16.msra.mxu0 %v4997
    %5314 = vmatprep.subr.bf16.mxu0 %v5000
    %5315 = vmatpush1.bf16.msra.mxu0 %v4999
    %5316 = vmatprep.subr.bf16.mxu0 %v5002
    %5317 = vmatpush1.bf16.msra.mxu0 %v5001
    %5318 = vmatprep.subr.bf16.mxu0 %v5004
    %5319 = vmatpush1.bf16.msra.mxu0 %v5003
    %5320 = vmatprep.subr.bf16.mxu0 %v5006
    %5321 = vmatpush1.bf16.msra.mxu0 %v5005
    %5322 = vmatprep.mubr.bf16.mxu0 %v4289
    %5323 = vmatmul.mubr.bf16.gmra.mrb[0].mxu0 %v4288
    %v5324 = vpop.f32.mrb[0].mxu0
    %v5325 = vadd.f32 %v5284, %v5324
    %v5326 = vpop.f32.mrb[0].mxu0
    %v5327 = vadd.f32 %v5286, %v5326
    %v5328 = vpop.f32.mrb[0].mxu0
    %v5329 = vpop.f32.mrb[0].mxu0
    %5330 = vdwg.mxu0
    %5331 = vmatprep.subr.bf16.mxu0 %v5008
    %5332 = vmatpush1.bf16.msra.mxu0 %v5007
    %5333 = vmatprep.subr.bf16.mxu0 %v5010
    %5334 = vmatpush1.bf16.msra.mxu0 %v5009
    %5335 = vmatprep.subr.bf16.mxu0 %v5012
    %5336 = vmatpush1.bf16.msra.mxu0 %v5011
    %5337 = vmatprep.subr.bf16.mxu0 %v5014
    %5338 = vmatpush1.bf16.msra.mxu0 %v5013
    %5339 = vmatprep.subr.bf16.mxu0 %v5016
    %5340 = vmatpush1.bf16.msra.mxu0 %v5015
    %5341 = vmatprep.subr.bf16.mxu0 %v5018
    %5342 = vmatpush1.bf16.msra.mxu0 %v5017
    %5343 = vmatprep.subr.bf16.mxu0 %v5020
    %5344 = vmatpush1.bf16.msra.mxu0 %v5019
    %5345 = vmatprep.subr.bf16.mxu0 %v5022
    %5346 = vmatpush1.bf16.msra.mxu0 %v5021
    %5347 = vmatprep.subr.bf16.mxu0 0
    %5348 = vmatpush1.bf16.msra.mxu0 0
    %5349 = vmatprep.subr.bf16.mxu0 0
    %5350 = vmatpush1.bf16.msra.mxu0 0
    %5351 = vmatprep.subr.bf16.mxu0 0
    %5352 = vmatpush1.bf16.msra.mxu0 0
    %5353 = vmatprep.subr.bf16.mxu0 0
    %5354 = vmatpush1.bf16.msra.mxu0 0
    %5355 = vmatprep.subr.bf16.mxu0 0
    %5356 = vmatpush1.bf16.msra.mxu0 0
    %5357 = vmatprep.subr.bf16.mxu0 0
    %5358 = vmatpush1.bf16.msra.mxu0 0
    %5359 = vmatprep.subr.bf16.mxu0 0
    %5360 = vmatpush1.bf16.msra.mxu0 0
    %5361 = vmatprep.subr.bf16.mxu0 0
    %5362 = vmatpush1.bf16.msra.mxu0 0
    %5363 = vmatprep.mubr.bf16.mxu0 0
    %5364 = vmatmul.mubr.bf16.gmra.mrb[0].mxu0 %v4290
    %v5365 = vpop.f32.mrb[0].mxu0
    %v5366 = vadd.f32 %v5325, %v5365
    %v5367 = vpop.f32.mrb[0].mxu0
    %v5368 = vadd.f32 %v5327, %v5367
    %v5369 = vpop.f32.mrb[0].mxu0
    %v5370 = vpop.f32.mrb[0].mxu0
    %5371 = vdwg.mxu0
    %v5372 = vmax.f32 %v5366, 0.0
    %v5373 = vmax.f32 %v5368, 0.0
    %v5374 = vpack.c.bf16 %v5372, %v5372
    %v5375 = vpack.c.bf16 %v5373, %v5373
    %v5376 = vld [vmem:[#allocation9] sm:$0xf]
    %v5377 = vld [vmem:[#allocation9 + $0x4] sm:$0xf]
    %v5378 = vld [vmem:[#allocation9 + $0x8] sm:$0xf]
    %v5379 = vld [vmem:[#allocation9 + $0xc] sm:$0xf]
    %v5380 = vld [vmem:[#allocation9 + $0x10] sm:$0xf]
    %v5381 = vld [vmem:[#allocation9 + $0x14] sm:$0xf]
    %v5382 = vld [vmem:[#allocation9 + $0x18] sm:$0xf]
    %v5383 = vld [vmem:[#allocation9 + $0x1c] sm:$0xf]
    %v5384 = vld [vmem:[#allocation9 + $0x20] sm:$0xf]
    %v5385 = vld [vmem:[#allocation9 + $0x24] sm:$0xf]
    %v5386 = vld [vmem:[#allocation9 + $0x28] sm:$0xf]
    %v5387 = vld [vmem:[#allocation9 + $0x2c] sm:$0xf]
    %v5388 = vld [vmem:[#allocation9 + $0x30] sm:$0xf]
    %v5389 = vld [vmem:[#allocation9 + $0x34] sm:$0xf]
    %v5390 = vld [vmem:[#allocation9 + $0x38] sm:$0xf]
    %v5391 = vld [vmem:[#allocation9 + $0x3c] sm:$0xf]
    %v5392 = vld [vmem:[#allocation9 + $0x40] sm:$0xf]
    %v5393 = vld [vmem:[#allocation9 + $0x44] sm:$0xf]
    %v5394 = vld [vmem:[#allocation9 + $0x48] sm:$0xf]
    %v5395 = vld [vmem:[#allocation9 + $0x4c] sm:$0xf]
    %v5396 = vld [vmem:[#allocation9 + $0x50] sm:$0xf]
    %v5397 = vld [vmem:[#allocation9 + $0x54] sm:$0xf]
    %v5398 = vld [vmem:[#allocation9 + $0x58] sm:$0xf]
    %v5399 = vld [vmem:[#allocation9 + $0x5c] sm:$0xf]
    %v5400 = vld [vmem:[#allocation9 + $0x60] sm:$0xf]
    %v5401 = vld [vmem:[#allocation9 + $0x64] sm:$0xf]
    %v5402 = vld [vmem:[#allocation9 + $0x68] sm:$0xf]
    %v5403 = vld [vmem:[#allocation9 + $0x6c] sm:$0xf]
    %v5404 = vld [vmem:[#allocation9 + $0x70] sm:$0xf]
    %v5405 = vld [vmem:[#allocation9 + $0x74] sm:$0xf]
    %v5406 = vld [vmem:[#allocation9 + $0x78] sm:$0xf]
    %v5407 = vld [vmem:[#allocation9 + $0x7c] sm:$0xf]
    %v5408 = vld [vmem:[#allocation10] sm:$0x1]
    %v5410 = vlaneseq
    %v5411 = vshrl.u32 %v5410, 7
    %v5412 = vsub.s32 0, %v5411
    %v5413 = vrot.slane %v5408, %v5412
    %v5447 = vunpack.c.l.b16 %v5376
    %v5448 = vunpack.c.l.b16 %v5377
    %v5449 = vunpack.c.l.b16 %v5378
    %v5450 = vunpack.c.l.b16 %v5379
    %v5451 = vunpack.c.l.b16 %v5380
    %v5452 = vunpack.c.l.b16 %v5381
    %v5453 = vunpack.c.l.b16 %v5382
    %v5454 = vunpack.c.l.b16 %v5383
    %v5455 = vunpack.c.l.b16 %v5384
    %v5456 = vunpack.c.l.b16 %v5385
    %v5457 = vunpack.c.l.b16 %v5386
    %v5458 = vunpack.c.l.b16 %v5387
    %v5459 = vunpack.c.l.b16 %v5388
    %v5460 = vunpack.c.l.b16 %v5389
    %v5461 = vunpack.c.l.b16 %v5390
    %v5462 = vunpack.c.l.b16 %v5391
    %v5463 = vunpack.c.l.b16 %v5392
    %v5464 = vunpack.c.l.b16 %v5393
    %v5465 = vunpack.c.l.b16 %v5394
    %v5466 = vunpack.c.l.b16 %v5395
    %v5467 = vunpack.c.l.b16 %v5396
    %v5468 = vunpack.c.l.b16 %v5397
    %v5469 = vunpack.c.l.b16 %v5398
    %v5470 = vunpack.c.l.b16 %v5399
    %v5471 = vunpack.c.l.b16 %v5400
    %v5472 = vunpack.c.l.b16 %v5401
    %v5473 = vunpack.c.l.b16 %v5402
    %v5474 = vunpack.c.l.b16 %v5403
    %v5475 = vunpack.c.l.b16 %v5404
    %v5476 = vunpack.c.l.b16 %v5405
    %v5477 = vunpack.c.l.b16 %v5406
    %v5478 = vunpack.c.l.b16 %v5407
    %v5479 = vpack.c.b16 %v5448, %v5447
    %v5480 = vpack.c.b16 %v5450, %v5449
    %v5481 = vpack.c.b16 %v5452, %v5451
    %v5482 = vpack.c.b16 %v5454, %v5453
    %v5483 = vpack.c.b16 %v5456, %v5455
    %v5484 = vpack.c.b16 %v5458, %v5457
    %v5485 = vpack.c.b16 %v5460, %v5459
    %v5486 = vpack.c.b16 %v5462, %v5461
    %v5487 = vpack.c.b16 %v5464, %v5463
    %v5488 = vpack.c.b16 %v5466, %v5465
    %v5489 = vpack.c.b16 %v5468, %v5467
    %v5490 = vpack.c.b16 %v5470, %v5469
    %v5491 = vpack.c.b16 %v5472, %v5471
    %v5492 = vpack.c.b16 %v5474, %v5473
    %v5493 = vpack.c.b16 %v5476, %v5475
    %v5494 = vpack.c.b16 %v5478, %v5477
    %5511 = vmatprep.subr.bf16.mxu0 0
    %5512 = vmatpush1.bf16.msra.mxu0 %v5479
    %5513 = vmatprep.subr.bf16.mxu0 0
    %5514 = vmatpush1.bf16.msra.mxu0 %v5480
    %5515 = vmatprep.subr.bf16.mxu0 0
    %5516 = vmatpush1.bf16.msra.mxu0 %v5481
    %5517 = vmatprep.subr.bf16.mxu0 0
    %5518 = vmatpush1.bf16.msra.mxu0 %v5482
    %5519 = vmatprep.subr.bf16.mxu0 0
    %5520 = vmatpush1.bf16.msra.mxu0 %v5483
    %5521 = vmatprep.subr.bf16.mxu0 0
    %5522 = vmatpush1.bf16.msra.mxu0 %v5484
    %5523 = vmatprep.subr.bf16.mxu0 0
    %5524 = vmatpush1.bf16.msra.mxu0 %v5485
    %5525 = vmatprep.subr.bf16.mxu0 0
    %5526 = vmatpush1.bf16.msra.mxu0 %v5486
    %5527 = vmatprep.subr.bf16.mxu0 0
    %5528 = vmatpush1.bf16.msra.mxu0 %v5487
    %5529 = vmatprep.subr.bf16.mxu0 0
    %5530 = vmatpush1.bf16.msra.mxu0 %v5488
    %5531 = vmatprep.subr.bf16.mxu0 0
    %5532 = vmatpush1.bf16.msra.mxu0 %v5489
    %5533 = vmatprep.subr.bf16.mxu0 0
    %5534 = vmatpush1.bf16.msra.mxu0 %v5490
    %5535 = vmatprep.subr.bf16.mxu0 0
    %5536 = vmatpush1.bf16.msra.mxu0 %v5491
    %5537 = vmatprep.subr.bf16.mxu0 0
    %5538 = vmatpush1.bf16.msra.mxu0 %v5492
    %5539 = vmatprep.subr.bf16.mxu0 0
    %5540 = vmatpush1.bf16.msra.mxu0 %v5493
    %5541 = vmatprep.subr.bf16.mxu0 0
    %5542 = vmatpush1.bf16.msra.mxu0 %v5494
    %5543 = vmatprep.mubr.bf16.mxu0 %v5375
    %5544 = vmatmul.mubr.bf16.gmra.mrb[0].mxu0 %v5374
    %v5545 = vpop.f32.mrb[0].mxu0
    %v5546 = vadd.f32 %v5413, %v5545
    %v5547 = vpop.f32.mrb[0].mxu0
    %v5548 = vpop.f32.mrb[0].mxu0
    %v5549 = vpop.f32.mrb[0].mxu0
    %5550 = vdwg.mxu0
    %v5551 = vmax.f32 %v5546, 0.0
    %v5552 = vpack.c.bf16 %v5551, %v5551
    %v5553 = vld [vmem:[#allocation12] sm:$0xf]
    %v5554 = vld [vmem:[#allocation12 + $0x4] sm:$0xf]
    %v5555 = vld [vmem:[#allocation12 + $0x8] sm:$0xf]
    %v5556 = vld [vmem:[#allocation12 + $0xc] sm:$0xf]
    %v5557 = vld [vmem:[#allocation12 + $0x10] sm:$0xf]
    %v5558 = vld [vmem:[#allocation12 + $0x14] sm:$0xf]
    %v5559 = vld [vmem:[#allocation12 + $0x18] sm:$0xf]
    %v5560 = vld [vmem:[#allocation12 + $0x1c] sm:$0xf]
    %v5561 = vld [vmem:[#allocation12 + $0x20] sm:$0xf]
    %v5562 = vld [vmem:[#allocation12 + $0x24] sm:$0xf]
    %v5563 = vld [vmem:[#allocation12 + $0x28] sm:$0xf]
    %v5564 = vld [vmem:[#allocation12 + $0x2c] sm:$0xf]
    %v5565 = vld [vmem:[#allocation12 + $0x30] sm:$0xf]
    %v5566 = vld [vmem:[#allocation12 + $0x34] sm:$0xf]
    %v5567 = vld [vmem:[#allocation12 + $0x38] sm:$0xf]
    %v5568 = vld [vmem:[#allocation12 + $0x3c] sm:$0xf]
    %v5569 = vld [vmem:[#allocation13] sm:$0x1]
    %v5571 = vlaneseq
    %v5572 = vshrl.u32 %v5571, 7
    %v5573 = vsub.s32 0, %v5572
    %v5574 = vrot.slane %v5569, %v5573
    %v5592 = vunpack.c.l.b16 %v5553
    %v5593 = vunpack.c.l.b16 %v5554
    %v5594 = vunpack.c.l.b16 %v5555
    %v5595 = vunpack.c.l.b16 %v5556
    %v5596 = vunpack.c.l.b16 %v5557
    %v5597 = vunpack.c.l.b16 %v5558
    %v5598 = vunpack.c.l.b16 %v5559
    %v5599 = vunpack.c.l.b16 %v5560
    %v5600 = vunpack.c.l.b16 %v5561
    %v5601 = vunpack.c.l.b16 %v5562
    %v5602 = vunpack.c.l.b16 %v5563
    %v5603 = vunpack.c.l.b16 %v5564
    %v5604 = vunpack.c.l.b16 %v5565
    %v5605 = vunpack.c.l.b16 %v5566
    %v5606 = vunpack.c.l.b16 %v5567
    %v5607 = vunpack.c.l.b16 %v5568
    %v5608 = vpack.c.b16 %v5593, %v5592
    %v5609 = vpack.c.b16 %v5595, %v5594
    %v5610 = vpack.c.b16 %v5597, %v5596
    %v5611 = vpack.c.b16 %v5599, %v5598
    %v5612 = vpack.c.b16 %v5601, %v5600
    %v5613 = vpack.c.b16 %v5603, %v5602
    %v5614 = vpack.c.b16 %v5605, %v5604
    %v5615 = vpack.c.b16 %v5607, %v5606
    %5624 = vmatprep.subr.bf16.mxu0 0
    %5625 = vmatpush1.bf16.msra.mxu0 %v5608
    %5626 = vmatprep.subr.bf16.mxu0 0
    %5627 = vmatpush1.bf16.msra.mxu0 %v5609
    %5628 = vmatprep.subr.bf16.mxu0 0
    %5629 = vmatpush1.bf16.msra.mxu0 %v5610
    %5630 = vmatprep.subr.bf16.mxu0 0
    %5631 = vmatpush1.bf16.msra.mxu0 %v5611
    %5632 = vmatprep.subr.bf16.mxu0 0
    %5633 = vmatpush1.bf16.msra.mxu0 %v5612
    %5634 = vmatprep.subr.bf16.mxu0 0
    %5635 = vmatpush1.bf16.msra.mxu0 %v5613
    %5636 = vmatprep.subr.bf16.mxu0 0
    %5637 = vmatpush1.bf16.msra.mxu0 %v5614
    %5638 = vmatprep.subr.bf16.mxu0 0
    %5639 = vmatpush1.bf16.msra.mxu0 %v5615
    %5640 = vmatprep.subr.bf16.mxu0 0
    %5641 = vmatpush1.bf16.msra.mxu0 0
    %5642 = vmatprep.subr.bf16.mxu0 0
    %5643 = vmatpush1.bf16.msra.mxu0 0
    %5644 = vmatprep.subr.bf16.mxu0 0
    %5645 = vmatpush1.bf16.msra.mxu0 0
    %5646 = vmatprep.subr.bf16.mxu0 0
    %5647 = vmatpush1.bf16.msra.mxu0 0
    %5648 = vmatprep.subr.bf16.mxu0 0
    %5649 = vmatpush1.bf16.msra.mxu0 0
    %5650 = vmatprep.subr.bf16.mxu0 0
    %5651 = vmatpush1.bf16.msra.mxu0 0
    %5652 = vmatprep.subr.bf16.mxu0 0
    %5653 = vmatpush1.bf16.msra.mxu0 0
    %5654 = vmatprep.subr.bf16.mxu0 0
    %5655 = vmatpush1.bf16.msra.mxu0 0
    %5656 = vmatprep.mubr.bf16.mxu0 0
    %5657 = vmatmul.mubr.bf16.gmra.mrb[0].mxu0 %v5552
    %v5658 = vpop.f32.mrb[0].mxu0
    %v5659 = vadd.f32 %v5574, %v5658
    %v5660 = vpop.f32.mrb[0].mxu0
    %v5661 = vpop.f32.mrb[0].mxu0
    %v5662 = vpop.f32.mrb[0].mxu0
    %5663 = vdwg.mxu0
    %v5664 = vmax.f32 %v5659, 0.0
    %v5665 = vpack.c.bf16 %v5664, %v5664
    %v5666 = vld [vmem:[#allocation15] sm:$0xf]
    %v5667 = vld [vmem:[#allocation15 + $0x4] sm:$0xf]
    %v5668 = vld [vmem:[#allocation15 + $0x8] sm:$0xf]
    %v5669 = vld [vmem:[#allocation15 + $0xc] sm:$0xf]
    %v5670 = vld [vmem:[#allocation15 + $0x10] sm:$0xf]
    %v5671 = vld [vmem:[#allocation15 + $0x14] sm:$0xf]
    %v5672 = vld [vmem:[#allocation15 + $0x18] sm:$0xf]
    %v5673 = vld [vmem:[#allocation15 + $0x1c] sm:$0xf]
    %v5674 = vld [vmem:[#allocation15 + $0x20] sm:$0xf]
    %v5675 = vld [vmem:[#allocation15 + $0x24] sm:$0xf]
    %v5676 = vld [vmem:[#allocation15 + $0x28] sm:$0xf]
    %v5677 = vld [vmem:[#allocation15 + $0x2c] sm:$0xf]
    %v5678 = vld [vmem:[#allocation15 + $0x30] sm:$0xf]
    %v5679 = vld [vmem:[#allocation15 + $0x34] sm:$0xf]
    %v5680 = vld [vmem:[#allocation15 + $0x38] sm:$0xf]
    %v5681 = vld [vmem:[#allocation15 + $0x3c] sm:$0xf]
    %v5682 = vld [vmem:[#allocation16] sm:$0x1]
    %v5684 = vlaneseq
    %v5685 = vshrl.u32 %v5684, 7
    %v5686 = vsub.s32 0, %v5685
    %v5687 = vrot.slane %v5682, %v5686
    %v5705 = vunpack.c.l.b16 %v5666
    %v5706 = vunpack.c.l.b16 %v5667
    %v5707 = vunpack.c.l.b16 %v5668
    %v5708 = vunpack.c.l.b16 %v5669
    %v5709 = vunpack.c.l.b16 %v5670
    %v5710 = vunpack.c.l.b16 %v5671
    %v5711 = vunpack.c.l.b16 %v5672
    %v5712 = vunpack.c.l.b16 %v5673
    %v5713 = vunpack.c.l.b16 %v5674
    %v5714 = vunpack.c.l.b16 %v5675
    %v5715 = vunpack.c.l.b16 %v5676
    %v5716 = vunpack.c.l.b16 %v5677
    %v5717 = vunpack.c.l.b16 %v5678
    %v5718 = vunpack.c.l.b16 %v5679
    %v5719 = vunpack.c.l.b16 %v5680
    %v5720 = vunpack.c.l.b16 %v5681
    %v5721 = vpack.c.b16 %v5706, %v5705
    %v5722 = vpack.c.b16 %v5708, %v5707
    %v5723 = vpack.c.b16 %v5710, %v5709
    %v5724 = vpack.c.b16 %v5712, %v5711
    %v5725 = vpack.c.b16 %v5714, %v5713
    %v5726 = vpack.c.b16 %v5716, %v5715
    %v5727 = vpack.c.b16 %v5718, %v5717
    %v5728 = vpack.c.b16 %v5720, %v5719
    %5737 = vmatprep.subr.bf16.mxu0 0
    %5738 = vmatpush1.bf16.msra.mxu0 %v5721
    %5739 = vmatprep.subr.bf16.mxu0 0
    %5740 = vmatpush1.bf16.msra.mxu0 %v5722
    %5741 = vmatprep.subr.bf16.mxu0 0
    %5742 = vmatpush1.bf16.msra.mxu0 %v5723
    %5743 = vmatprep.subr.bf16.mxu0 0
    %5744 = vmatpush1.bf16.msra.mxu0 %v5724
    %5745 = vmatprep.subr.bf16.mxu0 0
    %5746 = vmatpush1.bf16.msra.mxu0 %v5725
    %5747 = vmatprep.subr.bf16.mxu0 0
    %5748 = vmatpush1.bf16.msra.mxu0 %v5726
    %5749 = vmatprep.subr.bf16.mxu0 0
    %5750 = vmatpush1.bf16.msra.mxu0 %v5727
    %5751 = vmatprep.subr.bf16.mxu0 0
    %5752 = vmatpush1.bf16.msra.mxu0 %v5728
    %5753 = vmatprep.subr.bf16.mxu0 0
    %5754 = vmatpush1.bf16.msra.mxu0 0
    %5755 = vmatprep.subr.bf16.mxu0 0
    %5756 = vmatpush1.bf16.msra.mxu0 0
    %5757 = vmatprep.subr.bf16.mxu0 0
    %5758 = vmatpush1.bf16.msra.mxu0 0
    %5759 = vmatprep.subr.bf16.mxu0 0
    %5760 = vmatpush1.bf16.msra.mxu0 0
    %5761 = vmatprep.subr.bf16.mxu0 0
    %5762 = vmatpush1.bf16.msra.mxu0 0
    %5763 = vmatprep.subr.bf16.mxu0 0
    %5764 = vmatpush1.bf16.msra.mxu0 0
    %5765 = vmatprep.subr.bf16.mxu0 0
    %5766 = vmatpush1.bf16.msra.mxu0 0
    %5767 = vmatprep.subr.bf16.mxu0 0
    %5768 = vmatpush1.bf16.msra.mxu0 0
    %5769 = vmatprep.mubr.bf16.mxu0 0
    %5770 = vmatmul.mubr.bf16.gmra.mrb[0].mxu0 %v5665
    %v5771 = vpop.f32.mrb[0].mxu0
    %v5772 = vadd.f32 %v5687, %v5771
    %v5773 = vpop.f32.mrb[0].mxu0
    %v5774 = vpop.f32.mrb[0].mxu0
    %v5775 = vpop.f32.mrb[0].mxu0
    %5776 = vdwg.mxu0
    %v5777 = vmax.f32 %v5772, 0.0
    %v5778 = vpack.c.bf16 %v5777, %v5777
    %v5779 = vld [vmem:[#allocation18] sm:$0xff]
    %v5780 = vld [vmem:[#allocation18 + $0x8] sm:$0xff]
    %v5781 = vld [vmem:[#allocation18 + $0x10] sm:$0xff]
    %v5782 = vld [vmem:[#allocation18 + $0x18] sm:$0xff]
    %v5783 = vld [vmem:[#allocation18 + $0x20] sm:$0xff]
    %v5784 = vld [vmem:[#allocation18 + $0x28] sm:$0xff]
    %v5785 = vld [vmem:[#allocation18 + $0x30] sm:$0xff]
    %v5786 = vld [vmem:[#allocation18 + $0x38] sm:$0xff]
    %v5787 = vld [vmem:[#allocation18 + $0x40] sm:$0xff]
    %v5788 = vld [vmem:[#allocation18 + $0x48] sm:$0xff]
    %v5789 = vld [vmem:[#allocation18 + $0x50] sm:$0xff]
    %v5790 = vld [vmem:[#allocation18 + $0x58] sm:$0xff]
    %v5791 = vld [vmem:[#allocation18 + $0x60] sm:$0xff]
    %v5792 = vld [vmem:[#allocation18 + $0x68] sm:$0xff]
    %v5793 = vld [vmem:[#allocation18 + $0x70] sm:$0xff]
    %v5794 = vld [vmem:[#allocation18 + $0x78] sm:$0xff]
    %v5795 = vld [vmem:[#allocation19] sm:$0x3]
    %v5797 = vlaneseq
    %v5798 = vshrl.u32 %v5797, 7
    %v5799 = vsub.s32 0, %v5798
    %v5800 = vrot.slane %v5795, %v5799
    %v5801 = vlaneseq
    %v5802 = vshrl.u32 %v5801, 7
    %v5803 = vsub.s32 1, %v5802
    %v5804 = vrot.slane %v5795, %v5803
    %v5823 = vunpack.c.l.b16 %v5779
    %v5824 = vunpack.c.h.b16 %v5779
    %v5825 = vunpack.c.l.b16 %v5780
    %v5826 = vunpack.c.h.b16 %v5780
    %v5827 = vunpack.c.l.b16 %v5781
    %v5828 = vunpack.c.h.b16 %v5781
    %v5829 = vunpack.c.l.b16 %v5782
    %v5830 = vunpack.c.h.b16 %v5782
    %v5831 = vunpack.c.l.b16 %v5783
    %v5832 = vunpack.c.h.b16 %v5783
    %v5833 = vunpack.c.l.b16 %v5784
    %v5834 = vunpack.c.h.b16 %v5784
    %v5835 = vunpack.c.l.b16 %v5785
    %v5836 = vunpack.c.h.b16 %v5785
    %v5837 = vunpack.c.l.b16 %v5786
    %v5838 = vunpack.c.h.b16 %v5786
    %v5839 = vunpack.c.l.b16 %v5787
    %v5840 = vunpack.c.h.b16 %v5787
    %v5841 = vunpack.c.l.b16 %v5788
    %v5842 = vunpack.c.h.b16 %v5788
    %v5843 = vunpack.c.l.b16 %v5789
    %v5844 = vunpack.c.h.b16 %v5789
    %v5845 = vunpack.c.l.b16 %v5790
    %v5846 = vunpack.c.h.b16 %v5790
    %v5847 = vunpack.c.l.b16 %v5791
    %v5848 = vunpack.c.h.b16 %v5791
    %v5849 = vunpack.c.l.b16 %v5792
    %v5850 = vunpack.c.h.b16 %v5792
    %v5851 = vunpack.c.l.b16 %v5793
    %v5852 = vunpack.c.h.b16 %v5793
    %v5853 = vunpack.c.l.b16 %v5794
    %v5854 = vunpack.c.h.b16 %v5794
    %v5855 = vpack.c.b16 %v5825, %v5823
    %v5856 = vpack.c.b16 %v5826, %v5824
    %v5857 = vpack.c.b16 %v5829, %v5827
    %v5858 = vpack.c.b16 %v5830, %v5828
    %v5859 = vpack.c.b16 %v5833, %v5831
    %v5860 = vpack.c.b16 %v5834, %v5832
    %v5861 = vpack.c.b16 %v5837, %v5835
    %v5862 = vpack.c.b16 %v5838, %v5836
    %v5863 = vpack.c.b16 %v5841, %v5839
    %v5864 = vpack.c.b16 %v5842, %v5840
    %v5865 = vpack.c.b16 %v5845, %v5843
    %v5866 = vpack.c.b16 %v5846, %v5844
    %v5867 = vpack.c.b16 %v5849, %v5847
    %v5868 = vpack.c.b16 %v5850, %v5848
    %v5869 = vpack.c.b16 %v5853, %v5851
    %v5870 = vpack.c.b16 %v5854, %v5852
    %5887 = vmatprep.subr.bf16.mxu0 %v5856
    %5888 = vmatpush1.bf16.msra.mxu0 %v5855
    %5889 = vmatprep.subr.bf16.mxu0 %v5858
    %5890 = vmatpush1.bf16.msra.mxu0 %v5857
    %5891 = vmatprep.subr.bf16.mxu0 %v5860
    %5892 = vmatpush1.bf16.msra.mxu0 %v5859
    %5893 = vmatprep.subr.bf16.mxu0 %v5862
    %5894 = vmatpush1.bf16.msra.mxu0 %v5861
    %5895 = vmatprep.subr.bf16.mxu0 %v5864
    %5896 = vmatpush1.bf16.msra.mxu0 %v5863
    %5897 = vmatprep.subr.bf16.mxu0 %v5866
    %5898 = vmatpush1.bf16.msra.mxu0 %v5865
    %5899 = vmatprep.subr.bf16.mxu0 %v5868
    %5900 = vmatpush1.bf16.msra.mxu0 %v5867
    %5901 = vmatprep.subr.bf16.mxu0 %v5870
    %5902 = vmatpush1.bf16.msra.mxu0 %v5869
    %5903 = vmatprep.subr.bf16.mxu0 0
    %5904 = vmatpush1.bf16.msra.mxu0 0
    %5905 = vmatprep.subr.bf16.mxu0 0
    %5906 = vmatpush1.bf16.msra.mxu0 0
    %5907 = vmatprep.subr.bf16.mxu0 0
    %5908 = vmatpush1.bf16.msra.mxu0 0
    %5909 = vmatprep.subr.bf16.mxu0 0
    %5910 = vmatpush1.bf16.msra.mxu0 0
    %5911 = vmatprep.subr.bf16.mxu0 0
    %5912 = vmatpush1.bf16.msra.mxu0 0
    %5913 = vmatprep.subr.bf16.mxu0 0
    %5914 = vmatpush1.bf16.msra.mxu0 0
    %5915 = vmatprep.subr.bf16.mxu0 0
    %5916 = vmatpush1.bf16.msra.mxu0 0
    %5917 = vmatprep.subr.bf16.mxu0 0
    %5918 = vmatpush1.bf16.msra.mxu0 0
    %5919 = vmatprep.mubr.bf16.mxu0 0
    %5920 = vmatmul.mubr.bf16.gmra.mrb[0].mxu0 %v5778
    %v5921 = vpop.f32.mrb[0].mxu0
    %v5922 = vadd.f32 %v5800, %v5921
    %v5923 = vpop.f32.mrb[0].mxu0
    %v5924 = vadd.f32 %v5804, %v5923
    %v5925 = vpop.f32.mrb[0].mxu0
    %v5926 = vpop.f32.mrb[0].mxu0
    %5927 = vdwg.mxu0
    %v5928 = vmax.f32 %v5922, 0.0
    %v5929 = vmax.f32 %v5924, 0.0
    %v5930 = vpack.c.bf16 %v5928, %v5928
    %v5931 = vpack.c.bf16 %v5929, %v5929
    %v5932 = vld [vmem:[#allocation21] sm:$0xff]
    %v5933 = vld [vmem:[#allocation21 + $0x8] sm:$0xff]
    %v5934 = vld [vmem:[#allocation21 + $0x10] sm:$0xff]
    %v5935 = vld [vmem:[#allocation21 + $0x18] sm:$0xff]
    %v5936 = vld [vmem:[#allocation21 + $0x20] sm:$0xf]
    %v5937 = vld [vmem:[#allocation21 + $0x24] sm:$0xff]
    %v5938 = vld [vmem:[#allocation21 + $0x2c] sm:$0xff]
    %v5939 = vld [vmem:[#allocation21 + $0x34] sm:$0xff]
    %v5940 = vld [vmem:[#allocation21 + $0x3c] sm:$0xff]
    %v5941 = vld [vmem:[#allocation21 + $0x44] sm:$0xf]
    %v5942 = vld [vmem:[#allocation21 + $0x48] sm:$0xff]
    %v5943 = vld [vmem:[#allocation21 + $0x50] sm:$0xff]
    %v5944 = vld [vmem:[#allocation21 + $0x58] sm:$0xff]
    %v5945 = vld [vmem:[#allocation21 + $0x60] sm:$0xff]
    %v5946 = vld [vmem:[#allocation21 + $0x68] sm:$0xf]
    %v5947 = vld [vmem:[#allocation21 + $0x6c] sm:$0xff]
    %v5948 = vld [vmem:[#allocation21 + $0x74] sm:$0xff]
    %v5949 = vld [vmem:[#allocation21 + $0x7c] sm:$0xff]
    %v5950 = vld [vmem:[#allocation21 + $0x84] sm:$0xff]
    %v5951 = vld [vmem:[#allocation21 + $0x8c] sm:$0xf]
    %v5952 = vld [vmem:[#allocation21 + $0x90] sm:$0xff]
    %v5953 = vld [vmem:[#allocation21 + $0x98] sm:$0xff]
    %v5954 = vld [vmem:[#allocation21 + $0xa0] sm:$0xff]
    %v5955 = vld [vmem:[#allocation21 + $0xa8] sm:$0xff]
    %v5956 = vld [vmem:[#allocation21 + $0xb0] sm:$0xf]
    %v5957 = vld [vmem:[#allocation21 + $0xb4] sm:$0xff]
    %v5958 = vld [vmem:[#allocation21 + $0xbc] sm:$0xff]
    %v5959 = vld [vmem:[#allocation21 + $0xc4] sm:$0xff]
    %v5960 = vld [vmem:[#allocation21 + $0xcc] sm:$0xff]
    %v5961 = vld [vmem:[#allocation21 + $0xd4] sm:$0xf]
    %v5962 = vld [vmem:[#allocation21 + $0xd8] sm:$0xff]
    %v5963 = vld [vmem:[#allocation21 + $0xe0] sm:$0xff]
    %v5964 = vld [vmem:[#allocation21 + $0xe8] sm:$0xff]
    %v5965 = vld [vmem:[#allocation21 + $0xf0] sm:$0xff]
    %v5966 = vld [vmem:[#allocation21 + $0xf8] sm:$0xf]
    %v5967 = vld [vmem:[#allocation21 + $0xfc] sm:$0xff]
    %v5968 = vld [vmem:[#allocation21 + $0x104] sm:$0xff]
    %v5969 = vld [vmem:[#allocation21 + $0x10c] sm:$0xff]
    %v5970 = vld [vmem:[#allocation21 + $0x114] sm:$0xff]
    %v5971 = vld [vmem:[#allocation21 + $0x11c] sm:$0xf]
    %v5972 = vld [vmem:[#allocation21 + $0x120] sm:$0xff]
    %v5973 = vld [vmem:[#allocation21 + $0x128] sm:$0xff]
    %v5974 = vld [vmem:[#allocation21 + $0x130] sm:$0xff]
    %v5975 = vld [vmem:[#allocation21 + $0x138] sm:$0xff]
    %v5976 = vld [vmem:[#allocation21 + $0x140] sm:$0xf]
    %v5977 = vld [vmem:[#allocation21 + $0x144] sm:$0xff]
    %v5978 = vld [vmem:[#allocation21 + $0x14c] sm:$0xff]
    %v5979 = vld [vmem:[#allocation21 + $0x154] sm:$0xff]
    %v5980 = vld [vmem:[#allocation21 + $0x15c] sm:$0xff]
    %v5981 = vld [vmem:[#allocation21 + $0x164] sm:$0xf]
    %v5982 = vld [vmem:[#allocation21 + $0x168] sm:$0xff]
    %v5983 = vld [vmem:[#allocation21 + $0x170] sm:$0xff]
    %v5984 = vld [vmem:[#allocation21 + $0x178] sm:$0xff]
    %v5985 = vld [vmem:[#allocation21 + $0x180] sm:$0xff]
    %v5986 = vld [vmem:[#allocation21 + $0x188] sm:$0xf]
    %v5987 = vld [vmem:[#allocation21 + $0x18c] sm:$0xff]
    %v5988 = vld [vmem:[#allocation21 + $0x194] sm:$0xff]
    %v5989 = vld [vmem:[#allocation21 + $0x19c] sm:$0xff]
    %v5990 = vld [vmem:[#allocation21 + $0x1a4] sm:$0xff]
    %v5991 = vld [vmem:[#allocation21 + $0x1ac] sm:$0xf]
    %v5992 = vld [vmem:[#allocation21 + $0x1b0] sm:$0xff]
    %v5993 = vld [vmem:[#allocation21 + $0x1b8] sm:$0xff]
    %v5994 = vld [vmem:[#allocation21 + $0x1c0] sm:$0xff]
    %v5995 = vld [vmem:[#allocation21 + $0x1c8] sm:$0xff]
    %v5996 = vld [vmem:[#allocation21 + $0x1d0] sm:$0xf]
    %v5997 = vld [vmem:[#allocation21 + $0x1d4] sm:$0xff]
    %v5998 = vld [vmem:[#allocation21 + $0x1dc] sm:$0xff]
    %v5999 = vld [vmem:[#allocation21 + $0x1e4] sm:$0xff]
    %v6000 = vld [vmem:[#allocation21 + $0x1ec] sm:$0xff]
    %v6001 = vld [vmem:[#allocation21 + $0x1f4] sm:$0xf]
    %v6002 = vld [vmem:[#allocation21 + $0x1f8] sm:$0xff]
    %v6003 = vld [vmem:[#allocation21 + $0x200] sm:$0xff]
    %v6004 = vld [vmem:[#allocation21 + $0x208] sm:$0xff]
    %v6005 = vld [vmem:[#allocation21 + $0x210] sm:$0xff]
    %v6006 = vld [vmem:[#allocation21 + $0x218] sm:$0xf]
    %v6007 = vld [vmem:[#allocation21 + $0x21c] sm:$0xff]
    %v6008 = vld [vmem:[#allocation21 + $0x224] sm:$0xff]
    %v6009 = vld [vmem:[#allocation21 + $0x22c] sm:$0xff]
    %v6010 = vld [vmem:[#allocation21 + $0x234] sm:$0xff]
    %v6011 = vld [vmem:[#allocation21 + $0x23c] sm:$0xf]
    %v6012 = vld [vmem:[#allocation21 + $0x240] sm:$0xff]
    %v6013 = vld [vmem:[#allocation21 + $0x248] sm:$0xff]
    %v6014 = vld [vmem:[#allocation21 + $0x250] sm:$0xff]
    %v6015 = vld [vmem:[#allocation21 + $0x258] sm:$0xff]
    %v6016 = vld [vmem:[#allocation21 + $0x260] sm:$0xf]
    %v6017 = vld [vmem:[#allocation21 + $0x264] sm:$0xff]
    %v6018 = vld [vmem:[#allocation21 + $0x26c] sm:$0xff]
    %v6019 = vld [vmem:[#allocation21 + $0x274] sm:$0xff]
    %v6020 = vld [vmem:[#allocation21 + $0x27c] sm:$0xff]
    %v6021 = vld [vmem:[#allocation21 + $0x284] sm:$0xf]
    %v6022 = vld [vmem:[#allocation21 + $0x288] sm:$0xff]
    %v6023 = vld [vmem:[#allocation21 + $0x290] sm:$0xff]
    %v6024 = vld [vmem:[#allocation21 + $0x298] sm:$0xff]
    %v6025 = vld [vmem:[#allocation21 + $0x2a0] sm:$0xff]
    %v6026 = vld [vmem:[#allocation21 + $0x2a8] sm:$0xf]
    %v6027 = vld [vmem:[#allocation21 + $0x2ac] sm:$0xff]
    %v6028 = vld [vmem:[#allocation21 + $0x2b4] sm:$0xff]
    %v6029 = vld [vmem:[#allocation21 + $0x2bc] sm:$0xff]
    %v6030 = vld [vmem:[#allocation21 + $0x2c4] sm:$0xff]
    %v6031 = vld [vmem:[#allocation21 + $0x2cc] sm:$0xf]
    %v6032 = vld [vmem:[#allocation21 + $0x2d0] sm:$0xff]
    %v6033 = vld [vmem:[#allocation21 + $0x2d8] sm:$0xff]
    %v6034 = vld [vmem:[#allocation21 + $0x2e0] sm:$0xff]
    %v6035 = vld [vmem:[#allocation21 + $0x2e8] sm:$0xff]
    %v6036 = vld [vmem:[#allocation21 + $0x2f0] sm:$0xf]
    %v6037 = vld [vmem:[#allocation21 + $0x2f4] sm:$0xff]
    %v6038 = vld [vmem:[#allocation21 + $0x2fc] sm:$0xff]
    %v6039 = vld [vmem:[#allocation21 + $0x304] sm:$0xff]
    %v6040 = vld [vmem:[#allocation21 + $0x30c] sm:$0xff]
    %v6041 = vld [vmem:[#allocation21 + $0x314] sm:$0xf]
    %v6042 = vld [vmem:[#allocation21 + $0x318] sm:$0xff]
    %v6043 = vld [vmem:[#allocation21 + $0x320] sm:$0xff]
    %v6044 = vld [vmem:[#allocation21 + $0x328] sm:$0xff]
    %v6045 = vld [vmem:[#allocation21 + $0x330] sm:$0xff]
    %v6046 = vld [vmem:[#allocation21 + $0x338] sm:$0xf]
    %v6047 = vld [vmem:[#allocation21 + $0x33c] sm:$0xff]
    %v6048 = vld [vmem:[#allocation21 + $0x344] sm:$0xff]
    %v6049 = vld [vmem:[#allocation21 + $0x34c] sm:$0xff]
    %v6050 = vld [vmem:[#allocation21 + $0x354] sm:$0xff]
    %v6051 = vld [vmem:[#allocation21 + $0x35c] sm:$0xf]
    %v6052 = vld [vmem:[#allocation21 + $0x360] sm:$0xff]
    %v6053 = vld [vmem:[#allocation21 + $0x368] sm:$0xff]
    %v6054 = vld [vmem:[#allocation21 + $0x370] sm:$0xff]
    %v6055 = vld [vmem:[#allocation21 + $0x378] sm:$0xff]
    %v6056 = vld [vmem:[#allocation21 + $0x380] sm:$0xf]
    %v6057 = vld [vmem:[#allocation21 + $0x384] sm:$0xff]
    %v6058 = vld [vmem:[#allocation21 + $0x38c] sm:$0xff]
    %v6059 = vld [vmem:[#allocation21 + $0x394] sm:$0xff]
    %v6060 = vld [vmem:[#allocation21 + $0x39c] sm:$0xff]
    %v6061 = vld [vmem:[#allocation21 + $0x3a4] sm:$0xf]
    %v6062 = vld [vmem:[#allocation21 + $0x3a8] sm:$0xff]
    %v6063 = vld [vmem:[#allocation21 + $0x3b0] sm:$0xff]
    %v6064 = vld [vmem:[#allocation21 + $0x3b8] sm:$0xff]
    %v6065 = vld [vmem:[#allocation21 + $0x3c0] sm:$0xff]
    %v6066 = vld [vmem:[#allocation21 + $0x3c8] sm:$0xf]
    %v6067 = vld [vmem:[#allocation21 + $0x3cc] sm:$0xff]
    %v6068 = vld [vmem:[#allocation21 + $0x3d4] sm:$0xff]
    %v6069 = vld [vmem:[#allocation21 + $0x3dc] sm:$0xff]
    %v6070 = vld [vmem:[#allocation21 + $0x3e4] sm:$0xff]
    %v6071 = vld [vmem:[#allocation21 + $0x3ec] sm:$0xf]
    %v6072 = vld [vmem:[#allocation21 + $0x3f0] sm:$0xff]
    %v6073 = vld [vmem:[#allocation21 + $0x3f8] sm:$0xff]
    %v6074 = vld [vmem:[#allocation21 + $0x400] sm:$0xff]
    %v6075 = vld [vmem:[#allocation21 + $0x408] sm:$0xff]
    %v6076 = vld [vmem:[#allocation21 + $0x410] sm:$0xf]
    %v6077 = vld [vmem:[#allocation21 + $0x414] sm:$0xff]
    %v6078 = vld [vmem:[#allocation21 + $0x41c] sm:$0xff]
    %v6079 = vld [vmem:[#allocation21 + $0x424] sm:$0xff]
    %v6080 = vld [vmem:[#allocation21 + $0x42c] sm:$0xff]
    %v6081 = vld [vmem:[#allocation21 + $0x434] sm:$0xf]
    %v6082 = vld [vmem:[#allocation21 + $0x438] sm:$0xff]
    %v6083 = vld [vmem:[#allocation21 + $0x440] sm:$0xff]
    %v6084 = vld [vmem:[#allocation21 + $0x448] sm:$0xff]
    %v6085 = vld [vmem:[#allocation21 + $0x450] sm:$0xff]
    %v6086 = vld [vmem:[#allocation21 + $0x458] sm:$0xf]
    %v6087 = vld [vmem:[#allocation21 + $0x45c] sm:$0xff]
    %v6088 = vld [vmem:[#allocation21 + $0x464] sm:$0xff]
    %v6089 = vld [vmem:[#allocation21 + $0x46c] sm:$0xff]
    %v6090 = vld [vmem:[#allocation21 + $0x474] sm:$0xff]
    %v6091 = vld [vmem:[#allocation21 + $0x47c] sm:$0xf]
    %v6092 = vld [vmem:[#allocation22] sm:$0xff]
    %v6093 = vld [vmem:[#allocation22 + $0x8] sm:$0x1]
    %v6096 = vlaneseq
    %v6097 = vshrl.u32 %v6096, 7
    %v6098 = vsub.s32 0, %v6097
    %v6099 = vrot.slane %v6092, %v6098
    %v6100 = vlaneseq
    %v6101 = vshrl.u32 %v6100, 7
    %v6102 = vsub.s32 1, %v6101
    %v6103 = vrot.slane %v6092, %v6102
    %v6104 = vlaneseq
    %v6105 = vshrl.u32 %v6104, 7
    %v6106 = vsub.s32 2, %v6105
    %v6107 = vrot.slane %v6092, %v6106
    %v6108 = vlaneseq
    %v6109 = vshrl.u32 %v6108, 7
    %v6110 = vsub.s32 3, %v6109
    %v6111 = vrot.slane %v6092, %v6110
    %v6112 = vlaneseq
    %v6113 = vshrl.u32 %v6112, 7
    %v6114 = vsub.s32 4, %v6113
    %v6115 = vrot.slane %v6092, %v6114
    %v6116 = vlaneseq
    %v6117 = vshrl.u32 %v6116, 7
    %v6118 = vsub.s32 5, %v6117
    %v6119 = vrot.slane %v6092, %v6118
    %v6120 = vlaneseq
    %v6121 = vshrl.u32 %v6120, 7
    %v6122 = vsub.s32 6, %v6121
    %v6123 = vrot.slane %v6092, %v6122
    %v6124 = vlaneseq
    %v6125 = vshrl.u32 %v6124, 7
    %v6126 = vsub.s32 7, %v6125
    %v6127 = vrot.slane %v6092, %v6126
    %v6128 = vlaneseq
    %v6129 = vshrl.u32 %v6128, 7
    %v6130 = vsub.s32 0, %v6129
    %v6131 = vrot.slane %v6093, %v6130
    %v6301 = vunpack.c.l.b16 %v5932
    %v6302 = vunpack.c.h.b16 %v5932
    %v6303 = vunpack.c.l.b16 %v5933
    %v6304 = vunpack.c.h.b16 %v5933
    %v6305 = vunpack.c.l.b16 %v5934
    %v6306 = vunpack.c.h.b16 %v5934
    %v6307 = vunpack.c.l.b16 %v5935
    %v6308 = vunpack.c.h.b16 %v5935
    %v6309 = vunpack.c.l.b16 %v5936
    %v6310 = vunpack.c.l.b16 %v5937
    %v6311 = vunpack.c.h.b16 %v5937
    %v6312 = vunpack.c.l.b16 %v5938
    %v6313 = vunpack.c.h.b16 %v5938
    %v6314 = vunpack.c.l.b16 %v5939
    %v6315 = vunpack.c.h.b16 %v5939
    %v6316 = vunpack.c.l.b16 %v5940
    %v6317 = vunpack.c.h.b16 %v5940
    %v6318 = vunpack.c.l.b16 %v5941
    %v6319 = vunpack.c.l.b16 %v5942
    %v6320 = vunpack.c.h.b16 %v5942
    %v6321 = vunpack.c.l.b16 %v5943
    %v6322 = vunpack.c.h.b16 %v5943
    %v6323 = vunpack.c.l.b16 %v5944
    %v6324 = vunpack.c.h.b16 %v5944
    %v6325 = vunpack.c.l.b16 %v5945
    %v6326 = vunpack.c.h.b16 %v5945
    %v6327 = vunpack.c.l.b16 %v5946
    %v6328 = vunpack.c.l.b16 %v5947
    %v6329 = vunpack.c.h.b16 %v5947
    %v6330 = vunpack.c.l.b16 %v5948
    %v6331 = vunpack.c.h.b16 %v5948
    %v6332 = vunpack.c.l.b16 %v5949
    %v6333 = vunpack.c.h.b16 %v5949
    %v6334 = vunpack.c.l.b16 %v5950
    %v6335 = vunpack.c.h.b16 %v5950
    %v6336 = vunpack.c.l.b16 %v5951
    %v6337 = vunpack.c.l.b16 %v5952
    %v6338 = vunpack.c.h.b16 %v5952
    %v6339 = vunpack.c.l.b16 %v5953
    %v6340 = vunpack.c.h.b16 %v5953
    %v6341 = vunpack.c.l.b16 %v5954
    %v6342 = vunpack.c.h.b16 %v5954
    %v6343 = vunpack.c.l.b16 %v5955
    %v6344 = vunpack.c.h.b16 %v5955
    %v6345 = vunpack.c.l.b16 %v5956
    %v6346 = vunpack.c.l.b16 %v5957
    %v6347 = vunpack.c.h.b16 %v5957
    %v6348 = vunpack.c.l.b16 %v5958
    %v6349 = vunpack.c.h.b16 %v5958
    %v6350 = vunpack.c.l.b16 %v5959
    %v6351 = vunpack.c.h.b16 %v5959
    %v6352 = vunpack.c.l.b16 %v5960
    %v6353 = vunpack.c.h.b16 %v5960
    %v6354 = vunpack.c.l.b16 %v5961
    %v6355 = vunpack.c.l.b16 %v5962
    %v6356 = vunpack.c.h.b16 %v5962
    %v6357 = vunpack.c.l.b16 %v5963
    %v6358 = vunpack.c.h.b16 %v5963
    %v6359 = vunpack.c.l.b16 %v5964
    %v6360 = vunpack.c.h.b16 %v5964
    %v6361 = vunpack.c.l.b16 %v5965
    %v6362 = vunpack.c.h.b16 %v5965
    %v6363 = vunpack.c.l.b16 %v5966
    %v6364 = vunpack.c.l.b16 %v5967
    %v6365 = vunpack.c.h.b16 %v5967
    %v6366 = vunpack.c.l.b16 %v5968
    %v6367 = vunpack.c.h.b16 %v5968
    %v6368 = vunpack.c.l.b16 %v5969
    %v6369 = vunpack.c.h.b16 %v5969
    %v6370 = vunpack.c.l.b16 %v5970
    %v6371 = vunpack.c.h.b16 %v5970
    %v6372 = vunpack.c.l.b16 %v5971
    %v6373 = vunpack.c.l.b16 %v5972
    %v6374 = vunpack.c.h.b16 %v5972
    %v6375 = vunpack.c.l.b16 %v5973
    %v6376 = vunpack.c.h.b16 %v5973
    %v6377 = vunpack.c.l.b16 %v5974
    %v6378 = vunpack.c.h.b16 %v5974
    %v6379 = vunpack.c.l.b16 %v5975
    %v6380 = vunpack.c.h.b16 %v5975
    %v6381 = vunpack.c.l.b16 %v5976
    %v6382 = vunpack.c.l.b16 %v5977
    %v6383 = vunpack.c.h.b16 %v5977
    %v6384 = vunpack.c.l.b16 %v5978
    %v6385 = vunpack.c.h.b16 %v5978
    %v6386 = vunpack.c.l.b16 %v5979
    %v6387 = vunpack.c.h.b16 %v5979
    %v6388 = vunpack.c.l.b16 %v5980
    %v6389 = vunpack.c.h.b16 %v5980
    %v6390 = vunpack.c.l.b16 %v5981
    %v6391 = vunpack.c.l.b16 %v5982
    %v6392 = vunpack.c.h.b16 %v5982
    %v6393 = vunpack.c.l.b16 %v5983
    %v6394 = vunpack.c.h.b16 %v5983
    %v6395 = vunpack.c.l.b16 %v5984
    %v6396 = vunpack.c.h.b16 %v5984
    %v6397 = vunpack.c.l.b16 %v5985
    %v6398 = vunpack.c.h.b16 %v5985
    %v6399 = vunpack.c.l.b16 %v5986
    %v6400 = vunpack.c.l.b16 %v5987
    %v6401 = vunpack.c.h.b16 %v5987
    %v6402 = vunpack.c.l.b16 %v5988
    %v6403 = vunpack.c.h.b16 %v5988
    %v6404 = vunpack.c.l.b16 %v5989
    %v6405 = vunpack.c.h.b16 %v5989
    %v6406 = vunpack.c.l.b16 %v5990
    %v6407 = vunpack.c.h.b16 %v5990
    %v6408 = vunpack.c.l.b16 %v5991
    %v6409 = vunpack.c.l.b16 %v5992
    %v6410 = vunpack.c.h.b16 %v5992
    %v6411 = vunpack.c.l.b16 %v5993
    %v6412 = vunpack.c.h.b16 %v5993
    %v6413 = vunpack.c.l.b16 %v5994
    %v6414 = vunpack.c.h.b16 %v5994
    %v6415 = vunpack.c.l.b16 %v5995
    %v6416 = vunpack.c.h.b16 %v5995
    %v6417 = vunpack.c.l.b16 %v5996
    %v6418 = vunpack.c.l.b16 %v5997
    %v6419 = vunpack.c.h.b16 %v5997
    %v6420 = vunpack.c.l.b16 %v5998
    %v6421 = vunpack.c.h.b16 %v5998
    %v6422 = vunpack.c.l.b16 %v5999
    %v6423 = vunpack.c.h.b16 %v5999
    %v6424 = vunpack.c.l.b16 %v6000
    %v6425 = vunpack.c.h.b16 %v6000
    %v6426 = vunpack.c.l.b16 %v6001
    %v6427 = vunpack.c.l.b16 %v6002
    %v6428 = vunpack.c.h.b16 %v6002
    %v6429 = vunpack.c.l.b16 %v6003
    %v6430 = vunpack.c.h.b16 %v6003
    %v6431 = vunpack.c.l.b16 %v6004
    %v6432 = vunpack.c.h.b16 %v6004
    %v6433 = vunpack.c.l.b16 %v6005
    %v6434 = vunpack.c.h.b16 %v6005
    %v6435 = vunpack.c.l.b16 %v6006
    %v6436 = vunpack.c.l.b16 %v6007
    %v6437 = vunpack.c.h.b16 %v6007
    %v6438 = vunpack.c.l.b16 %v6008
    %v6439 = vunpack.c.h.b16 %v6008
    %v6440 = vunpack.c.l.b16 %v6009
    %v6441 = vunpack.c.h.b16 %v6009
    %v6442 = vunpack.c.l.b16 %v6010
    %v6443 = vunpack.c.h.b16 %v6010
    %v6444 = vunpack.c.l.b16 %v6011
    %v6445 = vunpack.c.l.b16 %v6012
    %v6446 = vunpack.c.h.b16 %v6012
    %v6447 = vunpack.c.l.b16 %v6013
    %v6448 = vunpack.c.h.b16 %v6013
    %v6449 = vunpack.c.l.b16 %v6014
    %v6450 = vunpack.c.h.b16 %v6014
    %v6451 = vunpack.c.l.b16 %v6015
    %v6452 = vunpack.c.h.b16 %v6015
    %v6453 = vunpack.c.l.b16 %v6016
    %v6454 = vunpack.c.l.b16 %v6017
    %v6455 = vunpack.c.h.b16 %v6017
    %v6456 = vunpack.c.l.b16 %v6018
    %v6457 = vunpack.c.h.b16 %v6018
    %v6458 = vunpack.c.l.b16 %v6019
    %v6459 = vunpack.c.h.b16 %v6019
    %v6460 = vunpack.c.l.b16 %v6020
    %v6461 = vunpack.c.h.b16 %v6020
    %v6462 = vunpack.c.l.b16 %v6021
    %v6463 = vunpack.c.l.b16 %v6022
    %v6464 = vunpack.c.h.b16 %v6022
    %v6465 = vunpack.c.l.b16 %v6023
    %v6466 = vunpack.c.h.b16 %v6023
    %v6467 = vunpack.c.l.b16 %v6024
    %v6468 = vunpack.c.h.b16 %v6024
    %v6469 = vunpack.c.l.b16 %v6025
    %v6470 = vunpack.c.h.b16 %v6025
    %v6471 = vunpack.c.l.b16 %v6026
    %v6472 = vunpack.c.l.b16 %v6027
    %v6473 = vunpack.c.h.b16 %v6027
    %v6474 = vunpack.c.l.b16 %v6028
    %v6475 = vunpack.c.h.b16 %v6028
    %v6476 = vunpack.c.l.b16 %v6029
    %v6477 = vunpack.c.h.b16 %v6029
    %v6478 = vunpack.c.l.b16 %v6030
    %v6479 = vunpack.c.h.b16 %v6030
    %v6480 = vunpack.c.l.b16 %v6031
    %v6481 = vunpack.c.l.b16 %v6032
    %v6482 = vunpack.c.h.b16 %v6032
    %v6483 = vunpack.c.l.b16 %v6033
    %v6484 = vunpack.c.h.b16 %v6033
    %v6485 = vunpack.c.l.b16 %v6034
    %v6486 = vunpack.c.h.b16 %v6034
    %v6487 = vunpack.c.l.b16 %v6035
    %v6488 = vunpack.c.h.b16 %v6035
    %v6489 = vunpack.c.l.b16 %v6036
    %v6490 = vunpack.c.l.b16 %v6037
    %v6491 = vunpack.c.h.b16 %v6037
    %v6492 = vunpack.c.l.b16 %v6038
    %v6493 = vunpack.c.h.b16 %v6038
    %v6494 = vunpack.c.l.b16 %v6039
    %v6495 = vunpack.c.h.b16 %v6039
    %v6496 = vunpack.c.l.b16 %v6040
    %v6497 = vunpack.c.h.b16 %v6040
    %v6498 = vunpack.c.l.b16 %v6041
    %v6499 = vunpack.c.l.b16 %v6042
    %v6500 = vunpack.c.h.b16 %v6042
    %v6501 = vunpack.c.l.b16 %v6043
    %v6502 = vunpack.c.h.b16 %v6043
    %v6503 = vunpack.c.l.b16 %v6044
    %v6504 = vunpack.c.h.b16 %v6044
    %v6505 = vunpack.c.l.b16 %v6045
    %v6506 = vunpack.c.h.b16 %v6045
    %v6507 = vunpack.c.l.b16 %v6046
    %v6508 = vunpack.c.l.b16 %v6047
    %v6509 = vunpack.c.h.b16 %v6047
    %v6510 = vunpack.c.l.b16 %v6048
    %v6511 = vunpack.c.h.b16 %v6048
    %v6512 = vunpack.c.l.b16 %v6049
    %v6513 = vunpack.c.h.b16 %v6049
    %v6514 = vunpack.c.l.b16 %v6050
    %v6515 = vunpack.c.h.b16 %v6050
    %v6516 = vunpack.c.l.b16 %v6051
    %v6517 = vunpack.c.l.b16 %v6052
    %v6518 = vunpack.c.h.b16 %v6052
    %v6519 = vunpack.c.l.b16 %v6053
    %v6520 = vunpack.c.h.b16 %v6053
    %v6521 = vunpack.c.l.b16 %v6054
    %v6522 = vunpack.c.h.b16 %v6054
    %v6523 = vunpack.c.l.b16 %v6055
    %v6524 = vunpack.c.h.b16 %v6055
    %v6525 = vunpack.c.l.b16 %v6056
    %v6526 = vunpack.c.l.b16 %v6057
    %v6527 = vunpack.c.h.b16 %v6057
    %v6528 = vunpack.c.l.b16 %v6058
    %v6529 = vunpack.c.h.b16 %v6058
    %v6530 = vunpack.c.l.b16 %v6059
    %v6531 = vunpack.c.h.b16 %v6059
    %v6532 = vunpack.c.l.b16 %v6060
    %v6533 = vunpack.c.h.b16 %v6060
    %v6534 = vunpack.c.l.b16 %v6061
    %v6535 = vunpack.c.l.b16 %v6062
    %v6536 = vunpack.c.h.b16 %v6062
    %v6537 = vunpack.c.l.b16 %v6063
    %v6538 = vunpack.c.h.b16 %v6063
    %v6539 = vunpack.c.l.b16 %v6064
    %v6540 = vunpack.c.h.b16 %v6064
    %v6541 = vunpack.c.l.b16 %v6065
    %v6542 = vunpack.c.h.b16 %v6065
    %v6543 = vunpack.c.l.b16 %v6066
    %v6544 = vunpack.c.l.b16 %v6067
    %v6545 = vunpack.c.h.b16 %v6067
    %v6546 = vunpack.c.l.b16 %v6068
    %v6547 = vunpack.c.h.b16 %v6068
    %v6548 = vunpack.c.l.b16 %v6069
    %v6549 = vunpack.c.h.b16 %v6069
    %v6550 = vunpack.c.l.b16 %v6070
    %v6551 = vunpack.c.h.b16 %v6070
    %v6552 = vunpack.c.l.b16 %v6071
    %v6553 = vunpack.c.l.b16 %v6072
    %v6554 = vunpack.c.h.b16 %v6072
    %v6555 = vunpack.c.l.b16 %v6073
    %v6556 = vunpack.c.h.b16 %v6073
    %v6557 = vunpack.c.l.b16 %v6074
    %v6558 = vunpack.c.h.b16 %v6074
    %v6559 = vunpack.c.l.b16 %v6075
    %v6560 = vunpack.c.h.b16 %v6075
    %v6561 = vunpack.c.l.b16 %v6076
    %v6562 = vunpack.c.l.b16 %v6077
    %v6563 = vunpack.c.h.b16 %v6077
    %v6564 = vunpack.c.l.b16 %v6078
    %v6565 = vunpack.c.h.b16 %v6078
    %v6566 = vunpack.c.l.b16 %v6079
    %v6567 = vunpack.c.h.b16 %v6079
    %v6568 = vunpack.c.l.b16 %v6080
    %v6569 = vunpack.c.h.b16 %v6080
    %v6570 = vunpack.c.l.b16 %v6081
    %v6571 = vunpack.c.l.b16 %v6082
    %v6572 = vunpack.c.h.b16 %v6082
    %v6573 = vunpack.c.l.b16 %v6083
    %v6574 = vunpack.c.h.b16 %v6083
    %v6575 = vunpack.c.l.b16 %v6084
    %v6576 = vunpack.c.h.b16 %v6084
    %v6577 = vunpack.c.l.b16 %v6085
    %v6578 = vunpack.c.h.b16 %v6085
    %v6579 = vunpack.c.l.b16 %v6086
    %v6580 = vunpack.c.l.b16 %v6087
    %v6581 = vunpack.c.h.b16 %v6087
    %v6582 = vunpack.c.l.b16 %v6088
    %v6583 = vunpack.c.h.b16 %v6088
    %v6584 = vunpack.c.l.b16 %v6089
    %v6585 = vunpack.c.h.b16 %v6089
    %v6586 = vunpack.c.l.b16 %v6090
    %v6587 = vunpack.c.h.b16 %v6090
    %v6588 = vunpack.c.l.b16 %v6091
    %v6589 = vpack.c.b16 %v6310, %v6301
    %v6590 = vpack.c.b16 %v6311, %v6302
    %v6591 = vpack.c.b16 %v6312, %v6303
    %v6592 = vpack.c.b16 %v6313, %v6304
    %v6593 = vpack.c.b16 %v6314, %v6305
    %v6594 = vpack.c.b16 %v6315, %v6306
    %v6595 = vpack.c.b16 %v6316, %v6307
    %v6596 = vpack.c.b16 %v6317, %v6308
    %v6597 = vpack.c.b16 %v6318, %v6309
    %v6598 = vpack.c.b16 %v6328, %v6319
    %v6599 = vpack.c.b16 %v6329, %v6320
    %v6600 = vpack.c.b16 %v6330, %v6321
    %v6601 = vpack.c.b16 %v6331, %v6322
    %v6602 = vpack.c.b16 %v6332, %v6323
    %v6603 = vpack.c.b16 %v6333, %v6324
    %v6604 = vpack.c.b16 %v6334, %v6325
    %v6605 = vpack.c.b16 %v6335, %v6326
    %v6606 = vpack.c.b16 %v6336, %v6327
    %v6607 = vpack.c.b16 %v6346, %v6337
    %v6608 = vpack.c.b16 %v6347, %v6338
    %v6609 = vpack.c.b16 %v6348, %v6339
    %v6610 = vpack.c.b16 %v6349, %v6340
    %v6611 = vpack.c.b16 %v6350, %v6341
    %v6612 = vpack.c.b16 %v6351, %v6342
    %v6613 = vpack.c.b16 %v6352, %v6343
    %v6614 = vpack.c.b16 %v6353, %v6344
    %v6615 = vpack.c.b16 %v6354, %v6345
    %v6616 = vpack.c.b16 %v6364, %v6355
    %v6617 = vpack.c.b16 %v6365, %v6356
    %v6618 = vpack.c.b16 %v6366, %v6357
    %v6619 = vpack.c.b16 %v6367, %v6358
    %v6620 = vpack.c.b16 %v6368, %v6359
    %v6621 = vpack.c.b16 %v6369, %v6360
    %v6622 = vpack.c.b16 %v6370, %v6361
    %v6623 = vpack.c.b16 %v6371, %v6362
    %v6624 = vpack.c.b16 %v6372, %v6363
    %v6625 = vpack.c.b16 %v6382, %v6373
    %v6626 = vpack.c.b16 %v6383, %v6374
    %v6627 = vpack.c.b16 %v6384, %v6375
    %v6628 = vpack.c.b16 %v6385, %v6376
    %v6629 = vpack.c.b16 %v6386, %v6377
    %v6630 = vpack.c.b16 %v6387, %v6378
    %v6631 = vpack.c.b16 %v6388, %v6379
    %v6632 = vpack.c.b16 %v6389, %v6380
    %v6633 = vpack.c.b16 %v6390, %v6381
    %v6634 = vpack.c.b16 %v6400, %v6391
    %v6635 = vpack.c.b16 %v6401, %v6392
    %v6636 = vpack.c.b16 %v6402, %v6393
    %v6637 = vpack.c.b16 %v6403, %v6394
    %v6638 = vpack.c.b16 %v6404, %v6395
    %v6639 = vpack.c.b16 %v6405, %v6396
    %v6640 = vpack.c.b16 %v6406, %v6397
    %v6641 = vpack.c.b16 %v6407, %v6398
    %v6642 = vpack.c.b16 %v6408, %v6399
    %v6643 = vpack.c.b16 %v6418, %v6409
    %v6644 = vpack.c.b16 %v6419, %v6410
    %v6645 = vpack.c.b16 %v6420, %v6411
    %v6646 = vpack.c.b16 %v6421, %v6412
    %v6647 = vpack.c.b16 %v6422, %v6413
    %v6648 = vpack.c.b16 %v6423, %v6414
    %v6649 = vpack.c.b16 %v6424, %v6415
    %v6650 = vpack.c.b16 %v6425, %v6416
    %v6651 = vpack.c.b16 %v6426, %v6417
    %v6652 = vpack.c.b16 %v6436, %v6427
    %v6653 = vpack.c.b16 %v6437, %v6428
    %v6654 = vpack.c.b16 %v6438, %v6429
    %v6655 = vpack.c.b16 %v6439, %v6430
    %v6656 = vpack.c.b16 %v6440, %v6431
    %v6657 = vpack.c.b16 %v6441, %v6432
    %v6658 = vpack.c.b16 %v6442, %v6433
    %v6659 = vpack.c.b16 %v6443, %v6434
    %v6660 = vpack.c.b16 %v6444, %v6435
    %v6661 = vpack.c.b16 %v6454, %v6445
    %v6662 = vpack.c.b16 %v6455, %v6446
    %v6663 = vpack.c.b16 %v6456, %v6447
    %v6664 = vpack.c.b16 %v6457, %v6448
    %v6665 = vpack.c.b16 %v6458, %v6449
    %v6666 = vpack.c.b16 %v6459, %v6450
    %v6667 = vpack.c.b16 %v6460, %v6451
    %v6668 = vpack.c.b16 %v6461, %v6452
    %v6669 = vpack.c.b16 %v6462, %v6453
    %v6670 = vpack.c.b16 %v6472, %v6463
    %v6671 = vpack.c.b16 %v6473, %v6464
    %v6672 = vpack.c.b16 %v6474, %v6465
    %v6673 = vpack.c.b16 %v6475, %v6466
    %v6674 = vpack.c.b16 %v6476, %v6467
    %v6675 = vpack.c.b16 %v6477, %v6468
    %v6676 = vpack.c.b16 %v6478, %v6469
    %v6677 = vpack.c.b16 %v6479, %v6470
    %v6678 = vpack.c.b16 %v6480, %v6471
    %v6679 = vpack.c.b16 %v6490, %v6481
    %v6680 = vpack.c.b16 %v6491, %v6482
    %v6681 = vpack.c.b16 %v6492, %v6483
    %v6682 = vpack.c.b16 %v6493, %v6484
    %v6683 = vpack.c.b16 %v6494, %v6485
    %v6684 = vpack.c.b16 %v6495, %v6486
    %v6685 = vpack.c.b16 %v6496, %v6487
    %v6686 = vpack.c.b16 %v6497, %v6488
    %v6687 = vpack.c.b16 %v6498, %v6489
    %v6688 = vpack.c.b16 %v6508, %v6499
    %v6689 = vpack.c.b16 %v6509, %v6500
    %v6690 = vpack.c.b16 %v6510, %v6501
    %v6691 = vpack.c.b16 %v6511, %v6502
    %v6692 = vpack.c.b16 %v6512, %v6503
    %v6693 = vpack.c.b16 %v6513, %v6504
    %v6694 = vpack.c.b16 %v6514, %v6505
    %v6695 = vpack.c.b16 %v6515, %v6506
    %v6696 = vpack.c.b16 %v6516, %v6507
    %v6697 = vpack.c.b16 %v6526, %v6517
    %v6698 = vpack.c.b16 %v6527, %v6518
    %v6699 = vpack.c.b16 %v6528, %v6519
    %v6700 = vpack.c.b16 %v6529, %v6520
    %v6701 = vpack.c.b16 %v6530, %v6521
    %v6702 = vpack.c.b16 %v6531, %v6522
    %v6703 = vpack.c.b16 %v6532, %v6523
    %v6704 = vpack.c.b16 %v6533, %v6524
    %v6705 = vpack.c.b16 %v6534, %v6525
    %v6706 = vpack.c.b16 %v6544, %v6535
    %v6707 = vpack.c.b16 %v6545, %v6536
    %v6708 = vpack.c.b16 %v6546, %v6537
    %v6709 = vpack.c.b16 %v6547, %v6538
    %v6710 = vpack.c.b16 %v6548, %v6539
    %v6711 = vpack.c.b16 %v6549, %v6540
    %v6712 = vpack.c.b16 %v6550, %v6541
    %v6713 = vpack.c.b16 %v6551, %v6542
    %v6714 = vpack.c.b16 %v6552, %v6543
    %v6715 = vpack.c.b16 %v6562, %v6553
    %v6716 = vpack.c.b16 %v6563, %v6554
    %v6717 = vpack.c.b16 %v6564, %v6555
    %v6718 = vpack.c.b16 %v6565, %v6556
    %v6719 = vpack.c.b16 %v6566, %v6557
    %v6720 = vpack.c.b16 %v6567, %v6558
    %v6721 = vpack.c.b16 %v6568, %v6559
    %v6722 = vpack.c.b16 %v6569, %v6560
    %v6723 = vpack.c.b16 %v6570, %v6561
    %v6724 = vpack.c.b16 %v6580, %v6571
    %v6725 = vpack.c.b16 %v6581, %v6572
    %v6726 = vpack.c.b16 %v6582, %v6573
    %v6727 = vpack.c.b16 %v6583, %v6574
    %v6728 = vpack.c.b16 %v6584, %v6575
    %v6729 = vpack.c.b16 %v6585, %v6576
    %v6730 = vpack.c.b16 %v6586, %v6577
    %v6731 = vpack.c.b16 %v6587, %v6578
    %v6732 = vpack.c.b16 %v6588, %v6579
    %6877 = vmatprep.subr.bf16.mxu0 %v6590
    %6878 = vmatpush1.bf16.msra.mxu0 %v6589
    %6879 = vmatprep.subr.bf16.mxu0 %v6599
    %6880 = vmatpush1.bf16.msra.mxu0 %v6598
    %6881 = vmatprep.subr.bf16.mxu0 %v6608
    %6882 = vmatpush1.bf16.msra.mxu0 %v6607
    %6883 = vmatprep.subr.bf16.mxu0 %v6617
    %6884 = vmatpush1.bf16.msra.mxu0 %v6616
    %6885 = vmatprep.subr.bf16.mxu0 %v6626
    %6886 = vmatpush1.bf16.msra.mxu0 %v6625
    %6887 = vmatprep.subr.bf16.mxu0 %v6635
    %6888 = vmatpush1.bf16.msra.mxu0 %v6634
    %6889 = vmatprep.subr.bf16.mxu0 %v6644
    %6890 = vmatpush1.bf16.msra.mxu0 %v6643
    %6891 = vmatprep.subr.bf16.mxu0 %v6653
    %6892 = vmatpush1.bf16.msra.mxu0 %v6652
    %6893 = vmatprep.subr.bf16.mxu0 %v6662
    %6894 = vmatpush1.bf16.msra.mxu0 %v6661
    %6895 = vmatprep.subr.bf16.mxu0 %v6671
    %6896 = vmatpush1.bf16.msra.mxu0 %v6670
    %6897 = vmatprep.subr.bf16.mxu0 %v6680
    %6898 = vmatpush1.bf16.msra.mxu0 %v6679
    %6899 = vmatprep.subr.bf16.mxu0 %v6689
    %6900 = vmatpush1.bf16.msra.mxu0 %v6688
    %6901 = vmatprep.subr.bf16.mxu0 %v6698
    %6902 = vmatpush1.bf16.msra.mxu0 %v6697
    %6903 = vmatprep.subr.bf16.mxu0 %v6707
    %6904 = vmatpush1.bf16.msra.mxu0 %v6706
    %6905 = vmatprep.subr.bf16.mxu0 %v6716
    %6906 = vmatpush1.bf16.msra.mxu0 %v6715
    %6907 = vmatprep.subr.bf16.mxu0 %v6725
    %6908 = vmatpush1.bf16.msra.mxu0 %v6724
    %6909 = vmatprep.mubr.bf16.mxu0 %v5931
    %6910 = vmatmul.mubr.bf16.gmra.mrb[0].mxu0 %v5930
    %v6911 = vpop.f32.mrb[0].mxu0
    %v6912 = vadd.f32 %v6099, %v6911
    %v6913 = vpop.f32.mrb[0].mxu0
    %v6914 = vadd.f32 %v6103, %v6913
    %v6915 = vpop.f32.mrb[0].mxu0
    %v6916 = vpop.f32.mrb[0].mxu0
    %6917 = vdwg.mxu0
    %6918 = vmatprep.subr.bf16.mxu0 %v6592
    %6919 = vmatpush1.bf16.msra.mxu0 %v6591
    %6920 = vmatprep.subr.bf16.mxu0 %v6601
    %6921 = vmatpush1.bf16.msra.mxu0 %v6600
    %6922 = vmatprep.subr.bf16.mxu0 %v6610
    %6923 = vmatpush1.bf16.msra.mxu0 %v6609
    %6924 = vmatprep.subr.bf16.mxu0 %v6619
    %6925 = vmatpush1.bf16.msra.mxu0 %v6618
    %6926 = vmatprep.subr.bf16.mxu0 %v6628
    %6927 = vmatpush1.bf16.msra.mxu0 %v6627
    %6928 = vmatprep.subr.bf16.mxu0 %v6637
    %6929 = vmatpush1.bf16.msra.mxu0 %v6636
    %6930 = vmatprep.subr.bf16.mxu0 %v6646
    %6931 = vmatpush1.bf16.msra.mxu0 %v6645
    %6932 = vmatprep.subr.bf16.mxu0 %v6655
    %6933 = vmatpush1.bf16.msra.mxu0 %v6654
    %6934 = vmatprep.subr.bf16.mxu0 %v6664
    %6935 = vmatpush1.bf16.msra.mxu0 %v6663
    %6936 = vmatprep.subr.bf16.mxu0 %v6673
    %6937 = vmatpush1.bf16.msra.mxu0 %v6672
    %6938 = vmatprep.subr.bf16.mxu0 %v6682
    %6939 = vmatpush1.bf16.msra.mxu0 %v6681
    %6940 = vmatprep.subr.bf16.mxu0 %v6691
    %6941 = vmatpush1.bf16.msra.mxu0 %v6690
    %6942 = vmatprep.subr.bf16.mxu0 %v6700
    %6943 = vmatpush1.bf16.msra.mxu0 %v6699
    %6944 = vmatprep.subr.bf16.mxu0 %v6709
    %6945 = vmatpush1.bf16.msra.mxu0 %v6708
    %6946 = vmatprep.subr.bf16.mxu0 %v6718
    %6947 = vmatpush1.bf16.msra.mxu0 %v6717
    %6948 = vmatprep.subr.bf16.mxu0 %v6727
    %6949 = vmatpush1.bf16.msra.mxu0 %v6726
    %6950 = vmatprep.mubr.bf16.mxu0 %v5931
    %6951 = vmatmul.mubr.bf16.gmra.mrb[0].mxu0 %v5930
    %v6952 = vpop.f32.mrb[0].mxu0
    %v6953 = vadd.f32 %v6107, %v6952
    %v6954 = vpop.f32.mrb[0].mxu0
    %v6955 = vadd.f32 %v6111, %v6954
    %v6956 = vpop.f32.mrb[0].mxu0
    %v6957 = vpop.f32.mrb[0].mxu0
    %6958 = vdwg.mxu0
    %6959 = vmatprep.subr.bf16.mxu0 %v6594
    %6960 = vmatpush1.bf16.msra.mxu0 %v6593
    %6961 = vmatprep.subr.bf16.mxu0 %v6603
    %6962 = vmatpush1.bf16.msra.mxu0 %v6602
    %6963 = vmatprep.subr.bf16.mxu0 %v6612
    %6964 = vmatpush1.bf16.msra.mxu0 %v6611
    %6965 = vmatprep.subr.bf16.mxu0 %v6621
    %6966 = vmatpush1.bf16.msra.mxu0 %v6620
    %6967 = vmatprep.subr.bf16.mxu0 %v6630
    %6968 = vmatpush1.bf16.msra.mxu0 %v6629
    %6969 = vmatprep.subr.bf16.mxu0 %v6639
    %6970 = vmatpush1.bf16.msra.mxu0 %v6638
    %6971 = vmatprep.subr.bf16.mxu0 %v6648
    %6972 = vmatpush1.bf16.msra.mxu0 %v6647
    %6973 = vmatprep.subr.bf16.mxu0 %v6657
    %6974 = vmatpush1.bf16.msra.mxu0 %v6656
    %6975 = vmatprep.subr.bf16.mxu0 %v6666
    %6976 = vmatpush1.bf16.msra.mxu0 %v6665
    %6977 = vmatprep.subr.bf16.mxu0 %v6675
    %6978 = vmatpush1.bf16.msra.mxu0 %v6674
    %6979 = vmatprep.subr.bf16.mxu0 %v6684
    %6980 = vmatpush1.bf16.msra.mxu0 %v6683
    %6981 = vmatprep.subr.bf16.mxu0 %v6693
    %6982 = vmatpush1.bf16.msra.mxu0 %v6692
    %6983 = vmatprep.subr.bf16.mxu0 %v6702
    %6984 = vmatpush1.bf16.msra.mxu0 %v6701
    %6985 = vmatprep.subr.bf16.mxu0 %v6711
    %6986 = vmatpush1.bf16.msra.mxu0 %v6710
    %6987 = vmatprep.subr.bf16.mxu0 %v6720
    %6988 = vmatpush1.bf16.msra.mxu0 %v6719
    %6989 = vmatprep.subr.bf16.mxu0 %v6729
    %6990 = vmatpush1.bf16.msra.mxu0 %v6728
    %6991 = vmatprep.mubr.bf16.mxu0 %v5931
    %6992 = vmatmul.mubr.bf16.gmra.mrb[0].mxu0 %v5930
    %v6993 = vpop.f32.mrb[0].mxu0
    %v6994 = vadd.f32 %v6115, %v6993
    %v6995 = vpop.f32.mrb[0].mxu0
    %v6996 = vadd.f32 %v6119, %v6995
    %v6997 = vpop.f32.mrb[0].mxu0
    %v6998 = vpop.f32.mrb[0].mxu0
    %6999 = vdwg.mxu0
    %7000 = vmatprep.subr.bf16.mxu0 %v6596
    %7001 = vmatpush1.bf16.msra.mxu0 %v6595
    %7002 = vmatprep.subr.bf16.mxu0 %v6605
    %7003 = vmatpush1.bf16.msra.mxu0 %v6604
    %7004 = vmatprep.subr.bf16.mxu0 %v6614
    %7005 = vmatpush1.bf16.msra.mxu0 %v6613
    %7006 = vmatprep.subr.bf16.mxu0 %v6623
    %7007 = vmatpush1.bf16.msra.mxu0 %v6622
    %7008 = vmatprep.subr.bf16.mxu0 %v6632
    %7009 = vmatpush1.bf16.msra.mxu0 %v6631
    %7010 = vmatprep.subr.bf16.mxu0 %v6641
    %7011 = vmatpush1.bf16.msra.mxu0 %v6640
    %7012 = vmatprep.subr.bf16.mxu0 %v6650
    %7013 = vmatpush1.bf16.msra.mxu0 %v6649
    %7014 = vmatprep.subr.bf16.mxu0 %v6659
    %7015 = vmatpush1.bf16.msra.mxu0 %v6658
    %7016 = vmatprep.subr.bf16.mxu0 %v6668
    %7017 = vmatpush1.bf16.msra.mxu0 %v6667
    %7018 = vmatprep.subr.bf16.mxu0 %v6677
    %7019 = vmatpush1.bf16.msra.mxu0 %v6676
    %7020 = vmatprep.subr.bf16.mxu0 %v6686
    %7021 = vmatpush1.bf16.msra.mxu0 %v6685
    %7022 = vmatprep.subr.bf16.mxu0 %v6695
    %7023 = vmatpush1.bf16.msra.mxu0 %v6694
    %7024 = vmatprep.subr.bf16.mxu0 %v6704
    %7025 = vmatpush1.bf16.msra.mxu0 %v6703
    %7026 = vmatprep.subr.bf16.mxu0 %v6713
    %7027 = vmatpush1.bf16.msra.mxu0 %v6712
    %7028 = vmatprep.subr.bf16.mxu0 %v6722
    %7029 = vmatpush1.bf16.msra.mxu0 %v6721
    %7030 = vmatprep.subr.bf16.mxu0 %v6731
    %7031 = vmatpush1.bf16.msra.mxu0 %v6730
    %7032 = vmatprep.mubr.bf16.mxu0 %v5931
    %7033 = vmatmul.mubr.bf16.gmra.mrb[0].mxu0 %v5930
    %v7034 = vpop.f32.mrb[0].mxu0
    %v7035 = vadd.f32 %v6123, %v7034
    %v7036 = vpop.f32.mrb[0].mxu0
    %v7037 = vadd.f32 %v6127, %v7036
    %v7038 = vpop.f32.mrb[0].mxu0
    %v7039 = vpop.f32.mrb[0].mxu0
    %7040 = vdwg.mxu0
    %7041 = vmatprep.subr.bf16.mxu0 0
    %7042 = vmatpush1.bf16.msra.mxu0 %v6597
    %7043 = vmatprep.subr.bf16.mxu0 0
    %7044 = vmatpush1.bf16.msra.mxu0 %v6606
    %7045 = vmatprep.subr.bf16.mxu0 0
    %7046 = vmatpush1.bf16.msra.mxu0 %v6615
    %7047 = vmatprep.subr.bf16.mxu0 0
    %7048 = vmatpush1.bf16.msra.mxu0 %v6624
    %7049 = vmatprep.subr.bf16.mxu0 0
    %7050 = vmatpush1.bf16.msra.mxu0 %v6633
    %7051 = vmatprep.subr.bf16.mxu0 0
    %7052 = vmatpush1.bf16.msra.mxu0 %v6642
    %7053 = vmatprep.subr.bf16.mxu0 0
    %7054 = vmatpush1.bf16.msra.mxu0 %v6651
    %7055 = vmatprep.subr.bf16.mxu0 0
    %7056 = vmatpush1.bf16.msra.mxu0 %v6660
    %7057 = vmatprep.subr.bf16.mxu0 0
    %7058 = vmatpush1.bf16.msra.mxu0 %v6669
    %7059 = vmatprep.subr.bf16.mxu0 0
    %7060 = vmatpush1.bf16.msra.mxu0 %v6678
    %7061 = vmatprep.subr.bf16.mxu0 0
    %7062 = vmatpush1.bf16.msra.mxu0 %v6687
    %7063 = vmatprep.subr.bf16.mxu0 0
    %7064 = vmatpush1.bf16.msra.mxu0 %v6696
    %7065 = vmatprep.subr.bf16.mxu0 0
    %7066 = vmatpush1.bf16.msra.mxu0 %v6705
    %7067 = vmatprep.subr.bf16.mxu0 0
    %7068 = vmatpush1.bf16.msra.mxu0 %v6714
    %7069 = vmatprep.subr.bf16.mxu0 0
    %7070 = vmatpush1.bf16.msra.mxu0 %v6723
    %7071 = vmatprep.subr.bf16.mxu0 0
    %7072 = vmatpush1.bf16.msra.mxu0 %v6732
    %7073 = vmatprep.mubr.bf16.mxu0 %v5931
    %7074 = vmatmul.mubr.bf16.gmra.mrb[0].mxu0 %v5930
    %v7075 = vpop.f32.mrb[0].mxu0
    %v7076 = vadd.f32 %v6131, %v7075
    %v7077 = vpop.f32.mrb[0].mxu0
    %v7078 = vpop.f32.mrb[0].mxu0
    %v7079 = vpop.f32.mrb[0].mxu0
    %7080 = vdwg.mxu0
    %v7081 = vmax.f32 %v6912, 0.0
    %v7082 = vmax.f32 %v6914, 0.0
    %v7083 = vmax.f32 %v6953, 0.0
    %v7084 = vmax.f32 %v6955, 0.0
    %v7085 = vmax.f32 %v6994, 0.0
    %v7086 = vmax.f32 %v6996, 0.0
    %v7087 = vmax.f32 %v7035, 0.0
    %v7088 = vmax.f32 %v7037, 0.0
    %v7089 = vmax.f32 %v7076, 0.0
    %v7090 = vpack.c.bf16 %v7081, %v7081
    %v7091 = vpack.c.bf16 %v7082, %v7082
    %v7092 = vpack.c.bf16 %v7083, %v7083
    %v7093 = vpack.c.bf16 %v7084, %v7084
    %v7094 = vpack.c.bf16 %v7085, %v7085
    %v7095 = vpack.c.bf16 %v7086, %v7086
    %v7096 = vpack.c.bf16 %v7087, %v7087
    %v7097 = vpack.c.bf16 %v7088, %v7088
    %v7098 = vpack.c.bf16 %v7089, %v7089
    %v7099 = vld [vmem:[#allocation24] sm:$0xff]
    %v7100 = vld [vmem:[#allocation24 + $0x8] sm:$0xff]
    %v7101 = vld [vmem:[#allocation24 + $0x10] sm:$0xff]
    %v7102 = vld [vmem:[#allocation24 + $0x18] sm:$0xf]
    %v7103 = vld [vmem:[#allocation24 + $0x1c] sm:$0xff]
    %v7104 = vld [vmem:[#allocation24 + $0x24] sm:$0xff]
    %v7105 = vld [vmem:[#allocation24 + $0x2c] sm:$0xff]
    %v7106 = vld [vmem:[#allocation24 + $0x34] sm:$0xf]
    %v7107 = vld [vmem:[#allocation24 + $0x38] sm:$0xff]
    %v7108 = vld [vmem:[#allocation24 + $0x40] sm:$0xff]
    %v7109 = vld [vmem:[#allocation24 + $0x48] sm:$0xff]
    %v7110 = vld [vmem:[#allocation24 + $0x50] sm:$0xf]
    %v7111 = vld [vmem:[#allocation24 + $0x54] sm:$0xff]
    %v7112 = vld [vmem:[#allocation24 + $0x5c] sm:$0xff]
    %v7113 = vld [vmem:[#allocation24 + $0x64] sm:$0xff]
    %v7114 = vld [vmem:[#allocation24 + $0x6c] sm:$0xf]
    %v7115 = vld [vmem:[#allocation24 + $0x70] sm:$0xff]
    %v7116 = vld [vmem:[#allocation24 + $0x78] sm:$0xff]
    %v7117 = vld [vmem:[#allocation24 + $0x80] sm:$0xff]
    %v7118 = vld [vmem:[#allocation24 + $0x88] sm:$0xf]
    %v7119 = vld [vmem:[#allocation24 + $0x8c] sm:$0xff]
    %v7120 = vld [vmem:[#allocation24 + $0x94] sm:$0xff]
    %v7121 = vld [vmem:[#allocation24 + $0x9c] sm:$0xff]
    %v7122 = vld [vmem:[#allocation24 + $0xa4] sm:$0xf]
    %v7123 = vld [vmem:[#allocation24 + $0xa8] sm:$0xff]
    %v7124 = vld [vmem:[#allocation24 + $0xb0] sm:$0xff]
    %v7125 = vld [vmem:[#allocation24 + $0xb8] sm:$0xff]
    %v7126 = vld [vmem:[#allocation24 + $0xc0] sm:$0xf]
    %v7127 = vld [vmem:[#allocation24 + $0xc4] sm:$0xff]
    %v7128 = vld [vmem:[#allocation24 + $0xcc] sm:$0xff]
    %v7129 = vld [vmem:[#allocation24 + $0xd4] sm:$0xff]
    %v7130 = vld [vmem:[#allocation24 + $0xdc] sm:$0xf]
    %v7131 = vld [vmem:[#allocation24 + $0xe0] sm:$0xff]
    %v7132 = vld [vmem:[#allocation24 + $0xe8] sm:$0xff]
    %v7133 = vld [vmem:[#allocation24 + $0xf0] sm:$0xff]
    %v7134 = vld [vmem:[#allocation24 + $0xf8] sm:$0xf]
    %v7135 = vld [vmem:[#allocation24 + $0xfc] sm:$0xff]
    %v7136 = vld [vmem:[#allocation24 + $0x104] sm:$0xff]
    %v7137 = vld [vmem:[#allocation24 + $0x10c] sm:$0xff]
    %v7138 = vld [vmem:[#allocation24 + $0x114] sm:$0xf]
    %v7139 = vld [vmem:[#allocation24 + $0x118] sm:$0xff]
    %v7140 = vld [vmem:[#allocation24 + $0x120] sm:$0xff]
    %v7141 = vld [vmem:[#allocation24 + $0x128] sm:$0xff]
    %v7142 = vld [vmem:[#allocation24 + $0x130] sm:$0xf]
    %v7143 = vld [vmem:[#allocation24 + $0x134] sm:$0xff]
    %v7144 = vld [vmem:[#allocation24 + $0x13c] sm:$0xff]
    %v7145 = vld [vmem:[#allocation24 + $0x144] sm:$0xff]
    %v7146 = vld [vmem:[#allocation24 + $0x14c] sm:$0xf]
    %v7147 = vld [vmem:[#allocation24 + $0x150] sm:$0xff]
    %v7148 = vld [vmem:[#allocation24 + $0x158] sm:$0xff]
    %v7149 = vld [vmem:[#allocation24 + $0x160] sm:$0xff]
    %v7150 = vld [vmem:[#allocation24 + $0x168] sm:$0xf]
    %v7151 = vld [vmem:[#allocation24 + $0x16c] sm:$0xff]
    %v7152 = vld [vmem:[#allocation24 + $0x174] sm:$0xff]
    %v7153 = vld [vmem:[#allocation24 + $0x17c] sm:$0xff]
    %v7154 = vld [vmem:[#allocation24 + $0x184] sm:$0xf]
    %v7155 = vld [vmem:[#allocation24 + $0x188] sm:$0xff]
    %v7156 = vld [vmem:[#allocation24 + $0x190] sm:$0xff]
    %v7157 = vld [vmem:[#allocation24 + $0x198] sm:$0xff]
    %v7158 = vld [vmem:[#allocation24 + $0x1a0] sm:$0xf]
    %v7159 = vld [vmem:[#allocation24 + $0x1a4] sm:$0xff]
    %v7160 = vld [vmem:[#allocation24 + $0x1ac] sm:$0xff]
    %v7161 = vld [vmem:[#allocation24 + $0x1b4] sm:$0xff]
    %v7162 = vld [vmem:[#allocation24 + $0x1bc] sm:$0xf]
    %v7163 = vld [vmem:[#allocation24 + $0x1c0] sm:$0xff]
    %v7164 = vld [vmem:[#allocation24 + $0x1c8] sm:$0xff]
    %v7165 = vld [vmem:[#allocation24 + $0x1d0] sm:$0xff]
    %v7166 = vld [vmem:[#allocation24 + $0x1d8] sm:$0xf]
    %v7167 = vld [vmem:[#allocation24 + $0x1dc] sm:$0xff]
    %v7168 = vld [vmem:[#allocation24 + $0x1e4] sm:$0xff]
    %v7169 = vld [vmem:[#allocation24 + $0x1ec] sm:$0xff]
    %v7170 = vld [vmem:[#allocation24 + $0x1f4] sm:$0xf]
    %v7171 = vld [vmem:[#allocation24 + $0x1f8] sm:$0xff]
    %v7172 = vld [vmem:[#allocation24 + $0x200] sm:$0xff]
    %v7173 = vld [vmem:[#allocation24 + $0x208] sm:$0xff]
    %v7174 = vld [vmem:[#allocation24 + $0x210] sm:$0xf]
    %v7175 = vld [vmem:[#allocation24 + $0x214] sm:$0xff]
    %v7176 = vld [vmem:[#allocation24 + $0x21c] sm:$0xff]
    %v7177 = vld [vmem:[#allocation24 + $0x224] sm:$0xff]
    %v7178 = vld [vmem:[#allocation24 + $0x22c] sm:$0xf]
    %v7179 = vld [vmem:[#allocation24 + $0x230] sm:$0xff]
    %v7180 = vld [vmem:[#allocation24 + $0x238] sm:$0xff]
    %v7181 = vld [vmem:[#allocation24 + $0x240] sm:$0xff]
    %v7182 = vld [vmem:[#allocation24 + $0x248] sm:$0xf]
    %v7183 = vld [vmem:[#allocation24 + $0x24c] sm:$0xff]
    %v7184 = vld [vmem:[#allocation24 + $0x254] sm:$0xff]
    %v7185 = vld [vmem:[#allocation24 + $0x25c] sm:$0xff]
    %v7186 = vld [vmem:[#allocation24 + $0x264] sm:$0xf]
    %v7187 = vld [vmem:[#allocation24 + $0x268] sm:$0xff]
    %v7188 = vld [vmem:[#allocation24 + $0x270] sm:$0xff]
    %v7189 = vld [vmem:[#allocation24 + $0x278] sm:$0xff]
    %v7190 = vld [vmem:[#allocation24 + $0x280] sm:$0xf]
    %v7191 = vld [vmem:[#allocation24 + $0x284] sm:$0xff]
    %v7192 = vld [vmem:[#allocation24 + $0x28c] sm:$0xff]
    %v7193 = vld [vmem:[#allocation24 + $0x294] sm:$0xff]
    %v7194 = vld [vmem:[#allocation24 + $0x29c] sm:$0xf]
    %v7195 = vld [vmem:[#allocation24 + $0x2a0] sm:$0xff]
    %v7196 = vld [vmem:[#allocation24 + $0x2a8] sm:$0xff]
    %v7197 = vld [vmem:[#allocation24 + $0x2b0] sm:$0xff]
    %v7198 = vld [vmem:[#allocation24 + $0x2b8] sm:$0xf]
    %v7199 = vld [vmem:[#allocation24 + $0x2bc] sm:$0xff]
    %v7200 = vld [vmem:[#allocation24 + $0x2c4] sm:$0xff]
    %v7201 = vld [vmem:[#allocation24 + $0x2cc] sm:$0xff]
    %v7202 = vld [vmem:[#allocation24 + $0x2d4] sm:$0xf]
    %v7203 = vld [vmem:[#allocation24 + $0x2d8] sm:$0xff]
    %v7204 = vld [vmem:[#allocation24 + $0x2e0] sm:$0xff]
    %v7205 = vld [vmem:[#allocation24 + $0x2e8] sm:$0xff]
    %v7206 = vld [vmem:[#allocation24 + $0x2f0] sm:$0xf]
    %v7207 = vld [vmem:[#allocation24 + $0x2f4] sm:$0xff]
    %v7208 = vld [vmem:[#allocation24 + $0x2fc] sm:$0xff]
    %v7209 = vld [vmem:[#allocation24 + $0x304] sm:$0xff]
    %v7210 = vld [vmem:[#allocation24 + $0x30c] sm:$0xf]
    %v7211 = vld [vmem:[#allocation24 + $0x310] sm:$0xff]
    %v7212 = vld [vmem:[#allocation24 + $0x318] sm:$0xff]
    %v7213 = vld [vmem:[#allocation24 + $0x320] sm:$0xff]
    %v7214 = vld [vmem:[#allocation24 + $0x328] sm:$0xf]
    %v7215 = vld [vmem:[#allocation24 + $0x32c] sm:$0xff]
    %v7216 = vld [vmem:[#allocation24 + $0x334] sm:$0xff]
    %v7217 = vld [vmem:[#allocation24 + $0x33c] sm:$0xff]
    %v7218 = vld [vmem:[#allocation24 + $0x344] sm:$0xf]
    %v7219 = vld [vmem:[#allocation24 + $0x348] sm:$0xff]
    %v7220 = vld [vmem:[#allocation24 + $0x350] sm:$0xff]
    %v7221 = vld [vmem:[#allocation24 + $0x358] sm:$0xff]
    %v7222 = vld [vmem:[#allocation24 + $0x360] sm:$0xf]
    %v7223 = vld [vmem:[#allocation24 + $0x364] sm:$0xff]
    %v7224 = vld [vmem:[#allocation24 + $0x36c] sm:$0xff]
    %v7225 = vld [vmem:[#allocation24 + $0x374] sm:$0xff]
    %v7226 = vld [vmem:[#allocation24 + $0x37c] sm:$0xf]
    %v7227 = vld [vmem:[#allocation24 + $0x380] sm:$0xff]
    %v7228 = vld [vmem:[#allocation24 + $0x388] sm:$0xff]
    %v7229 = vld [vmem:[#allocation24 + $0x390] sm:$0xff]
    %v7230 = vld [vmem:[#allocation24 + $0x398] sm:$0xf]
    %v7231 = vld [vmem:[#allocation24 + $0x39c] sm:$0xff]
    %v7232 = vld [vmem:[#allocation24 + $0x3a4] sm:$0xff]
    %v7233 = vld [vmem:[#allocation24 + $0x3ac] sm:$0xff]
    %v7234 = vld [vmem:[#allocation24 + $0x3b4] sm:$0xf]
    %v7235 = vld [vmem:[#allocation24 + $0x3b8] sm:$0xff]
    %v7236 = vld [vmem:[#allocation24 + $0x3c0] sm:$0xff]
    %v7237 = vld [vmem:[#allocation24 + $0x3c8] sm:$0xff]
    %v7238 = vld [vmem:[#allocation24 + $0x3d0] sm:$0xf]
    %v7239 = vld [vmem:[#allocation24 + $0x3d4] sm:$0xff]
    %v7240 = vld [vmem:[#allocation24 + $0x3dc] sm:$0xff]
    %v7241 = vld [vmem:[#allocation24 + $0x3e4] sm:$0xff]
    %v7242 = vld [vmem:[#allocation24 + $0x3ec] sm:$0xf]
    %v7243 = vld [vmem:[#allocation24 + $0x3f0] sm:$0xff]
    %v7244 = vld [vmem:[#allocation24 + $0x3f8] sm:$0xff]
    %v7245 = vld [vmem:[#allocation24 + $0x400] sm:$0xff]
    %v7246 = vld [vmem:[#allocation24 + $0x408] sm:$0xf]
    %v7247 = vld [vmem:[#allocation24 + $0x40c] sm:$0xff]
    %v7248 = vld [vmem:[#allocation24 + $0x414] sm:$0xff]
    %v7249 = vld [vmem:[#allocation24 + $0x41c] sm:$0xff]
    %v7250 = vld [vmem:[#allocation24 + $0x424] sm:$0xf]
    %v7251 = vld [vmem:[#allocation24 + $0x428] sm:$0xff]
    %v7252 = vld [vmem:[#allocation24 + $0x430] sm:$0xff]
    %v7253 = vld [vmem:[#allocation24 + $0x438] sm:$0xff]
    %v7254 = vld [vmem:[#allocation24 + $0x440] sm:$0xf]
    %v7255 = vld [vmem:[#allocation24 + $0x444] sm:$0xff]
    %v7256 = vld [vmem:[#allocation24 + $0x44c] sm:$0xff]
    %v7257 = vld [vmem:[#allocation24 + $0x454] sm:$0xff]
    %v7258 = vld [vmem:[#allocation24 + $0x45c] sm:$0xf]
    %v7259 = vld [vmem:[#allocation24 + $0x460] sm:$0xff]
    %v7260 = vld [vmem:[#allocation24 + $0x468] sm:$0xff]
    %v7261 = vld [vmem:[#allocation24 + $0x470] sm:$0xff]
    %v7262 = vld [vmem:[#allocation24 + $0x478] sm:$0xf]
    %v7263 = vld [vmem:[#allocation24 + $0x47c] sm:$0xff]
    %v7264 = vld [vmem:[#allocation24 + $0x484] sm:$0xff]
    %v7265 = vld [vmem:[#allocation24 + $0x48c] sm:$0xff]
    %v7266 = vld [vmem:[#allocation24 + $0x494] sm:$0xf]
    %v7267 = vld [vmem:[#allocation24 + $0x498] sm:$0xff]
    %v7268 = vld [vmem:[#allocation24 + $0x4a0] sm:$0xff]
    %v7269 = vld [vmem:[#allocation24 + $0x4a8] sm:$0xff]
    %v7270 = vld [vmem:[#allocation24 + $0x4b0] sm:$0xf]
    %v7271 = vld [vmem:[#allocation24 + $0x4b4] sm:$0xff]
    %v7272 = vld [vmem:[#allocation24 + $0x4bc] sm:$0xff]
    %v7273 = vld [vmem:[#allocation24 + $0x4c4] sm:$0xff]
    %v7274 = vld [vmem:[#allocation24 + $0x4cc] sm:$0xf]
    %v7275 = vld [vmem:[#allocation24 + $0x4d0] sm:$0xff]
    %v7276 = vld [vmem:[#allocation24 + $0x4d8] sm:$0xff]
    %v7277 = vld [vmem:[#allocation24 + $0x4e0] sm:$0xff]
    %v7278 = vld [vmem:[#allocation24 + $0x4e8] sm:$0xf]
    %v7279 = vld [vmem:[#allocation24 + $0x4ec] sm:$0xff]
    %v7280 = vld [vmem:[#allocation24 + $0x4f4] sm:$0xff]
    %v7281 = vld [vmem:[#allocation24 + $0x4fc] sm:$0xff]
    %v7282 = vld [vmem:[#allocation24 + $0x504] sm:$0xf]
    %v7283 = vld [vmem:[#allocation24 + $0x508] sm:$0xff]
    %v7284 = vld [vmem:[#allocation24 + $0x510] sm:$0xff]
    %v7285 = vld [vmem:[#allocation24 + $0x518] sm:$0xff]
    %v7286 = vld [vmem:[#allocation24 + $0x520] sm:$0xf]
    %v7287 = vld [vmem:[#allocation24 + $0x524] sm:$0xff]
    %v7288 = vld [vmem:[#allocation24 + $0x52c] sm:$0xff]
    %v7289 = vld [vmem:[#allocation24 + $0x534] sm:$0xff]
    %v7290 = vld [vmem:[#allocation24 + $0x53c] sm:$0xf]
    %v7291 = vld [vmem:[#allocation24 + $0x540] sm:$0xff]
    %v7292 = vld [vmem:[#allocation24 + $0x548] sm:$0xff]
    %v7293 = vld [vmem:[#allocation24 + $0x550] sm:$0xff]
    %v7294 = vld [vmem:[#allocation24 + $0x558] sm:$0xf]
    %v7295 = vld [vmem:[#allocation24 + $0x55c] sm:$0xff]
    %v7296 = vld [vmem:[#allocation24 + $0x564] sm:$0xff]
    %v7297 = vld [vmem:[#allocation24 + $0x56c] sm:$0xff]
    %v7298 = vld [vmem:[#allocation24 + $0x574] sm:$0xf]
    %v7299 = vld [vmem:[#allocation24 + $0x578] sm:$0xff]
    %v7300 = vld [vmem:[#allocation24 + $0x580] sm:$0xff]
    %v7301 = vld [vmem:[#allocation24 + $0x588] sm:$0xff]
    %v7302 = vld [vmem:[#allocation24 + $0x590] sm:$0xf]
    %v7303 = vld [vmem:[#allocation24 + $0x594] sm:$0xff]
    %v7304 = vld [vmem:[#allocation24 + $0x59c] sm:$0xff]
    %v7305 = vld [vmem:[#allocation24 + $0x5a4] sm:$0xff]
    %v7306 = vld [vmem:[#allocation24 + $0x5ac] sm:$0xf]
    %v7307 = vld [vmem:[#allocation24 + $0x5b0] sm:$0xff]
    %v7308 = vld [vmem:[#allocation24 + $0x5b8] sm:$0xff]
    %v7309 = vld [vmem:[#allocation24 + $0x5c0] sm:$0xff]
    %v7310 = vld [vmem:[#allocation24 + $0x5c8] sm:$0xf]
    %v7311 = vld [vmem:[#allocation24 + $0x5cc] sm:$0xff]
    %v7312 = vld [vmem:[#allocation24 + $0x5d4] sm:$0xff]
    %v7313 = vld [vmem:[#allocation24 + $0x5dc] sm:$0xff]
    %v7314 = vld [vmem:[#allocation24 + $0x5e4] sm:$0xf]
    %v7315 = vld [vmem:[#allocation24 + $0x5e8] sm:$0xff]
    %v7316 = vld [vmem:[#allocation24 + $0x5f0] sm:$0xff]
    %v7317 = vld [vmem:[#allocation24 + $0x5f8] sm:$0xff]
    %v7318 = vld [vmem:[#allocation24 + $0x600] sm:$0xf]
    %v7319 = vld [vmem:[#allocation24 + $0x604] sm:$0xff]
    %v7320 = vld [vmem:[#allocation24 + $0x60c] sm:$0xff]
    %v7321 = vld [vmem:[#allocation24 + $0x614] sm:$0xff]
    %v7322 = vld [vmem:[#allocation24 + $0x61c] sm:$0xf]
    %v7323 = vld [vmem:[#allocation24 + $0x620] sm:$0xff]
    %v7324 = vld [vmem:[#allocation24 + $0x628] sm:$0xff]
    %v7325 = vld [vmem:[#allocation24 + $0x630] sm:$0xff]
    %v7326 = vld [vmem:[#allocation24 + $0x638] sm:$0xf]
    %v7327 = vld [vmem:[#allocation24 + $0x63c] sm:$0xff]
    %v7328 = vld [vmem:[#allocation24 + $0x644] sm:$0xff]
    %v7329 = vld [vmem:[#allocation24 + $0x64c] sm:$0xff]
    %v7330 = vld [vmem:[#allocation24 + $0x654] sm:$0xf]
    %v7331 = vld [vmem:[#allocation24 + $0x658] sm:$0xff]
    %v7332 = vld [vmem:[#allocation24 + $0x660] sm:$0xff]
    %v7333 = vld [vmem:[#allocation24 + $0x668] sm:$0xff]
    %v7334 = vld [vmem:[#allocation24 + $0x670] sm:$0xf]
    %v7335 = vld [vmem:[#allocation24 + $0x674] sm:$0xff]
    %v7336 = vld [vmem:[#allocation24 + $0x67c] sm:$0xff]
    %v7337 = vld [vmem:[#allocation24 + $0x684] sm:$0xff]
    %v7338 = vld [vmem:[#allocation24 + $0x68c] sm:$0xf]
    %v7339 = vld [vmem:[#allocation24 + $0x690] sm:$0xff]
    %v7340 = vld [vmem:[#allocation24 + $0x698] sm:$0xff]
    %v7341 = vld [vmem:[#allocation24 + $0x6a0] sm:$0xff]
    %v7342 = vld [vmem:[#allocation24 + $0x6a8] sm:$0xf]
    %v7343 = vld [vmem:[#allocation24 + $0x6ac] sm:$0xff]
    %v7344 = vld [vmem:[#allocation24 + $0x6b4] sm:$0xff]
    %v7345 = vld [vmem:[#allocation24 + $0x6bc] sm:$0xff]
    %v7346 = vld [vmem:[#allocation24 + $0x6c4] sm:$0xf]
    %v7347 = vld [vmem:[#allocation24 + $0x6c8] sm:$0xff]
    %v7348 = vld [vmem:[#allocation24 + $0x6d0] sm:$0xff]
    %v7349 = vld [vmem:[#allocation24 + $0x6d8] sm:$0xff]
    %v7350 = vld [vmem:[#allocation24 + $0x6e0] sm:$0xf]
    %v7351 = vld [vmem:[#allocation24 + $0x6e4] sm:$0xff]
    %v7352 = vld [vmem:[#allocation24 + $0x6ec] sm:$0xff]
    %v7353 = vld [vmem:[#allocation24 + $0x6f4] sm:$0xff]
    %v7354 = vld [vmem:[#allocation24 + $0x6fc] sm:$0xf]
    %v7355 = vld [vmem:[#allocation24 + $0x700] sm:$0xff]
    %v7356 = vld [vmem:[#allocation24 + $0x708] sm:$0xff]
    %v7357 = vld [vmem:[#allocation24 + $0x710] sm:$0xff]
    %v7358 = vld [vmem:[#allocation24 + $0x718] sm:$0xf]
    %v7359 = vld [vmem:[#allocation24 + $0x71c] sm:$0xff]
    %v7360 = vld [vmem:[#allocation24 + $0x724] sm:$0xff]
    %v7361 = vld [vmem:[#allocation24 + $0x72c] sm:$0xff]
    %v7362 = vld [vmem:[#allocation24 + $0x734] sm:$0xf]
    %v7363 = vld [vmem:[#allocation24 + $0x738] sm:$0xff]
    %v7364 = vld [vmem:[#allocation24 + $0x740] sm:$0xff]
    %v7365 = vld [vmem:[#allocation24 + $0x748] sm:$0xff]
    %v7366 = vld [vmem:[#allocation24 + $0x750] sm:$0xf]
    %v7367 = vld [vmem:[#allocation24 + $0x754] sm:$0xff]
    %v7368 = vld [vmem:[#allocation24 + $0x75c] sm:$0xff]
    %v7369 = vld [vmem:[#allocation24 + $0x764] sm:$0xff]
    %v7370 = vld [vmem:[#allocation24 + $0x76c] sm:$0xf]
    %v7371 = vld [vmem:[#allocation24 + $0x770] sm:$0xff]
    %v7372 = vld [vmem:[#allocation24 + $0x778] sm:$0xff]
    %v7373 = vld [vmem:[#allocation24 + $0x780] sm:$0xff]
    %v7374 = vld [vmem:[#allocation24 + $0x788] sm:$0xf]
    %v7375 = vld [vmem:[#allocation24 + $0x78c] sm:$0xff]
    %v7376 = vld [vmem:[#allocation24 + $0x794] sm:$0xff]
    %v7377 = vld [vmem:[#allocation24 + $0x79c] sm:$0xff]
    %v7378 = vld [vmem:[#allocation24 + $0x7a4] sm:$0xf]
    %v7379 = vld [vmem:[#allocation24 + $0x7a8] sm:$0xff]
    %v7380 = vld [vmem:[#allocation24 + $0x7b0] sm:$0xff]
    %v7381 = vld [vmem:[#allocation24 + $0x7b8] sm:$0xff]
    %v7382 = vld [vmem:[#allocation24 + $0x7c0] sm:$0xf]
    %v7383 = vld [vmem:[#allocation24 + $0x7c4] sm:$0xff]
    %v7384 = vld [vmem:[#allocation24 + $0x7cc] sm:$0xff]
    %v7385 = vld [vmem:[#allocation24 + $0x7d4] sm:$0xff]
    %v7386 = vld [vmem:[#allocation24 + $0x7dc] sm:$0xf]
    %v7387 = vld [vmem:[#allocation24 + $0x7e0] sm:$0xff]
    %v7388 = vld [vmem:[#allocation24 + $0x7e8] sm:$0xff]
    %v7389 = vld [vmem:[#allocation24 + $0x7f0] sm:$0xff]
    %v7390 = vld [vmem:[#allocation24 + $0x7f8] sm:$0xf]
    %v7391 = vld [vmem:[#allocation24 + $0x7fc] sm:$0xff]
    %v7392 = vld [vmem:[#allocation24 + $0x804] sm:$0xff]
    %v7393 = vld [vmem:[#allocation24 + $0x80c] sm:$0xff]
    %v7394 = vld [vmem:[#allocation24 + $0x814] sm:$0xf]
    %v7395 = vld [vmem:[#allocation24 + $0x818] sm:$0xff]
    %v7396 = vld [vmem:[#allocation24 + $0x820] sm:$0xff]
    %v7397 = vld [vmem:[#allocation24 + $0x828] sm:$0xff]
    %v7398 = vld [vmem:[#allocation24 + $0x830] sm:$0xf]
    %v7399 = vld [vmem:[#allocation24 + $0x834] sm:$0xff]
    %v7400 = vld [vmem:[#allocation24 + $0x83c] sm:$0xff]
    %v7401 = vld [vmem:[#allocation24 + $0x844] sm:$0xff]
    %v7402 = vld [vmem:[#allocation24 + $0x84c] sm:$0xf]
    %v7403 = vld [vmem:[#allocation24 + $0x850] sm:$0xff]
    %v7404 = vld [vmem:[#allocation24 + $0x858] sm:$0xff]
    %v7405 = vld [vmem:[#allocation24 + $0x860] sm:$0xff]
    %v7406 = vld [vmem:[#allocation24 + $0x868] sm:$0xf]
    %v7407 = vld [vmem:[#allocation24 + $0x86c] sm:$0xff]
    %v7408 = vld [vmem:[#allocation24 + $0x874] sm:$0xff]
    %v7409 = vld [vmem:[#allocation24 + $0x87c] sm:$0xff]
    %v7410 = vld [vmem:[#allocation24 + $0x884] sm:$0xf]
    %v7411 = vld [vmem:[#allocation24 + $0x888] sm:$0xff]
    %v7412 = vld [vmem:[#allocation24 + $0x890] sm:$0xff]
    %v7413 = vld [vmem:[#allocation24 + $0x898] sm:$0xff]
    %v7414 = vld [vmem:[#allocation24 + $0x8a0] sm:$0xf]
    %v7415 = vld [vmem:[#allocation24 + $0x8a4] sm:$0xff]
    %v7416 = vld [vmem:[#allocation24 + $0x8ac] sm:$0xff]
    %v7417 = vld [vmem:[#allocation24 + $0x8b4] sm:$0xff]
    %v7418 = vld [vmem:[#allocation24 + $0x8bc] sm:$0xf]
    %v7419 = vld [vmem:[#allocation24 + $0x8c0] sm:$0xff]
    %v7420 = vld [vmem:[#allocation24 + $0x8c8] sm:$0xff]
    %v7421 = vld [vmem:[#allocation24 + $0x8d0] sm:$0xff]
    %v7422 = vld [vmem:[#allocation24 + $0x8d8] sm:$0xf]
    %v7423 = vld [vmem:[#allocation24 + $0x8dc] sm:$0xff]
    %v7424 = vld [vmem:[#allocation24 + $0x8e4] sm:$0xff]
    %v7425 = vld [vmem:[#allocation24 + $0x8ec] sm:$0xff]
    %v7426 = vld [vmem:[#allocation24 + $0x8f4] sm:$0xf]
    %v7427 = vld [vmem:[#allocation24 + $0x8f8] sm:$0xff]
    %v7428 = vld [vmem:[#allocation24 + $0x900] sm:$0xff]
    %v7429 = vld [vmem:[#allocation24 + $0x908] sm:$0xff]
    %v7430 = vld [vmem:[#allocation24 + $0x910] sm:$0xf]
    %v7431 = vld [vmem:[#allocation24 + $0x914] sm:$0xff]
    %v7432 = vld [vmem:[#allocation24 + $0x91c] sm:$0xff]
    %v7433 = vld [vmem:[#allocation24 + $0x924] sm:$0xff]
    %v7434 = vld [vmem:[#allocation24 + $0x92c] sm:$0xf]
    %v7435 = vld [vmem:[#allocation24 + $0x930] sm:$0xff]
    %v7436 = vld [vmem:[#allocation24 + $0x938] sm:$0xff]
    %v7437 = vld [vmem:[#allocation24 + $0x940] sm:$0xff]
    %v7438 = vld [vmem:[#allocation24 + $0x948] sm:$0xf]
    %v7439 = vld [vmem:[#allocation24 + $0x94c] sm:$0xff]
    %v7440 = vld [vmem:[#allocation24 + $0x954] sm:$0xff]
    %v7441 = vld [vmem:[#allocation24 + $0x95c] sm:$0xff]
    %v7442 = vld [vmem:[#allocation24 + $0x964] sm:$0xf]
    %v7443 = vld [vmem:[#allocation24 + $0x968] sm:$0xff]
    %v7444 = vld [vmem:[#allocation24 + $0x970] sm:$0xff]
    %v7445 = vld [vmem:[#allocation24 + $0x978] sm:$0xff]
    %v7446 = vld [vmem:[#allocation24 + $0x980] sm:$0xf]
    %v7447 = vld [vmem:[#allocation24 + $0x984] sm:$0xff]
    %v7448 = vld [vmem:[#allocation24 + $0x98c] sm:$0xff]
    %v7449 = vld [vmem:[#allocation24 + $0x994] sm:$0xff]
    %v7450 = vld [vmem:[#allocation24 + $0x99c] sm:$0xf]
    %v7451 = vld [vmem:[#allocation24 + $0x9a0] sm:$0xff]
    %v7452 = vld [vmem:[#allocation24 + $0x9a8] sm:$0xff]
    %v7453 = vld [vmem:[#allocation24 + $0x9b0] sm:$0xff]
    %v7454 = vld [vmem:[#allocation24 + $0x9b8] sm:$0xf]
    %v7455 = vld [vmem:[#allocation24 + $0x9bc] sm:$0xff]
    %v7456 = vld [vmem:[#allocation24 + $0x9c4] sm:$0xff]
    %v7457 = vld [vmem:[#allocation24 + $0x9cc] sm:$0xff]
    %v7458 = vld [vmem:[#allocation24 + $0x9d4] sm:$0xf]
    %v7459 = vld [vmem:[#allocation24 + $0x9d8] sm:$0xff]
    %v7460 = vld [vmem:[#allocation24 + $0x9e0] sm:$0xff]
    %v7461 = vld [vmem:[#allocation24 + $0x9e8] sm:$0xff]
    %v7462 = vld [vmem:[#allocation24 + $0x9f0] sm:$0xf]
    %v7463 = vld [vmem:[#allocation24 + $0x9f4] sm:$0xff]
    %v7464 = vld [vmem:[#allocation24 + $0x9fc] sm:$0xff]
    %v7465 = vld [vmem:[#allocation24 + $0xa04] sm:$0xff]
    %v7466 = vld [vmem:[#allocation24 + $0xa0c] sm:$0xf]
    %v7467 = vld [vmem:[#allocation24 + $0xa10] sm:$0xff]
    %v7468 = vld [vmem:[#allocation24 + $0xa18] sm:$0xff]
    %v7469 = vld [vmem:[#allocation24 + $0xa20] sm:$0xff]
    %v7470 = vld [vmem:[#allocation24 + $0xa28] sm:$0xf]
    %v7471 = vld [vmem:[#allocation24 + $0xa2c] sm:$0xff]
    %v7472 = vld [vmem:[#allocation24 + $0xa34] sm:$0xff]
    %v7473 = vld [vmem:[#allocation24 + $0xa3c] sm:$0xff]
    %v7474 = vld [vmem:[#allocation24 + $0xa44] sm:$0xf]
    %v7475 = vld [vmem:[#allocation24 + $0xa48] sm:$0xff]
    %v7476 = vld [vmem:[#allocation24 + $0xa50] sm:$0xff]
    %v7477 = vld [vmem:[#allocation24 + $0xa58] sm:$0xff]
    %v7478 = vld [vmem:[#allocation24 + $0xa60] sm:$0xf]
    %v7479 = vld [vmem:[#allocation24 + $0xa64] sm:$0xff]
    %v7480 = vld [vmem:[#allocation24 + $0xa6c] sm:$0xff]
    %v7481 = vld [vmem:[#allocation24 + $0xa74] sm:$0xff]
    %v7482 = vld [vmem:[#allocation24 + $0xa7c] sm:$0xf]
    %v7483 = vld [vmem:[#allocation24 + $0xa80] sm:$0xff]
    %v7484 = vld [vmem:[#allocation24 + $0xa88] sm:$0xff]
    %v7485 = vld [vmem:[#allocation24 + $0xa90] sm:$0xff]
    %v7486 = vld [vmem:[#allocation24 + $0xa98] sm:$0xf]
    %v7487 = vld [vmem:[#allocation24 + $0xa9c] sm:$0xff]
    %v7488 = vld [vmem:[#allocation24 + $0xaa4] sm:$0xff]
    %v7489 = vld [vmem:[#allocation24 + $0xaac] sm:$0xff]
    %v7490 = vld [vmem:[#allocation24 + $0xab4] sm:$0xf]
    %v7491 = vld [vmem:[#allocation24 + $0xab8] sm:$0xff]
    %v7492 = vld [vmem:[#allocation24 + $0xac0] sm:$0xff]
    %v7493 = vld [vmem:[#allocation24 + $0xac8] sm:$0xff]
    %v7494 = vld [vmem:[#allocation24 + $0xad0] sm:$0xf]
    %v7495 = vld [vmem:[#allocation24 + $0xad4] sm:$0xff]
    %v7496 = vld [vmem:[#allocation24 + $0xadc] sm:$0xff]
    %v7497 = vld [vmem:[#allocation24 + $0xae4] sm:$0xff]
    %v7498 = vld [vmem:[#allocation24 + $0xaec] sm:$0xf]
    %v7499 = vld [vmem:[#allocation24 + $0xaf0] sm:$0xff]
    %v7500 = vld [vmem:[#allocation24 + $0xaf8] sm:$0xff]
    %v7501 = vld [vmem:[#allocation24 + $0xb00] sm:$0xff]
    %v7502 = vld [vmem:[#allocation24 + $0xb08] sm:$0xf]
    %v7503 = vld [vmem:[#allocation24 + $0xb0c] sm:$0xff]
    %v7504 = vld [vmem:[#allocation24 + $0xb14] sm:$0xff]
    %v7505 = vld [vmem:[#allocation24 + $0xb1c] sm:$0xff]
    %v7506 = vld [vmem:[#allocation24 + $0xb24] sm:$0xf]
    %v7507 = vld [vmem:[#allocation24 + $0xb28] sm:$0xff]
    %v7508 = vld [vmem:[#allocation24 + $0xb30] sm:$0xff]
    %v7509 = vld [vmem:[#allocation24 + $0xb38] sm:$0xff]
    %v7510 = vld [vmem:[#allocation24 + $0xb40] sm:$0xf]
    %v7511 = vld [vmem:[#allocation24 + $0xb44] sm:$0xff]
    %v7512 = vld [vmem:[#allocation24 + $0xb4c] sm:$0xff]
    %v7513 = vld [vmem:[#allocation24 + $0xb54] sm:$0xff]
    %v7514 = vld [vmem:[#allocation24 + $0xb5c] sm:$0xf]
    %v7515 = vld [vmem:[#allocation24 + $0xb60] sm:$0xff]
    %v7516 = vld [vmem:[#allocation24 + $0xb68] sm:$0xff]
    %v7517 = vld [vmem:[#allocation24 + $0xb70] sm:$0xff]
    %v7518 = vld [vmem:[#allocation24 + $0xb78] sm:$0xf]
    %v7519 = vld [vmem:[#allocation24 + $0xb7c] sm:$0xff]
    %v7520 = vld [vmem:[#allocation24 + $0xb84] sm:$0xff]
    %v7521 = vld [vmem:[#allocation24 + $0xb8c] sm:$0xff]
    %v7522 = vld [vmem:[#allocation24 + $0xb94] sm:$0xf]
    %v7523 = vld [vmem:[#allocation24 + $0xb98] sm:$0xff]
    %v7524 = vld [vmem:[#allocation24 + $0xba0] sm:$0xff]
    %v7525 = vld [vmem:[#allocation24 + $0xba8] sm:$0xff]
    %v7526 = vld [vmem:[#allocation24 + $0xbb0] sm:$0xf]
    %v7527 = vld [vmem:[#allocation24 + $0xbb4] sm:$0xff]
    %v7528 = vld [vmem:[#allocation24 + $0xbbc] sm:$0xff]
    %v7529 = vld [vmem:[#allocation24 + $0xbc4] sm:$0xff]
    %v7530 = vld [vmem:[#allocation24 + $0xbcc] sm:$0xf]
    %v7531 = vld [vmem:[#allocation24 + $0xbd0] sm:$0xff]
    %v7532 = vld [vmem:[#allocation24 + $0xbd8] sm:$0xff]
    %v7533 = vld [vmem:[#allocation24 + $0xbe0] sm:$0xff]
    %v7534 = vld [vmem:[#allocation24 + $0xbe8] sm:$0xf]
    %v7535 = vld [vmem:[#allocation24 + $0xbec] sm:$0xff]
    %v7536 = vld [vmem:[#allocation24 + $0xbf4] sm:$0xff]
    %v7537 = vld [vmem:[#allocation24 + $0xbfc] sm:$0xff]
    %v7538 = vld [vmem:[#allocation24 + $0xc04] sm:$0xf]
    %v7539 = vld [vmem:[#allocation24 + $0xc08] sm:$0xff]
    %v7540 = vld [vmem:[#allocation24 + $0xc10] sm:$0xff]
    %v7541 = vld [vmem:[#allocation24 + $0xc18] sm:$0xff]
    %v7542 = vld [vmem:[#allocation24 + $0xc20] sm:$0xf]
    %v7543 = vld [vmem:[#allocation24 + $0xc24] sm:$0xff]
    %v7544 = vld [vmem:[#allocation24 + $0xc2c] sm:$0xff]
    %v7545 = vld [vmem:[#allocation24 + $0xc34] sm:$0xff]
    %v7546 = vld [vmem:[#allocation24 + $0xc3c] sm:$0xf]
    %v7547 = vld [vmem:[#allocation24 + $0xc40] sm:$0xff]
    %v7548 = vld [vmem:[#allocation24 + $0xc48] sm:$0xff]
    %v7549 = vld [vmem:[#allocation24 + $0xc50] sm:$0xff]
    %v7550 = vld [vmem:[#allocation24 + $0xc58] sm:$0xf]
    %v7551 = vld [vmem:[#allocation24 + $0xc5c] sm:$0xff]
    %v7552 = vld [vmem:[#allocation24 + $0xc64] sm:$0xff]
    %v7553 = vld [vmem:[#allocation24 + $0xc6c] sm:$0xff]
    %v7554 = vld [vmem:[#allocation24 + $0xc74] sm:$0xf]
    %v7555 = vld [vmem:[#allocation24 + $0xc78] sm:$0xff]
    %v7556 = vld [vmem:[#allocation24 + $0xc80] sm:$0xff]
    %v7557 = vld [vmem:[#allocation24 + $0xc88] sm:$0xff]
    %v7558 = vld [vmem:[#allocation24 + $0xc90] sm:$0xf]
    %v7559 = vld [vmem:[#allocation24 + $0xc94] sm:$0xff]
    %v7560 = vld [vmem:[#allocation24 + $0xc9c] sm:$0xff]
    %v7561 = vld [vmem:[#allocation24 + $0xca4] sm:$0xff]
    %v7562 = vld [vmem:[#allocation24 + $0xcac] sm:$0xf]
    %v7563 = vld [vmem:[#allocation24 + $0xcb0] sm:$0xff]
    %v7564 = vld [vmem:[#allocation24 + $0xcb8] sm:$0xff]
    %v7565 = vld [vmem:[#allocation24 + $0xcc0] sm:$0xff]
    %v7566 = vld [vmem:[#allocation24 + $0xcc8] sm:$0xf]
    %v7567 = vld [vmem:[#allocation24 + $0xccc] sm:$0xff]
    %v7568 = vld [vmem:[#allocation24 + $0xcd4] sm:$0xff]
    %v7569 = vld [vmem:[#allocation24 + $0xcdc] sm:$0xff]
    %v7570 = vld [vmem:[#allocation24 + $0xce4] sm:$0xf]
    %v7571 = vld [vmem:[#allocation24 + $0xce8] sm:$0xff]
    %v7572 = vld [vmem:[#allocation24 + $0xcf0] sm:$0xff]
    %v7573 = vld [vmem:[#allocation24 + $0xcf8] sm:$0xff]
    %v7574 = vld [vmem:[#allocation24 + $0xd00] sm:$0xf]
    %v7575 = vld [vmem:[#allocation24 + $0xd04] sm:$0xff]
    %v7576 = vld [vmem:[#allocation24 + $0xd0c] sm:$0xff]
    %v7577 = vld [vmem:[#allocation24 + $0xd14] sm:$0xff]
    %v7578 = vld [vmem:[#allocation24 + $0xd1c] sm:$0xf]
    %v7579 = vld [vmem:[#allocation24 + $0xd20] sm:$0xff]
    %v7580 = vld [vmem:[#allocation24 + $0xd28] sm:$0xff]
    %v7581 = vld [vmem:[#allocation24 + $0xd30] sm:$0xff]
    %v7582 = vld [vmem:[#allocation24 + $0xd38] sm:$0xf]
    %v7583 = vld [vmem:[#allocation24 + $0xd3c] sm:$0xff]
    %v7584 = vld [vmem:[#allocation24 + $0xd44] sm:$0xff]
    %v7585 = vld [vmem:[#allocation24 + $0xd4c] sm:$0xff]
    %v7586 = vld [vmem:[#allocation24 + $0xd54] sm:$0xf]
    %v7587 = vld [vmem:[#allocation24 + $0xd58] sm:$0xff]
    %v7588 = vld [vmem:[#allocation24 + $0xd60] sm:$0xff]
    %v7589 = vld [vmem:[#allocation24 + $0xd68] sm:$0xff]
    %v7590 = vld [vmem:[#allocation24 + $0xd70] sm:$0xf]
    %v7591 = vld [vmem:[#allocation24 + $0xd74] sm:$0xff]
    %v7592 = vld [vmem:[#allocation24 + $0xd7c] sm:$0xff]
    %v7593 = vld [vmem:[#allocation24 + $0xd84] sm:$0xff]
    %v7594 = vld [vmem:[#allocation24 + $0xd8c] sm:$0xf]
    %v7595 = vld [vmem:[#allocation24 + $0xd90] sm:$0xff]
    %v7596 = vld [vmem:[#allocation24 + $0xd98] sm:$0xff]
    %v7597 = vld [vmem:[#allocation24 + $0xda0] sm:$0xff]
    %v7598 = vld [vmem:[#allocation24 + $0xda8] sm:$0xf]
    %v7599 = vld [vmem:[#allocation24 + $0xdac] sm:$0xff]
    %v7600 = vld [vmem:[#allocation24 + $0xdb4] sm:$0xff]
    %v7601 = vld [vmem:[#allocation24 + $0xdbc] sm:$0xff]
    %v7602 = vld [vmem:[#allocation24 + $0xdc4] sm:$0xf]
    %v7603 = vld [vmem:[#allocation24 + $0xdc8] sm:$0xff]
    %v7604 = vld [vmem:[#allocation24 + $0xdd0] sm:$0xff]
    %v7605 = vld [vmem:[#allocation24 + $0xdd8] sm:$0xff]
    %v7606 = vld [vmem:[#allocation24 + $0xde0] sm:$0xf]
    %v7607 = vld [vmem:[#allocation24 + $0xde4] sm:$0xff]
    %v7608 = vld [vmem:[#allocation24 + $0xdec] sm:$0xff]
    %v7609 = vld [vmem:[#allocation24 + $0xdf4] sm:$0xff]
    %v7610 = vld [vmem:[#allocation24 + $0xdfc] sm:$0xf]
    %v7611 = vld [vmem:[#allocation24 + $0xe00] sm:$0xff]
    %v7612 = vld [vmem:[#allocation24 + $0xe08] sm:$0xff]
    %v7613 = vld [vmem:[#allocation24 + $0xe10] sm:$0xff]
    %v7614 = vld [vmem:[#allocation24 + $0xe18] sm:$0xf]
    %v7615 = vld [vmem:[#allocation24 + $0xe1c] sm:$0xff]
    %v7616 = vld [vmem:[#allocation24 + $0xe24] sm:$0xff]
    %v7617 = vld [vmem:[#allocation24 + $0xe2c] sm:$0xff]
    %v7618 = vld [vmem:[#allocation24 + $0xe34] sm:$0xf]
    %v7619 = vld [vmem:[#allocation24 + $0xe38] sm:$0xff]
    %v7620 = vld [vmem:[#allocation24 + $0xe40] sm:$0xff]
    %v7621 = vld [vmem:[#allocation24 + $0xe48] sm:$0xff]
    %v7622 = vld [vmem:[#allocation24 + $0xe50] sm:$0xf]
    %v7623 = vld [vmem:[#allocation24 + $0xe54] sm:$0xff]
    %v7624 = vld [vmem:[#allocation24 + $0xe5c] sm:$0xff]
    %v7625 = vld [vmem:[#allocation24 + $0xe64] sm:$0xff]
    %v7626 = vld [vmem:[#allocation24 + $0xe6c] sm:$0xf]
    %v7627 = vld [vmem:[#allocation24 + $0xe70] sm:$0xff]
    %v7628 = vld [vmem:[#allocation24 + $0xe78] sm:$0xff]
    %v7629 = vld [vmem:[#allocation24 + $0xe80] sm:$0xff]
    %v7630 = vld [vmem:[#allocation24 + $0xe88] sm:$0xf]
    %v7631 = vld [vmem:[#allocation24 + $0xe8c] sm:$0xff]
    %v7632 = vld [vmem:[#allocation24 + $0xe94] sm:$0xff]
    %v7633 = vld [vmem:[#allocation24 + $0xe9c] sm:$0xff]
    %v7634 = vld [vmem:[#allocation24 + $0xea4] sm:$0xf]
    %v7635 = vld [vmem:[#allocation24 + $0xea8] sm:$0xff]
    %v7636 = vld [vmem:[#allocation24 + $0xeb0] sm:$0xff]
    %v7637 = vld [vmem:[#allocation24 + $0xeb8] sm:$0xff]
    %v7638 = vld [vmem:[#allocation24 + $0xec0] sm:$0xf]
    %v7639 = vld [vmem:[#allocation24 + $0xec4] sm:$0xff]
    %v7640 = vld [vmem:[#allocation24 + $0xecc] sm:$0xff]
    %v7641 = vld [vmem:[#allocation24 + $0xed4] sm:$0xff]
    %v7642 = vld [vmem:[#allocation24 + $0xedc] sm:$0xf]
    %v7643 = vld [vmem:[#allocation24 + $0xee0] sm:$0xff]
    %v7644 = vld [vmem:[#allocation24 + $0xee8] sm:$0xff]
    %v7645 = vld [vmem:[#allocation24 + $0xef0] sm:$0xff]
    %v7646 = vld [vmem:[#allocation24 + $0xef8] sm:$0xf]
    %v7647 = vld [vmem:[#allocation24 + $0xefc] sm:$0xff]
    %v7648 = vld [vmem:[#allocation24 + $0xf04] sm:$0xff]
    %v7649 = vld [vmem:[#allocation24 + $0xf0c] sm:$0xff]
    %v7650 = vld [vmem:[#allocation24 + $0xf14] sm:$0xf]
    %v7651 = vld [vmem:[#allocation24 + $0xf18] sm:$0xff]
    %v7652 = vld [vmem:[#allocation24 + $0xf20] sm:$0xff]
    %v7653 = vld [vmem:[#allocation24 + $0xf28] sm:$0xff]
    %v7654 = vld [vmem:[#allocation24 + $0xf30] sm:$0xf]
    %v7655 = vld [vmem:[#allocation24 + $0xf34] sm:$0xff]
    %v7656 = vld [vmem:[#allocation24 + $0xf3c] sm:$0xff]
    %v7657 = vld [vmem:[#allocation24 + $0xf44] sm:$0xff]
    %v7658 = vld [vmem:[#allocation24 + $0xf4c] sm:$0xf]
    %v7659 = vld [vmem:[#allocation24 + $0xf50] sm:$0xff]
    %v7660 = vld [vmem:[#allocation24 + $0xf58] sm:$0xff]
    %v7661 = vld [vmem:[#allocation24 + $0xf60] sm:$0xff]
    %v7662 = vld [vmem:[#allocation24 + $0xf68] sm:$0xf]
    %v7663 = vld [vmem:[#allocation24 + $0xf6c] sm:$0xff]
    %v7664 = vld [vmem:[#allocation24 + $0xf74] sm:$0xff]
    %v7665 = vld [vmem:[#allocation24 + $0xf7c] sm:$0xff]
    %v7666 = vld [vmem:[#allocation24 + $0xf84] sm:$0xf]
    %v7667 = vld [vmem:[#allocation24 + $0xf88] sm:$0xff]
    %v7668 = vld [vmem:[#allocation24 + $0xf90] sm:$0xff]
    %v7669 = vld [vmem:[#allocation24 + $0xf98] sm:$0xff]
    %v7670 = vld [vmem:[#allocation24 + $0xfa0] sm:$0xf]
    %v7671 = vld [vmem:[#allocation24 + $0xfa4] sm:$0xff]
    %v7672 = vld [vmem:[#allocation24 + $0xfac] sm:$0xff]
    %v7673 = vld [vmem:[#allocation24 + $0xfb4] sm:$0xff]
    %v7674 = vld [vmem:[#allocation24 + $0xfbc] sm:$0xf]
    %v7675 = vld [vmem:[#allocation25] sm:$0xff]
    %v7677 = vlaneseq
    %v7678 = vshrl.u32 %v7677, 7
    %v7679 = vsub.s32 0, %v7678
    %v7680 = vrot.slane %v7675, %v7679
    %v7681 = vlaneseq
    %v7682 = vshrl.u32 %v7681, 7
    %v7683 = vsub.s32 1, %v7682
    %v7684 = vrot.slane %v7675, %v7683
    %v7685 = vlaneseq
    %v7686 = vshrl.u32 %v7685, 7
    %v7687 = vsub.s32 2, %v7686
    %v7688 = vrot.slane %v7675, %v7687
    %v7689 = vlaneseq
    %v7690 = vshrl.u32 %v7689, 7
    %v7691 = vsub.s32 3, %v7690
    %v7692 = vrot.slane %v7675, %v7691
    %v7693 = vlaneseq
    %v7694 = vshrl.u32 %v7693, 7
    %v7695 = vsub.s32 4, %v7694
    %v7696 = vrot.slane %v7675, %v7695
    %v7697 = vlaneseq
    %v7698 = vshrl.u32 %v7697, 7
    %v7699 = vsub.s32 5, %v7698
    %v7700 = vrot.slane %v7675, %v7699
    %v7701 = vlaneseq
    %v7702 = vshrl.u32 %v7701, 7
    %v7703 = vsub.s32 6, %v7702
    %v7704 = vrot.slane %v7675, %v7703
    %v8288 = vunpack.c.l.b16 %v7099
    %v8289 = vunpack.c.h.b16 %v7099
    %v8290 = vunpack.c.l.b16 %v7100
    %v8291 = vunpack.c.h.b16 %v7100
    %v8292 = vunpack.c.l.b16 %v7101
    %v8293 = vunpack.c.h.b16 %v7101
    %v8294 = vunpack.c.l.b16 %v7102
    %v8295 = vunpack.c.l.b16 %v7103
    %v8296 = vunpack.c.h.b16 %v7103
    %v8297 = vunpack.c.l.b16 %v7104
    %v8298 = vunpack.c.h.b16 %v7104
    %v8299 = vunpack.c.l.b16 %v7105
    %v8300 = vunpack.c.h.b16 %v7105
    %v8301 = vunpack.c.l.b16 %v7106
    %v8302 = vunpack.c.l.b16 %v7107
    %v8303 = vunpack.c.h.b16 %v7107
    %v8304 = vunpack.c.l.b16 %v7108
    %v8305 = vunpack.c.h.b16 %v7108
    %v8306 = vunpack.c.l.b16 %v7109
    %v8307 = vunpack.c.h.b16 %v7109
    %v8308 = vunpack.c.l.b16 %v7110
    %v8309 = vunpack.c.l.b16 %v7111
    %v8310 = vunpack.c.h.b16 %v7111
    %v8311 = vunpack.c.l.b16 %v7112
    %v8312 = vunpack.c.h.b16 %v7112
    %v8313 = vunpack.c.l.b16 %v7113
    %v8314 = vunpack.c.h.b16 %v7113
    %v8315 = vunpack.c.l.b16 %v7114
    %v8316 = vunpack.c.l.b16 %v7115
    %v8317 = vunpack.c.h.b16 %v7115
    %v8318 = vunpack.c.l.b16 %v7116
    %v8319 = vunpack.c.h.b16 %v7116
    %v8320 = vunpack.c.l.b16 %v7117
    %v8321 = vunpack.c.h.b16 %v7117
    %v8322 = vunpack.c.l.b16 %v7118
    %v8323 = vunpack.c.l.b16 %v7119
    %v8324 = vunpack.c.h.b16 %v7119
    %v8325 = vunpack.c.l.b16 %v7120
    %v8326 = vunpack.c.h.b16 %v7120
    %v8327 = vunpack.c.l.b16 %v7121
    %v8328 = vunpack.c.h.b16 %v7121
    %v8329 = vunpack.c.l.b16 %v7122
    %v8330 = vunpack.c.l.b16 %v7123
    %v8331 = vunpack.c.h.b16 %v7123
    %v8332 = vunpack.c.l.b16 %v7124
    %v8333 = vunpack.c.h.b16 %v7124
    %v8334 = vunpack.c.l.b16 %v7125
    %v8335 = vunpack.c.h.b16 %v7125
    %v8336 = vunpack.c.l.b16 %v7126
    %v8337 = vunpack.c.l.b16 %v7127
    %v8338 = vunpack.c.h.b16 %v7127
    %v8339 = vunpack.c.l.b16 %v7128
    %v8340 = vunpack.c.h.b16 %v7128
    %v8341 = vunpack.c.l.b16 %v7129
    %v8342 = vunpack.c.h.b16 %v7129
    %v8343 = vunpack.c.l.b16 %v7130
    %v8344 = vunpack.c.l.b16 %v7131
    %v8345 = vunpack.c.h.b16 %v7131
    %v8346 = vunpack.c.l.b16 %v7132
    %v8347 = vunpack.c.h.b16 %v7132
    %v8348 = vunpack.c.l.b16 %v7133
    %v8349 = vunpack.c.h.b16 %v7133
    %v8350 = vunpack.c.l.b16 %v7134
    %v8351 = vunpack.c.l.b16 %v7135
    %v8352 = vunpack.c.h.b16 %v7135
    %v8353 = vunpack.c.l.b16 %v7136
    %v8354 = vunpack.c.h.b16 %v7136
    %v8355 = vunpack.c.l.b16 %v7137
    %v8356 = vunpack.c.h.b16 %v7137
    %v8357 = vunpack.c.l.b16 %v7138
    %v8358 = vunpack.c.l.b16 %v7139
    %v8359 = vunpack.c.h.b16 %v7139
    %v8360 = vunpack.c.l.b16 %v7140
    %v8361 = vunpack.c.h.b16 %v7140
    %v8362 = vunpack.c.l.b16 %v7141
    %v8363 = vunpack.c.h.b16 %v7141
    %v8364 = vunpack.c.l.b16 %v7142
    %v8365 = vunpack.c.l.b16 %v7143
    %v8366 = vunpack.c.h.b16 %v7143
    %v8367 = vunpack.c.l.b16 %v7144
    %v8368 = vunpack.c.h.b16 %v7144
    %v8369 = vunpack.c.l.b16 %v7145
    %v8370 = vunpack.c.h.b16 %v7145
    %v8371 = vunpack.c.l.b16 %v7146
    %v8372 = vunpack.c.l.b16 %v7147
    %v8373 = vunpack.c.h.b16 %v7147
    %v8374 = vunpack.c.l.b16 %v7148
    %v8375 = vunpack.c.h.b16 %v7148
    %v8376 = vunpack.c.l.b16 %v7149
    %v8377 = vunpack.c.h.b16 %v7149
    %v8378 = vunpack.c.l.b16 %v7150
    %v8379 = vunpack.c.l.b16 %v7151
    %v8380 = vunpack.c.h.b16 %v7151
    %v8381 = vunpack.c.l.b16 %v7152
    %v8382 = vunpack.c.h.b16 %v7152
    %v8383 = vunpack.c.l.b16 %v7153
    %v8384 = vunpack.c.h.b16 %v7153
    %v8385 = vunpack.c.l.b16 %v7154
    %v8386 = vunpack.c.l.b16 %v7155
    %v8387 = vunpack.c.h.b16 %v7155
    %v8388 = vunpack.c.l.b16 %v7156
    %v8389 = vunpack.c.h.b16 %v7156
    %v8390 = vunpack.c.l.b16 %v7157
    %v8391 = vunpack.c.h.b16 %v7157
    %v8392 = vunpack.c.l.b16 %v7158
    %v8393 = vunpack.c.l.b16 %v7159
    %v8394 = vunpack.c.h.b16 %v7159
    %v8395 = vunpack.c.l.b16 %v7160
    %v8396 = vunpack.c.h.b16 %v7160
    %v8397 = vunpack.c.l.b16 %v7161
    %v8398 = vunpack.c.h.b16 %v7161
    %v8399 = vunpack.c.l.b16 %v7162
    %v8400 = vunpack.c.l.b16 %v7163
    %v8401 = vunpack.c.h.b16 %v7163
    %v8402 = vunpack.c.l.b16 %v7164
    %v8403 = vunpack.c.h.b16 %v7164
    %v8404 = vunpack.c.l.b16 %v7165
    %v8405 = vunpack.c.h.b16 %v7165
    %v8406 = vunpack.c.l.b16 %v7166
    %v8407 = vunpack.c.l.b16 %v7167
    %v8408 = vunpack.c.h.b16 %v7167
    %v8409 = vunpack.c.l.b16 %v7168
    %v8410 = vunpack.c.h.b16 %v7168
    %v8411 = vunpack.c.l.b16 %v7169
    %v8412 = vunpack.c.h.b16 %v7169
    %v8413 = vunpack.c.l.b16 %v7170
    %v8414 = vunpack.c.l.b16 %v7171
    %v8415 = vunpack.c.h.b16 %v7171
    %v8416 = vunpack.c.l.b16 %v7172
    %v8417 = vunpack.c.h.b16 %v7172
    %v8418 = vunpack.c.l.b16 %v7173
    %v8419 = vunpack.c.h.b16 %v7173
    %v8420 = vunpack.c.l.b16 %v7174
    %v8421 = vunpack.c.l.b16 %v7175
    %v8422 = vunpack.c.h.b16 %v7175
    %v8423 = vunpack.c.l.b16 %v7176
    %v8424 = vunpack.c.h.b16 %v7176
    %v8425 = vunpack.c.l.b16 %v7177
    %v8426 = vunpack.c.h.b16 %v7177
    %v8427 = vunpack.c.l.b16 %v7178
    %v8428 = vunpack.c.l.b16 %v7179
    %v8429 = vunpack.c.h.b16 %v7179
    %v8430 = vunpack.c.l.b16 %v7180
    %v8431 = vunpack.c.h.b16 %v7180
    %v8432 = vunpack.c.l.b16 %v7181
    %v8433 = vunpack.c.h.b16 %v7181
    %v8434 = vunpack.c.l.b16 %v7182
    %v8435 = vunpack.c.l.b16 %v7183
    %v8436 = vunpack.c.h.b16 %v7183
    %v8437 = vunpack.c.l.b16 %v7184
    %v8438 = vunpack.c.h.b16 %v7184
    %v8439 = vunpack.c.l.b16 %v7185
    %v8440 = vunpack.c.h.b16 %v7185
    %v8441 = vunpack.c.l.b16 %v7186
    %v8442 = vunpack.c.l.b16 %v7187
    %v8443 = vunpack.c.h.b16 %v7187
    %v8444 = vunpack.c.l.b16 %v7188
    %v8445 = vunpack.c.h.b16 %v7188
    %v8446 = vunpack.c.l.b16 %v7189
    %v8447 = vunpack.c.h.b16 %v7189
    %v8448 = vunpack.c.l.b16 %v7190
    %v8449 = vunpack.c.l.b16 %v7191
    %v8450 = vunpack.c.h.b16 %v7191
    %v8451 = vunpack.c.l.b16 %v7192
    %v8452 = vunpack.c.h.b16 %v7192
    %v8453 = vunpack.c.l.b16 %v7193
    %v8454 = vunpack.c.h.b16 %v7193
    %v8455 = vunpack.c.l.b16 %v7194
    %v8456 = vunpack.c.l.b16 %v7195
    %v8457 = vunpack.c.h.b16 %v7195
    %v8458 = vunpack.c.l.b16 %v7196
    %v8459 = vunpack.c.h.b16 %v7196
    %v8460 = vunpack.c.l.b16 %v7197
    %v8461 = vunpack.c.h.b16 %v7197
    %v8462 = vunpack.c.l.b16 %v7198
    %v8463 = vunpack.c.l.b16 %v7199
    %v8464 = vunpack.c.h.b16 %v7199
    %v8465 = vunpack.c.l.b16 %v7200
    %v8466 = vunpack.c.h.b16 %v7200
    %v8467 = vunpack.c.l.b16 %v7201
    %v8468 = vunpack.c.h.b16 %v7201
    %v8469 = vunpack.c.l.b16 %v7202
    %v8470 = vunpack.c.l.b16 %v7203
    %v8471 = vunpack.c.h.b16 %v7203
    %v8472 = vunpack.c.l.b16 %v7204
    %v8473 = vunpack.c.h.b16 %v7204
    %v8474 = vunpack.c.l.b16 %v7205
    %v8475 = vunpack.c.h.b16 %v7205
    %v8476 = vunpack.c.l.b16 %v7206
    %v8477 = vunpack.c.l.b16 %v7207
    %v8478 = vunpack.c.h.b16 %v7207
    %v8479 = vunpack.c.l.b16 %v7208
    %v8480 = vunpack.c.h.b16 %v7208
    %v8481 = vunpack.c.l.b16 %v7209
    %v8482 = vunpack.c.h.b16 %v7209
    %v8483 = vunpack.c.l.b16 %v7210
    %v8484 = vunpack.c.l.b16 %v7211
    %v8485 = vunpack.c.h.b16 %v7211
    %v8486 = vunpack.c.l.b16 %v7212
    %v8487 = vunpack.c.h.b16 %v7212
    %v8488 = vunpack.c.l.b16 %v7213
    %v8489 = vunpack.c.h.b16 %v7213
    %v8490 = vunpack.c.l.b16 %v7214
    %v8491 = vunpack.c.l.b16 %v7215
    %v8492 = vunpack.c.h.b16 %v7215
    %v8493 = vunpack.c.l.b16 %v7216
    %v8494 = vunpack.c.h.b16 %v7216
    %v8495 = vunpack.c.l.b16 %v7217
    %v8496 = vunpack.c.h.b16 %v7217
    %v8497 = vunpack.c.l.b16 %v7218
    %v8498 = vunpack.c.l.b16 %v7219
    %v8499 = vunpack.c.h.b16 %v7219
    %v8500 = vunpack.c.l.b16 %v7220
    %v8501 = vunpack.c.h.b16 %v7220
    %v8502 = vunpack.c.l.b16 %v7221
    %v8503 = vunpack.c.h.b16 %v7221
    %v8504 = vunpack.c.l.b16 %v7222
    %v8505 = vunpack.c.l.b16 %v7223
    %v8506 = vunpack.c.h.b16 %v7223
    %v8507 = vunpack.c.l.b16 %v7224
    %v8508 = vunpack.c.h.b16 %v7224
    %v8509 = vunpack.c.l.b16 %v7225
    %v8510 = vunpack.c.h.b16 %v7225
    %v8511 = vunpack.c.l.b16 %v7226
    %v8512 = vunpack.c.l.b16 %v7227
    %v8513 = vunpack.c.h.b16 %v7227
    %v8514 = vunpack.c.l.b16 %v7228
    %v8515 = vunpack.c.h.b16 %v7228
    %v8516 = vunpack.c.l.b16 %v7229
    %v8517 = vunpack.c.h.b16 %v7229
    %v8518 = vunpack.c.l.b16 %v7230
    %v8519 = vunpack.c.l.b16 %v7231
    %v8520 = vunpack.c.h.b16 %v7231
    %v8521 = vunpack.c.l.b16 %v7232
    %v8522 = vunpack.c.h.b16 %v7232
    %v8523 = vunpack.c.l.b16 %v7233
    %v8524 = vunpack.c.h.b16 %v7233
    %v8525 = vunpack.c.l.b16 %v7234
    %v8526 = vunpack.c.l.b16 %v7235
    %v8527 = vunpack.c.h.b16 %v7235
    %v8528 = vunpack.c.l.b16 %v7236
    %v8529 = vunpack.c.h.b16 %v7236
    %v8530 = vunpack.c.l.b16 %v7237
    %v8531 = vunpack.c.h.b16 %v7237
    %v8532 = vunpack.c.l.b16 %v7238
    %v8533 = vunpack.c.l.b16 %v7239
    %v8534 = vunpack.c.h.b16 %v7239
    %v8535 = vunpack.c.l.b16 %v7240
    %v8536 = vunpack.c.h.b16 %v7240
    %v8537 = vunpack.c.l.b16 %v7241
    %v8538 = vunpack.c.h.b16 %v7241
    %v8539 = vunpack.c.l.b16 %v7242
    %v8540 = vunpack.c.l.b16 %v7243
    %v8541 = vunpack.c.h.b16 %v7243
    %v8542 = vunpack.c.l.b16 %v7244
    %v8543 = vunpack.c.h.b16 %v7244
    %v8544 = vunpack.c.l.b16 %v7245
    %v8545 = vunpack.c.h.b16 %v7245
    %v8546 = vunpack.c.l.b16 %v7246
    %v8547 = vunpack.c.l.b16 %v7247
    %v8548 = vunpack.c.h.b16 %v7247
    %v8549 = vunpack.c.l.b16 %v7248
    %v8550 = vunpack.c.h.b16 %v7248
    %v8551 = vunpack.c.l.b16 %v7249
    %v8552 = vunpack.c.h.b16 %v7249
    %v8553 = vunpack.c.l.b16 %v7250
    %v8554 = vunpack.c.l.b16 %v7251
    %v8555 = vunpack.c.h.b16 %v7251
    %v8556 = vunpack.c.l.b16 %v7252
    %v8557 = vunpack.c.h.b16 %v7252
    %v8558 = vunpack.c.l.b16 %v7253
    %v8559 = vunpack.c.h.b16 %v7253
    %v8560 = vunpack.c.l.b16 %v7254
    %v8561 = vunpack.c.l.b16 %v7255
    %v8562 = vunpack.c.h.b16 %v7255
    %v8563 = vunpack.c.l.b16 %v7256
    %v8564 = vunpack.c.h.b16 %v7256
    %v8565 = vunpack.c.l.b16 %v7257
    %v8566 = vunpack.c.h.b16 %v7257
    %v8567 = vunpack.c.l.b16 %v7258
    %v8568 = vunpack.c.l.b16 %v7259
    %v8569 = vunpack.c.h.b16 %v7259
    %v8570 = vunpack.c.l.b16 %v7260
    %v8571 = vunpack.c.h.b16 %v7260
    %v8572 = vunpack.c.l.b16 %v7261
    %v8573 = vunpack.c.h.b16 %v7261
    %v8574 = vunpack.c.l.b16 %v7262
    %v8575 = vunpack.c.l.b16 %v7263
    %v8576 = vunpack.c.h.b16 %v7263
    %v8577 = vunpack.c.l.b16 %v7264
    %v8578 = vunpack.c.h.b16 %v7264
    %v8579 = vunpack.c.l.b16 %v7265
    %v8580 = vunpack.c.h.b16 %v7265
    %v8581 = vunpack.c.l.b16 %v7266
    %v8582 = vunpack.c.l.b16 %v7267
    %v8583 = vunpack.c.h.b16 %v7267
    %v8584 = vunpack.c.l.b16 %v7268
    %v8585 = vunpack.c.h.b16 %v7268
    %v8586 = vunpack.c.l.b16 %v7269
    %v8587 = vunpack.c.h.b16 %v7269
    %v8588 = vunpack.c.l.b16 %v7270
    %v8589 = vunpack.c.l.b16 %v7271
    %v8590 = vunpack.c.h.b16 %v7271
    %v8591 = vunpack.c.l.b16 %v7272
    %v8592 = vunpack.c.h.b16 %v7272
    %v8593 = vunpack.c.l.b16 %v7273
    %v8594 = vunpack.c.h.b16 %v7273
    %v8595 = vunpack.c.l.b16 %v7274
    %v8596 = vunpack.c.l.b16 %v7275
    %v8597 = vunpack.c.h.b16 %v7275
    %v8598 = vunpack.c.l.b16 %v7276
    %v8599 = vunpack.c.h.b16 %v7276
    %v8600 = vunpack.c.l.b16 %v7277
    %v8601 = vunpack.c.h.b16 %v7277
    %v8602 = vunpack.c.l.b16 %v7278
    %v8603 = vunpack.c.l.b16 %v7279
    %v8604 = vunpack.c.h.b16 %v7279
    %v8605 = vunpack.c.l.b16 %v7280
    %v8606 = vunpack.c.h.b16 %v7280
    %v8607 = vunpack.c.l.b16 %v7281
    %v8608 = vunpack.c.h.b16 %v7281
    %v8609 = vunpack.c.l.b16 %v7282
    %v8610 = vunpack.c.l.b16 %v7283
    %v8611 = vunpack.c.h.b16 %v7283
    %v8612 = vunpack.c.l.b16 %v7284
    %v8613 = vunpack.c.h.b16 %v7284
    %v8614 = vunpack.c.l.b16 %v7285
    %v8615 = vunpack.c.h.b16 %v7285
    %v8616 = vunpack.c.l.b16 %v7286
    %v8617 = vunpack.c.l.b16 %v7287
    %v8618 = vunpack.c.h.b16 %v7287
    %v8619 = vunpack.c.l.b16 %v7288
    %v8620 = vunpack.c.h.b16 %v7288
    %v8621 = vunpack.c.l.b16 %v7289
    %v8622 = vunpack.c.h.b16 %v7289
    %v8623 = vunpack.c.l.b16 %v7290
    %v8624 = vunpack.c.l.b16 %v7291
    %v8625 = vunpack.c.h.b16 %v7291
    %v8626 = vunpack.c.l.b16 %v7292
    %v8627 = vunpack.c.h.b16 %v7292
    %v8628 = vunpack.c.l.b16 %v7293
    %v8629 = vunpack.c.h.b16 %v7293
    %v8630 = vunpack.c.l.b16 %v7294
    %v8631 = vunpack.c.l.b16 %v7295
    %v8632 = vunpack.c.h.b16 %v7295
    %v8633 = vunpack.c.l.b16 %v7296
    %v8634 = vunpack.c.h.b16 %v7296
    %v8635 = vunpack.c.l.b16 %v7297
    %v8636 = vunpack.c.h.b16 %v7297
    %v8637 = vunpack.c.l.b16 %v7298
    %v8638 = vunpack.c.l.b16 %v7299
    %v8639 = vunpack.c.h.b16 %v7299
    %v8640 = vunpack.c.l.b16 %v7300
    %v8641 = vunpack.c.h.b16 %v7300
    %v8642 = vunpack.c.l.b16 %v7301
    %v8643 = vunpack.c.h.b16 %v7301
    %v8644 = vunpack.c.l.b16 %v7302
    %v8645 = vunpack.c.l.b16 %v7303
    %v8646 = vunpack.c.h.b16 %v7303
    %v8647 = vunpack.c.l.b16 %v7304
    %v8648 = vunpack.c.h.b16 %v7304
    %v8649 = vunpack.c.l.b16 %v7305
    %v8650 = vunpack.c.h.b16 %v7305
    %v8651 = vunpack.c.l.b16 %v7306
    %v8652 = vunpack.c.l.b16 %v7307
    %v8653 = vunpack.c.h.b16 %v7307
    %v8654 = vunpack.c.l.b16 %v7308
    %v8655 = vunpack.c.h.b16 %v7308
    %v8656 = vunpack.c.l.b16 %v7309
    %v8657 = vunpack.c.h.b16 %v7309
    %v8658 = vunpack.c.l.b16 %v7310
    %v8659 = vunpack.c.l.b16 %v7311
    %v8660 = vunpack.c.h.b16 %v7311
    %v8661 = vunpack.c.l.b16 %v7312
    %v8662 = vunpack.c.h.b16 %v7312
    %v8663 = vunpack.c.l.b16 %v7313
    %v8664 = vunpack.c.h.b16 %v7313
    %v8665 = vunpack.c.l.b16 %v7314
    %v8666 = vunpack.c.l.b16 %v7315
    %v8667 = vunpack.c.h.b16 %v7315
    %v8668 = vunpack.c.l.b16 %v7316
    %v8669 = vunpack.c.h.b16 %v7316
    %v8670 = vunpack.c.l.b16 %v7317
    %v8671 = vunpack.c.h.b16 %v7317
    %v8672 = vunpack.c.l.b16 %v7318
    %v8673 = vunpack.c.l.b16 %v7319
    %v8674 = vunpack.c.h.b16 %v7319
    %v8675 = vunpack.c.l.b16 %v7320
    %v8676 = vunpack.c.h.b16 %v7320
    %v8677 = vunpack.c.l.b16 %v7321
    %v8678 = vunpack.c.h.b16 %v7321
    %v8679 = vunpack.c.l.b16 %v7322
    %v8680 = vunpack.c.l.b16 %v7323
    %v8681 = vunpack.c.h.b16 %v7323
    %v8682 = vunpack.c.l.b16 %v7324
    %v8683 = vunpack.c.h.b16 %v7324
    %v8684 = vunpack.c.l.b16 %v7325
    %v8685 = vunpack.c.h.b16 %v7325
    %v8686 = vunpack.c.l.b16 %v7326
    %v8687 = vunpack.c.l.b16 %v7327
    %v8688 = vunpack.c.h.b16 %v7327
    %v8689 = vunpack.c.l.b16 %v7328
    %v8690 = vunpack.c.h.b16 %v7328
    %v8691 = vunpack.c.l.b16 %v7329
    %v8692 = vunpack.c.h.b16 %v7329
    %v8693 = vunpack.c.l.b16 %v7330
    %v8694 = vunpack.c.l.b16 %v7331
    %v8695 = vunpack.c.h.b16 %v7331
    %v8696 = vunpack.c.l.b16 %v7332
    %v8697 = vunpack.c.h.b16 %v7332
    %v8698 = vunpack.c.l.b16 %v7333
    %v8699 = vunpack.c.h.b16 %v7333
    %v8700 = vunpack.c.l.b16 %v7334
    %v8701 = vunpack.c.l.b16 %v7335
    %v8702 = vunpack.c.h.b16 %v7335
    %v8703 = vunpack.c.l.b16 %v7336
    %v8704 = vunpack.c.h.b16 %v7336
    %v8705 = vunpack.c.l.b16 %v7337
    %v8706 = vunpack.c.h.b16 %v7337
    %v8707 = vunpack.c.l.b16 %v7338
    %v8708 = vunpack.c.l.b16 %v7339
    %v8709 = vunpack.c.h.b16 %v7339
    %v8710 = vunpack.c.l.b16 %v7340
    %v8711 = vunpack.c.h.b16 %v7340
    %v8712 = vunpack.c.l.b16 %v7341
    %v8713 = vunpack.c.h.b16 %v7341
    %v8714 = vunpack.c.l.b16 %v7342
    %v8715 = vunpack.c.l.b16 %v7343
    %v8716 = vunpack.c.h.b16 %v7343
    %v8717 = vunpack.c.l.b16 %v7344
    %v8718 = vunpack.c.h.b16 %v7344
    %v8719 = vunpack.c.l.b16 %v7345
    %v8720 = vunpack.c.h.b16 %v7345
    %v8721 = vunpack.c.l.b16 %v7346
    %v8722 = vunpack.c.l.b16 %v7347
    %v8723 = vunpack.c.h.b16 %v7347
    %v8724 = vunpack.c.l.b16 %v7348
    %v8725 = vunpack.c.h.b16 %v7348
    %v8726 = vunpack.c.l.b16 %v7349
    %v8727 = vunpack.c.h.b16 %v7349
    %v8728 = vunpack.c.l.b16 %v7350
    %v8729 = vunpack.c.l.b16 %v7351
    %v8730 = vunpack.c.h.b16 %v7351
    %v8731 = vunpack.c.l.b16 %v7352
    %v8732 = vunpack.c.h.b16 %v7352
    %v8733 = vunpack.c.l.b16 %v7353
    %v8734 = vunpack.c.h.b16 %v7353
    %v8735 = vunpack.c.l.b16 %v7354
    %v8736 = vunpack.c.l.b16 %v7355
    %v8737 = vunpack.c.h.b16 %v7355
    %v8738 = vunpack.c.l.b16 %v7356
    %v8739 = vunpack.c.h.b16 %v7356
    %v8740 = vunpack.c.l.b16 %v7357
    %v8741 = vunpack.c.h.b16 %v7357
    %v8742 = vunpack.c.l.b16 %v7358
    %v8743 = vunpack.c.l.b16 %v7359
    %v8744 = vunpack.c.h.b16 %v7359
    %v8745 = vunpack.c.l.b16 %v7360
    %v8746 = vunpack.c.h.b16 %v7360
    %v8747 = vunpack.c.l.b16 %v7361
    %v8748 = vunpack.c.h.b16 %v7361
    %v8749 = vunpack.c.l.b16 %v7362
    %v8750 = vunpack.c.l.b16 %v7363
    %v8751 = vunpack.c.h.b16 %v7363
    %v8752 = vunpack.c.l.b16 %v7364
    %v8753 = vunpack.c.h.b16 %v7364
    %v8754 = vunpack.c.l.b16 %v7365
    %v8755 = vunpack.c.h.b16 %v7365
    %v8756 = vunpack.c.l.b16 %v7366
    %v8757 = vunpack.c.l.b16 %v7367
    %v8758 = vunpack.c.h.b16 %v7367
    %v8759 = vunpack.c.l.b16 %v7368
    %v8760 = vunpack.c.h.b16 %v7368
    %v8761 = vunpack.c.l.b16 %v7369
    %v8762 = vunpack.c.h.b16 %v7369
    %v8763 = vunpack.c.l.b16 %v7370
    %v8764 = vunpack.c.l.b16 %v7371
    %v8765 = vunpack.c.h.b16 %v7371
    %v8766 = vunpack.c.l.b16 %v7372
    %v8767 = vunpack.c.h.b16 %v7372
    %v8768 = vunpack.c.l.b16 %v7373
    %v8769 = vunpack.c.h.b16 %v7373
    %v8770 = vunpack.c.l.b16 %v7374
    %v8771 = vunpack.c.l.b16 %v7375
    %v8772 = vunpack.c.h.b16 %v7375
    %v8773 = vunpack.c.l.b16 %v7376
    %v8774 = vunpack.c.h.b16 %v7376
    %v8775 = vunpack.c.l.b16 %v7377
    %v8776 = vunpack.c.h.b16 %v7377
    %v8777 = vunpack.c.l.b16 %v7378
    %v8778 = vunpack.c.l.b16 %v7379
    %v8779 = vunpack.c.h.b16 %v7379
    %v8780 = vunpack.c.l.b16 %v7380
    %v8781 = vunpack.c.h.b16 %v7380
    %v8782 = vunpack.c.l.b16 %v7381
    %v8783 = vunpack.c.h.b16 %v7381
    %v8784 = vunpack.c.l.b16 %v7382
    %v8785 = vunpack.c.l.b16 %v7383
    %v8786 = vunpack.c.h.b16 %v7383
    %v8787 = vunpack.c.l.b16 %v7384
    %v8788 = vunpack.c.h.b16 %v7384
    %v8789 = vunpack.c.l.b16 %v7385
    %v8790 = vunpack.c.h.b16 %v7385
    %v8791 = vunpack.c.l.b16 %v7386
    %v8792 = vunpack.c.l.b16 %v7387
    %v8793 = vunpack.c.h.b16 %v7387
    %v8794 = vunpack.c.l.b16 %v7388
    %v8795 = vunpack.c.h.b16 %v7388
    %v8796 = vunpack.c.l.b16 %v7389
    %v8797 = vunpack.c.h.b16 %v7389
    %v8798 = vunpack.c.l.b16 %v7390
    %v8799 = vunpack.c.l.b16 %v7391
    %v8800 = vunpack.c.h.b16 %v7391
    %v8801 = vunpack.c.l.b16 %v7392
    %v8802 = vunpack.c.h.b16 %v7392
    %v8803 = vunpack.c.l.b16 %v7393
    %v8804 = vunpack.c.h.b16 %v7393
    %v8805 = vunpack.c.l.b16 %v7394
    %v8806 = vunpack.c.l.b16 %v7395
    %v8807 = vunpack.c.h.b16 %v7395
    %v8808 = vunpack.c.l.b16 %v7396
    %v8809 = vunpack.c.h.b16 %v7396
    %v8810 = vunpack.c.l.b16 %v7397
    %v8811 = vunpack.c.h.b16 %v7397
    %v8812 = vunpack.c.l.b16 %v7398
    %v8813 = vunpack.c.l.b16 %v7399
    %v8814 = vunpack.c.h.b16 %v7399
    %v8815 = vunpack.c.l.b16 %v7400
    %v8816 = vunpack.c.h.b16 %v7400
    %v8817 = vunpack.c.l.b16 %v7401
    %v8818 = vunpack.c.h.b16 %v7401
    %v8819 = vunpack.c.l.b16 %v7402
    %v8820 = vunpack.c.l.b16 %v7403
    %v8821 = vunpack.c.h.b16 %v7403
    %v8822 = vunpack.c.l.b16 %v7404
    %v8823 = vunpack.c.h.b16 %v7404
    %v8824 = vunpack.c.l.b16 %v7405
    %v8825 = vunpack.c.h.b16 %v7405
    %v8826 = vunpack.c.l.b16 %v7406
    %v8827 = vunpack.c.l.b16 %v7407
    %v8828 = vunpack.c.h.b16 %v7407
    %v8829 = vunpack.c.l.b16 %v7408
    %v8830 = vunpack.c.h.b16 %v7408
    %v8831 = vunpack.c.l.b16 %v7409
    %v8832 = vunpack.c.h.b16 %v7409
    %v8833 = vunpack.c.l.b16 %v7410
    %v8834 = vunpack.c.l.b16 %v7411
    %v8835 = vunpack.c.h.b16 %v7411
    %v8836 = vunpack.c.l.b16 %v7412
    %v8837 = vunpack.c.h.b16 %v7412
    %v8838 = vunpack.c.l.b16 %v7413
    %v8839 = vunpack.c.h.b16 %v7413
    %v8840 = vunpack.c.l.b16 %v7414
    %v8841 = vunpack.c.l.b16 %v7415
    %v8842 = vunpack.c.h.b16 %v7415
    %v8843 = vunpack.c.l.b16 %v7416
    %v8844 = vunpack.c.h.b16 %v7416
    %v8845 = vunpack.c.l.b16 %v7417
    %v8846 = vunpack.c.h.b16 %v7417
    %v8847 = vunpack.c.l.b16 %v7418
    %v8848 = vunpack.c.l.b16 %v7419
    %v8849 = vunpack.c.h.b16 %v7419
    %v8850 = vunpack.c.l.b16 %v7420
    %v8851 = vunpack.c.h.b16 %v7420
    %v8852 = vunpack.c.l.b16 %v7421
    %v8853 = vunpack.c.h.b16 %v7421
    %v8854 = vunpack.c.l.b16 %v7422
    %v8855 = vunpack.c.l.b16 %v7423
    %v8856 = vunpack.c.h.b16 %v7423
    %v8857 = vunpack.c.l.b16 %v7424
    %v8858 = vunpack.c.h.b16 %v7424
    %v8859 = vunpack.c.l.b16 %v7425
    %v8860 = vunpack.c.h.b16 %v7425
    %v8861 = vunpack.c.l.b16 %v7426
    %v8862 = vunpack.c.l.b16 %v7427
    %v8863 = vunpack.c.h.b16 %v7427
    %v8864 = vunpack.c.l.b16 %v7428
    %v8865 = vunpack.c.h.b16 %v7428
    %v8866 = vunpack.c.l.b16 %v7429
    %v8867 = vunpack.c.h.b16 %v7429
    %v8868 = vunpack.c.l.b16 %v7430
    %v8869 = vunpack.c.l.b16 %v7431
    %v8870 = vunpack.c.h.b16 %v7431
    %v8871 = vunpack.c.l.b16 %v7432
    %v8872 = vunpack.c.h.b16 %v7432
    %v8873 = vunpack.c.l.b16 %v7433
    %v8874 = vunpack.c.h.b16 %v7433
    %v8875 = vunpack.c.l.b16 %v7434
    %v8876 = vunpack.c.l.b16 %v7435
    %v8877 = vunpack.c.h.b16 %v7435
    %v8878 = vunpack.c.l.b16 %v7436
    %v8879 = vunpack.c.h.b16 %v7436
    %v8880 = vunpack.c.l.b16 %v7437
    %v8881 = vunpack.c.h.b16 %v7437
    %v8882 = vunpack.c.l.b16 %v7438
    %v8883 = vunpack.c.l.b16 %v7439
    %v8884 = vunpack.c.h.b16 %v7439
    %v8885 = vunpack.c.l.b16 %v7440
    %v8886 = vunpack.c.h.b16 %v7440
    %v8887 = vunpack.c.l.b16 %v7441
    %v8888 = vunpack.c.h.b16 %v7441
    %v8889 = vunpack.c.l.b16 %v7442
    %v8890 = vunpack.c.l.b16 %v7443
    %v8891 = vunpack.c.h.b16 %v7443
    %v8892 = vunpack.c.l.b16 %v7444
    %v8893 = vunpack.c.h.b16 %v7444
    %v8894 = vunpack.c.l.b16 %v7445
    %v8895 = vunpack.c.h.b16 %v7445
    %v8896 = vunpack.c.l.b16 %v7446
    %v8897 = vunpack.c.l.b16 %v7447
    %v8898 = vunpack.c.h.b16 %v7447
    %v8899 = vunpack.c.l.b16 %v7448
    %v8900 = vunpack.c.h.b16 %v7448
    %v8901 = vunpack.c.l.b16 %v7449
    %v8902 = vunpack.c.h.b16 %v7449
    %v8903 = vunpack.c.l.b16 %v7450
    %v8904 = vunpack.c.l.b16 %v7451
    %v8905 = vunpack.c.h.b16 %v7451
    %v8906 = vunpack.c.l.b16 %v7452
    %v8907 = vunpack.c.h.b16 %v7452
    %v8908 = vunpack.c.l.b16 %v7453
    %v8909 = vunpack.c.h.b16 %v7453
    %v8910 = vunpack.c.l.b16 %v7454
    %v8911 = vunpack.c.l.b16 %v7455
    %v8912 = vunpack.c.h.b16 %v7455
    %v8913 = vunpack.c.l.b16 %v7456
    %v8914 = vunpack.c.h.b16 %v7456
    %v8915 = vunpack.c.l.b16 %v7457
    %v8916 = vunpack.c.h.b16 %v7457
    %v8917 = vunpack.c.l.b16 %v7458
    %v8918 = vunpack.c.l.b16 %v7459
    %v8919 = vunpack.c.h.b16 %v7459
    %v8920 = vunpack.c.l.b16 %v7460
    %v8921 = vunpack.c.h.b16 %v7460
    %v8922 = vunpack.c.l.b16 %v7461
    %v8923 = vunpack.c.h.b16 %v7461
    %v8924 = vunpack.c.l.b16 %v7462
    %v8925 = vunpack.c.l.b16 %v7463
    %v8926 = vunpack.c.h.b16 %v7463
    %v8927 = vunpack.c.l.b16 %v7464
    %v8928 = vunpack.c.h.b16 %v7464
    %v8929 = vunpack.c.l.b16 %v7465
    %v8930 = vunpack.c.h.b16 %v7465
    %v8931 = vunpack.c.l.b16 %v7466
    %v8932 = vunpack.c.l.b16 %v7467
    %v8933 = vunpack.c.h.b16 %v7467
    %v8934 = vunpack.c.l.b16 %v7468
    %v8935 = vunpack.c.h.b16 %v7468
    %v8936 = vunpack.c.l.b16 %v7469
    %v8937 = vunpack.c.h.b16 %v7469
    %v8938 = vunpack.c.l.b16 %v7470
    %v8939 = vunpack.c.l.b16 %v7471
    %v8940 = vunpack.c.h.b16 %v7471
    %v8941 = vunpack.c.l.b16 %v7472
    %v8942 = vunpack.c.h.b16 %v7472
    %v8943 = vunpack.c.l.b16 %v7473
    %v8944 = vunpack.c.h.b16 %v7473
    %v8945 = vunpack.c.l.b16 %v7474
    %v8946 = vunpack.c.l.b16 %v7475
    %v8947 = vunpack.c.h.b16 %v7475
    %v8948 = vunpack.c.l.b16 %v7476
    %v8949 = vunpack.c.h.b16 %v7476
    %v8950 = vunpack.c.l.b16 %v7477
    %v8951 = vunpack.c.h.b16 %v7477
    %v8952 = vunpack.c.l.b16 %v7478
    %v8953 = vunpack.c.l.b16 %v7479
    %v8954 = vunpack.c.h.b16 %v7479
    %v8955 = vunpack.c.l.b16 %v7480
    %v8956 = vunpack.c.h.b16 %v7480
    %v8957 = vunpack.c.l.b16 %v7481
    %v8958 = vunpack.c.h.b16 %v7481
    %v8959 = vunpack.c.l.b16 %v7482
    %v8960 = vunpack.c.l.b16 %v7483
    %v8961 = vunpack.c.h.b16 %v7483
    %v8962 = vunpack.c.l.b16 %v7484
    %v8963 = vunpack.c.h.b16 %v7484
    %v8964 = vunpack.c.l.b16 %v7485
    %v8965 = vunpack.c.h.b16 %v7485
    %v8966 = vunpack.c.l.b16 %v7486
    %v8967 = vunpack.c.l.b16 %v7487
    %v8968 = vunpack.c.h.b16 %v7487
    %v8969 = vunpack.c.l.b16 %v7488
    %v8970 = vunpack.c.h.b16 %v7488
    %v8971 = vunpack.c.l.b16 %v7489
    %v8972 = vunpack.c.h.b16 %v7489
    %v8973 = vunpack.c.l.b16 %v7490
    %v8974 = vunpack.c.l.b16 %v7491
    %v8975 = vunpack.c.h.b16 %v7491
    %v8976 = vunpack.c.l.b16 %v7492
    %v8977 = vunpack.c.h.b16 %v7492
    %v8978 = vunpack.c.l.b16 %v7493
    %v8979 = vunpack.c.h.b16 %v7493
    %v8980 = vunpack.c.l.b16 %v7494
    %v8981 = vunpack.c.l.b16 %v7495
    %v8982 = vunpack.c.h.b16 %v7495
    %v8983 = vunpack.c.l.b16 %v7496
    %v8984 = vunpack.c.h.b16 %v7496
    %v8985 = vunpack.c.l.b16 %v7497
    %v8986 = vunpack.c.h.b16 %v7497
    %v8987 = vunpack.c.l.b16 %v7498
    %v8988 = vunpack.c.l.b16 %v7499
    %v8989 = vunpack.c.h.b16 %v7499
    %v8990 = vunpack.c.l.b16 %v7500
    %v8991 = vunpack.c.h.b16 %v7500
    %v8992 = vunpack.c.l.b16 %v7501
    %v8993 = vunpack.c.h.b16 %v7501
    %v8994 = vunpack.c.l.b16 %v7502
    %v8995 = vunpack.c.l.b16 %v7503
    %v8996 = vunpack.c.h.b16 %v7503
    %v8997 = vunpack.c.l.b16 %v7504
    %v8998 = vunpack.c.h.b16 %v7504
    %v8999 = vunpack.c.l.b16 %v7505
    %v9000 = vunpack.c.h.b16 %v7505
    %v9001 = vunpack.c.l.b16 %v7506
    %v9002 = vunpack.c.l.b16 %v7507
    %v9003 = vunpack.c.h.b16 %v7507
    %v9004 = vunpack.c.l.b16 %v7508
    %v9005 = vunpack.c.h.b16 %v7508
    %v9006 = vunpack.c.l.b16 %v7509
    %v9007 = vunpack.c.h.b16 %v7509
    %v9008 = vunpack.c.l.b16 %v7510
    %v9009 = vunpack.c.l.b16 %v7511
    %v9010 = vunpack.c.h.b16 %v7511
    %v9011 = vunpack.c.l.b16 %v7512
    %v9012 = vunpack.c.h.b16 %v7512
    %v9013 = vunpack.c.l.b16 %v7513
    %v9014 = vunpack.c.h.b16 %v7513
    %v9015 = vunpack.c.l.b16 %v7514
    %v9016 = vunpack.c.l.b16 %v7515
    %v9017 = vunpack.c.h.b16 %v7515
    %v9018 = vunpack.c.l.b16 %v7516
    %v9019 = vunpack.c.h.b16 %v7516
    %v9020 = vunpack.c.l.b16 %v7517
    %v9021 = vunpack.c.h.b16 %v7517
    %v9022 = vunpack.c.l.b16 %v7518
    %v9023 = vunpack.c.l.b16 %v7519
    %v9024 = vunpack.c.h.b16 %v7519
    %v9025 = vunpack.c.l.b16 %v7520
    %v9026 = vunpack.c.h.b16 %v7520
    %v9027 = vunpack.c.l.b16 %v7521
    %v9028 = vunpack.c.h.b16 %v7521
    %v9029 = vunpack.c.l.b16 %v7522
    %v9030 = vunpack.c.l.b16 %v7523
    %v9031 = vunpack.c.h.b16 %v7523
    %v9032 = vunpack.c.l.b16 %v7524
    %v9033 = vunpack.c.h.b16 %v7524
    %v9034 = vunpack.c.l.b16 %v7525
    %v9035 = vunpack.c.h.b16 %v7525
    %v9036 = vunpack.c.l.b16 %v7526
    %v9037 = vunpack.c.l.b16 %v7527
    %v9038 = vunpack.c.h.b16 %v7527
    %v9039 = vunpack.c.l.b16 %v7528
    %v9040 = vunpack.c.h.b16 %v7528
    %v9041 = vunpack.c.l.b16 %v7529
    %v9042 = vunpack.c.h.b16 %v7529
    %v9043 = vunpack.c.l.b16 %v7530
    %v9044 = vunpack.c.l.b16 %v7531
    %v9045 = vunpack.c.h.b16 %v7531
    %v9046 = vunpack.c.l.b16 %v7532
    %v9047 = vunpack.c.h.b16 %v7532
    %v9048 = vunpack.c.l.b16 %v7533
    %v9049 = vunpack.c.h.b16 %v7533
    %v9050 = vunpack.c.l.b16 %v7534
    %v9051 = vunpack.c.l.b16 %v7535
    %v9052 = vunpack.c.h.b16 %v7535
    %v9053 = vunpack.c.l.b16 %v7536
    %v9054 = vunpack.c.h.b16 %v7536
    %v9055 = vunpack.c.l.b16 %v7537
    %v9056 = vunpack.c.h.b16 %v7537
    %v9057 = vunpack.c.l.b16 %v7538
    %v9058 = vunpack.c.l.b16 %v7539
    %v9059 = vunpack.c.h.b16 %v7539
    %v9060 = vunpack.c.l.b16 %v7540
    %v9061 = vunpack.c.h.b16 %v7540
    %v9062 = vunpack.c.l.b16 %v7541
    %v9063 = vunpack.c.h.b16 %v7541
    %v9064 = vunpack.c.l.b16 %v7542
    %v9065 = vunpack.c.l.b16 %v7543
    %v9066 = vunpack.c.h.b16 %v7543
    %v9067 = vunpack.c.l.b16 %v7544
    %v9068 = vunpack.c.h.b16 %v7544
    %v9069 = vunpack.c.l.b16 %v7545
    %v9070 = vunpack.c.h.b16 %v7545
    %v9071 = vunpack.c.l.b16 %v7546
    %v9072 = vunpack.c.l.b16 %v7547
    %v9073 = vunpack.c.h.b16 %v7547
    %v9074 = vunpack.c.l.b16 %v7548
    %v9075 = vunpack.c.h.b16 %v7548
    %v9076 = vunpack.c.l.b16 %v7549
    %v9077 = vunpack.c.h.b16 %v7549
    %v9078 = vunpack.c.l.b16 %v7550
    %v9079 = vunpack.c.l.b16 %v7551
    %v9080 = vunpack.c.h.b16 %v7551
    %v9081 = vunpack.c.l.b16 %v7552
    %v9082 = vunpack.c.h.b16 %v7552
    %v9083 = vunpack.c.l.b16 %v7553
    %v9084 = vunpack.c.h.b16 %v7553
    %v9085 = vunpack.c.l.b16 %v7554
    %v9086 = vunpack.c.l.b16 %v7555
    %v9087 = vunpack.c.h.b16 %v7555
    %v9088 = vunpack.c.l.b16 %v7556
    %v9089 = vunpack.c.h.b16 %v7556
    %v9090 = vunpack.c.l.b16 %v7557
    %v9091 = vunpack.c.h.b16 %v7557
    %v9092 = vunpack.c.l.b16 %v7558
    %v9093 = vunpack.c.l.b16 %v7559
    %v9094 = vunpack.c.h.b16 %v7559
    %v9095 = vunpack.c.l.b16 %v7560
    %v9096 = vunpack.c.h.b16 %v7560
    %v9097 = vunpack.c.l.b16 %v7561
    %v9098 = vunpack.c.h.b16 %v7561
    %v9099 = vunpack.c.l.b16 %v7562
    %v9100 = vunpack.c.l.b16 %v7563
    %v9101 = vunpack.c.h.b16 %v7563
    %v9102 = vunpack.c.l.b16 %v7564
    %v9103 = vunpack.c.h.b16 %v7564
    %v9104 = vunpack.c.l.b16 %v7565
    %v9105 = vunpack.c.h.b16 %v7565
    %v9106 = vunpack.c.l.b16 %v7566
    %v9107 = vunpack.c.l.b16 %v7567
    %v9108 = vunpack.c.h.b16 %v7567
    %v9109 = vunpack.c.l.b16 %v7568
    %v9110 = vunpack.c.h.b16 %v7568
    %v9111 = vunpack.c.l.b16 %v7569
    %v9112 = vunpack.c.h.b16 %v7569
    %v9113 = vunpack.c.l.b16 %v7570
    %v9114 = vunpack.c.l.b16 %v7571
    %v9115 = vunpack.c.h.b16 %v7571
    %v9116 = vunpack.c.l.b16 %v7572
    %v9117 = vunpack.c.h.b16 %v7572
    %v9118 = vunpack.c.l.b16 %v7573
    %v9119 = vunpack.c.h.b16 %v7573
    %v9120 = vunpack.c.l.b16 %v7574
    %v9121 = vunpack.c.l.b16 %v7575
    %v9122 = vunpack.c.h.b16 %v7575
    %v9123 = vunpack.c.l.b16 %v7576
    %v9124 = vunpack.c.h.b16 %v7576
    %v9125 = vunpack.c.l.b16 %v7577
    %v9126 = vunpack.c.h.b16 %v7577
    %v9127 = vunpack.c.l.b16 %v7578
    %v9128 = vunpack.c.l.b16 %v7579
    %v9129 = vunpack.c.h.b16 %v7579
    %v9130 = vunpack.c.l.b16 %v7580
    %v9131 = vunpack.c.h.b16 %v7580
    %v9132 = vunpack.c.l.b16 %v7581
    %v9133 = vunpack.c.h.b16 %v7581
    %v9134 = vunpack.c.l.b16 %v7582
    %v9135 = vunpack.c.l.b16 %v7583
    %v9136 = vunpack.c.h.b16 %v7583
    %v9137 = vunpack.c.l.b16 %v7584
    %v9138 = vunpack.c.h.b16 %v7584
    %v9139 = vunpack.c.l.b16 %v7585
    %v9140 = vunpack.c.h.b16 %v7585
    %v9141 = vunpack.c.l.b16 %v7586
    %v9142 = vunpack.c.l.b16 %v7587
    %v9143 = vunpack.c.h.b16 %v7587
    %v9144 = vunpack.c.l.b16 %v7588
    %v9145 = vunpack.c.h.b16 %v7588
    %v9146 = vunpack.c.l.b16 %v7589
    %v9147 = vunpack.c.h.b16 %v7589
    %v9148 = vunpack.c.l.b16 %v7590
    %v9149 = vunpack.c.l.b16 %v7591
    %v9150 = vunpack.c.h.b16 %v7591
    %v9151 = vunpack.c.l.b16 %v7592
    %v9152 = vunpack.c.h.b16 %v7592
    %v9153 = vunpack.c.l.b16 %v7593
    %v9154 = vunpack.c.h.b16 %v7593
    %v9155 = vunpack.c.l.b16 %v7594
    %v9156 = vunpack.c.l.b16 %v7595
    %v9157 = vunpack.c.h.b16 %v7595
    %v9158 = vunpack.c.l.b16 %v7596
    %v9159 = vunpack.c.h.b16 %v7596
    %v9160 = vunpack.c.l.b16 %v7597
    %v9161 = vunpack.c.h.b16 %v7597
    %v9162 = vunpack.c.l.b16 %v7598
    %v9163 = vunpack.c.l.b16 %v7599
    %v9164 = vunpack.c.h.b16 %v7599
    %v9165 = vunpack.c.l.b16 %v7600
    %v9166 = vunpack.c.h.b16 %v7600
    %v9167 = vunpack.c.l.b16 %v7601
    %v9168 = vunpack.c.h.b16 %v7601
    %v9169 = vunpack.c.l.b16 %v7602
    %v9170 = vunpack.c.l.b16 %v7603
    %v9171 = vunpack.c.h.b16 %v7603
    %v9172 = vunpack.c.l.b16 %v7604
    %v9173 = vunpack.c.h.b16 %v7604
    %v9174 = vunpack.c.l.b16 %v7605
    %v9175 = vunpack.c.h.b16 %v7605
    %v9176 = vunpack.c.l.b16 %v7606
    %v9177 = vunpack.c.l.b16 %v7607
    %v9178 = vunpack.c.h.b16 %v7607
    %v9179 = vunpack.c.l.b16 %v7608
    %v9180 = vunpack.c.h.b16 %v7608
    %v9181 = vunpack.c.l.b16 %v7609
    %v9182 = vunpack.c.h.b16 %v7609
    %v9183 = vunpack.c.l.b16 %v7610
    %v9184 = vunpack.c.l.b16 %v7611
    %v9185 = vunpack.c.h.b16 %v7611
    %v9186 = vunpack.c.l.b16 %v7612
    %v9187 = vunpack.c.h.b16 %v7612
    %v9188 = vunpack.c.l.b16 %v7613
    %v9189 = vunpack.c.h.b16 %v7613
    %v9190 = vunpack.c.l.b16 %v7614
    %v9191 = vunpack.c.l.b16 %v7615
    %v9192 = vunpack.c.h.b16 %v7615
    %v9193 = vunpack.c.l.b16 %v7616
    %v9194 = vunpack.c.h.b16 %v7616
    %v9195 = vunpack.c.l.b16 %v7617
    %v9196 = vunpack.c.h.b16 %v7617
    %v9197 = vunpack.c.l.b16 %v7618
    %v9198 = vunpack.c.l.b16 %v7619
    %v9199 = vunpack.c.h.b16 %v7619
    %v9200 = vunpack.c.l.b16 %v7620
    %v9201 = vunpack.c.h.b16 %v7620
    %v9202 = vunpack.c.l.b16 %v7621
    %v9203 = vunpack.c.h.b16 %v7621
    %v9204 = vunpack.c.l.b16 %v7622
    %v9205 = vunpack.c.l.b16 %v7623
    %v9206 = vunpack.c.h.b16 %v7623
    %v9207 = vunpack.c.l.b16 %v7624
    %v9208 = vunpack.c.h.b16 %v7624
    %v9209 = vunpack.c.l.b16 %v7625
    %v9210 = vunpack.c.h.b16 %v7625
    %v9211 = vunpack.c.l.b16 %v7626
    %v9212 = vunpack.c.l.b16 %v7627
    %v9213 = vunpack.c.h.b16 %v7627
    %v9214 = vunpack.c.l.b16 %v7628
    %v9215 = vunpack.c.h.b16 %v7628
    %v9216 = vunpack.c.l.b16 %v7629
    %v9217 = vunpack.c.h.b16 %v7629
    %v9218 = vunpack.c.l.b16 %v7630
    %v9219 = vunpack.c.l.b16 %v7631
    %v9220 = vunpack.c.h.b16 %v7631
    %v9221 = vunpack.c.l.b16 %v7632
    %v9222 = vunpack.c.h.b16 %v7632
    %v9223 = vunpack.c.l.b16 %v7633
    %v9224 = vunpack.c.h.b16 %v7633
    %v9225 = vunpack.c.l.b16 %v7634
    %v9226 = vunpack.c.l.b16 %v7635
    %v9227 = vunpack.c.h.b16 %v7635
    %v9228 = vunpack.c.l.b16 %v7636
    %v9229 = vunpack.c.h.b16 %v7636
    %v9230 = vunpack.c.l.b16 %v7637
    %v9231 = vunpack.c.h.b16 %v7637
    %v9232 = vunpack.c.l.b16 %v7638
    %v9233 = vunpack.c.l.b16 %v7639
    %v9234 = vunpack.c.h.b16 %v7639
    %v9235 = vunpack.c.l.b16 %v7640
    %v9236 = vunpack.c.h.b16 %v7640
    %v9237 = vunpack.c.l.b16 %v7641
    %v9238 = vunpack.c.h.b16 %v7641
    %v9239 = vunpack.c.l.b16 %v7642
    %v9240 = vunpack.c.l.b16 %v7643
    %v9241 = vunpack.c.h.b16 %v7643
    %v9242 = vunpack.c.l.b16 %v7644
    %v9243 = vunpack.c.h.b16 %v7644
    %v9244 = vunpack.c.l.b16 %v7645
    %v9245 = vunpack.c.h.b16 %v7645
    %v9246 = vunpack.c.l.b16 %v7646
    %v9247 = vunpack.c.l.b16 %v7647
    %v9248 = vunpack.c.h.b16 %v7647
    %v9249 = vunpack.c.l.b16 %v7648
    %v9250 = vunpack.c.h.b16 %v7648
    %v9251 = vunpack.c.l.b16 %v7649
    %v9252 = vunpack.c.h.b16 %v7649
    %v9253 = vunpack.c.l.b16 %v7650
    %v9254 = vunpack.c.l.b16 %v7651
    %v9255 = vunpack.c.h.b16 %v7651
    %v9256 = vunpack.c.l.b16 %v7652
    %v9257 = vunpack.c.h.b16 %v7652
    %v9258 = vunpack.c.l.b16 %v7653
    %v9259 = vunpack.c.h.b16 %v7653
    %v9260 = vunpack.c.l.b16 %v7654
    %v9261 = vunpack.c.l.b16 %v7655
    %v9262 = vunpack.c.h.b16 %v7655
    %v9263 = vunpack.c.l.b16 %v7656
    %v9264 = vunpack.c.h.b16 %v7656
    %v9265 = vunpack.c.l.b16 %v7657
    %v9266 = vunpack.c.h.b16 %v7657
    %v9267 = vunpack.c.l.b16 %v7658
    %v9268 = vunpack.c.l.b16 %v7659
    %v9269 = vunpack.c.h.b16 %v7659
    %v9270 = vunpack.c.l.b16 %v7660
    %v9271 = vunpack.c.h.b16 %v7660
    %v9272 = vunpack.c.l.b16 %v7661
    %v9273 = vunpack.c.h.b16 %v7661
    %v9274 = vunpack.c.l.b16 %v7662
    %v9275 = vunpack.c.l.b16 %v7663
    %v9276 = vunpack.c.h.b16 %v7663
    %v9277 = vunpack.c.l.b16 %v7664
    %v9278 = vunpack.c.h.b16 %v7664
    %v9279 = vunpack.c.l.b16 %v7665
    %v9280 = vunpack.c.h.b16 %v7665
    %v9281 = vunpack.c.l.b16 %v7666
    %v9282 = vunpack.c.l.b16 %v7667
    %v9283 = vunpack.c.h.b16 %v7667
    %v9284 = vunpack.c.l.b16 %v7668
    %v9285 = vunpack.c.h.b16 %v7668
    %v9286 = vunpack.c.l.b16 %v7669
    %v9287 = vunpack.c.h.b16 %v7669
    %v9288 = vunpack.c.l.b16 %v7670
    %v9289 = vunpack.c.l.b16 %v7671
    %v9290 = vunpack.c.h.b16 %v7671
    %v9291 = vunpack.c.l.b16 %v7672
    %v9292 = vunpack.c.h.b16 %v7672
    %v9293 = vunpack.c.l.b16 %v7673
    %v9294 = vunpack.c.h.b16 %v7673
    %v9295 = vunpack.c.l.b16 %v7674
    %v9296 = vpack.c.b16 %v8295, %v8288
    %v9297 = vpack.c.b16 %v8296, %v8289
    %v9298 = vpack.c.b16 %v8297, %v8290
    %v9299 = vpack.c.b16 %v8298, %v8291
    %v9300 = vpack.c.b16 %v8299, %v8292
    %v9301 = vpack.c.b16 %v8300, %v8293
    %v9302 = vpack.c.b16 %v8301, %v8294
    %v9303 = vpack.c.b16 %v8309, %v8302
    %v9304 = vpack.c.b16 %v8310, %v8303
    %v9305 = vpack.c.b16 %v8311, %v8304
    %v9306 = vpack.c.b16 %v8312, %v8305
    %v9307 = vpack.c.b16 %v8313, %v8306
    %v9308 = vpack.c.b16 %v8314, %v8307
    %v9309 = vpack.c.b16 %v8315, %v8308
    %v9310 = vpack.c.b16 %v8323, %v8316
    %v9311 = vpack.c.b16 %v8324, %v8317
    %v9312 = vpack.c.b16 %v8325, %v8318
    %v9313 = vpack.c.b16 %v8326, %v8319
    %v9314 = vpack.c.b16 %v8327, %v8320
    %v9315 = vpack.c.b16 %v8328, %v8321
    %v9316 = vpack.c.b16 %v8329, %v8322
    %v9317 = vpack.c.b16 %v8337, %v8330
    %v9318 = vpack.c.b16 %v8338, %v8331
    %v9319 = vpack.c.b16 %v8339, %v8332
    %v9320 = vpack.c.b16 %v8340, %v8333
    %v9321 = vpack.c.b16 %v8341, %v8334
    %v9322 = vpack.c.b16 %v8342, %v8335
    %v9323 = vpack.c.b16 %v8343, %v8336
    %v9324 = vpack.c.b16 %v8351, %v8344
    %v9325 = vpack.c.b16 %v8352, %v8345
    %v9326 = vpack.c.b16 %v8353, %v8346
    %v9327 = vpack.c.b16 %v8354, %v8347
    %v9328 = vpack.c.b16 %v8355, %v8348
    %v9329 = vpack.c.b16 %v8356, %v8349
    %v9330 = vpack.c.b16 %v8357, %v8350
    %v9331 = vpack.c.b16 %v8365, %v8358
    %v9332 = vpack.c.b16 %v8366, %v8359
    %v9333 = vpack.c.b16 %v8367, %v8360
    %v9334 = vpack.c.b16 %v8368, %v8361
    %v9335 = vpack.c.b16 %v8369, %v8362
    %v9336 = vpack.c.b16 %v8370, %v8363
    %v9337 = vpack.c.b16 %v8371, %v8364
    %v9338 = vpack.c.b16 %v8379, %v8372
    %v9339 = vpack.c.b16 %v8380, %v8373
    %v9340 = vpack.c.b16 %v8381, %v8374
    %v9341 = vpack.c.b16 %v8382, %v8375
    %v9342 = vpack.c.b16 %v8383, %v8376
    %v9343 = vpack.c.b16 %v8384, %v8377
    %v9344 = vpack.c.b16 %v8385, %v8378
    %v9345 = vpack.c.b16 %v8393, %v8386
    %v9346 = vpack.c.b16 %v8394, %v8387
    %v9347 = vpack.c.b16 %v8395, %v8388
    %v9348 = vpack.c.b16 %v8396, %v8389
    %v9349 = vpack.c.b16 %v8397, %v8390
    %v9350 = vpack.c.b16 %v8398, %v8391
    %v9351 = vpack.c.b16 %v8399, %v8392
    %v9352 = vpack.c.b16 %v8407, %v8400
    %v9353 = vpack.c.b16 %v8408, %v8401
    %v9354 = vpack.c.b16 %v8409, %v8402
    %v9355 = vpack.c.b16 %v8410, %v8403
    %v9356 = vpack.c.b16 %v8411, %v8404
    %v9357 = vpack.c.b16 %v8412, %v8405
    %v9358 = vpack.c.b16 %v8413, %v8406
    %v9359 = vpack.c.b16 %v8421, %v8414
    %v9360 = vpack.c.b16 %v8422, %v8415
    %v9361 = vpack.c.b16 %v8423, %v8416
    %v9362 = vpack.c.b16 %v8424, %v8417
    %v9363 = vpack.c.b16 %v8425, %v8418
    %v9364 = vpack.c.b16 %v8426, %v8419
    %v9365 = vpack.c.b16 %v8427, %v8420
    %v9366 = vpack.c.b16 %v8435, %v8428
    %v9367 = vpack.c.b16 %v8436, %v8429
    %v9368 = vpack.c.b16 %v8437, %v8430
    %v9369 = vpack.c.b16 %v8438, %v8431
    %v9370 = vpack.c.b16 %v8439, %v8432
    %v9371 = vpack.c.b16 %v8440, %v8433
    %v9372 = vpack.c.b16 %v8441, %v8434
    %v9373 = vpack.c.b16 %v8449, %v8442
    %v9374 = vpack.c.b16 %v8450, %v8443
    %v9375 = vpack.c.b16 %v8451, %v8444
    %v9376 = vpack.c.b16 %v8452, %v8445
    %v9377 = vpack.c.b16 %v8453, %v8446
    %v9378 = vpack.c.b16 %v8454, %v8447
    %v9379 = vpack.c.b16 %v8455, %v8448
    %v9380 = vpack.c.b16 %v8463, %v8456
    %v9381 = vpack.c.b16 %v8464, %v8457
    %v9382 = vpack.c.b16 %v8465, %v8458
    %v9383 = vpack.c.b16 %v8466, %v8459
    %v9384 = vpack.c.b16 %v8467, %v8460
    %v9385 = vpack.c.b16 %v8468, %v8461
    %v9386 = vpack.c.b16 %v8469, %v8462
    %v9387 = vpack.c.b16 %v8477, %v8470
    %v9388 = vpack.c.b16 %v8478, %v8471
    %v9389 = vpack.c.b16 %v8479, %v8472
    %v9390 = vpack.c.b16 %v8480, %v8473
    %v9391 = vpack.c.b16 %v8481, %v8474
    %v9392 = vpack.c.b16 %v8482, %v8475
    %v9393 = vpack.c.b16 %v8483, %v8476
    %v9394 = vpack.c.b16 %v8491, %v8484
    %v9395 = vpack.c.b16 %v8492, %v8485
    %v9396 = vpack.c.b16 %v8493, %v8486
    %v9397 = vpack.c.b16 %v8494, %v8487
    %v9398 = vpack.c.b16 %v8495, %v8488
    %v9399 = vpack.c.b16 %v8496, %v8489
    %v9400 = vpack.c.b16 %v8497, %v8490
    %v9401 = vpack.c.b16 %v8505, %v8498
    %v9402 = vpack.c.b16 %v8506, %v8499
    %v9403 = vpack.c.b16 %v8507, %v8500
    %v9404 = vpack.c.b16 %v8508, %v8501
    %v9405 = vpack.c.b16 %v8509, %v8502
    %v9406 = vpack.c.b16 %v8510, %v8503
    %v9407 = vpack.c.b16 %v8511, %v8504
    %v9408 = vpack.c.b16 %v8519, %v8512
    %v9409 = vpack.c.b16 %v8520, %v8513
    %v9410 = vpack.c.b16 %v8521, %v8514
    %v9411 = vpack.c.b16 %v8522, %v8515
    %v9412 = vpack.c.b16 %v8523, %v8516
    %v9413 = vpack.c.b16 %v8524, %v8517
    %v9414 = vpack.c.b16 %v8525, %v8518
    %v9415 = vpack.c.b16 %v8533, %v8526
    %v9416 = vpack.c.b16 %v8534, %v8527
    %v9417 = vpack.c.b16 %v8535, %v8528
    %v9418 = vpack.c.b16 %v8536, %v8529
    %v9419 = vpack.c.b16 %v8537, %v8530
    %v9420 = vpack.c.b16 %v8538, %v8531
    %v9421 = vpack.c.b16 %v8539, %v8532
    %v9422 = vpack.c.b16 %v8547, %v8540
    %v9423 = vpack.c.b16 %v8548, %v8541
    %v9424 = vpack.c.b16 %v8549, %v8542
    %v9425 = vpack.c.b16 %v8550, %v8543
    %v9426 = vpack.c.b16 %v8551, %v8544
    %v9427 = vpack.c.b16 %v8552, %v8545
    %v9428 = vpack.c.b16 %v8553, %v8546
    %v9429 = vpack.c.b16 %v8561, %v8554
    %v9430 = vpack.c.b16 %v8562, %v8555
    %v9431 = vpack.c.b16 %v8563, %v8556
    %v9432 = vpack.c.b16 %v8564, %v8557
    %v9433 = vpack.c.b16 %v8565, %v8558
    %v9434 = vpack.c.b16 %v8566, %v8559
    %v9435 = vpack.c.b16 %v8567, %v8560
    %v9436 = vpack.c.b16 %v8575, %v8568
    %v9437 = vpack.c.b16 %v8576, %v8569
    %v9438 = vpack.c.b16 %v8577, %v8570
    %v9439 = vpack.c.b16 %v8578, %v8571
    %v9440 = vpack.c.b16 %v8579, %v8572
    %v9441 = vpack.c.b16 %v8580, %v8573
    %v9442 = vpack.c.b16 %v8581, %v8574
    %v9443 = vpack.c.b16 %v8589, %v8582
    %v9444 = vpack.c.b16 %v8590, %v8583
    %v9445 = vpack.c.b16 %v8591, %v8584
    %v9446 = vpack.c.b16 %v8592, %v8585
    %v9447 = vpack.c.b16 %v8593, %v8586
    %v9448 = vpack.c.b16 %v8594, %v8587
    %v9449 = vpack.c.b16 %v8595, %v8588
    %v9450 = vpack.c.b16 %v8603, %v8596
    %v9451 = vpack.c.b16 %v8604, %v8597
    %v9452 = vpack.c.b16 %v8605, %v8598
    %v9453 = vpack.c.b16 %v8606, %v8599
    %v9454 = vpack.c.b16 %v8607, %v8600
    %v9455 = vpack.c.b16 %v8608, %v8601
    %v9456 = vpack.c.b16 %v8609, %v8602
    %v9457 = vpack.c.b16 %v8617, %v8610
    %v9458 = vpack.c.b16 %v8618, %v8611
    %v9459 = vpack.c.b16 %v8619, %v8612
    %v9460 = vpack.c.b16 %v8620, %v8613
    %v9461 = vpack.c.b16 %v8621, %v8614
    %v9462 = vpack.c.b16 %v8622, %v8615
    %v9463 = vpack.c.b16 %v8623, %v8616
    %v9464 = vpack.c.b16 %v8631, %v8624
    %v9465 = vpack.c.b16 %v8632, %v8625
    %v9466 = vpack.c.b16 %v8633, %v8626
    %v9467 = vpack.c.b16 %v8634, %v8627
    %v9468 = vpack.c.b16 %v8635, %v8628
    %v9469 = vpack.c.b16 %v8636, %v8629
    %v9470 = vpack.c.b16 %v8637, %v8630
    %v9471 = vpack.c.b16 %v8645, %v8638
    %v9472 = vpack.c.b16 %v8646, %v8639
    %v9473 = vpack.c.b16 %v8647, %v8640
    %v9474 = vpack.c.b16 %v8648, %v8641
    %v9475 = vpack.c.b16 %v8649, %v8642
    %v9476 = vpack.c.b16 %v8650, %v8643
    %v9477 = vpack.c.b16 %v8651, %v8644
    %v9478 = vpack.c.b16 %v8659, %v8652
    %v9479 = vpack.c.b16 %v8660, %v8653
    %v9480 = vpack.c.b16 %v8661, %v8654
    %v9481 = vpack.c.b16 %v8662, %v8655
    %v9482 = vpack.c.b16 %v8663, %v8656
    %v9483 = vpack.c.b16 %v8664, %v8657
    %v9484 = vpack.c.b16 %v8665, %v8658
    %v9485 = vpack.c.b16 %v8673, %v8666
    %v9486 = vpack.c.b16 %v8674, %v8667
    %v9487 = vpack.c.b16 %v8675, %v8668
    %v9488 = vpack.c.b16 %v8676, %v8669
    %v9489 = vpack.c.b16 %v8677, %v8670
    %v9490 = vpack.c.b16 %v8678, %v8671
    %v9491 = vpack.c.b16 %v8679, %v8672
    %v9492 = vpack.c.b16 %v8687, %v8680
    %v9493 = vpack.c.b16 %v8688, %v8681
    %v9494 = vpack.c.b16 %v8689, %v8682
    %v9495 = vpack.c.b16 %v8690, %v8683
    %v9496 = vpack.c.b16 %v8691, %v8684
    %v9497 = vpack.c.b16 %v8692, %v8685
    %v9498 = vpack.c.b16 %v8693, %v8686
    %v9499 = vpack.c.b16 %v8701, %v8694
    %v9500 = vpack.c.b16 %v8702, %v8695
    %v9501 = vpack.c.b16 %v8703, %v8696
    %v9502 = vpack.c.b16 %v8704, %v8697
    %v9503 = vpack.c.b16 %v8705, %v8698
    %v9504 = vpack.c.b16 %v8706, %v8699
    %v9505 = vpack.c.b16 %v8707, %v8700
    %v9506 = vpack.c.b16 %v8715, %v8708
    %v9507 = vpack.c.b16 %v8716, %v8709
    %v9508 = vpack.c.b16 %v8717, %v8710
    %v9509 = vpack.c.b16 %v8718, %v8711
    %v9510 = vpack.c.b16 %v8719, %v8712
    %v9511 = vpack.c.b16 %v8720, %v8713
    %v9512 = vpack.c.b16 %v8721, %v8714
    %v9513 = vpack.c.b16 %v8729, %v8722
    %v9514 = vpack.c.b16 %v8730, %v8723
    %v9515 = vpack.c.b16 %v8731, %v8724
    %v9516 = vpack.c.b16 %v8732, %v8725
    %v9517 = vpack.c.b16 %v8733, %v8726
    %v9518 = vpack.c.b16 %v8734, %v8727
    %v9519 = vpack.c.b16 %v8735, %v8728
    %v9520 = vpack.c.b16 %v8743, %v8736
    %v9521 = vpack.c.b16 %v8744, %v8737
    %v9522 = vpack.c.b16 %v8745, %v8738
    %v9523 = vpack.c.b16 %v8746, %v8739
    %v9524 = vpack.c.b16 %v8747, %v8740
    %v9525 = vpack.c.b16 %v8748, %v8741
    %v9526 = vpack.c.b16 %v8749, %v8742
    %v9527 = vpack.c.b16 %v8757, %v8750
    %v9528 = vpack.c.b16 %v8758, %v8751
    %v9529 = vpack.c.b16 %v8759, %v8752
    %v9530 = vpack.c.b16 %v8760, %v8753
    %v9531 = vpack.c.b16 %v8761, %v8754
    %v9532 = vpack.c.b16 %v8762, %v8755
    %v9533 = vpack.c.b16 %v8763, %v8756
    %v9534 = vpack.c.b16 %v8771, %v8764
    %v9535 = vpack.c.b16 %v8772, %v8765
    %v9536 = vpack.c.b16 %v8773, %v8766
    %v9537 = vpack.c.b16 %v8774, %v8767
    %v9538 = vpack.c.b16 %v8775, %v8768
    %v9539 = vpack.c.b16 %v8776, %v8769
    %v9540 = vpack.c.b16 %v8777, %v8770
    %v9541 = vpack.c.b16 %v8785, %v8778
    %v9542 = vpack.c.b16 %v8786, %v8779
    %v9543 = vpack.c.b16 %v8787, %v8780
    %v9544 = vpack.c.b16 %v8788, %v8781
    %v9545 = vpack.c.b16 %v8789, %v8782
    %v9546 = vpack.c.b16 %v8790, %v8783
    %v9547 = vpack.c.b16 %v8791, %v8784
    %v9548 = vpack.c.b16 %v8799, %v8792
    %v9549 = vpack.c.b16 %v8800, %v8793
    %v9550 = vpack.c.b16 %v8801, %v8794
    %v9551 = vpack.c.b16 %v8802, %v8795
    %v9552 = vpack.c.b16 %v8803, %v8796
    %v9553 = vpack.c.b16 %v8804, %v8797
    %v9554 = vpack.c.b16 %v8805, %v8798
    %v9555 = vpack.c.b16 %v8813, %v8806
    %v9556 = vpack.c.b16 %v8814, %v8807
    %v9557 = vpack.c.b16 %v8815, %v8808
    %v9558 = vpack.c.b16 %v8816, %v8809
    %v9559 = vpack.c.b16 %v8817, %v8810
    %v9560 = vpack.c.b16 %v8818, %v8811
    %v9561 = vpack.c.b16 %v8819, %v8812
    %v9562 = vpack.c.b16 %v8827, %v8820
    %v9563 = vpack.c.b16 %v8828, %v8821
    %v9564 = vpack.c.b16 %v8829, %v8822
    %v9565 = vpack.c.b16 %v8830, %v8823
    %v9566 = vpack.c.b16 %v8831, %v8824
    %v9567 = vpack.c.b16 %v8832, %v8825
    %v9568 = vpack.c.b16 %v8833, %v8826
    %v9569 = vpack.c.b16 %v8841, %v8834
    %v9570 = vpack.c.b16 %v8842, %v8835
    %v9571 = vpack.c.b16 %v8843, %v8836
    %v9572 = vpack.c.b16 %v8844, %v8837
    %v9573 = vpack.c.b16 %v8845, %v8838
    %v9574 = vpack.c.b16 %v8846, %v8839
    %v9575 = vpack.c.b16 %v8847, %v8840
    %v9576 = vpack.c.b16 %v8855, %v8848
    %v9577 = vpack.c.b16 %v8856, %v8849
    %v9578 = vpack.c.b16 %v8857, %v8850
    %v9579 = vpack.c.b16 %v8858, %v8851
    %v9580 = vpack.c.b16 %v8859, %v8852
    %v9581 = vpack.c.b16 %v8860, %v8853
    %v9582 = vpack.c.b16 %v8861, %v8854
    %v9583 = vpack.c.b16 %v8869, %v8862
    %v9584 = vpack.c.b16 %v8870, %v8863
    %v9585 = vpack.c.b16 %v8871, %v8864
    %v9586 = vpack.c.b16 %v8872, %v8865
    %v9587 = vpack.c.b16 %v8873, %v8866
    %v9588 = vpack.c.b16 %v8874, %v8867
    %v9589 = vpack.c.b16 %v8875, %v8868
    %v9590 = vpack.c.b16 %v8883, %v8876
    %v9591 = vpack.c.b16 %v8884, %v8877
    %v9592 = vpack.c.b16 %v8885, %v8878
    %v9593 = vpack.c.b16 %v8886, %v8879
    %v9594 = vpack.c.b16 %v8887, %v8880
    %v9595 = vpack.c.b16 %v8888, %v8881
    %v9596 = vpack.c.b16 %v8889, %v8882
    %v9597 = vpack.c.b16 %v8897, %v8890
    %v9598 = vpack.c.b16 %v8898, %v8891
    %v9599 = vpack.c.b16 %v8899, %v8892
    %v9600 = vpack.c.b16 %v8900, %v8893
    %v9601 = vpack.c.b16 %v8901, %v8894
    %v9602 = vpack.c.b16 %v8902, %v8895
    %v9603 = vpack.c.b16 %v8903, %v8896
    %v9604 = vpack.c.b16 %v8911, %v8904
    %v9605 = vpack.c.b16 %v8912, %v8905
    %v9606 = vpack.c.b16 %v8913, %v8906
    %v9607 = vpack.c.b16 %v8914, %v8907
    %v9608 = vpack.c.b16 %v8915, %v8908
    %v9609 = vpack.c.b16 %v8916, %v8909
    %v9610 = vpack.c.b16 %v8917, %v8910
    %v9611 = vpack.c.b16 %v8925, %v8918
    %v9612 = vpack.c.b16 %v8926, %v8919
    %v9613 = vpack.c.b16 %v8927, %v8920
    %v9614 = vpack.c.b16 %v8928, %v8921
    %v9615 = vpack.c.b16 %v8929, %v8922
    %v9616 = vpack.c.b16 %v8930, %v8923
    %v9617 = vpack.c.b16 %v8931, %v8924
    %v9618 = vpack.c.b16 %v8939, %v8932
    %v9619 = vpack.c.b16 %v8940, %v8933
    %v9620 = vpack.c.b16 %v8941, %v8934
    %v9621 = vpack.c.b16 %v8942, %v8935
    %v9622 = vpack.c.b16 %v8943, %v8936
    %v9623 = vpack.c.b16 %v8944, %v8937
    %v9624 = vpack.c.b16 %v8945, %v8938
    %v9625 = vpack.c.b16 %v8953, %v8946
    %v9626 = vpack.c.b16 %v8954, %v8947
    %v9627 = vpack.c.b16 %v8955, %v8948
    %v9628 = vpack.c.b16 %v8956, %v8949
    %v9629 = vpack.c.b16 %v8957, %v8950
    %v9630 = vpack.c.b16 %v8958, %v8951
    %v9631 = vpack.c.b16 %v8959, %v8952
    %v9632 = vpack.c.b16 %v8967, %v8960
    %v9633 = vpack.c.b16 %v8968, %v8961
    %v9634 = vpack.c.b16 %v8969, %v8962
    %v9635 = vpack.c.b16 %v8970, %v8963
    %v9636 = vpack.c.b16 %v8971, %v8964
    %v9637 = vpack.c.b16 %v8972, %v8965
    %v9638 = vpack.c.b16 %v8973, %v8966
    %v9639 = vpack.c.b16 %v8981, %v8974
    %v9640 = vpack.c.b16 %v8982, %v8975
    %v9641 = vpack.c.b16 %v8983, %v8976
    %v9642 = vpack.c.b16 %v8984, %v8977
    %v9643 = vpack.c.b16 %v8985, %v8978
    %v9644 = vpack.c.b16 %v8986, %v8979
    %v9645 = vpack.c.b16 %v8987, %v8980
    %v9646 = vpack.c.b16 %v8995, %v8988
    %v9647 = vpack.c.b16 %v8996, %v8989
    %v9648 = vpack.c.b16 %v8997, %v8990
    %v9649 = vpack.c.b16 %v8998, %v8991
    %v9650 = vpack.c.b16 %v8999, %v8992
    %v9651 = vpack.c.b16 %v9000, %v8993
    %v9652 = vpack.c.b16 %v9001, %v8994
    %v9653 = vpack.c.b16 %v9009, %v9002
    %v9654 = vpack.c.b16 %v9010, %v9003
    %v9655 = vpack.c.b16 %v9011, %v9004
    %v9656 = vpack.c.b16 %v9012, %v9005
    %v9657 = vpack.c.b16 %v9013, %v9006
    %v9658 = vpack.c.b16 %v9014, %v9007
    %v9659 = vpack.c.b16 %v9015, %v9008
    %v9660 = vpack.c.b16 %v9023, %v9016
    %v9661 = vpack.c.b16 %v9024, %v9017
    %v9662 = vpack.c.b16 %v9025, %v9018
    %v9663 = vpack.c.b16 %v9026, %v9019
    %v9664 = vpack.c.b16 %v9027, %v9020
    %v9665 = vpack.c.b16 %v9028, %v9021
    %v9666 = vpack.c.b16 %v9029, %v9022
    %v9667 = vpack.c.b16 %v9037, %v9030
    %v9668 = vpack.c.b16 %v9038, %v9031
    %v9669 = vpack.c.b16 %v9039, %v9032
    %v9670 = vpack.c.b16 %v9040, %v9033
    %v9671 = vpack.c.b16 %v9041, %v9034
    %v9672 = vpack.c.b16 %v9042, %v9035
    %v9673 = vpack.c.b16 %v9043, %v9036
    %v9674 = vpack.c.b16 %v9051, %v9044
    %v9675 = vpack.c.b16 %v9052, %v9045
    %v9676 = vpack.c.b16 %v9053, %v9046
    %v9677 = vpack.c.b16 %v9054, %v9047
    %v9678 = vpack.c.b16 %v9055, %v9048
    %v9679 = vpack.c.b16 %v9056, %v9049
    %v9680 = vpack.c.b16 %v9057, %v9050
    %v9681 = vpack.c.b16 %v9065, %v9058
    %v9682 = vpack.c.b16 %v9066, %v9059
    %v9683 = vpack.c.b16 %v9067, %v9060
    %v9684 = vpack.c.b16 %v9068, %v9061
    %v9685 = vpack.c.b16 %v9069, %v9062
    %v9686 = vpack.c.b16 %v9070, %v9063
    %v9687 = vpack.c.b16 %v9071, %v9064
    %v9688 = vpack.c.b16 %v9079, %v9072
    %v9689 = vpack.c.b16 %v9080, %v9073
    %v9690 = vpack.c.b16 %v9081, %v9074
    %v9691 = vpack.c.b16 %v9082, %v9075
    %v9692 = vpack.c.b16 %v9083, %v9076
    %v9693 = vpack.c.b16 %v9084, %v9077
    %v9694 = vpack.c.b16 %v9085, %v9078
    %v9695 = vpack.c.b16 %v9093, %v9086
    %v9696 = vpack.c.b16 %v9094, %v9087
    %v9697 = vpack.c.b16 %v9095, %v9088
    %v9698 = vpack.c.b16 %v9096, %v9089
    %v9699 = vpack.c.b16 %v9097, %v9090
    %v9700 = vpack.c.b16 %v9098, %v9091
    %v9701 = vpack.c.b16 %v9099, %v9092
    %v9702 = vpack.c.b16 %v9107, %v9100
    %v9703 = vpack.c.b16 %v9108, %v9101
    %v9704 = vpack.c.b16 %v9109, %v9102
    %v9705 = vpack.c.b16 %v9110, %v9103
    %v9706 = vpack.c.b16 %v9111, %v9104
    %v9707 = vpack.c.b16 %v9112, %v9105
    %v9708 = vpack.c.b16 %v9113, %v9106
    %v9709 = vpack.c.b16 %v9121, %v9114
    %v9710 = vpack.c.b16 %v9122, %v9115
    %v9711 = vpack.c.b16 %v9123, %v9116
    %v9712 = vpack.c.b16 %v9124, %v9117
    %v9713 = vpack.c.b16 %v9125, %v9118
    %v9714 = vpack.c.b16 %v9126, %v9119
    %v9715 = vpack.c.b16 %v9127, %v9120
    %v9716 = vpack.c.b16 %v9135, %v9128
    %v9717 = vpack.c.b16 %v9136, %v9129
    %v9718 = vpack.c.b16 %v9137, %v9130
    %v9719 = vpack.c.b16 %v9138, %v9131
    %v9720 = vpack.c.b16 %v9139, %v9132
    %v9721 = vpack.c.b16 %v9140, %v9133
    %v9722 = vpack.c.b16 %v9141, %v9134
    %v9723 = vpack.c.b16 %v9149, %v9142
    %v9724 = vpack.c.b16 %v9150, %v9143
    %v9725 = vpack.c.b16 %v9151, %v9144
    %v9726 = vpack.c.b16 %v9152, %v9145
    %v9727 = vpack.c.b16 %v9153, %v9146
    %v9728 = vpack.c.b16 %v9154, %v9147
    %v9729 = vpack.c.b16 %v9155, %v9148
    %v9730 = vpack.c.b16 %v9163, %v9156
    %v9731 = vpack.c.b16 %v9164, %v9157
    %v9732 = vpack.c.b16 %v9165, %v9158
    %v9733 = vpack.c.b16 %v9166, %v9159
    %v9734 = vpack.c.b16 %v9167, %v9160
    %v9735 = vpack.c.b16 %v9168, %v9161
    %v9736 = vpack.c.b16 %v9169, %v9162
    %v9737 = vpack.c.b16 %v9177, %v9170
    %v9738 = vpack.c.b16 %v9178, %v9171
    %v9739 = vpack.c.b16 %v9179, %v9172
    %v9740 = vpack.c.b16 %v9180, %v9173
    %v9741 = vpack.c.b16 %v9181, %v9174
    %v9742 = vpack.c.b16 %v9182, %v9175
    %v9743 = vpack.c.b16 %v9183, %v9176
    %v9744 = vpack.c.b16 %v9191, %v9184
    %v9745 = vpack.c.b16 %v9192, %v9185
    %v9746 = vpack.c.b16 %v9193, %v9186
    %v9747 = vpack.c.b16 %v9194, %v9187
    %v9748 = vpack.c.b16 %v9195, %v9188
    %v9749 = vpack.c.b16 %v9196, %v9189
    %v9750 = vpack.c.b16 %v9197, %v9190
    %v9751 = vpack.c.b16 %v9205, %v9198
    %v9752 = vpack.c.b16 %v9206, %v9199
    %v9753 = vpack.c.b16 %v9207, %v9200
    %v9754 = vpack.c.b16 %v9208, %v9201
    %v9755 = vpack.c.b16 %v9209, %v9202
    %v9756 = vpack.c.b16 %v9210, %v9203
    %v9757 = vpack.c.b16 %v9211, %v9204
    %v9758 = vpack.c.b16 %v9219, %v9212
    %v9759 = vpack.c.b16 %v9220, %v9213
    %v9760 = vpack.c.b16 %v9221, %v9214
    %v9761 = vpack.c.b16 %v9222, %v9215
    %v9762 = vpack.c.b16 %v9223, %v9216
    %v9763 = vpack.c.b16 %v9224, %v9217
    %v9764 = vpack.c.b16 %v9225, %v9218
    %v9765 = vpack.c.b16 %v9233, %v9226
    %v9766 = vpack.c.b16 %v9234, %v9227
    %v9767 = vpack.c.b16 %v9235, %v9228
    %v9768 = vpack.c.b16 %v9236, %v9229
    %v9769 = vpack.c.b16 %v9237, %v9230
    %v9770 = vpack.c.b16 %v9238, %v9231
    %v9771 = vpack.c.b16 %v9239, %v9232
    %v9772 = vpack.c.b16 %v9247, %v9240
    %v9773 = vpack.c.b16 %v9248, %v9241
    %v9774 = vpack.c.b16 %v9249, %v9242
    %v9775 = vpack.c.b16 %v9250, %v9243
    %v9776 = vpack.c.b16 %v9251, %v9244
    %v9777 = vpack.c.b16 %v9252, %v9245
    %v9778 = vpack.c.b16 %v9253, %v9246
    %v9779 = vpack.c.b16 %v9261, %v9254
    %v9780 = vpack.c.b16 %v9262, %v9255
    %v9781 = vpack.c.b16 %v9263, %v9256
    %v9782 = vpack.c.b16 %v9264, %v9257
    %v9783 = vpack.c.b16 %v9265, %v9258
    %v9784 = vpack.c.b16 %v9266, %v9259
    %v9785 = vpack.c.b16 %v9267, %v9260
    %v9786 = vpack.c.b16 %v9275, %v9268
    %v9787 = vpack.c.b16 %v9276, %v9269
    %v9788 = vpack.c.b16 %v9277, %v9270
    %v9789 = vpack.c.b16 %v9278, %v9271
    %v9790 = vpack.c.b16 %v9279, %v9272
    %v9791 = vpack.c.b16 %v9280, %v9273
    %v9792 = vpack.c.b16 %v9281, %v9274
    %v9793 = vpack.c.b16 %v9289, %v9282
    %v9794 = vpack.c.b16 %v9290, %v9283
    %v9795 = vpack.c.b16 %v9291, %v9284
    %v9796 = vpack.c.b16 %v9292, %v9285
    %v9797 = vpack.c.b16 %v9293, %v9286
    %v9798 = vpack.c.b16 %v9294, %v9287
    %v9799 = vpack.c.b16 %v9295, %v9288
    %10304 = vmatprep.subr.bf16.mxu0 %v9297
    %10305 = vmatpush1.bf16.msra.mxu0 %v9296
    %10306 = vmatprep.subr.bf16.mxu0 %v9304
    %10307 = vmatpush1.bf16.msra.mxu0 %v9303
    %10308 = vmatprep.subr.bf16.mxu0 %v9311
    %10309 = vmatpush1.bf16.msra.mxu0 %v9310
    %10310 = vmatprep.subr.bf16.mxu0 %v9318
    %10311 = vmatpush1.bf16.msra.mxu0 %v9317
    %10312 = vmatprep.subr.bf16.mxu0 %v9325
    %10313 = vmatpush1.bf16.msra.mxu0 %v9324
    %10314 = vmatprep.subr.bf16.mxu0 %v9332
    %10315 = vmatpush1.bf16.msra.mxu0 %v9331
    %10316 = vmatprep.subr.bf16.mxu0 %v9339
    %10317 = vmatpush1.bf16.msra.mxu0 %v9338
    %10318 = vmatprep.subr.bf16.mxu0 %v9346
    %10319 = vmatpush1.bf16.msra.mxu0 %v9345
    %10320 = vmatprep.subr.bf16.mxu0 %v9353
    %10321 = vmatpush1.bf16.msra.mxu0 %v9352
    %10322 = vmatprep.subr.bf16.mxu0 %v9360
    %10323 = vmatpush1.bf16.msra.mxu0 %v9359
    %10324 = vmatprep.subr.bf16.mxu0 %v9367
    %10325 = vmatpush1.bf16.msra.mxu0 %v9366
    %10326 = vmatprep.subr.bf16.mxu0 %v9374
    %10327 = vmatpush1.bf16.msra.mxu0 %v9373
    %10328 = vmatprep.subr.bf16.mxu0 %v9381
    %10329 = vmatpush1.bf16.msra.mxu0 %v9380
    %10330 = vmatprep.subr.bf16.mxu0 %v9388
    %10331 = vmatpush1.bf16.msra.mxu0 %v9387
    %10332 = vmatprep.subr.bf16.mxu0 %v9395
    %10333 = vmatpush1.bf16.msra.mxu0 %v9394
    %10334 = vmatprep.subr.bf16.mxu0 %v9402
    %10335 = vmatpush1.bf16.msra.mxu0 %v9401
    %10336 = vmatprep.mubr.bf16.mxu0 %v7091
    %10337 = vmatmul.mubr.bf16.gmra.mrb[0].mxu0 %v7090
    %v10338 = vpop.f32.mrb[0].mxu0
    %v10339 = vadd.f32 %v7680, %v10338
    %v10340 = vpop.f32.mrb[0].mxu0
    %v10341 = vadd.f32 %v7684, %v10340
    %v10342 = vpop.f32.mrb[0].mxu0
    %v10343 = vpop.f32.mrb[0].mxu0
    %10344 = vdwg.mxu0
    %10345 = vmatprep.subr.bf16.mxu0 %v9409
    %10346 = vmatpush1.bf16.msra.mxu0 %v9408
    %10347 = vmatprep.subr.bf16.mxu0 %v9416
    %10348 = vmatpush1.bf16.msra.mxu0 %v9415
    %10349 = vmatprep.subr.bf16.mxu0 %v9423
    %10350 = vmatpush1.bf16.msra.mxu0 %v9422
    %10351 = vmatprep.subr.bf16.mxu0 %v9430
    %10352 = vmatpush1.bf16.msra.mxu0 %v9429
    %10353 = vmatprep.subr.bf16.mxu0 %v9437
    %10354 = vmatpush1.bf16.msra.mxu0 %v9436
    %10355 = vmatprep.subr.bf16.mxu0 %v9444
    %10356 = vmatpush1.bf16.msra.mxu0 %v9443
    %10357 = vmatprep.subr.bf16.mxu0 %v9451
    %10358 = vmatpush1.bf16.msra.mxu0 %v9450
    %10359 = vmatprep.subr.bf16.mxu0 %v9458
    %10360 = vmatpush1.bf16.msra.mxu0 %v9457
    %10361 = vmatprep.subr.bf16.mxu0 %v9465
    %10362 = vmatpush1.bf16.msra.mxu0 %v9464
    %10363 = vmatprep.subr.bf16.mxu0 %v9472
    %10364 = vmatpush1.bf16.msra.mxu0 %v9471
    %10365 = vmatprep.subr.bf16.mxu0 %v9479
    %10366 = vmatpush1.bf16.msra.mxu0 %v9478
    %10367 = vmatprep.subr.bf16.mxu0 %v9486
    %10368 = vmatpush1.bf16.msra.mxu0 %v9485
    %10369 = vmatprep.subr.bf16.mxu0 %v9493
    %10370 = vmatpush1.bf16.msra.mxu0 %v9492
    %10371 = vmatprep.subr.bf16.mxu0 %v9500
    %10372 = vmatpush1.bf16.msra.mxu0 %v9499
    %10373 = vmatprep.subr.bf16.mxu0 %v9507
    %10374 = vmatpush1.bf16.msra.mxu0 %v9506
    %10375 = vmatprep.subr.bf16.mxu0 %v9514
    %10376 = vmatpush1.bf16.msra.mxu0 %v9513
    %10377 = vmatprep.mubr.bf16.mxu0 %v7093
    %10378 = vmatmul.mubr.bf16.gmra.mrb[0].mxu0 %v7092
    %v10379 = vpop.f32.mrb[0].mxu0
    %v10380 = vadd.f32 %v10339, %v10379
    %v10381 = vpop.f32.mrb[0].mxu0
    %v10382 = vadd.f32 %v10341, %v10381
    %v10383 = vpop.f32.mrb[0].mxu0
    %v10384 = vpop.f32.mrb[0].mxu0
    %10385 = vdwg.mxu0
    %10386 = vmatprep.subr.bf16.mxu0 %v9521
    %10387 = vmatpush1.bf16.msra.mxu0 %v9520
    %10388 = vmatprep.subr.bf16.mxu0 %v9528
    %10389 = vmatpush1.bf16.msra.mxu0 %v9527
    %10390 = vmatprep.subr.bf16.mxu0 %v9535
    %10391 = vmatpush1.bf16.msra.mxu0 %v9534
    %10392 = vmatprep.subr.bf16.mxu0 %v9542
    %10393 = vmatpush1.bf16.msra.mxu0 %v9541
    %10394 = vmatprep.subr.bf16.mxu0 %v9549
    %10395 = vmatpush1.bf16.msra.mxu0 %v9548
    %10396 = vmatprep.subr.bf16.mxu0 %v9556
    %10397 = vmatpush1.bf16.msra.mxu0 %v9555
    %10398 = vmatprep.subr.bf16.mxu0 %v9563
    %10399 = vmatpush1.bf16.msra.mxu0 %v9562
    %10400 = vmatprep.subr.bf16.mxu0 %v9570
    %10401 = vmatpush1.bf16.msra.mxu0 %v9569
    %10402 = vmatprep.subr.bf16.mxu0 %v9577
    %10403 = vmatpush1.bf16.msra.mxu0 %v9576
    %10404 = vmatprep.subr.bf16.mxu0 %v9584
    %10405 = vmatpush1.bf16.msra.mxu0 %v9583
    %10406 = vmatprep.subr.bf16.mxu0 %v9591
    %10407 = vmatpush1.bf16.msra.mxu0 %v9590
    %10408 = vmatprep.subr.bf16.mxu0 %v9598
    %10409 = vmatpush1.bf16.msra.mxu0 %v9597
    %10410 = vmatprep.subr.bf16.mxu0 %v9605
    %10411 = vmatpush1.bf16.msra.mxu0 %v9604
    %10412 = vmatprep.subr.bf16.mxu0 %v9612
    %10413 = vmatpush1.bf16.msra.mxu0 %v9611
    %10414 = vmatprep.subr.bf16.mxu0 %v9619
    %10415 = vmatpush1.bf16.msra.mxu0 %v9618
    %10416 = vmatprep.subr.bf16.mxu0 %v9626
    %10417 = vmatpush1.bf16.msra.mxu0 %v9625
    %10418 = vmatprep.mubr.bf16.mxu0 %v7095
    %10419 = vmatmul.mubr.bf16.gmra.mrb[0].mxu0 %v7094
    %v10420 = vpop.f32.mrb[0].mxu0
    %v10421 = vadd.f32 %v10380, %v10420
    %v10422 = vpop.f32.mrb[0].mxu0
    %v10423 = vadd.f32 %v10382, %v10422
    %v10424 = vpop.f32.mrb[0].mxu0
    %v10425 = vpop.f32.mrb[0].mxu0
    %10426 = vdwg.mxu0
    %10427 = vmatprep.subr.bf16.mxu0 %v9633
    %10428 = vmatpush1.bf16.msra.mxu0 %v9632
    %10429 = vmatprep.subr.bf16.mxu0 %v9640
    %10430 = vmatpush1.bf16.msra.mxu0 %v9639
    %10431 = vmatprep.subr.bf16.mxu0 %v9647
    %10432 = vmatpush1.bf16.msra.mxu0 %v9646
    %10433 = vmatprep.subr.bf16.mxu0 %v9654
    %10434 = vmatpush1.bf16.msra.mxu0 %v9653
    %10435 = vmatprep.subr.bf16.mxu0 %v9661
    %10436 = vmatpush1.bf16.msra.mxu0 %v9660
    %10437 = vmatprep.subr.bf16.mxu0 %v9668
    %10438 = vmatpush1.bf16.msra.mxu0 %v9667
    %10439 = vmatprep.subr.bf16.mxu0 %v9675
    %10440 = vmatpush1.bf16.msra.mxu0 %v9674
    %10441 = vmatprep.subr.bf16.mxu0 %v9682
    %10442 = vmatpush1.bf16.msra.mxu0 %v9681
    %10443 = vmatprep.subr.bf16.mxu0 %v9689
    %10444 = vmatpush1.bf16.msra.mxu0 %v9688
    %10445 = vmatprep.subr.bf16.mxu0 %v9696
    %10446 = vmatpush1.bf16.msra.mxu0 %v9695
    %10447 = vmatprep.subr.bf16.mxu0 %v9703
    %10448 = vmatpush1.bf16.msra.mxu0 %v9702
    %10449 = vmatprep.subr.bf16.mxu0 %v9710
    %10450 = vmatpush1.bf16.msra.mxu0 %v9709
    %10451 = vmatprep.subr.bf16.mxu0 %v9717
    %10452 = vmatpush1.bf16.msra.mxu0 %v9716
    %10453 = vmatprep.subr.bf16.mxu0 %v9724
    %10454 = vmatpush1.bf16.msra.mxu0 %v9723
    %10455 = vmatprep.subr.bf16.mxu0 %v9731
    %10456 = vmatpush1.bf16.msra.mxu0 %v9730
    %10457 = vmatprep.subr.bf16.mxu0 %v9738
    %10458 = vmatpush1.bf16.msra.mxu0 %v9737
    %10459 = vmatprep.mubr.bf16.mxu0 %v7097
    %10460 = vmatmul.mubr.bf16.gmra.mrb[0].mxu0 %v7096
    %v10461 = vpop.f32.mrb[0].mxu0
    %v10462 = vadd.f32 %v10421, %v10461
    %v10463 = vpop.f32.mrb[0].mxu0
    %v10464 = vadd.f32 %v10423, %v10463
    %v10465 = vpop.f32.mrb[0].mxu0
    %v10466 = vpop.f32.mrb[0].mxu0
    %10467 = vdwg.mxu0
    %10468 = vmatprep.subr.bf16.mxu0 %v9745
    %10469 = vmatpush1.bf16.msra.mxu0 %v9744
    %10470 = vmatprep.subr.bf16.mxu0 %v9752
    %10471 = vmatpush1.bf16.msra.mxu0 %v9751
    %10472 = vmatprep.subr.bf16.mxu0 %v9759
    %10473 = vmatpush1.bf16.msra.mxu0 %v9758
    %10474 = vmatprep.subr.bf16.mxu0 %v9766
    %10475 = vmatpush1.bf16.msra.mxu0 %v9765
    %10476 = vmatprep.subr.bf16.mxu0 %v9773
    %10477 = vmatpush1.bf16.msra.mxu0 %v9772
    %10478 = vmatprep.subr.bf16.mxu0 %v9780
    %10479 = vmatpush1.bf16.msra.mxu0 %v9779
    %10480 = vmatprep.subr.bf16.mxu0 %v9787
    %10481 = vmatpush1.bf16.msra.mxu0 %v9786
    %10482 = vmatprep.subr.bf16.mxu0 %v9794
    %10483 = vmatpush1.bf16.msra.mxu0 %v9793
    %10484 = vmatprep.subr.bf16.mxu0 0
    %10485 = vmatpush1.bf16.msra.mxu0 0
    %10486 = vmatprep.subr.bf16.mxu0 0
    %10487 = vmatpush1.bf16.msra.mxu0 0
    %10488 = vmatprep.subr.bf16.mxu0 0
    %10489 = vmatpush1.bf16.msra.mxu0 0
    %10490 = vmatprep.subr.bf16.mxu0 0
    %10491 = vmatpush1.bf16.msra.mxu0 0
    %10492 = vmatprep.subr.bf16.mxu0 0
    %10493 = vmatpush1.bf16.msra.mxu0 0
    %10494 = vmatprep.subr.bf16.mxu0 0
    %10495 = vmatpush1.bf16.msra.mxu0 0
    %10496 = vmatprep.subr.bf16.mxu0 0
    %10497 = vmatpush1.bf16.msra.mxu0 0
    %10498 = vmatprep.subr.bf16.mxu0 0
    %10499 = vmatpush1.bf16.msra.mxu0 0
    %10500 = vmatprep.mubr.bf16.mxu0 0
    %10501 = vmatmul.mubr.bf16.gmra.mrb[0].mxu0 %v7098
    %v10502 = vpop.f32.mrb[0].mxu0
    %v10503 = vadd.f32 %v10462, %v10502
    %v10504 = vpop.f32.mrb[0].mxu0
    %v10505 = vadd.f32 %v10464, %v10504
    %v10506 = vpop.f32.mrb[0].mxu0
    %v10507 = vpop.f32.mrb[0].mxu0
    %10508 = vdwg.mxu0
    %10509 = vmatprep.subr.bf16.mxu0 %v9299
    %10510 = vmatpush1.bf16.msra.mxu0 %v9298
    %10511 = vmatprep.subr.bf16.mxu0 %v9306
    %10512 = vmatpush1.bf16.msra.mxu0 %v9305
    %10513 = vmatprep.subr.bf16.mxu0 %v9313
    %10514 = vmatpush1.bf16.msra.mxu0 %v9312
    %10515 = vmatprep.subr.bf16.mxu0 %v9320
    %10516 = vmatpush1.bf16.msra.mxu0 %v9319
    %10517 = vmatprep.subr.bf16.mxu0 %v9327
    %10518 = vmatpush1.bf16.msra.mxu0 %v9326
    %10519 = vmatprep.subr.bf16.mxu0 %v9334
    %10520 = vmatpush1.bf16.msra.mxu0 %v9333
    %10521 = vmatprep.subr.bf16.mxu0 %v9341
    %10522 = vmatpush1.bf16.msra.mxu0 %v9340
    %10523 = vmatprep.subr.bf16.mxu0 %v9348
    %10524 = vmatpush1.bf16.msra.mxu0 %v9347
    %10525 = vmatprep.subr.bf16.mxu0 %v9355
    %10526 = vmatpush1.bf16.msra.mxu0 %v9354
    %10527 = vmatprep.subr.bf16.mxu0 %v9362
    %10528 = vmatpush1.bf16.msra.mxu0 %v9361
    %10529 = vmatprep.subr.bf16.mxu0 %v9369
    %10530 = vmatpush1.bf16.msra.mxu0 %v9368
    %10531 = vmatprep.subr.bf16.mxu0 %v9376
    %10532 = vmatpush1.bf16.msra.mxu0 %v9375
    %10533 = vmatprep.subr.bf16.mxu0 %v9383
    %10534 = vmatpush1.bf16.msra.mxu0 %v9382
    %10535 = vmatprep.subr.bf16.mxu0 %v9390
    %10536 = vmatpush1.bf16.msra.mxu0 %v9389
    %10537 = vmatprep.subr.bf16.mxu0 %v9397
    %10538 = vmatpush1.bf16.msra.mxu0 %v9396
    %10539 = vmatprep.subr.bf16.mxu0 %v9404
    %10540 = vmatpush1.bf16.msra.mxu0 %v9403
    %10541 = vmatprep.mubr.bf16.mxu0 %v7091
    %10542 = vmatmul.mubr.bf16.gmra.mrb[0].mxu0 %v7090
    %v10543 = vpop.f32.mrb[0].mxu0
    %v10544 = vadd.f32 %v7688, %v10543
    %v10545 = vpop.f32.mrb[0].mxu0
    %v10546 = vadd.f32 %v7692, %v10545
    %v10547 = vpop.f32.mrb[0].mxu0
    %v10548 = vpop.f32.mrb[0].mxu0
    %10549 = vdwg.mxu0
    %10550 = vmatprep.subr.bf16.mxu0 %v9411
    %10551 = vmatpush1.bf16.msra.mxu0 %v9410
    %10552 = vmatprep.subr.bf16.mxu0 %v9418
    %10553 = vmatpush1.bf16.msra.mxu0 %v9417
    %10554 = vmatprep.subr.bf16.mxu0 %v9425
    %10555 = vmatpush1.bf16.msra.mxu0 %v9424
    %10556 = vmatprep.subr.bf16.mxu0 %v9432
    %10557 = vmatpush1.bf16.msra.mxu0 %v9431
    %10558 = vmatprep.subr.bf16.mxu0 %v9439
    %10559 = vmatpush1.bf16.msra.mxu0 %v9438
    %10560 = vmatprep.subr.bf16.mxu0 %v9446
    %10561 = vmatpush1.bf16.msra.mxu0 %v9445
    %10562 = vmatprep.subr.bf16.mxu0 %v9453
    %10563 = vmatpush1.bf16.msra.mxu0 %v9452
    %10564 = vmatprep.subr.bf16.mxu0 %v9460
    %10565 = vmatpush1.bf16.msra.mxu0 %v9459
    %10566 = vmatprep.subr.bf16.mxu0 %v9467
    %10567 = vmatpush1.bf16.msra.mxu0 %v9466
    %10568 = vmatprep.subr.bf16.mxu0 %v9474
    %10569 = vmatpush1.bf16.msra.mxu0 %v9473
    %10570 = vmatprep.subr.bf16.mxu0 %v9481
    %10571 = vmatpush1.bf16.msra.mxu0 %v9480
    %10572 = vmatprep.subr.bf16.mxu0 %v9488
    %10573 = vmatpush1.bf16.msra.mxu0 %v9487
    %10574 = vmatprep.subr.bf16.mxu0 %v9495
    %10575 = vmatpush1.bf16.msra.mxu0 %v9494
    %10576 = vmatprep.subr.bf16.mxu0 %v9502
    %10577 = vmatpush1.bf16.msra.mxu0 %v9501
    %10578 = vmatprep.subr.bf16.mxu0 %v9509
    %10579 = vmatpush1.bf16.msra.mxu0 %v9508
    %10580 = vmatprep.subr.bf16.mxu0 %v9516
    %10581 = vmatpush1.bf16.msra.mxu0 %v9515
    %10582 = vmatprep.mubr.bf16.mxu0 %v7093
    %10583 = vmatmul.mubr.bf16.gmra.mrb[0].mxu0 %v7092
    %v10584 = vpop.f32.mrb[0].mxu0
    %v10585 = vadd.f32 %v10544, %v10584
    %v10586 = vpop.f32.mrb[0].mxu0
    %v10587 = vadd.f32 %v10546, %v10586
    %v10588 = vpop.f32.mrb[0].mxu0
    %v10589 = vpop.f32.mrb[0].mxu0
    %10590 = vdwg.mxu0
    %10591 = vmatprep.subr.bf16.mxu0 %v9523
    %10592 = vmatpush1.bf16.msra.mxu0 %v9522
    %10593 = vmatprep.subr.bf16.mxu0 %v9530
    %10594 = vmatpush1.bf16.msra.mxu0 %v9529
    %10595 = vmatprep.subr.bf16.mxu0 %v9537
    %10596 = vmatpush1.bf16.msra.mxu0 %v9536
    %10597 = vmatprep.subr.bf16.mxu0 %v9544
    %10598 = vmatpush1.bf16.msra.mxu0 %v9543
    %10599 = vmatprep.subr.bf16.mxu0 %v9551
    %10600 = vmatpush1.bf16.msra.mxu0 %v9550
    %10601 = vmatprep.subr.bf16.mxu0 %v9558
    %10602 = vmatpush1.bf16.msra.mxu0 %v9557
    %10603 = vmatprep.subr.bf16.mxu0 %v9565
    %10604 = vmatpush1.bf16.msra.mxu0 %v9564
    %10605 = vmatprep.subr.bf16.mxu0 %v9572
    %10606 = vmatpush1.bf16.msra.mxu0 %v9571
    %10607 = vmatprep.subr.bf16.mxu0 %v9579
    %10608 = vmatpush1.bf16.msra.mxu0 %v9578
    %10609 = vmatprep.subr.bf16.mxu0 %v9586
    %10610 = vmatpush1.bf16.msra.mxu0 %v9585
    %10611 = vmatprep.subr.bf16.mxu0 %v9593
    %10612 = vmatpush1.bf16.msra.mxu0 %v9592
    %10613 = vmatprep.subr.bf16.mxu0 %v9600
    %10614 = vmatpush1.bf16.msra.mxu0 %v9599
    %10615 = vmatprep.subr.bf16.mxu0 %v9607
    %10616 = vmatpush1.bf16.msra.mxu0 %v9606
    %10617 = vmatprep.subr.bf16.mxu0 %v9614
    %10618 = vmatpush1.bf16.msra.mxu0 %v9613
    %10619 = vmatprep.subr.bf16.mxu0 %v9621
    %10620 = vmatpush1.bf16.msra.mxu0 %v9620
    %10621 = vmatprep.subr.bf16.mxu0 %v9628
    %10622 = vmatpush1.bf16.msra.mxu0 %v9627
    %10623 = vmatprep.mubr.bf16.mxu0 %v7095
    %10624 = vmatmul.mubr.bf16.gmra.mrb[0].mxu0 %v7094
    %v10625 = vpop.f32.mrb[0].mxu0
    %v10626 = vadd.f32 %v10585, %v10625
    %v10627 = vpop.f32.mrb[0].mxu0
    %v10628 = vadd.f32 %v10587, %v10627
    %v10629 = vpop.f32.mrb[0].mxu0
    %v10630 = vpop.f32.mrb[0].mxu0
    %10631 = vdwg.mxu0
    %10632 = vmatprep.subr.bf16.mxu0 %v9635
    %10633 = vmatpush1.bf16.msra.mxu0 %v9634
    %10634 = vmatprep.subr.bf16.mxu0 %v9642
    %10635 = vmatpush1.bf16.msra.mxu0 %v9641
    %10636 = vmatprep.subr.bf16.mxu0 %v9649
    %10637 = vmatpush1.bf16.msra.mxu0 %v9648
    %10638 = vmatprep.subr.bf16.mxu0 %v9656
    %10639 = vmatpush1.bf16.msra.mxu0 %v9655
    %10640 = vmatprep.subr.bf16.mxu0 %v9663
    %10641 = vmatpush1.bf16.msra.mxu0 %v9662
    %10642 = vmatprep.subr.bf16.mxu0 %v9670
    %10643 = vmatpush1.bf16.msra.mxu0 %v9669
    %10644 = vmatprep.subr.bf16.mxu0 %v9677
    %10645 = vmatpush1.bf16.msra.mxu0 %v9676
    %10646 = vmatprep.subr.bf16.mxu0 %v9684
    %10647 = vmatpush1.bf16.msra.mxu0 %v9683
    %10648 = vmatprep.subr.bf16.mxu0 %v9691
    %10649 = vmatpush1.bf16.msra.mxu0 %v9690
    %10650 = vmatprep.subr.bf16.mxu0 %v9698
    %10651 = vmatpush1.bf16.msra.mxu0 %v9697
    %10652 = vmatprep.subr.bf16.mxu0 %v9705
    %10653 = vmatpush1.bf16.msra.mxu0 %v9704
    %10654 = vmatprep.subr.bf16.mxu0 %v9712
    %10655 = vmatpush1.bf16.msra.mxu0 %v9711
    %10656 = vmatprep.subr.bf16.mxu0 %v9719
    %10657 = vmatpush1.bf16.msra.mxu0 %v9718
    %10658 = vmatprep.subr.bf16.mxu0 %v9726
    %10659 = vmatpush1.bf16.msra.mxu0 %v9725
    %10660 = vmatprep.subr.bf16.mxu0 %v9733
    %10661 = vmatpush1.bf16.msra.mxu0 %v9732
    %10662 = vmatprep.subr.bf16.mxu0 %v9740
    %10663 = vmatpush1.bf16.msra.mxu0 %v9739
    %10664 = vmatprep.mubr.bf16.mxu0 %v7097
    %10665 = vmatmul.mubr.bf16.gmra.mrb[0].mxu0 %v7096
    %v10666 = vpop.f32.mrb[0].mxu0
    %v10667 = vadd.f32 %v10626, %v10666
    %v10668 = vpop.f32.mrb[0].mxu0
    %v10669 = vadd.f32 %v10628, %v10668
    %v10670 = vpop.f32.mrb[0].mxu0
    %v10671 = vpop.f32.mrb[0].mxu0
    %10672 = vdwg.mxu0
    %10673 = vmatprep.subr.bf16.mxu0 %v9747
    %10674 = vmatpush1.bf16.msra.mxu0 %v9746
    %10675 = vmatprep.subr.bf16.mxu0 %v9754
    %10676 = vmatpush1.bf16.msra.mxu0 %v9753
    %10677 = vmatprep.subr.bf16.mxu0 %v9761
    %10678 = vmatpush1.bf16.msra.mxu0 %v9760
    %10679 = vmatprep.subr.bf16.mxu0 %v9768
    %10680 = vmatpush1.bf16.msra.mxu0 %v9767
    %10681 = vmatprep.subr.bf16.mxu0 %v9775
    %10682 = vmatpush1.bf16.msra.mxu0 %v9774
    %10683 = vmatprep.subr.bf16.mxu0 %v9782
    %10684 = vmatpush1.bf16.msra.mxu0 %v9781
    %10685 = vmatprep.subr.bf16.mxu0 %v9789
    %10686 = vmatpush1.bf16.msra.mxu0 %v9788
    %10687 = vmatprep.subr.bf16.mxu0 %v9796
    %10688 = vmatpush1.bf16.msra.mxu0 %v9795
    %10689 = vmatprep.subr.bf16.mxu0 0
    %10690 = vmatpush1.bf16.msra.mxu0 0
    %10691 = vmatprep.subr.bf16.mxu0 0
    %10692 = vmatpush1.bf16.msra.mxu0 0
    %10693 = vmatprep.subr.bf16.mxu0 0
    %10694 = vmatpush1.bf16.msra.mxu0 0
    %10695 = vmatprep.subr.bf16.mxu0 0
    %10696 = vmatpush1.bf16.msra.mxu0 0
    %10697 = vmatprep.subr.bf16.mxu0 0
    %10698 = vmatpush1.bf16.msra.mxu0 0
    %10699 = vmatprep.subr.bf16.mxu0 0
    %10700 = vmatpush1.bf16.msra.mxu0 0
    %10701 = vmatprep.subr.bf16.mxu0 0
    %10702 = vmatpush1.bf16.msra.mxu0 0
    %10703 = vmatprep.subr.bf16.mxu0 0
    %10704 = vmatpush1.bf16.msra.mxu0 0
    %10705 = vmatprep.mubr.bf16.mxu0 0
    %10706 = vmatmul.mubr.bf16.gmra.mrb[0].mxu0 %v7098
    %v10707 = vpop.f32.mrb[0].mxu0
    %v10708 = vadd.f32 %v10667, %v10707
    %v10709 = vpop.f32.mrb[0].mxu0
    %v10710 = vadd.f32 %v10669, %v10709
    %v10711 = vpop.f32.mrb[0].mxu0
    %v10712 = vpop.f32.mrb[0].mxu0
    %10713 = vdwg.mxu0
    %10714 = vmatprep.subr.bf16.mxu0 %v9301
    %10715 = vmatpush1.bf16.msra.mxu0 %v9300
    %10716 = vmatprep.subr.bf16.mxu0 %v9308
    %10717 = vmatpush1.bf16.msra.mxu0 %v9307
    %10718 = vmatprep.subr.bf16.mxu0 %v9315
    %10719 = vmatpush1.bf16.msra.mxu0 %v9314
    %10720 = vmatprep.subr.bf16.mxu0 %v9322
    %10721 = vmatpush1.bf16.msra.mxu0 %v9321
    %10722 = vmatprep.subr.bf16.mxu0 %v9329
    %10723 = vmatpush1.bf16.msra.mxu0 %v9328
    %10724 = vmatprep.subr.bf16.mxu0 %v9336
    %10725 = vmatpush1.bf16.msra.mxu0 %v9335
    %10726 = vmatprep.subr.bf16.mxu0 %v9343
    %10727 = vmatpush1.bf16.msra.mxu0 %v9342
    %10728 = vmatprep.subr.bf16.mxu0 %v9350
    %10729 = vmatpush1.bf16.msra.mxu0 %v9349
    %10730 = vmatprep.subr.bf16.mxu0 %v9357
    %10731 = vmatpush1.bf16.msra.mxu0 %v9356
    %10732 = vmatprep.subr.bf16.mxu0 %v9364
    %10733 = vmatpush1.bf16.msra.mxu0 %v9363
    %10734 = vmatprep.subr.bf16.mxu0 %v9371
    %10735 = vmatpush1.bf16.msra.mxu0 %v9370
    %10736 = vmatprep.subr.bf16.mxu0 %v9378
    %10737 = vmatpush1.bf16.msra.mxu0 %v9377
    %10738 = vmatprep.subr.bf16.mxu0 %v9385
    %10739 = vmatpush1.bf16.msra.mxu0 %v9384
    %10740 = vmatprep.subr.bf16.mxu0 %v9392
    %10741 = vmatpush1.bf16.msra.mxu0 %v9391
    %10742 = vmatprep.subr.bf16.mxu0 %v9399
    %10743 = vmatpush1.bf16.msra.mxu0 %v9398
    %10744 = vmatprep.subr.bf16.mxu0 %v9406
    %10745 = vmatpush1.bf16.msra.mxu0 %v9405
    %10746 = vmatprep.mubr.bf16.mxu0 %v7091
    %10747 = vmatmul.mubr.bf16.gmra.mrb[0].mxu0 %v7090
    %v10748 = vpop.f32.mrb[0].mxu0
    %v10749 = vadd.f32 %v7696, %v10748
    %v10750 = vpop.f32.mrb[0].mxu0
    %v10751 = vadd.f32 %v7700, %v10750
    %v10752 = vpop.f32.mrb[0].mxu0
    %v10753 = vpop.f32.mrb[0].mxu0
    %10754 = vdwg.mxu0
    %10755 = vmatprep.subr.bf16.mxu0 %v9413
    %10756 = vmatpush1.bf16.msra.mxu0 %v9412
    %10757 = vmatprep.subr.bf16.mxu0 %v9420
    %10758 = vmatpush1.bf16.msra.mxu0 %v9419
    %10759 = vmatprep.subr.bf16.mxu0 %v9427
    %10760 = vmatpush1.bf16.msra.mxu0 %v9426
    %10761 = vmatprep.subr.bf16.mxu0 %v9434
    %10762 = vmatpush1.bf16.msra.mxu0 %v9433
    %10763 = vmatprep.subr.bf16.mxu0 %v9441
    %10764 = vmatpush1.bf16.msra.mxu0 %v9440
    %10765 = vmatprep.subr.bf16.mxu0 %v9448
    %10766 = vmatpush1.bf16.msra.mxu0 %v9447
    %10767 = vmatprep.subr.bf16.mxu0 %v9455
    %10768 = vmatpush1.bf16.msra.mxu0 %v9454
    %10769 = vmatprep.subr.bf16.mxu0 %v9462
    %10770 = vmatpush1.bf16.msra.mxu0 %v9461
    %10771 = vmatprep.subr.bf16.mxu0 %v9469
    %10772 = vmatpush1.bf16.msra.mxu0 %v9468
    %10773 = vmatprep.subr.bf16.mxu0 %v9476
    %10774 = vmatpush1.bf16.msra.mxu0 %v9475
    %10775 = vmatprep.subr.bf16.mxu0 %v9483
    %10776 = vmatpush1.bf16.msra.mxu0 %v9482
    %10777 = vmatprep.subr.bf16.mxu0 %v9490
    %10778 = vmatpush1.bf16.msra.mxu0 %v9489
    %10779 = vmatprep.subr.bf16.mxu0 %v9497
    %10780 = vmatpush1.bf16.msra.mxu0 %v9496
    %10781 = vmatprep.subr.bf16.mxu0 %v9504
    %10782 = vmatpush1.bf16.msra.mxu0 %v9503
    %10783 = vmatprep.subr.bf16.mxu0 %v9511
    %10784 = vmatpush1.bf16.msra.mxu0 %v9510
    %10785 = vmatprep.subr.bf16.mxu0 %v9518
    %10786 = vmatpush1.bf16.msra.mxu0 %v9517
    %10787 = vmatprep.mubr.bf16.mxu0 %v7093
    %10788 = vmatmul.mubr.bf16.gmra.mrb[0].mxu0 %v7092
    %v10789 = vpop.f32.mrb[0].mxu0
    %v10790 = vadd.f32 %v10749, %v10789
    %v10791 = vpop.f32.mrb[0].mxu0
    %v10792 = vadd.f32 %v10751, %v10791
    %v10793 = vpop.f32.mrb[0].mxu0
    %v10794 = vpop.f32.mrb[0].mxu0
    %10795 = vdwg.mxu0
    %10796 = vmatprep.subr.bf16.mxu0 %v9525
    %10797 = vmatpush1.bf16.msra.mxu0 %v9524
    %10798 = vmatprep.subr.bf16.mxu0 %v9532
    %10799 = vmatpush1.bf16.msra.mxu0 %v9531
    %10800 = vmatprep.subr.bf16.mxu0 %v9539
    %10801 = vmatpush1.bf16.msra.mxu0 %v9538
    %10802 = vmatprep.subr.bf16.mxu0 %v9546
    %10803 = vmatpush1.bf16.msra.mxu0 %v9545
    %10804 = vmatprep.subr.bf16.mxu0 %v9553
    %10805 = vmatpush1.bf16.msra.mxu0 %v9552
    %10806 = vmatprep.subr.bf16.mxu0 %v9560
    %10807 = vmatpush1.bf16.msra.mxu0 %v9559
    %10808 = vmatprep.subr.bf16.mxu0 %v9567
    %10809 = vmatpush1.bf16.msra.mxu0 %v9566
    %10810 = vmatprep.subr.bf16.mxu0 %v9574
    %10811 = vmatpush1.bf16.msra.mxu0 %v9573
    %10812 = vmatprep.subr.bf16.mxu0 %v9581
    %10813 = vmatpush1.bf16.msra.mxu0 %v9580
    %10814 = vmatprep.subr.bf16.mxu0 %v9588
    %10815 = vmatpush1.bf16.msra.mxu0 %v9587
    %10816 = vmatprep.subr.bf16.mxu0 %v9595
    %10817 = vmatpush1.bf16.msra.mxu0 %v9594
    %10818 = vmatprep.subr.bf16.mxu0 %v9602
    %10819 = vmatpush1.bf16.msra.mxu0 %v9601
    %10820 = vmatprep.subr.bf16.mxu0 %v9609
    %10821 = vmatpush1.bf16.msra.mxu0 %v9608
    %10822 = vmatprep.subr.bf16.mxu0 %v9616
    %10823 = vmatpush1.bf16.msra.mxu0 %v9615
    %10824 = vmatprep.subr.bf16.mxu0 %v9623
    %10825 = vmatpush1.bf16.msra.mxu0 %v9622
    %10826 = vmatprep.subr.bf16.mxu0 %v9630
    %10827 = vmatpush1.bf16.msra.mxu0 %v9629
    %10828 = vmatprep.mubr.bf16.mxu0 %v7095
    %10829 = vmatmul.mubr.bf16.gmra.mrb[0].mxu0 %v7094
    %v10830 = vpop.f32.mrb[0].mxu0
    %v10831 = vadd.f32 %v10790, %v10830
    %v10832 = vpop.f32.mrb[0].mxu0
    %v10833 = vadd.f32 %v10792, %v10832
    %v10834 = vpop.f32.mrb[0].mxu0
    %v10835 = vpop.f32.mrb[0].mxu0
    %10836 = vdwg.mxu0
    %10837 = vmatprep.subr.bf16.mxu0 %v9637
    %10838 = vmatpush1.bf16.msra.mxu0 %v9636
    %10839 = vmatprep.subr.bf16.mxu0 %v9644
    %10840 = vmatpush1.bf16.msra.mxu0 %v9643
    %10841 = vmatprep.subr.bf16.mxu0 %v9651
    %10842 = vmatpush1.bf16.msra.mxu0 %v9650
    %10843 = vmatprep.subr.bf16.mxu0 %v9658
    %10844 = vmatpush1.bf16.msra.mxu0 %v9657
    %10845 = vmatprep.subr.bf16.mxu0 %v9665
    %10846 = vmatpush1.bf16.msra.mxu0 %v9664
    %10847 = vmatprep.subr.bf16.mxu0 %v9672
    %10848 = vmatpush1.bf16.msra.mxu0 %v9671
    %10849 = vmatprep.subr.bf16.mxu0 %v9679
    %10850 = vmatpush1.bf16.msra.mxu0 %v9678
    %10851 = vmatprep.subr.bf16.mxu0 %v9686
    %10852 = vmatpush1.bf16.msra.mxu0 %v9685
    %10853 = vmatprep.subr.bf16.mxu0 %v9693
    %10854 = vmatpush1.bf16.msra.mxu0 %v9692
    %10855 = vmatprep.subr.bf16.mxu0 %v9700
    %10856 = vmatpush1.bf16.msra.mxu0 %v9699
    %10857 = vmatprep.subr.bf16.mxu0 %v9707
    %10858 = vmatpush1.bf16.msra.mxu0 %v9706
    %10859 = vmatprep.subr.bf16.mxu0 %v9714
    %10860 = vmatpush1.bf16.msra.mxu0 %v9713
    %10861 = vmatprep.subr.bf16.mxu0 %v9721
    %10862 = vmatpush1.bf16.msra.mxu0 %v9720
    %10863 = vmatprep.subr.bf16.mxu0 %v9728
    %10864 = vmatpush1.bf16.msra.mxu0 %v9727
    %10865 = vmatprep.subr.bf16.mxu0 %v9735
    %10866 = vmatpush1.bf16.msra.mxu0 %v9734
    %10867 = vmatprep.subr.bf16.mxu0 %v9742
    %10868 = vmatpush1.bf16.msra.mxu0 %v9741
    %10869 = vmatprep.mubr.bf16.mxu0 %v7097
    %10870 = vmatmul.mubr.bf16.gmra.mrb[0].mxu0 %v7096
    %v10871 = vpop.f32.mrb[0].mxu0
    %v10872 = vadd.f32 %v10831, %v10871
    %v10873 = vpop.f32.mrb[0].mxu0
    %v10874 = vadd.f32 %v10833, %v10873
    %v10875 = vpop.f32.mrb[0].mxu0
    %v10876 = vpop.f32.mrb[0].mxu0
    %10877 = vdwg.mxu0
    %10878 = vmatprep.subr.bf16.mxu0 %v9749
    %10879 = vmatpush1.bf16.msra.mxu0 %v9748
    %10880 = vmatprep.subr.bf16.mxu0 %v9756
    %10881 = vmatpush1.bf16.msra.mxu0 %v9755
    %10882 = vmatprep.subr.bf16.mxu0 %v9763
    %10883 = vmatpush1.bf16.msra.mxu0 %v9762
    %10884 = vmatprep.subr.bf16.mxu0 %v9770
    %10885 = vmatpush1.bf16.msra.mxu0 %v9769
    %10886 = vmatprep.subr.bf16.mxu0 %v9777
    %10887 = vmatpush1.bf16.msra.mxu0 %v9776
    %10888 = vmatprep.subr.bf16.mxu0 %v9784
    %10889 = vmatpush1.bf16.msra.mxu0 %v9783
    %10890 = vmatprep.subr.bf16.mxu0 %v9791
    %10891 = vmatpush1.bf16.msra.mxu0 %v9790
    %10892 = vmatprep.subr.bf16.mxu0 %v9798
    %10893 = vmatpush1.bf16.msra.mxu0 %v9797
    %10894 = vmatprep.subr.bf16.mxu0 0
    %10895 = vmatpush1.bf16.msra.mxu0 0
    %10896 = vmatprep.subr.bf16.mxu0 0
    %10897 = vmatpush1.bf16.msra.mxu0 0
    %10898 = vmatprep.subr.bf16.mxu0 0
    %10899 = vmatpush1.bf16.msra.mxu0 0
    %10900 = vmatprep.subr.bf16.mxu0 0
    %10901 = vmatpush1.bf16.msra.mxu0 0
    %10902 = vmatprep.subr.bf16.mxu0 0
    %10903 = vmatpush1.bf16.msra.mxu0 0
    %10904 = vmatprep.subr.bf16.mxu0 0
    %10905 = vmatpush1.bf16.msra.mxu0 0
    %10906 = vmatprep.subr.bf16.mxu0 0
    %10907 = vmatpush1.bf16.msra.mxu0 0
    %10908 = vmatprep.subr.bf16.mxu0 0
    %10909 = vmatpush1.bf16.msra.mxu0 0
    %10910 = vmatprep.mubr.bf16.mxu0 0
    %10911 = vmatmul.mubr.bf16.gmra.mrb[0].mxu0 %v7098
    %v10912 = vpop.f32.mrb[0].mxu0
    %v10913 = vadd.f32 %v10872, %v10912
    %v10914 = vpop.f32.mrb[0].mxu0
    %v10915 = vadd.f32 %v10874, %v10914
    %v10916 = vpop.f32.mrb[0].mxu0
    %v10917 = vpop.f32.mrb[0].mxu0
    %10918 = vdwg.mxu0
    %10919 = vmatprep.subr.bf16.mxu0 0
    %10920 = vmatpush1.bf16.msra.mxu0 %v9302
    %10921 = vmatprep.subr.bf16.mxu0 0
    %10922 = vmatpush1.bf16.msra.mxu0 %v9309
    %10923 = vmatprep.subr.bf16.mxu0 0
    %10924 = vmatpush1.bf16.msra.mxu0 %v9316
    %10925 = vmatprep.subr.bf16.mxu0 0
    %10926 = vmatpush1.bf16.msra.mxu0 %v9323
    %10927 = vmatprep.subr.bf16.mxu0 0
    %10928 = vmatpush1.bf16.msra.mxu0 %v9330
    %10929 = vmatprep.subr.bf16.mxu0 0
    %10930 = vmatpush1.bf16.msra.mxu0 %v9337
    %10931 = vmatprep.subr.bf16.mxu0 0
    %10932 = vmatpush1.bf16.msra.mxu0 %v9344
    %10933 = vmatprep.subr.bf16.mxu0 0
    %10934 = vmatpush1.bf16.msra.mxu0 %v9351
    %10935 = vmatprep.subr.bf16.mxu0 0
    %10936 = vmatpush1.bf16.msra.mxu0 %v9358
    %10937 = vmatprep.subr.bf16.mxu0 0
    %10938 = vmatpush1.bf16.msra.mxu0 %v9365
    %10939 = vmatprep.subr.bf16.mxu0 0
    %10940 = vmatpush1.bf16.msra.mxu0 %v9372
    %10941 = vmatprep.subr.bf16.mxu0 0
    %10942 = vmatpush1.bf16.msra.mxu0 %v9379
    %10943 = vmatprep.subr.bf16.mxu0 0
    %10944 = vmatpush1.bf16.msra.mxu0 %v9386
    %10945 = vmatprep.subr.bf16.mxu0 0
    %10946 = vmatpush1.bf16.msra.mxu0 %v9393
    %10947 = vmatprep.subr.bf16.mxu0 0
    %10948 = vmatpush1.bf16.msra.mxu0 %v9400
    %10949 = vmatprep.subr.bf16.mxu0 0
    %10950 = vmatpush1.bf16.msra.mxu0 %v9407
    %10951 = vmatprep.mubr.bf16.mxu0 %v7091
    %10952 = vmatmul.mubr.bf16.gmra.mrb[0].mxu0 %v7090
    %v10953 = vpop.f32.mrb[0].mxu0
    %v10954 = vadd.f32 %v7704, %v10953
    %v10955 = vpop.f32.mrb[0].mxu0
    %v10956 = vpop.f32.mrb[0].mxu0
    %v10957 = vpop.f32.mrb[0].mxu0
    %10958 = vdwg.mxu0
    %10959 = vmatprep.subr.bf16.mxu0 0
    %10960 = vmatpush1.bf16.msra.mxu0 %v9414
    %10961 = vmatprep.subr.bf16.mxu0 0
    %10962 = vmatpush1.bf16.msra.mxu0 %v9421
    %10963 = vmatprep.subr.bf16.mxu0 0
    %10964 = vmatpush1.bf16.msra.mxu0 %v9428
    %10965 = vmatprep.subr.bf16.mxu0 0
    %10966 = vmatpush1.bf16.msra.mxu0 %v9435
    %10967 = vmatprep.subr.bf16.mxu0 0
    %10968 = vmatpush1.bf16.msra.mxu0 %v9442
    %10969 = vmatprep.subr.bf16.mxu0 0
    %10970 = vmatpush1.bf16.msra.mxu0 %v9449
    %10971 = vmatprep.subr.bf16.mxu0 0
    %10972 = vmatpush1.bf16.msra.mxu0 %v9456
    %10973 = vmatprep.subr.bf16.mxu0 0
    %10974 = vmatpush1.bf16.msra.mxu0 %v9463
    %10975 = vmatprep.subr.bf16.mxu0 0
    %10976 = vmatpush1.bf16.msra.mxu0 %v9470
    %10977 = vmatprep.subr.bf16.mxu0 0
    %10978 = vmatpush1.bf16.msra.mxu0 %v9477
    %10979 = vmatprep.subr.bf16.mxu0 0
    %10980 = vmatpush1.bf16.msra.mxu0 %v9484
    %10981 = vmatprep.subr.bf16.mxu0 0
    %10982 = vmatpush1.bf16.msra.mxu0 %v9491
    %10983 = vmatprep.subr.bf16.mxu0 0
    %10984 = vmatpush1.bf16.msra.mxu0 %v9498
    %10985 = vmatprep.subr.bf16.mxu0 0
    %10986 = vmatpush1.bf16.msra.mxu0 %v9505
    %10987 = vmatprep.subr.bf16.mxu0 0
    %10988 = vmatpush1.bf16.msra.mxu0 %v9512
    %10989 = vmatprep.subr.bf16.mxu0 0
    %10990 = vmatpush1.bf16.msra.mxu0 %v9519
    %10991 = vmatprep.mubr.bf16.mxu0 %v7093
    %10992 = vmatmul.mubr.bf16.gmra.mrb[0].mxu0 %v7092
    %v10993 = vpop.f32.mrb[0].mxu0
    %v10994 = vadd.f32 %v10954, %v10993
    %v10995 = vpop.f32.mrb[0].mxu0
    %v10996 = vpop.f32.mrb[0].mxu0
    %v10997 = vpop.f32.mrb[0].mxu0
    %10998 = vdwg.mxu0
    %10999 = vmatprep.subr.bf16.mxu0 0
    %11000 = vmatpush1.bf16.msra.mxu0 %v9526
    %11001 = vmatprep.subr.bf16.mxu0 0
    %11002 = vmatpush1.bf16.msra.mxu0 %v9533
    %11003 = vmatprep.subr.bf16.mxu0 0
    %11004 = vmatpush1.bf16.msra.mxu0 %v9540
    %11005 = vmatprep.subr.bf16.mxu0 0
    %11006 = vmatpush1.bf16.msra.mxu0 %v9547
    %11007 = vmatprep.subr.bf16.mxu0 0
    %11008 = vmatpush1.bf16.msra.mxu0 %v9554
    %11009 = vmatprep.subr.bf16.mxu0 0
    %11010 = vmatpush1.bf16.msra.mxu0 %v9561
    %11011 = vmatprep.subr.bf16.mxu0 0
    %11012 = vmatpush1.bf16.msra.mxu0 %v9568
    %11013 = vmatprep.subr.bf16.mxu0 0
    %11014 = vmatpush1.bf16.msra.mxu0 %v9575
    %11015 = vmatprep.subr.bf16.mxu0 0
    %11016 = vmatpush1.bf16.msra.mxu0 %v9582
    %11017 = vmatprep.subr.bf16.mxu0 0
    %11018 = vmatpush1.bf16.msra.mxu0 %v9589
    %11019 = vmatprep.subr.bf16.mxu0 0
    %11020 = vmatpush1.bf16.msra.mxu0 %v9596
    %11021 = vmatprep.subr.bf16.mxu0 0
    %11022 = vmatpush1.bf16.msra.mxu0 %v9603
    %11023 = vmatprep.subr.bf16.mxu0 0
    %11024 = vmatpush1.bf16.msra.mxu0 %v9610
    %11025 = vmatprep.subr.bf16.mxu0 0
    %11026 = vmatpush1.bf16.msra.mxu0 %v9617
    %11027 = vmatprep.subr.bf16.mxu0 0
    %11028 = vmatpush1.bf16.msra.mxu0 %v9624
    %11029 = vmatprep.subr.bf16.mxu0 0
    %11030 = vmatpush1.bf16.msra.mxu0 %v9631
    %11031 = vmatprep.mubr.bf16.mxu0 %v7095
    %11032 = vmatmul.mubr.bf16.gmra.mrb[0].mxu0 %v7094
    %v11033 = vpop.f32.mrb[0].mxu0
    %v11034 = vadd.f32 %v10994, %v11033
    %v11035 = vpop.f32.mrb[0].mxu0
    %v11036 = vpop.f32.mrb[0].mxu0
    %v11037 = vpop.f32.mrb[0].mxu0
    %11038 = vdwg.mxu0
    %11039 = vmatprep.subr.bf16.mxu0 0
    %11040 = vmatpush1.bf16.msra.mxu0 %v9638
    %11041 = vmatprep.subr.bf16.mxu0 0
    %11042 = vmatpush1.bf16.msra.mxu0 %v9645
    %11043 = vmatprep.subr.bf16.mxu0 0
    %11044 = vmatpush1.bf16.msra.mxu0 %v9652
    %11045 = vmatprep.subr.bf16.mxu0 0
    %11046 = vmatpush1.bf16.msra.mxu0 %v9659
    %11047 = vmatprep.subr.bf16.mxu0 0
    %11048 = vmatpush1.bf16.msra.mxu0 %v9666
    %11049 = vmatprep.subr.bf16.mxu0 0
    %11050 = vmatpush1.bf16.msra.mxu0 %v9673
    %11051 = vmatprep.subr.bf16.mxu0 0
    %11052 = vmatpush1.bf16.msra.mxu0 %v9680
    %11053 = vmatprep.subr.bf16.mxu0 0
    %11054 = vmatpush1.bf16.msra.mxu0 %v9687
    %11055 = vmatprep.subr.bf16.mxu0 0
    %11056 = vmatpush1.bf16.msra.mxu0 %v9694
    %11057 = vmatprep.subr.bf16.mxu0 0
    %11058 = vmatpush1.bf16.msra.mxu0 %v9701
    %11059 = vmatprep.subr.bf16.mxu0 0
    %11060 = vmatpush1.bf16.msra.mxu0 %v9708
    %11061 = vmatprep.subr.bf16.mxu0 0
    %11062 = vmatpush1.bf16.msra.mxu0 %v9715
    %11063 = vmatprep.subr.bf16.mxu0 0
    %11064 = vmatpush1.bf16.msra.mxu0 %v9722
    %11065 = vmatprep.subr.bf16.mxu0 0
    %11066 = vmatpush1.bf16.msra.mxu0 %v9729
    %11067 = vmatprep.subr.bf16.mxu0 0
    %11068 = vmatpush1.bf16.msra.mxu0 %v9736
    %11069 = vmatprep.subr.bf16.mxu0 0
    %11070 = vmatpush1.bf16.msra.mxu0 %v9743
    %11071 = vmatprep.mubr.bf16.mxu0 %v7097
    %11072 = vmatmul.mubr.bf16.gmra.mrb[0].mxu0 %v7096
    %v11073 = vpop.f32.mrb[0].mxu0
    %v11074 = vadd.f32 %v11034, %v11073
    %v11075 = vpop.f32.mrb[0].mxu0
    %v11076 = vpop.f32.mrb[0].mxu0
    %v11077 = vpop.f32.mrb[0].mxu0
    %11078 = vdwg.mxu0
    %11079 = vmatprep.subr.bf16.mxu0 0
    %11080 = vmatpush1.bf16.msra.mxu0 %v9750
    %11081 = vmatprep.subr.bf16.mxu0 0
    %11082 = vmatpush1.bf16.msra.mxu0 %v9757
    %11083 = vmatprep.subr.bf16.mxu0 0
    %11084 = vmatpush1.bf16.msra.mxu0 %v9764
    %11085 = vmatprep.subr.bf16.mxu0 0
    %11086 = vmatpush1.bf16.msra.mxu0 %v9771
    %11087 = vmatprep.subr.bf16.mxu0 0
    %11088 = vmatpush1.bf16.msra.mxu0 %v9778
    %11089 = vmatprep.subr.bf16.mxu0 0
    %11090 = vmatpush1.bf16.msra.mxu0 %v9785
    %11091 = vmatprep.subr.bf16.mxu0 0
    %11092 = vmatpush1.bf16.msra.mxu0 %v9792
    %11093 = vmatprep.subr.bf16.mxu0 0
    %11094 = vmatpush1.bf16.msra.mxu0 %v9799
    %11095 = vmatprep.subr.bf16.mxu0 0
    %11096 = vmatpush1.bf16.msra.mxu0 0
    %11097 = vmatprep.subr.bf16.mxu0 0
    %11098 = vmatpush1.bf16.msra.mxu0 0
    %11099 = vmatprep.subr.bf16.mxu0 0
    %11100 = vmatpush1.bf16.msra.mxu0 0
    %11101 = vmatprep.subr.bf16.mxu0 0
    %11102 = vmatpush1.bf16.msra.mxu0 0
    %11103 = vmatprep.subr.bf16.mxu0 0
    %11104 = vmatpush1.bf16.msra.mxu0 0
    %11105 = vmatprep.subr.bf16.mxu0 0
    %11106 = vmatpush1.bf16.msra.mxu0 0
    %11107 = vmatprep.subr.bf16.mxu0 0
    %11108 = vmatpush1.bf16.msra.mxu0 0
    %11109 = vmatprep.subr.bf16.mxu0 0
    %11110 = vmatpush1.bf16.msra.mxu0 0
    %11111 = vmatprep.mubr.bf16.mxu0 0
    %11112 = vmatmul.mubr.bf16.gmra.mrb[0].mxu0 %v7098
    %v11113 = vpop.f32.mrb[0].mxu0
    %v11114 = vadd.f32 %v11074, %v11113
    %v11115 = vpop.f32.mrb[0].mxu0
    %v11116 = vpop.f32.mrb[0].mxu0
    %v11117 = vpop.f32.mrb[0].mxu0
    %11118 = vdwg.mxu0
    %v11119 = vmax.f32 %v10503, -30.0
    %v11120 = vmax.f32 %v10505, -30.0
    %v11121 = vmax.f32 %v10708, -30.0
    %v11122 = vmax.f32 %v10710, -30.0
    %v11123 = vmax.f32 %v10913, -30.0
    %v11124 = vmax.f32 %v10915, -30.0
    %v11125 = vmax.f32 %v11114, -30.0
    %v11126 = vmin.f32 %v11119, 30.0
    %v11127 = vmin.f32 %v11120, 30.0
    %v11128 = vmin.f32 %v11121, 30.0
    %v11129 = vmin.f32 %v11122, 30.0
    %v11130 = vmin.f32 %v11123, 30.0
    %v11131 = vmin.f32 %v11124, 30.0
    %v11132 = vmin.f32 %v11125, 30.0
    %v11133 = vsub.f32 0.0, %v11126
    %v11134 = vsub.f32 0.0, %v11127
    %v11135 = vsub.f32 0.0, %v11128
    %v11136 = vsub.f32 0.0, %v11129
    %v11137 = vsub.f32 0.0, %v11130
    %v11138 = vsub.f32 0.0, %v11131
    %v11139 = vsub.f32 0.0, %v11132
    %v11140 = vmul.f32 %v11133, 1.442695
    %v11141 = vpow.pop %v11140
    %v11142 = vmul.f32 %v11134, 1.442695
    %v11143 = vpow.pop %v11142
    %v11144 = vmul.f32 %v11135, 1.442695
    %v11145 = vpow.pop %v11144
    %v11146 = vmul.f32 %v11136, 1.442695
    %v11147 = vpow.pop %v11146
    %v11148 = vmul.f32 %v11137, 1.442695
    %v11149 = vpow.pop %v11148
    %v11150 = vmul.f32 %v11138, 1.442695
    %v11151 = vpow.pop %v11150
    %v11152 = vmul.f32 %v11139, 1.442695
    %v11153 = vpow.pop %v11152
    %v11154 = vadd.f32 %v11141, 1.0
    %v11155 = vadd.f32 %v11143, 1.0
    %v11156 = vadd.f32 %v11145, 1.0
    %v11157 = vadd.f32 %v11147, 1.0
    %v11158 = vadd.f32 %v11149, 1.0
    %v11159 = vadd.f32 %v11151, 1.0
    %v11160 = vadd.f32 %v11153, 1.0
    %v11161 = vrcp.pop %v11154
    %v11162 = vrcp.pop %v11155
    %v11163 = vrcp.pop %v11156
    %v11164 = vrcp.pop %v11157
    %v11165 = vrcp.pop %v11158
    %v11166 = vrcp.pop %v11159
    %v11167 = vrcp.pop %v11160
    %11168 = vst [vmem:[%s17] sm:$0xff] %v11161
    %11169 = vst [vmem:[%s17 + $0x8] sm:$0xff] %v11162
    %11170 = vst [vmem:[%s17 + $0x10] sm:$0xff] %v11163
    %11171 = vst [vmem:[%s17 + $0x18] sm:$0xff] %v11164
    %11172 = vst [vmem:[%s17 + $0x20] sm:$0xff] %v11165
    %11173 = vst [vmem:[%s17 + $0x28] sm:$0xff] %v11166
    %11174 = vst [vmem:[%s17 + $0x30] sm:$0xff] %v11167
    // Predicated region
    $region134: #{autoencoder_forward.1} parent=1 // pred_check
      _
    $region135: #{autoencoder_forward.1} parent=1 // pred_check_branch
      %11176 = sbr.rel (0) target = $region137
    $region136: #{autoencoder_forward.1} parent=1 // pred_region
      _
    $region137: #{autoencoder_forward.1} parent=1 // pred_fallthru
      _
    // Predicated region
    $region138: #{autoencoder_forward.1} parent=1 // pred_check
      _
    $region139: #{autoencoder_forward.1} parent=1 // pred_check_branch
      %11178 = sbr.rel (0) target = $region141
    $region140: #{autoencoder_forward.1} parent=1 // pred_region
      _
    $region141: #{autoencoder_forward.1} parent=1 // pred_fallthru
      _
    %11179 = vsyncpa [#allocation3], 1
    %11180 = vsyncpa [#allocation5], 1
    %11181 = vsyncpa [#allocation8], 1
    %11182 = vsyncpa [#allocation11], 1
    %11183 = vsyncpa [#allocation14], 1
    %11184 = vsyncpa [#allocation17], 1
    %11185 = vsyncpa [#allocation20], 1
    %11186 = vsyncpa [#allocation23], 1
    %11187 = vsyncpa [#allocation26], 1

</llo_original>
